<compile_context>
chip_gen: v6e
topology: v6e:2x2x1
jax: 0.10.0
libtpu: 0.0.40
codegen_flags: <defaults>
</compile_context>

<pallas_src>
import functools

import jax
import jax.numpy as jnp
from jax.experimental import pallas as pl
from jax.experimental.pallas import tpu as pltpu


def _round_up(x, m):
    return (x + m - 1) // m * m


def _pick_tile(extent, unit, max_tile):
    """Tile (multiple of `unit`, <= max_tile) giving >= 2 grid blocks; returns (tile, padded)."""
    nblk = max(2, pl.cdiv(extent, max_tile))
    tile = _round_up(pl.cdiv(extent, nblk), unit)
    return tile, nblk * tile


# ---------------------------------------------------------------------------
# Pallas kernels
# ---------------------------------------------------------------------------
def _conv_pool_kernel(a_ref, halo_ref, w_ref, b_ref, o_ref, xbuf, patches,
                      *, Cp, K, W2, T):
    """Fused conv(K x K, valid) + bias + ReLU + 2x2/2 maxpool on phase-decomposed input.

    a_ref:    (4*Cp, T)    bf16  current window of the phase slab (lanes = n*H2*W2 + p*W2 + q)
    halo_ref: (4*Cp, 128)  bf16  next 128 columns (static shifts reach at most 2*W2+2 < 128)
    w_ref:    (OC, K*K*Cp) bf16  rows ordered (ki, kj, c)
    b_ref:    (OC, 1)      f32
    o_ref:    (OC, T)            pooled output tile (junk at p >= P or q >= Q, sliced off outside)
    """
    # Contiguous haloed window in VMEM: xbuf[:, j] == xph[:, q*T + j].
    xbuf[:, :T] = a_ref[...]
    xbuf[:, T:] = halo_ref[...]

    # In-kernel im2col: one (Cp, T) strip per (pool offset, ki, kj); all offsets static.
    for off, (di, dj) in enumerate(((0, 0), (0, 1), (1, 0), (1, 1))):
        for ki in range(K):
            for kj in range(K):
                ai, bj = di + ki, dj + kj
                ph = (ai % 2) * 2 + (bj % 2)              # which (h, w) phase row-group
                shift = (ai // 2) * W2 + (bj // 2)        # lane shift inside the window
                r = (ki * K + kj) * Cp                    # patch row block for this tap
                patches[r:r + Cp, off * T:(off + 1) * T] = (
                    xbuf[ph * Cp:(ph + 1) * Cp, shift:shift + T])

    # One MXU issue for all 4 pool offsets, f32 accumulation.
    acc = jnp.dot(w_ref[...], patches[...], preferred_element_type=jnp.float32)
    res = acc[:, :T]
    for i in range(1, 4):                                  # 128-aligned lane chunks
        res = jnp.maximum(res, acc[:, i * T:(i + 1) * T])
    # pool(relu(conv + b)) == relu(max_i(conv_i) + b)
    o_ref[...] = jnp.maximum(res + b_ref[...], 0.0).astype(o_ref.dtype)


def _mlp_kernel(x_ref, w1_ref, b1_ref, w2_ref, b2_ref, w3_ref, b3_ref, o_ref):
    # Fused fc1(+ReLU) -> fc2(+ReLU) -> fc3.  Weights (in, out) zero-padded to 128-wide
    # outputs so every dot and the final store are lane-dense.
    h = jnp.dot(x_ref[...], w1_ref[...], preferred_element_type=jnp.float32)
    h = jnp.maximum(h + b1_ref[...], 0.0)
    h = jnp.dot(h, w2_ref[...], preferred_element_type=jnp.float32)
    h = jnp.maximum(h + b2_ref[...], 0.0)
    h = jnp.dot(h, w3_ref[...], preferred_element_type=jnp.float32)
    o_ref[...] = (h + b3_ref[...]).astype(o_ref.dtype)


# ---------------------------------------------------------------------------
# Wrappers (layout plumbing + pallas_call)
# ---------------------------------------------------------------------------
def _phase_decompose(x_cnhw, Cp):
    """(C,N,H,W) -> (4*Cp, N*H2*W2); row (pi*2+pj)*Cp + c holds x[c, n, 2*h2+pi, 2*w2+pj].

    Pure permutation of x (no data amplification); padded channels are zero.
    """
    C, N, H, W = x_cnhw.shape
    H2, W2 = H // 2, W // 2
    xp = x_cnhw.reshape(C, N, H2, 2, W2, 2)
    xp = xp.transpose(3, 5, 0, 1, 2, 4)                 # (pi, pj, c, n, h2, w2)
    if Cp != C:
        xp = jnp.pad(xp, ((0, 0), (0, 0), (0, Cp - C), (0, 0), (0, 0), (0, 0)))
    M = N * H2 * W2
    return xp.reshape(4 * Cp, M), M


def conv_relu_pool(x_cnhw, wmat, bias, out_dtype):
    """Conv2d(K=5, stride 1, valid) + ReLU + MaxPool2d(2, 2), fully fused in one kernel.

    x_cnhw: (C, N, H, W), wmat: (OC, K*K*Cp) bf16, bias: (OC, 1) f32 -> (OC, N, P, Q).
    """
    C, N, H, W = x_cnhw.shape
    OC, KKCp = wmat.shape
    K = 5
    Cp = KKCp // (K * K)
    assert Cp * K * K == KKCp and Cp >= C
    assert H % 2 == 0 and W % 2 == 0 and (H - K + 1) % 2 == 0 and (W - K + 1) % 2 == 0
    H2, W2 = H // 2, W // 2
    P, Q = (H - K + 1) // 2, (W - K + 1) // 2
    HALO = 128
    assert 2 * W2 + 2 <= HALO  # max static lane shift used by the kernel

    xph, M = _phase_decompose(x_cnhw.astype(jnp.bfloat16), Cp)       # (4*Cp, M) bf16
    max_tile = 1024 if OC <= 8 else 512        # keep the f32 (OC, 4*T) dot result off the spill cliff
    T, Mp = _pick_tile(M, 128, max_tile)
    nblk = Mp // T
    xph = jnp.pad(xph, ((0, 0), (0, Mp + T - M)))       # +T: zero halo region for the last tile

    kern = functools.partial(_conv_pool_kernel, Cp=Cp, K=K, W2=W2, T=T)
    out = pl.pallas_call(
        kern,
        out_shape=jax.ShapeDtypeStruct((OC, Mp), out_dtype),
        grid=(nblk,),
        in_specs=[
            pl.BlockSpec((4 * Cp, T), lambda q: (0, q)),
            pl.BlockSpec((4 * Cp, HALO),
                         lambda q: (0, q * (T // HALO) + (T // HALO))),   # next 128 cols
            pl.BlockSpec((OC, KKCp), lambda q: (0, 0)),
            pl.BlockSpec((OC, 1), lambda q: (0, 0)),
        ],
        out_specs=pl.BlockSpec((OC, T), lambda q: (0, q)),
        scratch_shapes=[
            pltpu.VMEM((4 * Cp, T + HALO), jnp.bfloat16),       # haloed input window
            pltpu.VMEM((K * K * Cp, 4 * T), jnp.bfloat16),      # in-kernel im2col block
        ],
        compiler_params=pltpu.CompilerParams(dimension_semantics=("parallel",)),
    )(xph, xph, wmat, bias)

    # Column m = n*H2*W2 + p*W2 + q; valid pooled positions are p < P, q < Q.
    return out[:, :M].reshape(OC, N, H2, W2)[:, :, :P, :Q]


def mlp(x, p):
    """Fused fc1+ReLU, fc2+ReLU, fc3 in a single pallas_call. x: (N, 400) f32 -> (N, 10)."""
    N, D = x.shape
    tile_n, Np = _pick_tile(N, 8, 1024)
    if Np != N:
        x = jnp.pad(x, ((0, Np - N), (0, 0)))
    out_pad = p["fc3_b"].shape[1]            # 128 (zero-padded, lane-dense output)

    out = pl.pallas_call(
        _mlp_kernel,
        out_shape=jax.ShapeDtypeStruct((Np, out_pad), jnp.float32),
        grid=(Np // tile_n,),
        in_specs=[
            pl.BlockSpec((tile_n, D), lambda i: (i, 0)),
            pl.BlockSpec(p["fc1_w"].shape, lambda i: (0, 0)),
            pl.BlockSpec(p["fc1_b"].shape, lambda i: (0, 0)),
            pl.BlockSpec(p["fc2_w"].shape, lambda i: (0, 0)),
            pl.BlockSpec(p["fc2_b"].shape, lambda i: (0, 0)),
            pl.BlockSpec(p["fc3_w"].shape, lambda i: (0, 0)),
            pl.BlockSpec(p["fc3_b"].shape, lambda i: (0, 0)),
        ],
        out_specs=pl.BlockSpec((tile_n, out_pad), lambda i: (i, 0)),
        compiler_params=pltpu.CompilerParams(dimension_semantics=("parallel",)),
    )(x, p["fc1_w"], p["fc1_b"], p["fc2_w"], p["fc2_b"], p["fc3_w"], p["fc3_b"])
    return out[:N, :10]                       # fc3 true width is 10


# ---------------------------------------------------------------------------
# Net.forward
# ---------------------------------------------------------------------------
def net_forward(x, p):
    # x: (N, 3, 32, 32) NCHW (torch layout).
    N = x.shape[0]
    xc = jnp.transpose(x, (1, 0, 2, 3))                                  # (C, N, H, W)
    xc = conv_relu_pool(xc, p["conv1_w"], p["conv1_b"], jnp.bfloat16)    # (6,  N, 14, 14)
    xc = conv_relu_pool(xc, p["conv2_w"], p["conv2_b"], jnp.float32)     # (16, N, 5, 5)
    xf = jnp.transpose(xc, (1, 0, 2, 3)).reshape(N, 16 * 5 * 5)          # torch .view order
    return mlp(xf, p)                                                     # (N, 10)


# ---------------------------------------------------------------------------
# Parameters
# ---------------------------------------------------------------------------
def init_params(key):
    """Torch-layout params with PyTorch-style U(-1/sqrt(fan_in), +1/sqrt(fan_in)) init."""
    def uni(k, shape, fan_in):
        bound = 1.0 / (fan_in ** 0.5)
        return jax.random.uniform(k, shape, jnp.float32, -bound, bound)

    ks = jax.random.split(key, 10)
    return {
        "conv1_w": uni(ks[0], (6, 3, 5, 5), 3 * 25),
        "conv1_b": uni(ks[1], (6,), 3 * 25),
        "conv2_w": uni(ks[2], (16, 6, 5, 5), 6 * 25),
        "conv2_b": uni(ks[3], (16,), 6 * 25),
        "fc1_w": uni(ks[4], (120, 400), 400),   # torch Linear weight is (out, in)
        "fc1_b": uni(ks[5], (120,), 400),
        "fc2_w": uni(ks[6], (84, 120), 120),
        "fc2_b": uni(ks[7], (84,), 120),
        "fc3_w": uni(ks[8], (10, 84), 84),
        "fc3_b": uni(ks[9], (10,), 84),
    }


def _pad_to(a, shape):
    return jnp.pad(a, tuple((0, t - s) for s, t in zip(a.shape, shape)))


def _prep_conv_w(w):
    """Torch (OC, C, K, K) -> bf16 (OC, K*K*Cp) with rows ordered (ki, kj, c), C padded even."""
    OC, C, K, _ = w.shape
    Cp = C + (C % 2)
    wt = jnp.transpose(w, (0, 2, 3, 1))                 # (OC, K, K, C)
    if Cp != C:
        wt = jnp.pad(wt, ((0, 0), (0, 0), (0, 0), (0, Cp - C)))
    return wt.reshape(OC, K * K * Cp).astype(jnp.bfloat16)


def prepare_params(tp):
    """One-time weight layout prep (conv -> bf16 matmul layout, fc -> padded (in, out))."""
    return {
        "conv1_w": _prep_conv_w(tp["conv1_w"]),
        "conv1_b": tp["conv1_b"].reshape(-1, 1).astype(jnp.float32),
        "conv2_w": _prep_conv_w(tp["conv2_w"]),
        "conv2_b": tp["conv2_b"].reshape(-1, 1).astype(jnp.float32),
        "fc1_w": _pad_to(tp["fc1_w"].T, (400, 128)),           # (400, 120) -> (400, 128)
        "fc1_b": _pad_to(tp["fc1_b"].reshape(1, -1), (1, 128)),
        "fc2_w": _pad_to(tp["fc2_w"].T, (128, 128)),           # (120, 84) -> (128, 128)
        "fc2_b": _pad_to(tp["fc2_b"].reshape(1, -1), (1, 128)),
        "fc3_w": _pad_to(tp["fc3_w"].T, (128, 128)),           # (84, 10) -> (128, 128)
        "fc3_b": _pad_to(tp["fc3_b"].reshape(1, -1), (1, 128)),
    }


# ---------------------------------------------------------------------------
# Pure-JAX reference (correctness sanity check)
# ---------------------------------------------------------------------------
def _reference_forward(x, tp):
    def conv(z, w, b):
        y = jax.lax.conv_general_dilated(
            z, w, (1, 1), "VALID", dimension_numbers=("NCHW", "OIHW", "NCHW"))
        return jax.nn.relu(y + b[None, :, None, None])

    def pool(z):
        return jax.lax.reduce_window(
            z, -jnp.inf, jax.lax.max, (1, 1, 2, 2), (1, 1, 2, 2), "VALID")

    y = pool(conv(x, tp["conv1_w"], tp["conv1_b"]))
    y = pool(conv(y, tp["conv2_w"], tp["conv2_b"]))
    y = y.reshape(y.shape[0], -1)
    y = jax.nn.relu(y @ tp["fc1_w"].T + tp["fc1_b"])
    y = jax.nn.relu(y @ tp["fc2_w"].T + tp["fc2_b"])
    return y @ tp["fc3_w"].T + tp["fc3_b"]


if __name__ == "__main__":
    key = jax.random.PRNGKey(0)
    kx, kp = jax.random.split(key)
    # Forward pass implies 32x32 RGB input (LeNet-on-CIFAR): (N, 3, 32, 32)
    x = jax.random.normal(kx, (2, 3, 32, 32), jnp.float32)
    torch_params = init_params(kp)
    params = prepare_params(torch_params)

    out = jax.block_until_ready(jax.jit(net_forward)(x, params))
    assert out.shape == (2, 10) and out.dtype == jnp.float32

    ref = jax.block_until_ready(_reference_forward(x, torch_params))
    assert jnp.allclose(out, ref, rtol=2e-2, atol=2e-2), "mismatch vs pure-JAX reference"

    print("KERNEL_OK")
</pallas_src>

<mosaic_0001>
module attributes {stable_mosaic.version = 11 : i64} {
  func.func @_conv_pool_kernel(%arg0: i32, %arg1: memref<16x256xbf16, #tpu.memory_space<vmem>>, %arg2: memref<16x128xbf16, #tpu.memory_space<vmem>>, %arg3: memref<6x100xbf16, #tpu.memory_space<vmem>>, %arg4: memref<6x1xf32, #tpu.memory_space<vmem>>, %arg5: memref<6x256xbf16, #tpu.memory_space<vmem>>, %arg6: memref<16x384xbf16, #tpu.memory_space<vmem>>, %arg7: memref<100x1024xbf16, #tpu.memory_space<vmem>>) attributes {dimension_semantics = [#tpu.dimension_semantics<parallel>], iteration_bounds = array<i64: 2>, scalar_prefetch = 0 : i64, scratch_operands = 2 : i64, tpu.core_type = #tpu.core_type<tc>, window_params = [{transform_indices = @transform_0, window_bounds = array<i64: 16, 256>}, {transform_indices = @transform_1, window_bounds = array<i64: 16, 128>}, {pipeline_mode = #tpu.pipeline_mode<synchronous>, transform_indices = @transform_2, window_bounds = array<i64: 6, 100>}, {pipeline_mode = #tpu.pipeline_mode<synchronous>, transform_indices = @transform_3, window_bounds = array<i64: 6, 1>}, {transform_indices = @transform_4, window_bounds = array<i64: 6, 256>}]} {
    %c0 = arith.constant 0 : index
    %c0_0 = arith.constant 0 : index
    %0 = vector.load %arg1[%c0, %c0_0] : memref<16x256xbf16, #tpu.memory_space<vmem>>, vector<16x256xbf16>
    %c0_1 = arith.constant 0 : index
    %c0_2 = arith.constant 0 : index
    %1 = vector.load %arg6[%c0_1, %c0_2] : memref<16x384xbf16, #tpu.memory_space<vmem>>, vector<16x256xbf16>
    tpu.vector_store %arg6[%c0_1, %c0_2], %0 {strides = array<i32>} : memref<16x384xbf16, #tpu.memory_space<vmem>>, vector<16x256xbf16>,
    %c0_3 = arith.constant 0 : index
    %c0_4 = arith.constant 0 : index
    %2 = vector.load %arg2[%c0_3, %c0_4] : memref<16x128xbf16, #tpu.memory_space<vmem>>, vector<16x128xbf16>
    %c0_5 = arith.constant 0 : index
    %c256 = arith.constant 256 : index
    %3 = vector.load %arg6[%c0_5, %c256] : memref<16x384xbf16, #tpu.memory_space<vmem>>, vector<16x128xbf16>
    tpu.vector_store %arg6[%c0_5, %c256], %2 {strides = array<i32>} : memref<16x384xbf16, #tpu.memory_space<vmem>>, vector<16x128xbf16>,
    %c0_6 = arith.constant 0 : index
    %c0_7 = arith.constant 0 : index
    %4 = vector.load %arg6[%c0_6, %c0_7] : memref<16x384xbf16, #tpu.memory_space<vmem>>, vector<4x256xbf16>
    %c0_8 = arith.constant 0 : index
    %c0_9 = arith.constant 0 : index
    %5 = vector.load %arg7[%c0_8, %c0_9] : memref<100x1024xbf16, #tpu.memory_space<vmem>>, vector<4x256xbf16>
    tpu.vector_store %arg7[%c0_8, %c0_9], %4 {strides = array<i32>} : memref<100x1024xbf16, #tpu.memory_space<vmem>>, vector<4x256xbf16>,
    %c4 = arith.constant 4 : index
    %c0_10 = arith.constant 0 : index
    %6 = vector.load %arg6[%c4, %c0_10] : memref<16x384xbf16, #tpu.memory_space<vmem>>, vector<4x256xbf16>
    %c4_11 = arith.constant 4 : index
    %c0_12 = arith.constant 0 : index
    %7 = vector.load %arg7[%c4_11, %c0_12] : memref<100x1024xbf16, #tpu.memory_space<vmem>>, vector<4x256xbf16>
    tpu.vector_store %arg7[%c4_11, %c0_12], %6 {strides = array<i32>} : memref<100x1024xbf16, #tpu.memory_space<vmem>>, vector<4x256xbf16>,
    %c0_13 = arith.constant 0 : index
    %c1 = arith.constant 1 : index
    %8 = vector.load %arg6[%c0_13, %c1] : memref<16x384xbf16, #tpu.memory_space<vmem>>, vector<4x256xbf16>
    %c8 = arith.constant 8 : index
    %c0_14 = arith.constant 0 : index
    %9 = vector.load %arg7[%c8, %c0_14] : memref<100x1024xbf16, #tpu.memory_space<vmem>>, vector<4x256xbf16>
    tpu.vector_store %arg7[%c8, %c0_14], %8 {strides = array<i32>} : memref<100x1024xbf16, #tpu.memory_space<vmem>>, vector<4x256xbf16>,
    %c4_15 = arith.constant 4 : index
    %c1_16 = arith.constant 1 : index
    %10 = vector.load %arg6[%c4_15, %c1_16] : memref<16x384xbf16, #tpu.memory_space<vmem>>, vector<4x256xbf16>
    %c12 = arith.constant 12 : index
    %c0_17 = arith.constant 0 : index
    %11 = vector.load %arg7[%c12, %c0_17] : memref<100x1024xbf16, #tpu.memory_space<vmem>>, vector<4x256xbf16>
    tpu.vector_store %arg7[%c12, %c0_17], %10 {strides = array<i32>} : memref<100x1024xbf16, #tpu.memory_space<vmem>>, vector<4x256xbf16>,
    %c0_18 = arith.constant 0 : index
    %c2 = arith.constant 2 : index
    %12 = vector.load %arg6[%c0_18, %c2] : memref<16x384xbf16, #tpu.memory_space<vmem>>, vector<4x256xbf16>
    %c16 = arith.constant 16 : index
    %c0_19 = arith.constant 0 : index
    %13 = vector.load %arg7[%c16, %c0_19] : memref<100x1024xbf16, #tpu.memory_space<vmem>>, vector<4x256xbf16>
    tpu.vector_store %arg7[%c16, %c0_19], %12 {strides = array<i32>} : memref<100x1024xbf16, #tpu.memory_space<vmem>>, vector<4x256xbf16>,
    %c8_20 = arith.constant 8 : index
    %c0_21 = arith.constant 0 : index
    %14 = vector.load %arg6[%c8_20, %c0_21] : memref<16x384xbf16, #tpu.memory_space<vmem>>, vector<4x256xbf16>
    %c20 = arith.constant 20 : index
    %c0_22 = arith.constant 0 : index
    %15 = vector.load %arg7[%c20, %c0_22] : memref<100x1024xbf16, #tpu.memory_space<vmem>>, vector<4x256xbf16>
    tpu.vector_store %arg7[%c20, %c0_22], %14 {strides = array<i32>} : memref<100x1024xbf16, #tpu.memory_space<vmem>>, vector<4x256xbf16>,
    %c12_23 = arith.constant 12 : index
    %c0_24 = arith.constant 0 : index
    %16 = vector.load %arg6[%c12_23, %c0_24] : memref<16x384xbf16, #tpu.memory_space<vmem>>, vector<4x256xbf16>
    %c24 = arith.constant 24 : index
    %c0_25 = arith.constant 0 : index
    %17 = vector.load %arg7[%c24, %c0_25] : memref<100x1024xbf16, #tpu.memory_space<vmem>>, vector<4x256xbf16>
    tpu.vector_store %arg7[%c24, %c0_25], %16 {strides = array<i32>} : memref<100x1024xbf16, #tpu.memory_space<vmem>>, vector<4x256xbf16>,
    %c8_26 = arith.constant 8 : index
    %c1_27 = arith.constant 1 : index
    %18 = vector.load %arg6[%c8_26, %c1_27] : memref<16x384xbf16, #tpu.memory_space<vmem>>, vector<4x256xbf16>
    %c28 = arith.constant 28 : index
    %c0_28 = arith.constant 0 : index
    %19 = vector.load %arg7[%c28, %c0_28] : memref<100x1024xbf16, #tpu.memory_space<vmem>>, vector<4x256xbf16>
    tpu.vector_store %arg7[%c28, %c0_28], %18 {strides = array<i32>} : memref<100x1024xbf16, #tpu.memory_space<vmem>>, vector<4x256xbf16>,
    %c12_29 = arith.constant 12 : index
    %c1_30 = arith.constant 1 : index
    %20 = vector.load %arg6[%c12_29, %c1_30] : memref<16x384xbf16, #tpu.memory_space<vmem>>, vector<4x256xbf16>
    %c32 = arith.constant 32 : index
    %c0_31 = arith.constant 0 : index
    %21 = vector.load %arg7[%c32, %c0_31] : memref<100x1024xbf16, #tpu.memory_space<vmem>>, vector<4x256xbf16>
    tpu.vector_store %arg7[%c32, %c0_31], %20 {strides = array<i32>} : memref<100x1024xbf16, #tpu.memory_space<vmem>>, vector<4x256xbf16>,
    %c8_32 = arith.constant 8 : index
    %c2_33 = arith.constant 2 : index
    %22 = vector.load %arg6[%c8_32, %c2_33] : memref<16x384xbf16, #tpu.memory_space<vmem>>, vector<4x256xbf16>
    %c36 = arith.constant 36 : index
    %c0_34 = arith.constant 0 : index
    %23 = vector.load %arg7[%c36, %c0_34] : memref<100x1024xbf16, #tpu.memory_space<vmem>>, vector<4x256xbf16>
    tpu.vector_store %arg7[%c36, %c0_34], %22 {strides = array<i32>} : memref<100x1024xbf16, #tpu.memory_space<vmem>>, vector<4x256xbf16>,
    %c0_35 = arith.constant 0 : index
    %c16_36 = arith.constant 16 : index
    %24 = vector.load %arg6[%c0_35, %c16_36] : memref<16x384xbf16, #tpu.memory_space<vmem>>, vector<4x256xbf16>
    %c40 = arith.constant 40 : index
    %c0_37 = arith.constant 0 : index
    %25 = vector.load %arg7[%c40, %c0_37] : memref<100x1024xbf16, #tpu.memory_space<vmem>>, vector<4x256xbf16>
    tpu.vector_store %arg7[%c40, %c0_37], %24 {strides = array<i32>} : memref<100x1024xbf16, #tpu.memory_space<vmem>>, vector<4x256xbf16>,
    %c4_38 = arith.constant 4 : index
    %c16_39 = arith.constant 16 : index
    %26 = vector.load %arg6[%c4_38, %c16_39] : memref<16x384xbf16, #tpu.memory_space<vmem>>, vector<4x256xbf16>
    %c44 = arith.constant 44 : index
    %c0_40 = arith.constant 0 : index
    %27 = vector.load %arg7[%c44, %c0_40] : memref<100x1024xbf16, #tpu.memory_space<vmem>>, vector<4x256xbf16>
    tpu.vector_store %arg7[%c44, %c0_40], %26 {strides = array<i32>} : memref<100x1024xbf16, #tpu.memory_space<vmem>>, vector<4x256xbf16>,
    %c0_41 = arith.constant 0 : index
    %c17 = arith.constant 17 : index
    %28 = vector.load %arg6[%c0_41, %c17] : memref<16x384xbf16, #tpu.memory_space<vmem>>, vector<4x256xbf16>
    %c48 = arith.constant 48 : index
    %c0_42 = arith.constant 0 : index
    %29 = vector.load %arg7[%c48, %c0_42] : memref<100x1024xbf16, #tpu.memory_space<vmem>>, vector<4x256xbf16>
    tpu.vector_store %arg7[%c48, %c0_42], %28 {strides = array<i32>} : memref<100x1024xbf16, #tpu.memory_space<vmem>>, vector<4x256xbf16>,
    %c4_43 = arith.constant 4 : index
    %c17_44 = arith.constant 17 : index
    %30 = vector.load %arg6[%c4_43, %c17_44] : memref<16x384xbf16, #tpu.memory_space<vmem>>, vector<4x256xbf16>
    %c52 = arith.constant 52 : index
    %c0_45 = arith.constant 0 : index
    %31 = vector.load %arg7[%c52, %c0_45] : memref<100x1024xbf16, #tpu.memory_space<vmem>>, vector<4x256xbf16>
    tpu.vector_store %arg7[%c52, %c0_45], %30 {strides = array<i32>} : memref<100x1024xbf16, #tpu.memory_space<vmem>>, vector<4x256xbf16>,
    %c0_46 = arith.constant 0 : index
    %c18 = arith.constant 18 : index
    %32 = vector.load %arg6[%c0_46, %c18] : memref<16x384xbf16, #tpu.memory_space<vmem>>, vector<4x256xbf16>
    %c56 = arith.constant 56 : index
    %c0_47 = arith.constant 0 : index
    %33 = vector.load %arg7[%c56, %c0_47] : memref<100x1024xbf16, #tpu.memory_space<vmem>>, vector<4x256xbf16>
    tpu.vector_store %arg7[%c56, %c0_47], %32 {strides = array<i32>} : memref<100x1024xbf16, #tpu.memory_space<vmem>>, vector<4x256xbf16>,
    %c8_48 = arith.constant 8 : index
    %c16_49 = arith.constant 16 : index
    %34 = vector.load %arg6[%c8_48, %c16_49] : memref<16x384xbf16, #tpu.memory_space<vmem>>, vector<4x256xbf16>
    %c60 = arith.constant 60 : index
    %c0_50 = arith.constant 0 : index
    %35 = vector.load %arg7[%c60, %c0_50] : memref<100x1024xbf16, #tpu.memory_space<vmem>>, vector<4x256xbf16>
    tpu.vector_store %arg7[%c60, %c0_50], %34 {strides = array<i32>} : memref<100x1024xbf16, #tpu.memory_space<vmem>>, vector<4x256xbf16>,
    %c12_51 = arith.constant 12 : index
    %c16_52 = arith.constant 16 : index
    %36 = vector.load %arg6[%c12_51, %c16_52] : memref<16x384xbf16, #tpu.memory_space<vmem>>, vector<4x256xbf16>
    %c64 = arith.constant 64 : index
    %c0_53 = arith.constant 0 : index
    %37 = vector.load %arg7[%c64, %c0_53] : memref<100x1024xbf16, #tpu.memory_space<vmem>>, vector<4x256xbf16>
    tpu.vector_store %arg7[%c64, %c0_53], %36 {strides = array<i32>} : memref<100x1024xbf16, #tpu.memory_space<vmem>>, vector<4x256xbf16>,
    %c8_54 = arith.constant 8 : index
    %c17_55 = arith.constant 17 : index
    %38 = vector.load %arg6[%c8_54, %c17_55] : memref<16x384xbf16, #tpu.memory_space<vmem>>, vector<4x256xbf16>
    %c68 = arith.constant 68 : index
    %c0_56 = arith.constant 0 : index
    %39 = vector.load %arg7[%c68, %c0_56] : memref<100x1024xbf16, #tpu.memory_space<vmem>>, vector<4x256xbf16>
    tpu.vector_store %arg7[%c68, %c0_56], %38 {strides = array<i32>} : memref<100x1024xbf16, #tpu.memory_space<vmem>>, vector<4x256xbf16>,
    %c12_57 = arith.constant 12 : index
    %c17_58 = arith.constant 17 : index
    %40 = vector.load %arg6[%c12_57, %c17_58] : memref<16x384xbf16, #tpu.memory_space<vmem>>, vector<4x256xbf16>
    %c72 = arith.constant 72 : index
    %c0_59 = arith.constant 0 : index
    %41 = vector.load %arg7[%c72, %c0_59] : memref<100x1024xbf16, #tpu.memory_space<vmem>>, vector<4x256xbf16>
    tpu.vector_store %arg7[%c72, %c0_59], %40 {strides = array<i32>} : memref<100x1024xbf16, #tpu.memory_space<vmem>>, vector<4x256xbf16>,
    %c8_60 = arith.constant 8 : index
    %c18_61 = arith.constant 18 : index
    %42 = vector.load %arg6[%c8_60, %c18_61] : memref<16x384xbf16, #tpu.memory_space<vmem>>, vector<4x256xbf16>
    %c76 = arith.constant 76 : index
    %c0_62 = arith.constant 0 : index
    %43 = vector.load %arg7[%c76, %c0_62] : memref<100x1024xbf16, #tpu.memory_space<vmem>>, vector<4x256xbf16>
    tpu.vector_store %arg7[%c76, %c0_62], %42 {strides = array<i32>} : memref<100x1024xbf16, #tpu.memory_space<vmem>>, vector<4x256xbf16>,
    %c0_63 = arith.constant 0 : index
    %c32_64 = arith.constant 32 : index
    %44 = vector.load %arg6[%c0_63, %c32_64] : memref<16x384xbf16, #tpu.memory_space<vmem>>, vector<4x256xbf16>
    %c80 = arith.constant 80 : index
    %c0_65 = arith.constant 0 : index
    %45 = vector.load %arg7[%c80, %c0_65] : memref<100x1024xbf16, #tpu.memory_space<vmem>>, vector<4x256xbf16>
    tpu.vector_store %arg7[%c80, %c0_65], %44 {strides = array<i32>} : memref<100x1024xbf16, #tpu.memory_space<vmem>>, vector<4x256xbf16>,
    %c4_66 = arith.constant 4 : index
    %c32_67 = arith.constant 32 : index
    %46 = vector.load %arg6[%c4_66, %c32_67] : memref<16x384xbf16, #tpu.memory_space<vmem>>, vector<4x256xbf16>
    %c84 = arith.constant 84 : index
    %c0_68 = arith.constant 0 : index
    %47 = vector.load %arg7[%c84, %c0_68] : memref<100x1024xbf16, #tpu.memory_space<vmem>>, vector<4x256xbf16>
    tpu.vector_store %arg7[%c84, %c0_68], %46 {strides = array<i32>} : memref<100x1024xbf16, #tpu.memory_space<vmem>>, vector<4x256xbf16>,
    %c0_69 = arith.constant 0 : index
    %c33 = arith.constant 33 : index
    %48 = vector.load %arg6[%c0_69, %c33] : memref<16x384xbf16, #tpu.memory_space<vmem>>, vector<4x256xbf16>
    %c88 = arith.constant 88 : index
    %c0_70 = arith.constant 0 : index
    %49 = vector.load %arg7[%c88, %c0_70] : memref<100x1024xbf16, #tpu.memory_space<vmem>>, vector<4x256xbf16>
    tpu.vector_store %arg7[%c88, %c0_70], %48 {strides = array<i32>} : memref<100x1024xbf16, #tpu.memory_space<vmem>>, vector<4x256xbf16>,
    %c4_71 = arith.constant 4 : index
    %c33_72 = arith.constant 33 : index
    %50 = vector.load %arg6[%c4_71, %c33_72] : memref<16x384xbf16, #tpu.memory_space<vmem>>, vector<4x256xbf16>
    %c92 = arith.constant 92 : index
    %c0_73 = arith.constant 0 : index
    %51 = vector.load %arg7[%c92, %c0_73] : memref<100x1024xbf16, #tpu.memory_space<vmem>>, vector<4x256xbf16>
    tpu.vector_store %arg7[%c92, %c0_73], %50 {strides = array<i32>} : memref<100x1024xbf16, #tpu.memory_space<vmem>>, vector<4x256xbf16>,
    %c0_74 = arith.constant 0 : index
    %c34 = arith.constant 34 : index
    %52 = vector.load %arg6[%c0_74, %c34] : memref<16x384xbf16, #tpu.memory_space<vmem>>, vector<4x256xbf16>
    %c96 = arith.constant 96 : index
    %c0_75 = arith.constant 0 : index
    %53 = vector.load %arg7[%c96, %c0_75] : memref<100x1024xbf16, #tpu.memory_space<vmem>>, vector<4x256xbf16>
    tpu.vector_store %arg7[%c96, %c0_75], %52 {strides = array<i32>} : memref<100x1024xbf16, #tpu.memory_space<vmem>>, vector<4x256xbf16>,
    %c4_76 = arith.constant 4 : index
    %c0_77 = arith.constant 0 : index
    %54 = vector.load %arg6[%c4_76, %c0_77] : memref<16x384xbf16, #tpu.memory_space<vmem>>, vector<4x256xbf16>
    %c0_78 = arith.constant 0 : index
    %c256_79 = arith.constant 256 : index
    %55 = vector.load %arg7[%c0_78, %c256_79] : memref<100x1024xbf16, #tpu.memory_space<vmem>>, vector<4x256xbf16>
    tpu.vector_store %arg7[%c0_78, %c256_79], %54 {strides = array<i32>} : memref<100x1024xbf16, #tpu.memory_space<vmem>>, vector<4x256xbf16>,
    %c0_80 = arith.constant 0 : index
    %c1_81 = arith.constant 1 : index
    %56 = vector.load %arg6[%c0_80, %c1_81] : memref<16x384xbf16, #tpu.memory_space<vmem>>, vector<4x256xbf16>
    %c4_82 = arith.constant 4 : index
    %c256_83 = arith.constant 256 : index
    %57 = vector.load %arg7[%c4_82, %c256_83] : memref<100x1024xbf16, #tpu.memory_space<vmem>>, vector<4x256xbf16>
    tpu.vector_store %arg7[%c4_82, %c256_83], %56 {strides = array<i32>} : memref<100x1024xbf16, #tpu.memory_space<vmem>>, vector<4x256xbf16>,
    %c4_84 = arith.constant 4 : index
    %c1_85 = arith.constant 1 : index
    %58 = vector.load %arg6[%c4_84, %c1_85] : memref<16x384xbf16, #tpu.memory_space<vmem>>, vector<4x256xbf16>
    %c8_86 = arith.constant 8 : index
    %c256_87 = arith.constant 256 : index
    %59 = vector.load %arg7[%c8_86, %c256_87] : memref<100x1024xbf16, #tpu.memory_space<vmem>>, vector<4x256xbf16>
    tpu.vector_store %arg7[%c8_86, %c256_87], %58 {strides = array<i32>} : memref<100x1024xbf16, #tpu.memory_space<vmem>>, vector<4x256xbf16>,
    %c0_88 = arith.constant 0 : index
    %c2_89 = arith.constant 2 : index
    %60 = vector.load %arg6[%c0_88, %c2_89] : memref<16x384xbf16, #tpu.memory_space<vmem>>, vector<4x256xbf16>
    %c12_90 = arith.constant 12 : index
    %c256_91 = arith.constant 256 : index
    %61 = vector.load %arg7[%c12_90, %c256_91] : memref<100x1024xbf16, #tpu.memory_space<vmem>>, vector<4x256xbf16>
    tpu.vector_store %arg7[%c12_90, %c256_91], %60 {strides = array<i32>} : memref<100x1024xbf16, #tpu.memory_space<vmem>>, vector<4x256xbf16>,
    %c4_92 = arith.constant 4 : index
    %c2_93 = arith.constant 2 : index
    %62 = vector.load %arg6[%c4_92, %c2_93] : memref<16x384xbf16, #tpu.memory_space<vmem>>, vector<4x256xbf16>
    %c16_94 = arith.constant 16 : index
    %c256_95 = arith.constant 256 : index
    %63 = vector.load %arg7[%c16_94, %c256_95] : memref<100x1024xbf16, #tpu.memory_space<vmem>>, vector<4x256xbf16>
    tpu.vector_store %arg7[%c16_94, %c256_95], %62 {strides = array<i32>} : memref<100x1024xbf16, #tpu.memory_space<vmem>>, vector<4x256xbf16>,
    %c12_96 = arith.constant 12 : index
    %c0_97 = arith.constant 0 : index
    %64 = vector.load %arg6[%c12_96, %c0_97] : memref<16x384xbf16, #tpu.memory_space<vmem>>, vector<4x256xbf16>
    %c20_98 = arith.constant 20 : index
    %c256_99 = arith.constant 256 : index
    %65 = vector.load %arg7[%c20_98, %c256_99] : memref<100x1024xbf16, #tpu.memory_space<vmem>>, vector<4x256xbf16>
    tpu.vector_store %arg7[%c20_98, %c256_99], %64 {strides = array<i32>} : memref<100x1024xbf16, #tpu.memory_space<vmem>>, vector<4x256xbf16>,
    %c8_100 = arith.constant 8 : index
    %c1_101 = arith.constant 1 : index
    %66 = vector.load %arg6[%c8_100, %c1_101] : memref<16x384xbf16, #tpu.memory_space<vmem>>, vector<4x256xbf16>
    %c24_102 = arith.constant 24 : index
    %c256_103 = arith.constant 256 : index
    %67 = vector.load %arg7[%c24_102, %c256_103] : memref<100x1024xbf16, #tpu.memory_space<vmem>>, vector<4x256xbf16>
    tpu.vector_store %arg7[%c24_102, %c256_103], %66 {strides = array<i32>} : memref<100x1024xbf16, #tpu.memory_space<vmem>>, vector<4x256xbf16>,
    %c12_104 = arith.constant 12 : index
    %c1_105 = arith.constant 1 : index
    %68 = vector.load %arg6[%c12_104, %c1_105] : memref<16x384xbf16, #tpu.memory_space<vmem>>, vector<4x256xbf16>
    %c28_106 = arith.constant 28 : index
    %c256_107 = arith.constant 256 : index
    %69 = vector.load %arg7[%c28_106, %c256_107] : memref<100x1024xbf16, #tpu.memory_space<vmem>>, vector<4x256xbf16>
    tpu.vector_store %arg7[%c28_106, %c256_107], %68 {strides = array<i32>} : memref<100x1024xbf16, #tpu.memory_space<vmem>>, vector<4x256xbf16>,
    %c8_108 = arith.constant 8 : index
    %c2_109 = arith.constant 2 : index
    %70 = vector.load %arg6[%c8_108, %c2_109] : memref<16x384xbf16, #tpu.memory_space<vmem>>, vector<4x256xbf16>
    %c32_110 = arith.constant 32 : index
    %c256_111 = arith.constant 256 : index
    %71 = vector.load %arg7[%c32_110, %c256_111] : memref<100x1024xbf16, #tpu.memory_space<vmem>>, vector<4x256xbf16>
    tpu.vector_store %arg7[%c32_110, %c256_111], %70 {strides = array<i32>} : memref<100x1024xbf16, #tpu.memory_space<vmem>>, vector<4x256xbf16>,
    %c12_112 = arith.constant 12 : index
    %c2_113 = arith.constant 2 : index
    %72 = vector.load %arg6[%c12_112, %c2_113] : memref<16x384xbf16, #tpu.memory_space<vmem>>, vector<4x256xbf16>
    %c36_114 = arith.constant 36 : index
    %c256_115 = arith.constant 256 : index
    %73 = vector.load %arg7[%c36_114, %c256_115] : memref<100x1024xbf16, #tpu.memory_space<vmem>>, vector<4x256xbf16>
    tpu.vector_store %arg7[%c36_114, %c256_115], %72 {strides = array<i32>} : memref<100x1024xbf16, #tpu.memory_space<vmem>>, vector<4x256xbf16>,
    %c4_116 = arith.constant 4 : index
    %c16_117 = arith.constant 16 : index
    %74 = vector.load %arg6[%c4_116, %c16_117] : memref<16x384xbf16, #tpu.memory_space<vmem>>, vector<4x256xbf16>
    %c40_118 = arith.constant 40 : index
    %c256_119 = arith.constant 256 : index
    %75 = vector.load %arg7[%c40_118, %c256_119] : memref<100x1024xbf16, #tpu.memory_space<vmem>>, vector<4x256xbf16>
    tpu.vector_store %arg7[%c40_118, %c256_119], %74 {strides = array<i32>} : memref<100x1024xbf16, #tpu.memory_space<vmem>>, vector<4x256xbf16>,
    %c0_120 = arith.constant 0 : index
    %c17_121 = arith.constant 17 : index
    %76 = vector.load %arg6[%c0_120, %c17_121] : memref<16x384xbf16, #tpu.memory_space<vmem>>, vector<4x256xbf16>
    %c44_122 = arith.constant 44 : index
    %c256_123 = arith.constant 256 : index
    %77 = vector.load %arg7[%c44_122, %c256_123] : memref<100x1024xbf16, #tpu.memory_space<vmem>>, vector<4x256xbf16>
    tpu.vector_store %arg7[%c44_122, %c256_123], %76 {strides = array<i32>} : memref<100x1024xbf16, #tpu.memory_space<vmem>>, vector<4x256xbf16>,
    %c4_124 = arith.constant 4 : index
    %c17_125 = arith.constant 17 : index
    %78 = vector.load %arg6[%c4_124, %c17_125] : memref<16x384xbf16, #tpu.memory_space<vmem>>, vector<4x256xbf16>
    %c48_126 = arith.constant 48 : index
    %c256_127 = arith.constant 256 : index
    %79 = vector.load %arg7[%c48_126, %c256_127] : memref<100x1024xbf16, #tpu.memory_space<vmem>>, vector<4x256xbf16>
    tpu.vector_store %arg7[%c48_126, %c256_127], %78 {strides = array<i32>} : memref<100x1024xbf16, #tpu.memory_space<vmem>>, vector<4x256xbf16>,
    %c0_128 = arith.constant 0 : index
    %c18_129 = arith.constant 18 : index
    %80 = vector.load %arg6[%c0_128, %c18_129] : memref<16x384xbf16, #tpu.memory_space<vmem>>, vector<4x256xbf16>
    %c52_130 = arith.constant 52 : index
    %c256_131 = arith.constant 256 : index
    %81 = vector.load %arg7[%c52_130, %c256_131] : memref<100x1024xbf16, #tpu.memory_space<vmem>>, vector<4x256xbf16>
    tpu.vector_store %arg7[%c52_130, %c256_131], %80 {strides = array<i32>} : memref<100x1024xbf16, #tpu.memory_space<vmem>>, vector<4x256xbf16>,
    %c4_132 = arith.constant 4 : index
    %c18_133 = arith.constant 18 : index
    %82 = vector.load %arg6[%c4_132, %c18_133] : memref<16x384xbf16, #tpu.memory_space<vmem>>, vector<4x256xbf16>
    %c56_134 = arith.constant 56 : index
    %c256_135 = arith.constant 256 : index
    %83 = vector.load %arg7[%c56_134, %c256_135] : memref<100x1024xbf16, #tpu.memory_space<vmem>>, vector<4x256xbf16>
    tpu.vector_store %arg7[%c56_134, %c256_135], %82 {strides = array<i32>} : memref<100x1024xbf16, #tpu.memory_space<vmem>>, vector<4x256xbf16>,
    %c12_136 = arith.constant 12 : index
    %c16_137 = arith.constant 16 : index
    %84 = vector.load %arg6[%c12_136, %c16_137] : memref<16x384xbf16, #tpu.memory_space<vmem>>, vector<4x256xbf16>
    %c60_138 = arith.constant 60 : index
    %c256_139 = arith.constant 256 : index
    %85 = vector.load %arg7[%c60_138, %c256_139] : memref<100x1024xbf16, #tpu.memory_space<vmem>>, vector<4x256xbf16>
    tpu.vector_store %arg7[%c60_138, %c256_139], %84 {strides = array<i32>} : memref<100x1024xbf16, #tpu.memory_space<vmem>>, vector<4x256xbf16>,
    %c8_140 = arith.constant 8 : index
    %c17_141 = arith.constant 17 : index
    %86 = vector.load %arg6[%c8_140, %c17_141] : memref<16x384xbf16, #tpu.memory_space<vmem>>, vector<4x256xbf16>
    %c64_142 = arith.constant 64 : index
    %c256_143 = arith.constant 256 : index
    %87 = vector.load %arg7[%c64_142, %c256_143] : memref<100x1024xbf16, #tpu.memory_space<vmem>>, vector<4x256xbf16>
    tpu.vector_store %arg7[%c64_142, %c256_143], %86 {strides = array<i32>} : memref<100x1024xbf16, #tpu.memory_space<vmem>>, vector<4x256xbf16>,
    %c12_144 = arith.constant 12 : index
    %c17_145 = arith.constant 17 : index
    %88 = vector.load %arg6[%c12_144, %c17_145] : memref<16x384xbf16, #tpu.memory_space<vmem>>, vector<4x256xbf16>
    %c68_146 = arith.constant 68 : index
    %c256_147 = arith.constant 256 : index
    %89 = vector.load %arg7[%c68_146, %c256_147] : memref<100x1024xbf16, #tpu.memory_space<vmem>>, vector<4x256xbf16>
    tpu.vector_store %arg7[%c68_146, %c256_147], %88 {strides = array<i32>} : memref<100x1024xbf16, #tpu.memory_space<vmem>>, vector<4x256xbf16>,
    %c8_148 = arith.constant 8 : index
    %c18_149 = arith.constant 18 : index
    %90 = vector.load %arg6[%c8_148, %c18_149] : memref<16x384xbf16, #tpu.memory_space<vmem>>, vector<4x256xbf16>
    %c72_150 = arith.constant 72 : index
    %c256_151 = arith.constant 256 : index
    %91 = vector.load %arg7[%c72_150, %c256_151] : memref<100x1024xbf16, #tpu.memory_space<vmem>>, vector<4x256xbf16>
    tpu.vector_store %arg7[%c72_150, %c256_151], %90 {strides = array<i32>} : memref<100x1024xbf16, #tpu.memory_space<vmem>>, vector<4x256xbf16>,
    %c12_152 = arith.constant 12 : index
    %c18_153 = arith.constant 18 : index
    %92 = vector.load %arg6[%c12_152, %c18_153] : memref<16x384xbf16, #tpu.memory_space<vmem>>, vector<4x256xbf16>
    %c76_154 = arith.constant 76 : index
    %c256_155 = arith.constant 256 : index
    %93 = vector.load %arg7[%c76_154, %c256_155] : memref<100x1024xbf16, #tpu.memory_space<vmem>>, vector<4x256xbf16>
    tpu.vector_store %arg7[%c76_154, %c256_155], %92 {strides = array<i32>} : memref<100x1024xbf16, #tpu.memory_space<vmem>>, vector<4x256xbf16>,
    %c4_156 = arith.constant 4 : index
    %c32_157 = arith.constant 32 : index
    %94 = vector.load %arg6[%c4_156, %c32_157] : memref<16x384xbf16, #tpu.memory_space<vmem>>, vector<4x256xbf16>
    %c80_158 = arith.constant 80 : index
    %c256_159 = arith.constant 256 : index
    %95 = vector.load %arg7[%c80_158, %c256_159] : memref<100x1024xbf16, #tpu.memory_space<vmem>>, vector<4x256xbf16>
    tpu.vector_store %arg7[%c80_158, %c256_159], %94 {strides = array<i32>} : memref<100x1024xbf16, #tpu.memory_space<vmem>>, vector<4x256xbf16>,
    %c0_160 = arith.constant 0 : index
    %c33_161 = arith.constant 33 : index
    %96 = vector.load %arg6[%c0_160, %c33_161] : memref<16x384xbf16, #tpu.memory_space<vmem>>, vector<4x256xbf16>
    %c84_162 = arith.constant 84 : index
    %c256_163 = arith.constant 256 : index
    %97 = vector.load %arg7[%c84_162, %c256_163] : memref<100x1024xbf16, #tpu.memory_space<vmem>>, vector<4x256xbf16>
    tpu.vector_store %arg7[%c84_162, %c256_163], %96 {strides = array<i32>} : memref<100x1024xbf16, #tpu.memory_space<vmem>>, vector<4x256xbf16>,
    %c4_164 = arith.constant 4 : index
    %c33_165 = arith.constant 33 : index
    %98 = vector.load %arg6[%c4_164, %c33_165] : memref<16x384xbf16, #tpu.memory_space<vmem>>, vector<4x256xbf16>
    %c88_166 = arith.constant 88 : index
    %c256_167 = arith.constant 256 : index
    %99 = vector.load %arg7[%c88_166, %c256_167] : memref<100x1024xbf16, #tpu.memory_space<vmem>>, vector<4x256xbf16>
    tpu.vector_store %arg7[%c88_166, %c256_167], %98 {strides = array<i32>} : memref<100x1024xbf16, #tpu.memory_space<vmem>>, vector<4x256xbf16>,
    %c0_168 = arith.constant 0 : index
    %c34_169 = arith.constant 34 : index
    %100 = vector.load %arg6[%c0_168, %c34_169] : memref<16x384xbf16, #tpu.memory_space<vmem>>, vector<4x256xbf16>
    %c92_170 = arith.constant 92 : index
    %c256_171 = arith.constant 256 : index
    %101 = vector.load %arg7[%c92_170, %c256_171] : memref<100x1024xbf16, #tpu.memory_space<vmem>>, vector<4x256xbf16>
    tpu.vector_store %arg7[%c92_170, %c256_171], %100 {strides = array<i32>} : memref<100x1024xbf16, #tpu.memory_space<vmem>>, vector<4x256xbf16>,
    %c4_172 = arith.constant 4 : index
    %c34_173 = arith.constant 34 : index
    %102 = vector.load %arg6[%c4_172, %c34_173] : memref<16x384xbf16, #tpu.memory_space<vmem>>, vector<4x256xbf16>
    %c96_174 = arith.constant 96 : index
    %c256_175 = arith.constant 256 : index
    %103 = vector.load %arg7[%c96_174, %c256_175] : memref<100x1024xbf16, #tpu.memory_space<vmem>>, vector<4x256xbf16>
    tpu.vector_store %arg7[%c96_174, %c256_175], %102 {strides = array<i32>} : memref<100x1024xbf16, #tpu.memory_space<vmem>>, vector<4x256xbf16>,
    %c8_176 = arith.constant 8 : index
    %c0_177 = arith.constant 0 : index
    %104 = vector.load %arg6[%c8_176, %c0_177] : memref<16x384xbf16, #tpu.memory_space<vmem>>, vector<4x256xbf16>
    %c0_178 = arith.constant 0 : index
    %c512 = arith.constant 512 : index
    %105 = vector.load %arg7[%c0_178, %c512] : memref<100x1024xbf16, #tpu.memory_space<vmem>>, vector<4x256xbf16>
    tpu.vector_store %arg7[%c0_178, %c512], %104 {strides = array<i32>} : memref<100x1024xbf16, #tpu.memory_space<vmem>>, vector<4x256xbf16>,
    %c12_179 = arith.constant 12 : index
    %c0_180 = arith.constant 0 : index
    %106 = vector.load %arg6[%c12_179, %c0_180] : memref<16x384xbf16, #tpu.memory_space<vmem>>, vector<4x256xbf16>
    %c4_181 = arith.constant 4 : index
    %c512_182 = arith.constant 512 : index
    %107 = vector.load %arg7[%c4_181, %c512_182] : memref<100x1024xbf16, #tpu.memory_space<vmem>>, vector<4x256xbf16>
    tpu.vector_store %arg7[%c4_181, %c512_182], %106 {strides = array<i32>} : memref<100x1024xbf16, #tpu.memory_space<vmem>>, vector<4x256xbf16>,
    %c8_183 = arith.constant 8 : index
    %c1_184 = arith.constant 1 : index
    %108 = vector.load %arg6[%c8_183, %c1_184] : memref<16x384xbf16, #tpu.memory_space<vmem>>, vector<4x256xbf16>
    %c8_185 = arith.constant 8 : index
    %c512_186 = arith.constant 512 : index
    %109 = vector.load %arg7[%c8_185, %c512_186] : memref<100x1024xbf16, #tpu.memory_space<vmem>>, vector<4x256xbf16>
    tpu.vector_store %arg7[%c8_185, %c512_186], %108 {strides = array<i32>} : memref<100x1024xbf16, #tpu.memory_space<vmem>>, vector<4x256xbf16>,
    %c12_187 = arith.constant 12 : index
    %c1_188 = arith.constant 1 : index
    %110 = vector.load %arg6[%c12_187, %c1_188] : memref<16x384xbf16, #tpu.memory_space<vmem>>, vector<4x256xbf16>
    %c12_189 = arith.constant 12 : index
    %c512_190 = arith.constant 512 : index
    %111 = vector.load %arg7[%c12_189, %c512_190] : memref<100x1024xbf16, #tpu.memory_space<vmem>>, vector<4x256xbf16>
    tpu.vector_store %arg7[%c12_189, %c512_190], %110 {strides = array<i32>} : memref<100x1024xbf16, #tpu.memory_space<vmem>>, vector<4x256xbf16>,
    %c8_191 = arith.constant 8 : index
    %c2_192 = arith.constant 2 : index
    %112 = vector.load %arg6[%c8_191, %c2_192] : memref<16x384xbf16, #tpu.memory_space<vmem>>, vector<4x256xbf16>
    %c16_193 = arith.constant 16 : index
    %c512_194 = arith.constant 512 : index
    %113 = vector.load %arg7[%c16_193, %c512_194] : memref<100x1024xbf16, #tpu.memory_space<vmem>>, vector<4x256xbf16>
    tpu.vector_store %arg7[%c16_193, %c512_194], %112 {strides = array<i32>} : memref<100x1024xbf16, #tpu.memory_space<vmem>>, vector<4x256xbf16>,
    %c0_195 = arith.constant 0 : index
    %c16_196 = arith.constant 16 : index
    %114 = vector.load %arg6[%c0_195, %c16_196] : memref<16x384xbf16, #tpu.memory_space<vmem>>, vector<4x256xbf16>
    %c20_197 = arith.constant 20 : index
    %c512_198 = arith.constant 512 : index
    %115 = vector.load %arg7[%c20_197, %c512_198] : memref<100x1024xbf16, #tpu.memory_space<vmem>>, vector<4x256xbf16>
    tpu.vector_store %arg7[%c20_197, %c512_198], %114 {strides = array<i32>} : memref<100x1024xbf16, #tpu.memory_space<vmem>>, vector<4x256xbf16>,
    %c4_199 = arith.constant 4 : index
    %c16_200 = arith.constant 16 : index
    %116 = vector.load %arg6[%c4_199, %c16_200] : memref<16x384xbf16, #tpu.memory_space<vmem>>, vector<4x256xbf16>
    %c24_201 = arith.constant 24 : index
    %c512_202 = arith.constant 512 : index
    %117 = vector.load %arg7[%c24_201, %c512_202] : memref<100x1024xbf16, #tpu.memory_space<vmem>>, vector<4x256xbf16>
    tpu.vector_store %arg7[%c24_201, %c512_202], %116 {strides = array<i32>} : memref<100x1024xbf16, #tpu.memory_space<vmem>>, vector<4x256xbf16>,
    %c0_203 = arith.constant 0 : index
    %c17_204 = arith.constant 17 : index
    %118 = vector.load %arg6[%c0_203, %c17_204] : memref<16x384xbf16, #tpu.memory_space<vmem>>, vector<4x256xbf16>
    %c28_205 = arith.constant 28 : index
    %c512_206 = arith.constant 512 : index
    %119 = vector.load %arg7[%c28_205, %c512_206] : memref<100x1024xbf16, #tpu.memory_space<vmem>>, vector<4x256xbf16>
    tpu.vector_store %arg7[%c28_205, %c512_206], %118 {strides = array<i32>} : memref<100x1024xbf16, #tpu.memory_space<vmem>>, vector<4x256xbf16>,
    %c4_207 = arith.constant 4 : index
    %c17_208 = arith.constant 17 : index
    %120 = vector.load %arg6[%c4_207, %c17_208] : memref<16x384xbf16, #tpu.memory_space<vmem>>, vector<4x256xbf16>
    %c32_209 = arith.constant 32 : index
    %c512_210 = arith.constant 512 : index
    %121 = vector.load %arg7[%c32_209, %c512_210] : memref<100x1024xbf16, #tpu.memory_space<vmem>>, vector<4x256xbf16>
    tpu.vector_store %arg7[%c32_209, %c512_210], %120 {strides = array<i32>} : memref<100x1024xbf16, #tpu.memory_space<vmem>>, vector<4x256xbf16>,
    %c0_211 = arith.constant 0 : index
    %c18_212 = arith.constant 18 : index
    %122 = vector.load %arg6[%c0_211, %c18_212] : memref<16x384xbf16, #tpu.memory_space<vmem>>, vector<4x256xbf16>
    %c36_213 = arith.constant 36 : index
    %c512_214 = arith.constant 512 : index
    %123 = vector.load %arg7[%c36_213, %c512_214] : memref<100x1024xbf16, #tpu.memory_space<vmem>>, vector<4x256xbf16>
    tpu.vector_store %arg7[%c36_213, %c512_214], %122 {strides = array<i32>} : memref<100x1024xbf16, #tpu.memory_space<vmem>>, vector<4x256xbf16>,
    %c8_215 = arith.constant 8 : index
    %c16_216 = arith.constant 16 : index
    %124 = vector.load %arg6[%c8_215, %c16_216] : memref<16x384xbf16, #tpu.memory_space<vmem>>, vector<4x256xbf16>
    %c40_217 = arith.constant 40 : index
    %c512_218 = arith.constant 512 : index
    %125 = vector.load %arg7[%c40_217, %c512_218] : memref<100x1024xbf16, #tpu.memory_space<vmem>>, vector<4x256xbf16>
    tpu.vector_store %arg7[%c40_217, %c512_218], %124 {strides = array<i32>} : memref<100x1024xbf16, #tpu.memory_space<vmem>>, vector<4x256xbf16>,
    %c12_219 = arith.constant 12 : index
    %c16_220 = arith.constant 16 : index
    %126 = vector.load %arg6[%c12_219, %c16_220] : memref<16x384xbf16, #tpu.memory_space<vmem>>, vector<4x256xbf16>
    %c44_221 = arith.constant 44 : index
    %c512_222 = arith.constant 512 : index
    %127 = vector.load %arg7[%c44_221, %c512_222] : memref<100x1024xbf16, #tpu.memory_space<vmem>>, vector<4x256xbf16>
    tpu.vector_store %arg7[%c44_221, %c512_222], %126 {strides = array<i32>} : memref<100x1024xbf16, #tpu.memory_space<vmem>>, vector<4x256xbf16>,
    %c8_223 = arith.constant 8 : index
    %c17_224 = arith.constant 17 : index
    %128 = vector.load %arg6[%c8_223, %c17_224] : memref<16x384xbf16, #tpu.memory_space<vmem>>, vector<4x256xbf16>
    %c48_225 = arith.constant 48 : index
    %c512_226 = arith.constant 512 : index
    %129 = vector.load %arg7[%c48_225, %c512_226] : memref<100x1024xbf16, #tpu.memory_space<vmem>>, vector<4x256xbf16>
    tpu.vector_store %arg7[%c48_225, %c512_226], %128 {strides = array<i32>} : memref<100x1024xbf16, #tpu.memory_space<vmem>>, vector<4x256xbf16>,
    %c12_227 = arith.constant 12 : index
    %c17_228 = arith.constant 17 : index
    %130 = vector.load %arg6[%c12_227, %c17_228] : memref<16x384xbf16, #tpu.memory_space<vmem>>, vector<4x256xbf16>
    %c52_229 = arith.constant 52 : index
    %c512_230 = arith.constant 512 : index
    %131 = vector.load %arg7[%c52_229, %c512_230] : memref<100x1024xbf16, #tpu.memory_space<vmem>>, vector<4x256xbf16>
    tpu.vector_store %arg7[%c52_229, %c512_230], %130 {strides = array<i32>} : memref<100x1024xbf16, #tpu.memory_space<vmem>>, vector<4x256xbf16>,
    %c8_231 = arith.constant 8 : index
    %c18_232 = arith.constant 18 : index
    %132 = vector.load %arg6[%c8_231, %c18_232] : memref<16x384xbf16, #tpu.memory_space<vmem>>, vector<4x256xbf16>
    %c56_233 = arith.constant 56 : index
    %c512_234 = arith.constant 512 : index
    %133 = vector.load %arg7[%c56_233, %c512_234] : memref<100x1024xbf16, #tpu.memory_space<vmem>>, vector<4x256xbf16>
    tpu.vector_store %arg7[%c56_233, %c512_234], %132 {strides = array<i32>} : memref<100x1024xbf16, #tpu.memory_space<vmem>>, vector<4x256xbf16>,
    %c0_235 = arith.constant 0 : index
    %c32_236 = arith.constant 32 : index
    %134 = vector.load %arg6[%c0_235, %c32_236] : memref<16x384xbf16, #tpu.memory_space<vmem>>, vector<4x256xbf16>
    %c60_237 = arith.constant 60 : index
    %c512_238 = arith.constant 512 : index
    %135 = vector.load %arg7[%c60_237, %c512_238] : memref<100x1024xbf16, #tpu.memory_space<vmem>>, vector<4x256xbf16>
    tpu.vector_store %arg7[%c60_237, %c512_238], %134 {strides = array<i32>} : memref<100x1024xbf16, #tpu.memory_space<vmem>>, vector<4x256xbf16>,
    %c4_239 = arith.constant 4 : index
    %c32_240 = arith.constant 32 : index
    %136 = vector.load %arg6[%c4_239, %c32_240] : memref<16x384xbf16, #tpu.memory_space<vmem>>, vector<4x256xbf16>
    %c64_241 = arith.constant 64 : index
    %c512_242 = arith.constant 512 : index
    %137 = vector.load %arg7[%c64_241, %c512_242] : memref<100x1024xbf16, #tpu.memory_space<vmem>>, vector<4x256xbf16>
    tpu.vector_store %arg7[%c64_241, %c512_242], %136 {strides = array<i32>} : memref<100x1024xbf16, #tpu.memory_space<vmem>>, vector<4x256xbf16>,
    %c0_243 = arith.constant 0 : index
    %c33_244 = arith.constant 33 : index
    %138 = vector.load %arg6[%c0_243, %c33_244] : memref<16x384xbf16, #tpu.memory_space<vmem>>, vector<4x256xbf16>
    %c68_245 = arith.constant 68 : index
    %c512_246 = arith.constant 512 : index
    %139 = vector.load %arg7[%c68_245, %c512_246] : memref<100x1024xbf16, #tpu.memory_space<vmem>>, vector<4x256xbf16>
    tpu.vector_store %arg7[%c68_245, %c512_246], %138 {strides = array<i32>} : memref<100x1024xbf16, #tpu.memory_space<vmem>>, vector<4x256xbf16>,
    %c4_247 = arith.constant 4 : index
    %c33_248 = arith.constant 33 : index
    %140 = vector.load %arg6[%c4_247, %c33_248] : memref<16x384xbf16, #tpu.memory_space<vmem>>, vector<4x256xbf16>
    %c72_249 = arith.constant 72 : index
    %c512_250 = arith.constant 512 : index
    %141 = vector.load %arg7[%c72_249, %c512_250] : memref<100x1024xbf16, #tpu.memory_space<vmem>>, vector<4x256xbf16>
    tpu.vector_store %arg7[%c72_249, %c512_250], %140 {strides = array<i32>} : memref<100x1024xbf16, #tpu.memory_space<vmem>>, vector<4x256xbf16>,
    %c0_251 = arith.constant 0 : index
    %c34_252 = arith.constant 34 : index
    %142 = vector.load %arg6[%c0_251, %c34_252] : memref<16x384xbf16, #tpu.memory_space<vmem>>, vector<4x256xbf16>
    %c76_253 = arith.constant 76 : index
    %c512_254 = arith.constant 512 : index
    %143 = vector.load %arg7[%c76_253, %c512_254] : memref<100x1024xbf16, #tpu.memory_space<vmem>>, vector<4x256xbf16>
    tpu.vector_store %arg7[%c76_253, %c512_254], %142 {strides = array<i32>} : memref<100x1024xbf16, #tpu.memory_space<vmem>>, vector<4x256xbf16>,
    %c8_255 = arith.constant 8 : index
    %c32_256 = arith.constant 32 : index
    %144 = vector.load %arg6[%c8_255, %c32_256] : memref<16x384xbf16, #tpu.memory_space<vmem>>, vector<4x256xbf16>
    %c80_257 = arith.constant 80 : index
    %c512_258 = arith.constant 512 : index
    %145 = vector.load %arg7[%c80_257, %c512_258] : memref<100x1024xbf16, #tpu.memory_space<vmem>>, vector<4x256xbf16>
    tpu.vector_store %arg7[%c80_257, %c512_258], %144 {strides = array<i32>} : memref<100x1024xbf16, #tpu.memory_space<vmem>>, vector<4x256xbf16>,
    %c12_259 = arith.constant 12 : index
    %c32_260 = arith.constant 32 : index
    %146 = vector.load %arg6[%c12_259, %c32_260] : memref<16x384xbf16, #tpu.memory_space<vmem>>, vector<4x256xbf16>
    %c84_261 = arith.constant 84 : index
    %c512_262 = arith.constant 512 : index
    %147 = vector.load %arg7[%c84_261, %c512_262] : memref<100x1024xbf16, #tpu.memory_space<vmem>>, vector<4x256xbf16>
    tpu.vector_store %arg7[%c84_261, %c512_262], %146 {strides = array<i32>} : memref<100x1024xbf16, #tpu.memory_space<vmem>>, vector<4x256xbf16>,
    %c8_263 = arith.constant 8 : index
    %c33_264 = arith.constant 33 : index
    %148 = vector.load %arg6[%c8_263, %c33_264] : memref<16x384xbf16, #tpu.memory_space<vmem>>, vector<4x256xbf16>
    %c88_265 = arith.constant 88 : index
    %c512_266 = arith.constant 512 : index
    %149 = vector.load %arg7[%c88_265, %c512_266] : memref<100x1024xbf16, #tpu.memory_space<vmem>>, vector<4x256xbf16>
    tpu.vector_store %arg7[%c88_265, %c512_266], %148 {strides = array<i32>} : memref<100x1024xbf16, #tpu.memory_space<vmem>>, vector<4x256xbf16>,
    %c12_267 = arith.constant 12 : index
    %c33_268 = arith.constant 33 : index
    %150 = vector.load %arg6[%c12_267, %c33_268] : memref<16x384xbf16, #tpu.memory_space<vmem>>, vector<4x256xbf16>
    %c92_269 = arith.constant 92 : index
    %c512_270 = arith.constant 512 : index
    %151 = vector.load %arg7[%c92_269, %c512_270] : memref<100x1024xbf16, #tpu.memory_space<vmem>>, vector<4x256xbf16>
    tpu.vector_store %arg7[%c92_269, %c512_270], %150 {strides = array<i32>} : memref<100x1024xbf16, #tpu.memory_space<vmem>>, vector<4x256xbf16>,
    %c8_271 = arith.constant 8 : index
    %c34_272 = arith.constant 34 : index
    %152 = vector.load %arg6[%c8_271, %c34_272] : memref<16x384xbf16, #tpu.memory_space<vmem>>, vector<4x256xbf16>
    %c96_273 = arith.constant 96 : index
    %c512_274 = arith.constant 512 : index
    %153 = vector.load %arg7[%c96_273, %c512_274] : memref<100x1024xbf16, #tpu.memory_space<vmem>>, vector<4x256xbf16>
    tpu.vector_store %arg7[%c96_273, %c512_274], %152 {strides = array<i32>} : memref<100x1024xbf16, #tpu.memory_space<vmem>>, vector<4x256xbf16>,
    %c12_275 = arith.constant 12 : index
    %c0_276 = arith.constant 0 : index
    %154 = vector.load %arg6[%c12_275, %c0_276] : memref<16x384xbf16, #tpu.memory_space<vmem>>, vector<4x256xbf16>
    %c0_277 = arith.constant 0 : index
    %c768 = arith.constant 768 : index
    %155 = vector.load %arg7[%c0_277, %c768] : memref<100x1024xbf16, #tpu.memory_space<vmem>>, vector<4x256xbf16>
    tpu.vector_store %arg7[%c0_277, %c768], %154 {strides = array<i32>} : memref<100x1024xbf16, #tpu.memory_space<vmem>>, vector<4x256xbf16>,
    %c8_278 = arith.constant 8 : index
    %c1_279 = arith.constant 1 : index
    %156 = vector.load %arg6[%c8_278, %c1_279] : memref<16x384xbf16, #tpu.memory_space<vmem>>, vector<4x256xbf16>
    %c4_280 = arith.constant 4 : index
    %c768_281 = arith.constant 768 : index
    %157 = vector.load %arg7[%c4_280, %c768_281] : memref<100x1024xbf16, #tpu.memory_space<vmem>>, vector<4x256xbf16>
    tpu.vector_store %arg7[%c4_280, %c768_281], %156 {strides = array<i32>} : memref<100x1024xbf16, #tpu.memory_space<vmem>>, vector<4x256xbf16>,
    %c12_282 = arith.constant 12 : index
    %c1_283 = arith.constant 1 : index
    %158 = vector.load %arg6[%c12_282, %c1_283] : memref<16x384xbf16, #tpu.memory_space<vmem>>, vector<4x256xbf16>
    %c8_284 = arith.constant 8 : index
    %c768_285 = arith.constant 768 : index
    %159 = vector.load %arg7[%c8_284, %c768_285] : memref<100x1024xbf16, #tpu.memory_space<vmem>>, vector<4x256xbf16>
    tpu.vector_store %arg7[%c8_284, %c768_285], %158 {strides = array<i32>} : memref<100x1024xbf16, #tpu.memory_space<vmem>>, vector<4x256xbf16>,
    %c8_286 = arith.constant 8 : index
    %c2_287 = arith.constant 2 : index
    %160 = vector.load %arg6[%c8_286, %c2_287] : memref<16x384xbf16, #tpu.memory_space<vmem>>, vector<4x256xbf16>
    %c12_288 = arith.constant 12 : index
    %c768_289 = arith.constant 768 : index
    %161 = vector.load %arg7[%c12_288, %c768_289] : memref<100x1024xbf16, #tpu.memory_space<vmem>>, vector<4x256xbf16>
    tpu.vector_store %arg7[%c12_288, %c768_289], %160 {strides = array<i32>} : memref<100x1024xbf16, #tpu.memory_space<vmem>>, vector<4x256xbf16>,
    %c12_290 = arith.constant 12 : index
    %c2_291 = arith.constant 2 : index
    %162 = vector.load %arg6[%c12_290, %c2_291] : memref<16x384xbf16, #tpu.memory_space<vmem>>, vector<4x256xbf16>
    %c16_292 = arith.constant 16 : index
    %c768_293 = arith.constant 768 : index
    %163 = vector.load %arg7[%c16_292, %c768_293] : memref<100x1024xbf16, #tpu.memory_space<vmem>>, vector<4x256xbf16>
    tpu.vector_store %arg7[%c16_292, %c768_293], %162 {strides = array<i32>} : memref<100x1024xbf16, #tpu.memory_space<vmem>>, vector<4x256xbf16>,
    %c4_294 = arith.constant 4 : index
    %c16_295 = arith.constant 16 : index
    %164 = vector.load %arg6[%c4_294, %c16_295] : memref<16x384xbf16, #tpu.memory_space<vmem>>, vector<4x256xbf16>
    %c20_296 = arith.constant 20 : index
    %c768_297 = arith.constant 768 : index
    %165 = vector.load %arg7[%c20_296, %c768_297] : memref<100x1024xbf16, #tpu.memory_space<vmem>>, vector<4x256xbf16>
    tpu.vector_store %arg7[%c20_296, %c768_297], %164 {strides = array<i32>} : memref<100x1024xbf16, #tpu.memory_space<vmem>>, vector<4x256xbf16>,
    %c0_298 = arith.constant 0 : index
    %c17_299 = arith.constant 17 : index
    %166 = vector.load %arg6[%c0_298, %c17_299] : memref<16x384xbf16, #tpu.memory_space<vmem>>, vector<4x256xbf16>
    %c24_300 = arith.constant 24 : index
    %c768_301 = arith.constant 768 : index
    %167 = vector.load %arg7[%c24_300, %c768_301] : memref<100x1024xbf16, #tpu.memory_space<vmem>>, vector<4x256xbf16>
    tpu.vector_store %arg7[%c24_300, %c768_301], %166 {strides = array<i32>} : memref<100x1024xbf16, #tpu.memory_space<vmem>>, vector<4x256xbf16>,
    %c4_302 = arith.constant 4 : index
    %c17_303 = arith.constant 17 : index
    %168 = vector.load %arg6[%c4_302, %c17_303] : memref<16x384xbf16, #tpu.memory_space<vmem>>, vector<4x256xbf16>
    %c28_304 = arith.constant 28 : index
    %c768_305 = arith.constant 768 : index
    %169 = vector.load %arg7[%c28_304, %c768_305] : memref<100x1024xbf16, #tpu.memory_space<vmem>>, vector<4x256xbf16>
    tpu.vector_store %arg7[%c28_304, %c768_305], %168 {strides = array<i32>} : memref<100x1024xbf16, #tpu.memory_space<vmem>>, vector<4x256xbf16>,
    %c0_306 = arith.constant 0 : index
    %c18_307 = arith.constant 18 : index
    %170 = vector.load %arg6[%c0_306, %c18_307] : memref<16x384xbf16, #tpu.memory_space<vmem>>, vector<4x256xbf16>
    %c32_308 = arith.constant 32 : index
    %c768_309 = arith.constant 768 : index
    %171 = vector.load %arg7[%c32_308, %c768_309] : memref<100x1024xbf16, #tpu.memory_space<vmem>>, vector<4x256xbf16>
    tpu.vector_store %arg7[%c32_308, %c768_309], %170 {strides = array<i32>} : memref<100x1024xbf16, #tpu.memory_space<vmem>>, vector<4x256xbf16>,
    %c4_310 = arith.constant 4 : index
    %c18_311 = arith.constant 18 : index
    %172 = vector.load %arg6[%c4_310, %c18_311] : memref<16x384xbf16, #tpu.memory_space<vmem>>, vector<4x256xbf16>
    %c36_312 = arith.constant 36 : index
    %c768_313 = arith.constant 768 : index
    %173 = vector.load %arg7[%c36_312, %c768_313] : memref<100x1024xbf16, #tpu.memory_space<vmem>>, vector<4x256xbf16>
    tpu.vector_store %arg7[%c36_312, %c768_313], %172 {strides = array<i32>} : memref<100x1024xbf16, #tpu.memory_space<vmem>>, vector<4x256xbf16>,
    %c12_314 = arith.constant 12 : index
    %c16_315 = arith.constant 16 : index
    %174 = vector.load %arg6[%c12_314, %c16_315] : memref<16x384xbf16, #tpu.memory_space<vmem>>, vector<4x256xbf16>
    %c40_316 = arith.constant 40 : index
    %c768_317 = arith.constant 768 : index
    %175 = vector.load %arg7[%c40_316, %c768_317] : memref<100x1024xbf16, #tpu.memory_space<vmem>>, vector<4x256xbf16>
    tpu.vector_store %arg7[%c40_316, %c768_317], %174 {strides = array<i32>} : memref<100x1024xbf16, #tpu.memory_space<vmem>>, vector<4x256xbf16>,
    %c8_318 = arith.constant 8 : index
    %c17_319 = arith.constant 17 : index
    %176 = vector.load %arg6[%c8_318, %c17_319] : memref<16x384xbf16, #tpu.memory_space<vmem>>, vector<4x256xbf16>
    %c44_320 = arith.constant 44 : index
    %c768_321 = arith.constant 768 : index
    %177 = vector.load %arg7[%c44_320, %c768_321] : memref<100x1024xbf16, #tpu.memory_space<vmem>>, vector<4x256xbf16>
    tpu.vector_store %arg7[%c44_320, %c768_321], %176 {strides = array<i32>} : memref<100x1024xbf16, #tpu.memory_space<vmem>>, vector<4x256xbf16>,
    %c12_322 = arith.constant 12 : index
    %c17_323 = arith.constant 17 : index
    %178 = vector.load %arg6[%c12_322, %c17_323] : memref<16x384xbf16, #tpu.memory_space<vmem>>, vector<4x256xbf16>
    %c48_324 = arith.constant 48 : index
    %c768_325 = arith.constant 768 : index
    %179 = vector.load %arg7[%c48_324, %c768_325] : memref<100x1024xbf16, #tpu.memory_space<vmem>>, vector<4x256xbf16>
    tpu.vector_store %arg7[%c48_324, %c768_325], %178 {strides = array<i32>} : memref<100x1024xbf16, #tpu.memory_space<vmem>>, vector<4x256xbf16>,
    %c8_326 = arith.constant 8 : index
    %c18_327 = arith.constant 18 : index
    %180 = vector.load %arg6[%c8_326, %c18_327] : memref<16x384xbf16, #tpu.memory_space<vmem>>, vector<4x256xbf16>
    %c52_328 = arith.constant 52 : index
    %c768_329 = arith.constant 768 : index
    %181 = vector.load %arg7[%c52_328, %c768_329] : memref<100x1024xbf16, #tpu.memory_space<vmem>>, vector<4x256xbf16>
    tpu.vector_store %arg7[%c52_328, %c768_329], %180 {strides = array<i32>} : memref<100x1024xbf16, #tpu.memory_space<vmem>>, vector<4x256xbf16>,
    %c12_330 = arith.constant 12 : index
    %c18_331 = arith.constant 18 : index
    %182 = vector.load %arg6[%c12_330, %c18_331] : memref<16x384xbf16, #tpu.memory_space<vmem>>, vector<4x256xbf16>
    %c56_332 = arith.constant 56 : index
    %c768_333 = arith.constant 768 : index
    %183 = vector.load %arg7[%c56_332, %c768_333] : memref<100x1024xbf16, #tpu.memory_space<vmem>>, vector<4x256xbf16>
    tpu.vector_store %arg7[%c56_332, %c768_333], %182 {strides = array<i32>} : memref<100x1024xbf16, #tpu.memory_space<vmem>>, vector<4x256xbf16>,
    %c4_334 = arith.constant 4 : index
    %c32_335 = arith.constant 32 : index
    %184 = vector.load %arg6[%c4_334, %c32_335] : memref<16x384xbf16, #tpu.memory_space<vmem>>, vector<4x256xbf16>
    %c60_336 = arith.constant 60 : index
    %c768_337 = arith.constant 768 : index
    %185 = vector.load %arg7[%c60_336, %c768_337] : memref<100x1024xbf16, #tpu.memory_space<vmem>>, vector<4x256xbf16>
    tpu.vector_store %arg7[%c60_336, %c768_337], %184 {strides = array<i32>} : memref<100x1024xbf16, #tpu.memory_space<vmem>>, vector<4x256xbf16>,
    %c0_338 = arith.constant 0 : index
    %c33_339 = arith.constant 33 : index
    %186 = vector.load %arg6[%c0_338, %c33_339] : memref<16x384xbf16, #tpu.memory_space<vmem>>, vector<4x256xbf16>
    %c64_340 = arith.constant 64 : index
    %c768_341 = arith.constant 768 : index
    %187 = vector.load %arg7[%c64_340, %c768_341] : memref<100x1024xbf16, #tpu.memory_space<vmem>>, vector<4x256xbf16>
    tpu.vector_store %arg7[%c64_340, %c768_341], %186 {strides = array<i32>} : memref<100x1024xbf16, #tpu.memory_space<vmem>>, vector<4x256xbf16>,
    %c4_342 = arith.constant 4 : index
    %c33_343 = arith.constant 33 : index
    %188 = vector.load %arg6[%c4_342, %c33_343] : memref<16x384xbf16, #tpu.memory_space<vmem>>, vector<4x256xbf16>
    %c68_344 = arith.constant 68 : index
    %c768_345 = arith.constant 768 : index
    %189 = vector.load %arg7[%c68_344, %c768_345] : memref<100x1024xbf16, #tpu.memory_space<vmem>>, vector<4x256xbf16>
    tpu.vector_store %arg7[%c68_344, %c768_345], %188 {strides = array<i32>} : memref<100x1024xbf16, #tpu.memory_space<vmem>>, vector<4x256xbf16>,
    %c0_346 = arith.constant 0 : index
    %c34_347 = arith.constant 34 : index
    %190 = vector.load %arg6[%c0_346, %c34_347] : memref<16x384xbf16, #tpu.memory_space<vmem>>, vector<4x256xbf16>
    %c72_348 = arith.constant 72 : index
    %c768_349 = arith.constant 768 : index
    %191 = vector.load %arg7[%c72_348, %c768_349] : memref<100x1024xbf16, #tpu.memory_space<vmem>>, vector<4x256xbf16>
    tpu.vector_store %arg7[%c72_348, %c768_349], %190 {strides = array<i32>} : memref<100x1024xbf16, #tpu.memory_space<vmem>>, vector<4x256xbf16>,
    %c4_350 = arith.constant 4 : index
    %c34_351 = arith.constant 34 : index
    %192 = vector.load %arg6[%c4_350, %c34_351] : memref<16x384xbf16, #tpu.memory_space<vmem>>, vector<4x256xbf16>
    %c76_352 = arith.constant 76 : index
    %c768_353 = arith.constant 768 : index
    %193 = vector.load %arg7[%c76_352, %c768_353] : memref<100x1024xbf16, #tpu.memory_space<vmem>>, vector<4x256xbf16>
    tpu.vector_store %arg7[%c76_352, %c768_353], %192 {strides = array<i32>} : memref<100x1024xbf16, #tpu.memory_space<vmem>>, vector<4x256xbf16>,
    %c12_354 = arith.constant 12 : index
    %c32_355 = arith.constant 32 : index
    %194 = vector.load %arg6[%c12_354, %c32_355] : memref<16x384xbf16, #tpu.memory_space<vmem>>, vector<4x256xbf16>
    %c80_356 = arith.constant 80 : index
    %c768_357 = arith.constant 768 : index
    %195 = vector.load %arg7[%c80_356, %c768_357] : memref<100x1024xbf16, #tpu.memory_space<vmem>>, vector<4x256xbf16>
    tpu.vector_store %arg7[%c80_356, %c768_357], %194 {strides = array<i32>} : memref<100x1024xbf16, #tpu.memory_space<vmem>>, vector<4x256xbf16>,
    %c8_358 = arith.constant 8 : index
    %c33_359 = arith.constant 33 : index
    %196 = vector.load %arg6[%c8_358, %c33_359] : memref<16x384xbf16, #tpu.memory_space<vmem>>, vector<4x256xbf16>
    %c84_360 = arith.constant 84 : index
    %c768_361 = arith.constant 768 : index
    %197 = vector.load %arg7[%c84_360, %c768_361] : memref<100x1024xbf16, #tpu.memory_space<vmem>>, vector<4x256xbf16>
    tpu.vector_store %arg7[%c84_360, %c768_361], %196 {strides = array<i32>} : memref<100x1024xbf16, #tpu.memory_space<vmem>>, vector<4x256xbf16>,
    %c12_362 = arith.constant 12 : index
    %c33_363 = arith.constant 33 : index
    %198 = vector.load %arg6[%c12_362, %c33_363] : memref<16x384xbf16, #tpu.memory_space<vmem>>, vector<4x256xbf16>
    %c88_364 = arith.constant 88 : index
    %c768_365 = arith.constant 768 : index
    %199 = vector.load %arg7[%c88_364, %c768_365] : memref<100x1024xbf16, #tpu.memory_space<vmem>>, vector<4x256xbf16>
    tpu.vector_store %arg7[%c88_364, %c768_365], %198 {strides = array<i32>} : memref<100x1024xbf16, #tpu.memory_space<vmem>>, vector<4x256xbf16>,
    %c8_366 = arith.constant 8 : index
    %c34_367 = arith.constant 34 : index
    %200 = vector.load %arg6[%c8_366, %c34_367] : memref<16x384xbf16, #tpu.memory_space<vmem>>, vector<4x256xbf16>
    %c92_368 = arith.constant 92 : index
    %c768_369 = arith.constant 768 : index
    %201 = vector.load %arg7[%c92_368, %c768_369] : memref<100x1024xbf16, #tpu.memory_space<vmem>>, vector<4x256xbf16>
    tpu.vector_store %arg7[%c92_368, %c768_369], %200 {strides = array<i32>} : memref<100x1024xbf16, #tpu.memory_space<vmem>>, vector<4x256xbf16>,
    %c12_370 = arith.constant 12 : index
    %c34_371 = arith.constant 34 : index
    %202 = vector.load %arg6[%c12_370, %c34_371] : memref<16x384xbf16, #tpu.memory_space<vmem>>, vector<4x256xbf16>
    %c96_372 = arith.constant 96 : index
    %c768_373 = arith.constant 768 : index
    %203 = vector.load %arg7[%c96_372, %c768_373] : memref<100x1024xbf16, #tpu.memory_space<vmem>>, vector<4x256xbf16>
    tpu.vector_store %arg7[%c96_372, %c768_373], %202 {strides = array<i32>} : memref<100x1024xbf16, #tpu.memory_space<vmem>>, vector<4x256xbf16>,
    %c0_374 = arith.constant 0 : index
    %c0_375 = arith.constant 0 : index
    %204 = vector.load %arg3[%c0_374, %c0_375] : memref<6x100xbf16, #tpu.memory_space<vmem>>, vector<6x100xbf16>
    %c0_376 = arith.constant 0 : index
    %c0_377 = arith.constant 0 : index
    %205 = vector.load %arg7[%c0_376, %c0_377] : memref<100x1024xbf16, #tpu.memory_space<vmem>>, vector<100x1024xbf16>
    %cst = arith.constant dense<0.000000e+00> : vector<6x1024xf32>
    %206 = tpu.matmul %204, %205, %cst {dimension_numbers = #tpu.dot_dimension_numbers<[1], [0], [0], [1], [0, 0, 1, 1], [], []>} : vector<6x100xbf16>, vector<100x1024xbf16>, vector<6x1024xf32> -> vector<6x1024xf32>
    %207 = vector.extract_strided_slice %206 {offsets = [0, 0], sizes = [6, 256], strides = [1, 1]} : vector<6x1024xf32> to vector<6x256xf32>
    %208 = vector.extract_strided_slice %206 {offsets = [0, 256], sizes = [6, 256], strides = [1, 1]} : vector<6x1024xf32> to vector<6x256xf32>
    %209 = arith.maximumf %207, %208 : vector<6x256xf32>
    %210 = vector.extract_strided_slice %206 {offsets = [0, 512], sizes = [6, 256], strides = [1, 1]} : vector<6x1024xf32> to vector<6x256xf32>
    %211 = arith.maximumf %209, %210 : vector<6x256xf32>
    %212 = vector.extract_strided_slice %206 {offsets = [0, 768], sizes = [6, 256], strides = [1, 1]} : vector<6x1024xf32> to vector<6x256xf32>
    %213 = arith.maximumf %211, %212 : vector<6x256xf32>
    %c0_378 = arith.constant 0 : index
    %c0_379 = arith.constant 0 : index
    %214 = vector.load %arg4[%c0_378, %c0_379] : memref<6x1xf32, #tpu.memory_space<vmem>>, vector<6x1xf32>
    %215 = vector.broadcast %214 : vector<6x1xf32> to vector<6x256xf32>
    %216 = arith.addf %213, %215 : vector<6x256xf32>
    %cst_380 = arith.constant 0.000000e+00 : f32
    %217 = vector.broadcast %cst_380 : f32 to vector<6x256xf32>
    %218 = arith.maximumf %216, %217 : vector<6x256xf32>
    %219 = arith.truncf %218 : vector<6x256xf32> to vector<6x256xbf16>
    %c0_381 = arith.constant 0 : index
    %c0_382 = arith.constant 0 : index
    %220 = vector.load %arg5[%c0_381, %c0_382] : memref<6x256xbf16, #tpu.memory_space<vmem>>, vector<6x256xbf16>
    tpu.vector_store %arg5[%c0_381, %c0_382], %219 {strides = array<i32>} : memref<6x256xbf16, #tpu.memory_space<vmem>>, vector<6x256xbf16>,
    return
  }
  func.func @transform_0(%arg0: i32) -> (i32, i32) {
    %c0_i32 = arith.constant 0 : i32
    %c0_i32_0 = arith.constant 0 : i32
    return %c0_i32, %arg0 : i32, i32
  }
  func.func @transform_1(%arg0: i32) -> (i32, i32) {
    %c2_i32 = arith.constant 2 : i32
    %0 = arith.muli %arg0, %c2_i32 : i32
    %c2_i32_0 = arith.constant 2 : i32
    %1 = arith.addi %0, %c2_i32_0 : i32
    %c0_i32 = arith.constant 0 : i32
    %c0_i32_1 = arith.constant 0 : i32
    return %c0_i32, %1 : i32, i32
  }
  func.func @transform_2(%arg0: i32) -> (i32, i32) {
    %c0_i32 = arith.constant 0 : i32
    %c0_i32_0 = arith.constant 0 : i32
    %c0_i32_1 = arith.constant 0 : i32
    return %c0_i32, %c0_i32_0 : i32, i32
  }
  func.func @transform_3(%arg0: i32) -> (i32, i32) {
    %c0_i32 = arith.constant 0 : i32
    %c0_i32_0 = arith.constant 0 : i32
    %c0_i32_1 = arith.constant 0 : i32
    return %c0_i32, %c0_i32_0 : i32, i32
  }
  func.func @transform_4(%arg0: i32) -> (i32, i32) {
    %c0_i32 = arith.constant 0 : i32
    %c0_i32_0 = arith.constant 0 : i32
    return %c0_i32, %arg0 : i32, i32
  }
}

module attributes {stable_mosaic.version = 11 : i64} {
  func.func @_conv_pool_kernel(%arg0: i32, %arg1: memref<24x128xbf16, #tpu.memory_space<vmem>>, %arg2: memref<24x128xbf16, #tpu.memory_space<vmem>>, %arg3: memref<16x150xbf16, #tpu.memory_space<vmem>>, %arg4: memref<16x1xf32, #tpu.memory_space<vmem>>, %arg5: memref<16x128xf32, #tpu.memory_space<vmem>>, %arg6: memref<24x256xbf16, #tpu.memory_space<vmem>>, %arg7: memref<150x512xbf16, #tpu.memory_space<vmem>>) attributes {dimension_semantics = [#tpu.dimension_semantics<parallel>], iteration_bounds = array<i64: 2>, scalar_prefetch = 0 : i64, scratch_operands = 2 : i64, tpu.core_type = #tpu.core_type<tc>, window_params = [{transform_indices = @transform_0, window_bounds = array<i64: 24, 128>}, {transform_indices = @transform_1, window_bounds = array<i64: 24, 128>}, {pipeline_mode = #tpu.pipeline_mode<synchronous>, transform_indices = @transform_2, window_bounds = array<i64: 16, 150>}, {pipeline_mode = #tpu.pipeline_mode<synchronous>, transform_indices = @transform_3, window_bounds = array<i64: 16, 1>}, {transform_indices = @transform_4, window_bounds = array<i64: 16, 128>}]} {
    %c0 = arith.constant 0 : index
    %c0_0 = arith.constant 0 : index
    %0 = vector.load %arg1[%c0, %c0_0] : memref<24x128xbf16, #tpu.memory_space<vmem>>, vector<24x128xbf16>
    %c0_1 = arith.constant 0 : index
    %c0_2 = arith.constant 0 : index
    %1 = vector.load %arg6[%c0_1, %c0_2] : memref<24x256xbf16, #tpu.memory_space<vmem>>, vector<24x128xbf16>
    tpu.vector_store %arg6[%c0_1, %c0_2], %0 {strides = array<i32>} : memref<24x256xbf16, #tpu.memory_space<vmem>>, vector<24x128xbf16>,
    %c0_3 = arith.constant 0 : index
    %c0_4 = arith.constant 0 : index
    %2 = vector.load %arg2[%c0_3, %c0_4] : memref<24x128xbf16, #tpu.memory_space<vmem>>, vector<24x128xbf16>
    %c0_5 = arith.constant 0 : index
    %c128 = arith.constant 128 : index
    %3 = vector.load %arg6[%c0_5, %c128] : memref<24x256xbf16, #tpu.memory_space<vmem>>, vector<24x128xbf16>
    tpu.vector_store %arg6[%c0_5, %c128], %2 {strides = array<i32>} : memref<24x256xbf16, #tpu.memory_space<vmem>>, vector<24x128xbf16>,
    %c0_6 = arith.constant 0 : index
    %c0_7 = arith.constant 0 : index
    %4 = vector.load %arg6[%c0_6, %c0_7] : memref<24x256xbf16, #tpu.memory_space<vmem>>, vector<6x128xbf16>
    %c0_8 = arith.constant 0 : index
    %c0_9 = arith.constant 0 : index
    %5 = vector.load %arg7[%c0_8, %c0_9] : memref<150x512xbf16, #tpu.memory_space<vmem>>, vector<6x128xbf16>
    tpu.vector_store %arg7[%c0_8, %c0_9], %4 {strides = array<i32>} : memref<150x512xbf16, #tpu.memory_space<vmem>>, vector<6x128xbf16>,
    %c6 = arith.constant 6 : index
    %c0_10 = arith.constant 0 : index
    %6 = vector.load %arg6[%c6, %c0_10] : memref<24x256xbf16, #tpu.memory_space<vmem>>, vector<6x128xbf16>
    %c6_11 = arith.constant 6 : index
    %c0_12 = arith.constant 0 : index
    %7 = vector.load %arg7[%c6_11, %c0_12] : memref<150x512xbf16, #tpu.memory_space<vmem>>, vector<6x128xbf16>
    tpu.vector_store %arg7[%c6_11, %c0_12], %6 {strides = array<i32>} : memref<150x512xbf16, #tpu.memory_space<vmem>>, vector<6x128xbf16>,
    %c0_13 = arith.constant 0 : index
    %c1 = arith.constant 1 : index
    %8 = vector.load %arg6[%c0_13, %c1] : memref<24x256xbf16, #tpu.memory_space<vmem>>, vector<6x128xbf16>
    %c12 = arith.constant 12 : index
    %c0_14 = arith.constant 0 : index
    %9 = vector.load %arg7[%c12, %c0_14] : memref<150x512xbf16, #tpu.memory_space<vmem>>, vector<6x128xbf16>
    tpu.vector_store %arg7[%c12, %c0_14], %8 {strides = array<i32>} : memref<150x512xbf16, #tpu.memory_space<vmem>>, vector<6x128xbf16>,
    %c6_15 = arith.constant 6 : index
    %c1_16 = arith.constant 1 : index
    %10 = vector.load %arg6[%c6_15, %c1_16] : memref<24x256xbf16, #tpu.memory_space<vmem>>, vector<6x128xbf16>
    %c18 = arith.constant 18 : index
    %c0_17 = arith.constant 0 : index
    %11 = vector.load %arg7[%c18, %c0_17] : memref<150x512xbf16, #tpu.memory_space<vmem>>, vector<6x128xbf16>
    tpu.vector_store %arg7[%c18, %c0_17], %10 {strides = array<i32>} : memref<150x512xbf16, #tpu.memory_space<vmem>>, vector<6x128xbf16>,
    %c0_18 = arith.constant 0 : index
    %c2 = arith.constant 2 : index
    %12 = vector.load %arg6[%c0_18, %c2] : memref<24x256xbf16, #tpu.memory_space<vmem>>, vector<6x128xbf16>
    %c24 = arith.constant 24 : index
    %c0_19 = arith.constant 0 : index
    %13 = vector.load %arg7[%c24, %c0_19] : memref<150x512xbf16, #tpu.memory_space<vmem>>, vector<6x128xbf16>
    tpu.vector_store %arg7[%c24, %c0_19], %12 {strides = array<i32>} : memref<150x512xbf16, #tpu.memory_space<vmem>>, vector<6x128xbf16>,
    %c12_20 = arith.constant 12 : index
    %c0_21 = arith.constant 0 : index
    %14 = vector.load %arg6[%c12_20, %c0_21] : memref<24x256xbf16, #tpu.memory_space<vmem>>, vector<6x128xbf16>
    %c30 = arith.constant 30 : index
    %c0_22 = arith.constant 0 : index
    %15 = vector.load %arg7[%c30, %c0_22] : memref<150x512xbf16, #tpu.memory_space<vmem>>, vector<6x128xbf16>
    tpu.vector_store %arg7[%c30, %c0_22], %14 {strides = array<i32>} : memref<150x512xbf16, #tpu.memory_space<vmem>>, vector<6x128xbf16>,
    %c18_23 = arith.constant 18 : index
    %c0_24 = arith.constant 0 : index
    %16 = vector.load %arg6[%c18_23, %c0_24] : memref<24x256xbf16, #tpu.memory_space<vmem>>, vector<6x128xbf16>
    %c36 = arith.constant 36 : index
    %c0_25 = arith.constant 0 : index
    %17 = vector.load %arg7[%c36, %c0_25] : memref<150x512xbf16, #tpu.memory_space<vmem>>, vector<6x128xbf16>
    tpu.vector_store %arg7[%c36, %c0_25], %16 {strides = array<i32>} : memref<150x512xbf16, #tpu.memory_space<vmem>>, vector<6x128xbf16>,
    %c12_26 = arith.constant 12 : index
    %c1_27 = arith.constant 1 : index
    %18 = vector.load %arg6[%c12_26, %c1_27] : memref<24x256xbf16, #tpu.memory_space<vmem>>, vector<6x128xbf16>
    %c42 = arith.constant 42 : index
    %c0_28 = arith.constant 0 : index
    %19 = vector.load %arg7[%c42, %c0_28] : memref<150x512xbf16, #tpu.memory_space<vmem>>, vector<6x128xbf16>
    tpu.vector_store %arg7[%c42, %c0_28], %18 {strides = array<i32>} : memref<150x512xbf16, #tpu.memory_space<vmem>>, vector<6x128xbf16>,
    %c18_29 = arith.constant 18 : index
    %c1_30 = arith.constant 1 : index
    %20 = vector.load %arg6[%c18_29, %c1_30] : memref<24x256xbf16, #tpu.memory_space<vmem>>, vector<6x128xbf16>
    %c48 = arith.constant 48 : index
    %c0_31 = arith.constant 0 : index
    %21 = vector.load %arg7[%c48, %c0_31] : memref<150x512xbf16, #tpu.memory_space<vmem>>, vector<6x128xbf16>
    tpu.vector_store %arg7[%c48, %c0_31], %20 {strides = array<i32>} : memref<150x512xbf16, #tpu.memory_space<vmem>>, vector<6x128xbf16>,
    %c12_32 = arith.constant 12 : index
    %c2_33 = arith.constant 2 : index
    %22 = vector.load %arg6[%c12_32, %c2_33] : memref<24x256xbf16, #tpu.memory_space<vmem>>, vector<6x128xbf16>
    %c54 = arith.constant 54 : index
    %c0_34 = arith.constant 0 : index
    %23 = vector.load %arg7[%c54, %c0_34] : memref<150x512xbf16, #tpu.memory_space<vmem>>, vector<6x128xbf16>
    tpu.vector_store %arg7[%c54, %c0_34], %22 {strides = array<i32>} : memref<150x512xbf16, #tpu.memory_space<vmem>>, vector<6x128xbf16>,
    %c0_35 = arith.constant 0 : index
    %c7 = arith.constant 7 : index
    %24 = vector.load %arg6[%c0_35, %c7] : memref<24x256xbf16, #tpu.memory_space<vmem>>, vector<6x128xbf16>
    %c60 = arith.constant 60 : index
    %c0_36 = arith.constant 0 : index
    %25 = vector.load %arg7[%c60, %c0_36] : memref<150x512xbf16, #tpu.memory_space<vmem>>, vector<6x128xbf16>
    tpu.vector_store %arg7[%c60, %c0_36], %24 {strides = array<i32>} : memref<150x512xbf16, #tpu.memory_space<vmem>>, vector<6x128xbf16>,
    %c6_37 = arith.constant 6 : index
    %c7_38 = arith.constant 7 : index
    %26 = vector.load %arg6[%c6_37, %c7_38] : memref<24x256xbf16, #tpu.memory_space<vmem>>, vector<6x128xbf16>
    %c66 = arith.constant 66 : index
    %c0_39 = arith.constant 0 : index
    %27 = vector.load %arg7[%c66, %c0_39] : memref<150x512xbf16, #tpu.memory_space<vmem>>, vector<6x128xbf16>
    tpu.vector_store %arg7[%c66, %c0_39], %26 {strides = array<i32>} : memref<150x512xbf16, #tpu.memory_space<vmem>>, vector<6x128xbf16>,
    %c0_40 = arith.constant 0 : index
    %c8 = arith.constant 8 : index
    %28 = vector.load %arg6[%c0_40, %c8] : memref<24x256xbf16, #tpu.memory_space<vmem>>, vector<6x128xbf16>
    %c72 = arith.constant 72 : index
    %c0_41 = arith.constant 0 : index
    %29 = vector.load %arg7[%c72, %c0_41] : memref<150x512xbf16, #tpu.memory_space<vmem>>, vector<6x128xbf16>
    tpu.vector_store %arg7[%c72, %c0_41], %28 {strides = array<i32>} : memref<150x512xbf16, #tpu.memory_space<vmem>>, vector<6x128xbf16>,
    %c6_42 = arith.constant 6 : index
    %c8_43 = arith.constant 8 : index
    %30 = vector.load %arg6[%c6_42, %c8_43] : memref<24x256xbf16, #tpu.memory_space<vmem>>, vector<6x128xbf16>
    %c78 = arith.constant 78 : index
    %c0_44 = arith.constant 0 : index
    %31 = vector.load %arg7[%c78, %c0_44] : memref<150x512xbf16, #tpu.memory_space<vmem>>, vector<6x128xbf16>
    tpu.vector_store %arg7[%c78, %c0_44], %30 {strides = array<i32>} : memref<150x512xbf16, #tpu.memory_space<vmem>>, vector<6x128xbf16>,
    %c0_45 = arith.constant 0 : index
    %c9 = arith.constant 9 : index
    %32 = vector.load %arg6[%c0_45, %c9] : memref<24x256xbf16, #tpu.memory_space<vmem>>, vector<6x128xbf16>
    %c84 = arith.constant 84 : index
    %c0_46 = arith.constant 0 : index
    %33 = vector.load %arg7[%c84, %c0_46] : memref<150x512xbf16, #tpu.memory_space<vmem>>, vector<6x128xbf16>
    tpu.vector_store %arg7[%c84, %c0_46], %32 {strides = array<i32>} : memref<150x512xbf16, #tpu.memory_space<vmem>>, vector<6x128xbf16>,
    %c12_47 = arith.constant 12 : index
    %c7_48 = arith.constant 7 : index
    %34 = vector.load %arg6[%c12_47, %c7_48] : memref<24x256xbf16, #tpu.memory_space<vmem>>, vector<6x128xbf16>
    %c90 = arith.constant 90 : index
    %c0_49 = arith.constant 0 : index
    %35 = vector.load %arg7[%c90, %c0_49] : memref<150x512xbf16, #tpu.memory_space<vmem>>, vector<6x128xbf16>
    tpu.vector_store %arg7[%c90, %c0_49], %34 {strides = array<i32>} : memref<150x512xbf16, #tpu.memory_space<vmem>>, vector<6x128xbf16>,
    %c18_50 = arith.constant 18 : index
    %c7_51 = arith.constant 7 : index
    %36 = vector.load %arg6[%c18_50, %c7_51] : memref<24x256xbf16, #tpu.memory_space<vmem>>, vector<6x128xbf16>
    %c96 = arith.constant 96 : index
    %c0_52 = arith.constant 0 : index
    %37 = vector.load %arg7[%c96, %c0_52] : memref<150x512xbf16, #tpu.memory_space<vmem>>, vector<6x128xbf16>
    tpu.vector_store %arg7[%c96, %c0_52], %36 {strides = array<i32>} : memref<150x512xbf16, #tpu.memory_space<vmem>>, vector<6x128xbf16>,
    %c12_53 = arith.constant 12 : index
    %c8_54 = arith.constant 8 : index
    %38 = vector.load %arg6[%c12_53, %c8_54] : memref<24x256xbf16, #tpu.memory_space<vmem>>, vector<6x128xbf16>
    %c102 = arith.constant 102 : index
    %c0_55 = arith.constant 0 : index
    %39 = vector.load %arg7[%c102, %c0_55] : memref<150x512xbf16, #tpu.memory_space<vmem>>, vector<6x128xbf16>
    tpu.vector_store %arg7[%c102, %c0_55], %38 {strides = array<i32>} : memref<150x512xbf16, #tpu.memory_space<vmem>>, vector<6x128xbf16>,
    %c18_56 = arith.constant 18 : index
    %c8_57 = arith.constant 8 : index
    %40 = vector.load %arg6[%c18_56, %c8_57] : memref<24x256xbf16, #tpu.memory_space<vmem>>, vector<6x128xbf16>
    %c108 = arith.constant 108 : index
    %c0_58 = arith.constant 0 : index
    %41 = vector.load %arg7[%c108, %c0_58] : memref<150x512xbf16, #tpu.memory_space<vmem>>, vector<6x128xbf16>
    tpu.vector_store %arg7[%c108, %c0_58], %40 {strides = array<i32>} : memref<150x512xbf16, #tpu.memory_space<vmem>>, vector<6x128xbf16>,
    %c12_59 = arith.constant 12 : index
    %c9_60 = arith.constant 9 : index
    %42 = vector.load %arg6[%c12_59, %c9_60] : memref<24x256xbf16, #tpu.memory_space<vmem>>, vector<6x128xbf16>
    %c114 = arith.constant 114 : index
    %c0_61 = arith.constant 0 : index
    %43 = vector.load %arg7[%c114, %c0_61] : memref<150x512xbf16, #tpu.memory_space<vmem>>, vector<6x128xbf16>
    tpu.vector_store %arg7[%c114, %c0_61], %42 {strides = array<i32>} : memref<150x512xbf16, #tpu.memory_space<vmem>>, vector<6x128xbf16>,
    %c0_62 = arith.constant 0 : index
    %c14 = arith.constant 14 : index
    %44 = vector.load %arg6[%c0_62, %c14] : memref<24x256xbf16, #tpu.memory_space<vmem>>, vector<6x128xbf16>
    %c120 = arith.constant 120 : index
    %c0_63 = arith.constant 0 : index
    %45 = vector.load %arg7[%c120, %c0_63] : memref<150x512xbf16, #tpu.memory_space<vmem>>, vector<6x128xbf16>
    tpu.vector_store %arg7[%c120, %c0_63], %44 {strides = array<i32>} : memref<150x512xbf16, #tpu.memory_space<vmem>>, vector<6x128xbf16>,
    %c6_64 = arith.constant 6 : index
    %c14_65 = arith.constant 14 : index
    %46 = vector.load %arg6[%c6_64, %c14_65] : memref<24x256xbf16, #tpu.memory_space<vmem>>, vector<6x128xbf16>
    %c126 = arith.constant 126 : index
    %c0_66 = arith.constant 0 : index
    %47 = vector.load %arg7[%c126, %c0_66] : memref<150x512xbf16, #tpu.memory_space<vmem>>, vector<6x128xbf16>
    tpu.vector_store %arg7[%c126, %c0_66], %46 {strides = array<i32>} : memref<150x512xbf16, #tpu.memory_space<vmem>>, vector<6x128xbf16>,
    %c0_67 = arith.constant 0 : index
    %c15 = arith.constant 15 : index
    %48 = vector.load %arg6[%c0_67, %c15] : memref<24x256xbf16, #tpu.memory_space<vmem>>, vector<6x128xbf16>
    %c132 = arith.constant 132 : index
    %c0_68 = arith.constant 0 : index
    %49 = vector.load %arg7[%c132, %c0_68] : memref<150x512xbf16, #tpu.memory_space<vmem>>, vector<6x128xbf16>
    tpu.vector_store %arg7[%c132, %c0_68], %48 {strides = array<i32>} : memref<150x512xbf16, #tpu.memory_space<vmem>>, vector<6x128xbf16>,
    %c6_69 = arith.constant 6 : index
    %c15_70 = arith.constant 15 : index
    %50 = vector.load %arg6[%c6_69, %c15_70] : memref<24x256xbf16, #tpu.memory_space<vmem>>, vector<6x128xbf16>
    %c138 = arith.constant 138 : index
    %c0_71 = arith.constant 0 : index
    %51 = vector.load %arg7[%c138, %c0_71] : memref<150x512xbf16, #tpu.memory_space<vmem>>, vector<6x128xbf16>
    tpu.vector_store %arg7[%c138, %c0_71], %50 {strides = array<i32>} : memref<150x512xbf16, #tpu.memory_space<vmem>>, vector<6x128xbf16>,
    %c0_72 = arith.constant 0 : index
    %c16 = arith.constant 16 : index
    %52 = vector.load %arg6[%c0_72, %c16] : memref<24x256xbf16, #tpu.memory_space<vmem>>, vector<6x128xbf16>
    %c144 = arith.constant 144 : index
    %c0_73 = arith.constant 0 : index
    %53 = vector.load %arg7[%c144, %c0_73] : memref<150x512xbf16, #tpu.memory_space<vmem>>, vector<6x128xbf16>
    tpu.vector_store %arg7[%c144, %c0_73], %52 {strides = array<i32>} : memref<150x512xbf16, #tpu.memory_space<vmem>>, vector<6x128xbf16>,
    %c6_74 = arith.constant 6 : index
    %c0_75 = arith.constant 0 : index
    %54 = vector.load %arg6[%c6_74, %c0_75] : memref<24x256xbf16, #tpu.memory_space<vmem>>, vector<6x128xbf16>
    %c0_76 = arith.constant 0 : index
    %c128_77 = arith.constant 128 : index
    %55 = vector.load %arg7[%c0_76, %c128_77] : memref<150x512xbf16, #tpu.memory_space<vmem>>, vector<6x128xbf16>
    tpu.vector_store %arg7[%c0_76, %c128_77], %54 {strides = array<i32>} : memref<150x512xbf16, #tpu.memory_space<vmem>>, vector<6x128xbf16>,
    %c0_78 = arith.constant 0 : index
    %c1_79 = arith.constant 1 : index
    %56 = vector.load %arg6[%c0_78, %c1_79] : memref<24x256xbf16, #tpu.memory_space<vmem>>, vector<6x128xbf16>
    %c6_80 = arith.constant 6 : index
    %c128_81 = arith.constant 128 : index
    %57 = vector.load %arg7[%c6_80, %c128_81] : memref<150x512xbf16, #tpu.memory_space<vmem>>, vector<6x128xbf16>
    tpu.vector_store %arg7[%c6_80, %c128_81], %56 {strides = array<i32>} : memref<150x512xbf16, #tpu.memory_space<vmem>>, vector<6x128xbf16>,
    %c6_82 = arith.constant 6 : index
    %c1_83 = arith.constant 1 : index
    %58 = vector.load %arg6[%c6_82, %c1_83] : memref<24x256xbf16, #tpu.memory_space<vmem>>, vector<6x128xbf16>
    %c12_84 = arith.constant 12 : index
    %c128_85 = arith.constant 128 : index
    %59 = vector.load %arg7[%c12_84, %c128_85] : memref<150x512xbf16, #tpu.memory_space<vmem>>, vector<6x128xbf16>
    tpu.vector_store %arg7[%c12_84, %c128_85], %58 {strides = array<i32>} : memref<150x512xbf16, #tpu.memory_space<vmem>>, vector<6x128xbf16>,
    %c0_86 = arith.constant 0 : index
    %c2_87 = arith.constant 2 : index
    %60 = vector.load %arg6[%c0_86, %c2_87] : memref<24x256xbf16, #tpu.memory_space<vmem>>, vector<6x128xbf16>
    %c18_88 = arith.constant 18 : index
    %c128_89 = arith.constant 128 : index
    %61 = vector.load %arg7[%c18_88, %c128_89] : memref<150x512xbf16, #tpu.memory_space<vmem>>, vector<6x128xbf16>
    tpu.vector_store %arg7[%c18_88, %c128_89], %60 {strides = array<i32>} : memref<150x512xbf16, #tpu.memory_space<vmem>>, vector<6x128xbf16>,
    %c6_90 = arith.constant 6 : index
    %c2_91 = arith.constant 2 : index
    %62 = vector.load %arg6[%c6_90, %c2_91] : memref<24x256xbf16, #tpu.memory_space<vmem>>, vector<6x128xbf16>
    %c24_92 = arith.constant 24 : index
    %c128_93 = arith.constant 128 : index
    %63 = vector.load %arg7[%c24_92, %c128_93] : memref<150x512xbf16, #tpu.memory_space<vmem>>, vector<6x128xbf16>
    tpu.vector_store %arg7[%c24_92, %c128_93], %62 {strides = array<i32>} : memref<150x512xbf16, #tpu.memory_space<vmem>>, vector<6x128xbf16>,
    %c18_94 = arith.constant 18 : index
    %c0_95 = arith.constant 0 : index
    %64 = vector.load %arg6[%c18_94, %c0_95] : memref<24x256xbf16, #tpu.memory_space<vmem>>, vector<6x128xbf16>
    %c30_96 = arith.constant 30 : index
    %c128_97 = arith.constant 128 : index
    %65 = vector.load %arg7[%c30_96, %c128_97] : memref<150x512xbf16, #tpu.memory_space<vmem>>, vector<6x128xbf16>
    tpu.vector_store %arg7[%c30_96, %c128_97], %64 {strides = array<i32>} : memref<150x512xbf16, #tpu.memory_space<vmem>>, vector<6x128xbf16>,
    %c12_98 = arith.constant 12 : index
    %c1_99 = arith.constant 1 : index
    %66 = vector.load %arg6[%c12_98, %c1_99] : memref<24x256xbf16, #tpu.memory_space<vmem>>, vector<6x128xbf16>
    %c36_100 = arith.constant 36 : index
    %c128_101 = arith.constant 128 : index
    %67 = vector.load %arg7[%c36_100, %c128_101] : memref<150x512xbf16, #tpu.memory_space<vmem>>, vector<6x128xbf16>
    tpu.vector_store %arg7[%c36_100, %c128_101], %66 {strides = array<i32>} : memref<150x512xbf16, #tpu.memory_space<vmem>>, vector<6x128xbf16>,
    %c18_102 = arith.constant 18 : index
    %c1_103 = arith.constant 1 : index
    %68 = vector.load %arg6[%c18_102, %c1_103] : memref<24x256xbf16, #tpu.memory_space<vmem>>, vector<6x128xbf16>
    %c42_104 = arith.constant 42 : index
    %c128_105 = arith.constant 128 : index
    %69 = vector.load %arg7[%c42_104, %c128_105] : memref<150x512xbf16, #tpu.memory_space<vmem>>, vector<6x128xbf16>
    tpu.vector_store %arg7[%c42_104, %c128_105], %68 {strides = array<i32>} : memref<150x512xbf16, #tpu.memory_space<vmem>>, vector<6x128xbf16>,
    %c12_106 = arith.constant 12 : index
    %c2_107 = arith.constant 2 : index
    %70 = vector.load %arg6[%c12_106, %c2_107] : memref<24x256xbf16, #tpu.memory_space<vmem>>, vector<6x128xbf16>
    %c48_108 = arith.constant 48 : index
    %c128_109 = arith.constant 128 : index
    %71 = vector.load %arg7[%c48_108, %c128_109] : memref<150x512xbf16, #tpu.memory_space<vmem>>, vector<6x128xbf16>
    tpu.vector_store %arg7[%c48_108, %c128_109], %70 {strides = array<i32>} : memref<150x512xbf16, #tpu.memory_space<vmem>>, vector<6x128xbf16>,
    %c18_110 = arith.constant 18 : index
    %c2_111 = arith.constant 2 : index
    %72 = vector.load %arg6[%c18_110, %c2_111] : memref<24x256xbf16, #tpu.memory_space<vmem>>, vector<6x128xbf16>
    %c54_112 = arith.constant 54 : index
    %c128_113 = arith.constant 128 : index
    %73 = vector.load %arg7[%c54_112, %c128_113] : memref<150x512xbf16, #tpu.memory_space<vmem>>, vector<6x128xbf16>
    tpu.vector_store %arg7[%c54_112, %c128_113], %72 {strides = array<i32>} : memref<150x512xbf16, #tpu.memory_space<vmem>>, vector<6x128xbf16>,
    %c6_114 = arith.constant 6 : index
    %c7_115 = arith.constant 7 : index
    %74 = vector.load %arg6[%c6_114, %c7_115] : memref<24x256xbf16, #tpu.memory_space<vmem>>, vector<6x128xbf16>
    %c60_116 = arith.constant 60 : index
    %c128_117 = arith.constant 128 : index
    %75 = vector.load %arg7[%c60_116, %c128_117] : memref<150x512xbf16, #tpu.memory_space<vmem>>, vector<6x128xbf16>
    tpu.vector_store %arg7[%c60_116, %c128_117], %74 {strides = array<i32>} : memref<150x512xbf16, #tpu.memory_space<vmem>>, vector<6x128xbf16>,
    %c0_118 = arith.constant 0 : index
    %c8_119 = arith.constant 8 : index
    %76 = vector.load %arg6[%c0_118, %c8_119] : memref<24x256xbf16, #tpu.memory_space<vmem>>, vector<6x128xbf16>
    %c66_120 = arith.constant 66 : index
    %c128_121 = arith.constant 128 : index
    %77 = vector.load %arg7[%c66_120, %c128_121] : memref<150x512xbf16, #tpu.memory_space<vmem>>, vector<6x128xbf16>
    tpu.vector_store %arg7[%c66_120, %c128_121], %76 {strides = array<i32>} : memref<150x512xbf16, #tpu.memory_space<vmem>>, vector<6x128xbf16>,
    %c6_122 = arith.constant 6 : index
    %c8_123 = arith.constant 8 : index
    %78 = vector.load %arg6[%c6_122, %c8_123] : memref<24x256xbf16, #tpu.memory_space<vmem>>, vector<6x128xbf16>
    %c72_124 = arith.constant 72 : index
    %c128_125 = arith.constant 128 : index
    %79 = vector.load %arg7[%c72_124, %c128_125] : memref<150x512xbf16, #tpu.memory_space<vmem>>, vector<6x128xbf16>
    tpu.vector_store %arg7[%c72_124, %c128_125], %78 {strides = array<i32>} : memref<150x512xbf16, #tpu.memory_space<vmem>>, vector<6x128xbf16>,
    %c0_126 = arith.constant 0 : index
    %c9_127 = arith.constant 9 : index
    %80 = vector.load %arg6[%c0_126, %c9_127] : memref<24x256xbf16, #tpu.memory_space<vmem>>, vector<6x128xbf16>
    %c78_128 = arith.constant 78 : index
    %c128_129 = arith.constant 128 : index
    %81 = vector.load %arg7[%c78_128, %c128_129] : memref<150x512xbf16, #tpu.memory_space<vmem>>, vector<6x128xbf16>
    tpu.vector_store %arg7[%c78_128, %c128_129], %80 {strides = array<i32>} : memref<150x512xbf16, #tpu.memory_space<vmem>>, vector<6x128xbf16>,
    %c6_130 = arith.constant 6 : index
    %c9_131 = arith.constant 9 : index
    %82 = vector.load %arg6[%c6_130, %c9_131] : memref<24x256xbf16, #tpu.memory_space<vmem>>, vector<6x128xbf16>
    %c84_132 = arith.constant 84 : index
    %c128_133 = arith.constant 128 : index
    %83 = vector.load %arg7[%c84_132, %c128_133] : memref<150x512xbf16, #tpu.memory_space<vmem>>, vector<6x128xbf16>
    tpu.vector_store %arg7[%c84_132, %c128_133], %82 {strides = array<i32>} : memref<150x512xbf16, #tpu.memory_space<vmem>>, vector<6x128xbf16>,
    %c18_134 = arith.constant 18 : index
    %c7_135 = arith.constant 7 : index
    %84 = vector.load %arg6[%c18_134, %c7_135] : memref<24x256xbf16, #tpu.memory_space<vmem>>, vector<6x128xbf16>
    %c90_136 = arith.constant 90 : index
    %c128_137 = arith.constant 128 : index
    %85 = vector.load %arg7[%c90_136, %c128_137] : memref<150x512xbf16, #tpu.memory_space<vmem>>, vector<6x128xbf16>
    tpu.vector_store %arg7[%c90_136, %c128_137], %84 {strides = array<i32>} : memref<150x512xbf16, #tpu.memory_space<vmem>>, vector<6x128xbf16>,
    %c12_138 = arith.constant 12 : index
    %c8_139 = arith.constant 8 : index
    %86 = vector.load %arg6[%c12_138, %c8_139] : memref<24x256xbf16, #tpu.memory_space<vmem>>, vector<6x128xbf16>
    %c96_140 = arith.constant 96 : index
    %c128_141 = arith.constant 128 : index
    %87 = vector.load %arg7[%c96_140, %c128_141] : memref<150x512xbf16, #tpu.memory_space<vmem>>, vector<6x128xbf16>
    tpu.vector_store %arg7[%c96_140, %c128_141], %86 {strides = array<i32>} : memref<150x512xbf16, #tpu.memory_space<vmem>>, vector<6x128xbf16>,
    %c18_142 = arith.constant 18 : index
    %c8_143 = arith.constant 8 : index
    %88 = vector.load %arg6[%c18_142, %c8_143] : memref<24x256xbf16, #tpu.memory_space<vmem>>, vector<6x128xbf16>
    %c102_144 = arith.constant 102 : index
    %c128_145 = arith.constant 128 : index
    %89 = vector.load %arg7[%c102_144, %c128_145] : memref<150x512xbf16, #tpu.memory_space<vmem>>, vector<6x128xbf16>
    tpu.vector_store %arg7[%c102_144, %c128_145], %88 {strides = array<i32>} : memref<150x512xbf16, #tpu.memory_space<vmem>>, vector<6x128xbf16>,
    %c12_146 = arith.constant 12 : index
    %c9_147 = arith.constant 9 : index
    %90 = vector.load %arg6[%c12_146, %c9_147] : memref<24x256xbf16, #tpu.memory_space<vmem>>, vector<6x128xbf16>
    %c108_148 = arith.constant 108 : index
    %c128_149 = arith.constant 128 : index
    %91 = vector.load %arg7[%c108_148, %c128_149] : memref<150x512xbf16, #tpu.memory_space<vmem>>, vector<6x128xbf16>
    tpu.vector_store %arg7[%c108_148, %c128_149], %90 {strides = array<i32>} : memref<150x512xbf16, #tpu.memory_space<vmem>>, vector<6x128xbf16>,
    %c18_150 = arith.constant 18 : index
    %c9_151 = arith.constant 9 : index
    %92 = vector.load %arg6[%c18_150, %c9_151] : memref<24x256xbf16, #tpu.memory_space<vmem>>, vector<6x128xbf16>
    %c114_152 = arith.constant 114 : index
    %c128_153 = arith.constant 128 : index
    %93 = vector.load %arg7[%c114_152, %c128_153] : memref<150x512xbf16, #tpu.memory_space<vmem>>, vector<6x128xbf16>
    tpu.vector_store %arg7[%c114_152, %c128_153], %92 {strides = array<i32>} : memref<150x512xbf16, #tpu.memory_space<vmem>>, vector<6x128xbf16>,
    %c6_154 = arith.constant 6 : index
    %c14_155 = arith.constant 14 : index
    %94 = vector.load %arg6[%c6_154, %c14_155] : memref<24x256xbf16, #tpu.memory_space<vmem>>, vector<6x128xbf16>
    %c120_156 = arith.constant 120 : index
    %c128_157 = arith.constant 128 : index
    %95 = vector.load %arg7[%c120_156, %c128_157] : memref<150x512xbf16, #tpu.memory_space<vmem>>, vector<6x128xbf16>
    tpu.vector_store %arg7[%c120_156, %c128_157], %94 {strides = array<i32>} : memref<150x512xbf16, #tpu.memory_space<vmem>>, vector<6x128xbf16>,
    %c0_158 = arith.constant 0 : index
    %c15_159 = arith.constant 15 : index
    %96 = vector.load %arg6[%c0_158, %c15_159] : memref<24x256xbf16, #tpu.memory_space<vmem>>, vector<6x128xbf16>
    %c126_160 = arith.constant 126 : index
    %c128_161 = arith.constant 128 : index
    %97 = vector.load %arg7[%c126_160, %c128_161] : memref<150x512xbf16, #tpu.memory_space<vmem>>, vector<6x128xbf16>
    tpu.vector_store %arg7[%c126_160, %c128_161], %96 {strides = array<i32>} : memref<150x512xbf16, #tpu.memory_space<vmem>>, vector<6x128xbf16>,
    %c6_162 = arith.constant 6 : index
    %c15_163 = arith.constant 15 : index
    %98 = vector.load %arg6[%c6_162, %c15_163] : memref<24x256xbf16, #tpu.memory_space<vmem>>, vector<6x128xbf16>
    %c132_164 = arith.constant 132 : index
    %c128_165 = arith.constant 128 : index
    %99 = vector.load %arg7[%c132_164, %c128_165] : memref<150x512xbf16, #tpu.memory_space<vmem>>, vector<6x128xbf16>
    tpu.vector_store %arg7[%c132_164, %c128_165], %98 {strides = array<i32>} : memref<150x512xbf16, #tpu.memory_space<vmem>>, vector<6x128xbf16>,
    %c0_166 = arith.constant 0 : index
    %c16_167 = arith.constant 16 : index
    %100 = vector.load %arg6[%c0_166, %c16_167] : memref<24x256xbf16, #tpu.memory_space<vmem>>, vector<6x128xbf16>
    %c138_168 = arith.constant 138 : index
    %c128_169 = arith.constant 128 : index
    %101 = vector.load %arg7[%c138_168, %c128_169] : memref<150x512xbf16, #tpu.memory_space<vmem>>, vector<6x128xbf16>
    tpu.vector_store %arg7[%c138_168, %c128_169], %100 {strides = array<i32>} : memref<150x512xbf16, #tpu.memory_space<vmem>>, vector<6x128xbf16>,
    %c6_170 = arith.constant 6 : index
    %c16_171 = arith.constant 16 : index
    %102 = vector.load %arg6[%c6_170, %c16_171] : memref<24x256xbf16, #tpu.memory_space<vmem>>, vector<6x128xbf16>
    %c144_172 = arith.constant 144 : index
    %c128_173 = arith.constant 128 : index
    %103 = vector.load %arg7[%c144_172, %c128_173] : memref<150x512xbf16, #tpu.memory_space<vmem>>, vector<6x128xbf16>
    tpu.vector_store %arg7[%c144_172, %c128_173], %102 {strides = array<i32>} : memref<150x512xbf16, #tpu.memory_space<vmem>>, vector<6x128xbf16>,
    %c12_174 = arith.constant 12 : index
    %c0_175 = arith.constant 0 : index
    %104 = vector.load %arg6[%c12_174, %c0_175] : memref<24x256xbf16, #tpu.memory_space<vmem>>, vector<6x128xbf16>
    %c0_176 = arith.constant 0 : index
    %c256 = arith.constant 256 : index
    %105 = vector.load %arg7[%c0_176, %c256] : memref<150x512xbf16, #tpu.memory_space<vmem>>, vector<6x128xbf16>
    tpu.vector_store %arg7[%c0_176, %c256], %104 {strides = array<i32>} : memref<150x512xbf16, #tpu.memory_space<vmem>>, vector<6x128xbf16>,
    %c18_177 = arith.constant 18 : index
    %c0_178 = arith.constant 0 : index
    %106 = vector.load %arg6[%c18_177, %c0_178] : memref<24x256xbf16, #tpu.memory_space<vmem>>, vector<6x128xbf16>
    %c6_179 = arith.constant 6 : index
    %c256_180 = arith.constant 256 : index
    %107 = vector.load %arg7[%c6_179, %c256_180] : memref<150x512xbf16, #tpu.memory_space<vmem>>, vector<6x128xbf16>
    tpu.vector_store %arg7[%c6_179, %c256_180], %106 {strides = array<i32>} : memref<150x512xbf16, #tpu.memory_space<vmem>>, vector<6x128xbf16>,
    %c12_181 = arith.constant 12 : index
    %c1_182 = arith.constant 1 : index
    %108 = vector.load %arg6[%c12_181, %c1_182] : memref<24x256xbf16, #tpu.memory_space<vmem>>, vector<6x128xbf16>
    %c12_183 = arith.constant 12 : index
    %c256_184 = arith.constant 256 : index
    %109 = vector.load %arg7[%c12_183, %c256_184] : memref<150x512xbf16, #tpu.memory_space<vmem>>, vector<6x128xbf16>
    tpu.vector_store %arg7[%c12_183, %c256_184], %108 {strides = array<i32>} : memref<150x512xbf16, #tpu.memory_space<vmem>>, vector<6x128xbf16>,
    %c18_185 = arith.constant 18 : index
    %c1_186 = arith.constant 1 : index
    %110 = vector.load %arg6[%c18_185, %c1_186] : memref<24x256xbf16, #tpu.memory_space<vmem>>, vector<6x128xbf16>
    %c18_187 = arith.constant 18 : index
    %c256_188 = arith.constant 256 : index
    %111 = vector.load %arg7[%c18_187, %c256_188] : memref<150x512xbf16, #tpu.memory_space<vmem>>, vector<6x128xbf16>
    tpu.vector_store %arg7[%c18_187, %c256_188], %110 {strides = array<i32>} : memref<150x512xbf16, #tpu.memory_space<vmem>>, vector<6x128xbf16>,
    %c12_189 = arith.constant 12 : index
    %c2_190 = arith.constant 2 : index
    %112 = vector.load %arg6[%c12_189, %c2_190] : memref<24x256xbf16, #tpu.memory_space<vmem>>, vector<6x128xbf16>
    %c24_191 = arith.constant 24 : index
    %c256_192 = arith.constant 256 : index
    %113 = vector.load %arg7[%c24_191, %c256_192] : memref<150x512xbf16, #tpu.memory_space<vmem>>, vector<6x128xbf16>
    tpu.vector_store %arg7[%c24_191, %c256_192], %112 {strides = array<i32>} : memref<150x512xbf16, #tpu.memory_space<vmem>>, vector<6x128xbf16>,
    %c0_193 = arith.constant 0 : index
    %c7_194 = arith.constant 7 : index
    %114 = vector.load %arg6[%c0_193, %c7_194] : memref<24x256xbf16, #tpu.memory_space<vmem>>, vector<6x128xbf16>
    %c30_195 = arith.constant 30 : index
    %c256_196 = arith.constant 256 : index
    %115 = vector.load %arg7[%c30_195, %c256_196] : memref<150x512xbf16, #tpu.memory_space<vmem>>, vector<6x128xbf16>
    tpu.vector_store %arg7[%c30_195, %c256_196], %114 {strides = array<i32>} : memref<150x512xbf16, #tpu.memory_space<vmem>>, vector<6x128xbf16>,
    %c6_197 = arith.constant 6 : index
    %c7_198 = arith.constant 7 : index
    %116 = vector.load %arg6[%c6_197, %c7_198] : memref<24x256xbf16, #tpu.memory_space<vmem>>, vector<6x128xbf16>
    %c36_199 = arith.constant 36 : index
    %c256_200 = arith.constant 256 : index
    %117 = vector.load %arg7[%c36_199, %c256_200] : memref<150x512xbf16, #tpu.memory_space<vmem>>, vector<6x128xbf16>
    tpu.vector_store %arg7[%c36_199, %c256_200], %116 {strides = array<i32>} : memref<150x512xbf16, #tpu.memory_space<vmem>>, vector<6x128xbf16>,
    %c0_201 = arith.constant 0 : index
    %c8_202 = arith.constant 8 : index
    %118 = vector.load %arg6[%c0_201, %c8_202] : memref<24x256xbf16, #tpu.memory_space<vmem>>, vector<6x128xbf16>
    %c42_203 = arith.constant 42 : index
    %c256_204 = arith.constant 256 : index
    %119 = vector.load %arg7[%c42_203, %c256_204] : memref<150x512xbf16, #tpu.memory_space<vmem>>, vector<6x128xbf16>
    tpu.vector_store %arg7[%c42_203, %c256_204], %118 {strides = array<i32>} : memref<150x512xbf16, #tpu.memory_space<vmem>>, vector<6x128xbf16>,
    %c6_205 = arith.constant 6 : index
    %c8_206 = arith.constant 8 : index
    %120 = vector.load %arg6[%c6_205, %c8_206] : memref<24x256xbf16, #tpu.memory_space<vmem>>, vector<6x128xbf16>
    %c48_207 = arith.constant 48 : index
    %c256_208 = arith.constant 256 : index
    %121 = vector.load %arg7[%c48_207, %c256_208] : memref<150x512xbf16, #tpu.memory_space<vmem>>, vector<6x128xbf16>
    tpu.vector_store %arg7[%c48_207, %c256_208], %120 {strides = array<i32>} : memref<150x512xbf16, #tpu.memory_space<vmem>>, vector<6x128xbf16>,
    %c0_209 = arith.constant 0 : index
    %c9_210 = arith.constant 9 : index
    %122 = vector.load %arg6[%c0_209, %c9_210] : memref<24x256xbf16, #tpu.memory_space<vmem>>, vector<6x128xbf16>
    %c54_211 = arith.constant 54 : index
    %c256_212 = arith.constant 256 : index
    %123 = vector.load %arg7[%c54_211, %c256_212] : memref<150x512xbf16, #tpu.memory_space<vmem>>, vector<6x128xbf16>
    tpu.vector_store %arg7[%c54_211, %c256_212], %122 {strides = array<i32>} : memref<150x512xbf16, #tpu.memory_space<vmem>>, vector<6x128xbf16>,
    %c12_213 = arith.constant 12 : index
    %c7_214 = arith.constant 7 : index
    %124 = vector.load %arg6[%c12_213, %c7_214] : memref<24x256xbf16, #tpu.memory_space<vmem>>, vector<6x128xbf16>
    %c60_215 = arith.constant 60 : index
    %c256_216 = arith.constant 256 : index
    %125 = vector.load %arg7[%c60_215, %c256_216] : memref<150x512xbf16, #tpu.memory_space<vmem>>, vector<6x128xbf16>
    tpu.vector_store %arg7[%c60_215, %c256_216], %124 {strides = array<i32>} : memref<150x512xbf16, #tpu.memory_space<vmem>>, vector<6x128xbf16>,
    %c18_217 = arith.constant 18 : index
    %c7_218 = arith.constant 7 : index
    %126 = vector.load %arg6[%c18_217, %c7_218] : memref<24x256xbf16, #tpu.memory_space<vmem>>, vector<6x128xbf16>
    %c66_219 = arith.constant 66 : index
    %c256_220 = arith.constant 256 : index
    %127 = vector.load %arg7[%c66_219, %c256_220] : memref<150x512xbf16, #tpu.memory_space<vmem>>, vector<6x128xbf16>
    tpu.vector_store %arg7[%c66_219, %c256_220], %126 {strides = array<i32>} : memref<150x512xbf16, #tpu.memory_space<vmem>>, vector<6x128xbf16>,
    %c12_221 = arith.constant 12 : index
    %c8_222 = arith.constant 8 : index
    %128 = vector.load %arg6[%c12_221, %c8_222] : memref<24x256xbf16, #tpu.memory_space<vmem>>, vector<6x128xbf16>
    %c72_223 = arith.constant 72 : index
    %c256_224 = arith.constant 256 : index
    %129 = vector.load %arg7[%c72_223, %c256_224] : memref<150x512xbf16, #tpu.memory_space<vmem>>, vector<6x128xbf16>
    tpu.vector_store %arg7[%c72_223, %c256_224], %128 {strides = array<i32>} : memref<150x512xbf16, #tpu.memory_space<vmem>>, vector<6x128xbf16>,
    %c18_225 = arith.constant 18 : index
    %c8_226 = arith.constant 8 : index
    %130 = vector.load %arg6[%c18_225, %c8_226] : memref<24x256xbf16, #tpu.memory_space<vmem>>, vector<6x128xbf16>
    %c78_227 = arith.constant 78 : index
    %c256_228 = arith.constant 256 : index
    %131 = vector.load %arg7[%c78_227, %c256_228] : memref<150x512xbf16, #tpu.memory_space<vmem>>, vector<6x128xbf16>
    tpu.vector_store %arg7[%c78_227, %c256_228], %130 {strides = array<i32>} : memref<150x512xbf16, #tpu.memory_space<vmem>>, vector<6x128xbf16>,
    %c12_229 = arith.constant 12 : index
    %c9_230 = arith.constant 9 : index
    %132 = vector.load %arg6[%c12_229, %c9_230] : memref<24x256xbf16, #tpu.memory_space<vmem>>, vector<6x128xbf16>
    %c84_231 = arith.constant 84 : index
    %c256_232 = arith.constant 256 : index
    %133 = vector.load %arg7[%c84_231, %c256_232] : memref<150x512xbf16, #tpu.memory_space<vmem>>, vector<6x128xbf16>
    tpu.vector_store %arg7[%c84_231, %c256_232], %132 {strides = array<i32>} : memref<150x512xbf16, #tpu.memory_space<vmem>>, vector<6x128xbf16>,
    %c0_233 = arith.constant 0 : index
    %c14_234 = arith.constant 14 : index
    %134 = vector.load %arg6[%c0_233, %c14_234] : memref<24x256xbf16, #tpu.memory_space<vmem>>, vector<6x128xbf16>
    %c90_235 = arith.constant 90 : index
    %c256_236 = arith.constant 256 : index
    %135 = vector.load %arg7[%c90_235, %c256_236] : memref<150x512xbf16, #tpu.memory_space<vmem>>, vector<6x128xbf16>
    tpu.vector_store %arg7[%c90_235, %c256_236], %134 {strides = array<i32>} : memref<150x512xbf16, #tpu.memory_space<vmem>>, vector<6x128xbf16>,
    %c6_237 = arith.constant 6 : index
    %c14_238 = arith.constant 14 : index
    %136 = vector.load %arg6[%c6_237, %c14_238] : memref<24x256xbf16, #tpu.memory_space<vmem>>, vector<6x128xbf16>
    %c96_239 = arith.constant 96 : index
    %c256_240 = arith.constant 256 : index
    %137 = vector.load %arg7[%c96_239, %c256_240] : memref<150x512xbf16, #tpu.memory_space<vmem>>, vector<6x128xbf16>
    tpu.vector_store %arg7[%c96_239, %c256_240], %136 {strides = array<i32>} : memref<150x512xbf16, #tpu.memory_space<vmem>>, vector<6x128xbf16>,
    %c0_241 = arith.constant 0 : index
    %c15_242 = arith.constant 15 : index
    %138 = vector.load %arg6[%c0_241, %c15_242] : memref<24x256xbf16, #tpu.memory_space<vmem>>, vector<6x128xbf16>
    %c102_243 = arith.constant 102 : index
    %c256_244 = arith.constant 256 : index
    %139 = vector.load %arg7[%c102_243, %c256_244] : memref<150x512xbf16, #tpu.memory_space<vmem>>, vector<6x128xbf16>
    tpu.vector_store %arg7[%c102_243, %c256_244], %138 {strides = array<i32>} : memref<150x512xbf16, #tpu.memory_space<vmem>>, vector<6x128xbf16>,
    %c6_245 = arith.constant 6 : index
    %c15_246 = arith.constant 15 : index
    %140 = vector.load %arg6[%c6_245, %c15_246] : memref<24x256xbf16, #tpu.memory_space<vmem>>, vector<6x128xbf16>
    %c108_247 = arith.constant 108 : index
    %c256_248 = arith.constant 256 : index
    %141 = vector.load %arg7[%c108_247, %c256_248] : memref<150x512xbf16, #tpu.memory_space<vmem>>, vector<6x128xbf16>
    tpu.vector_store %arg7[%c108_247, %c256_248], %140 {strides = array<i32>} : memref<150x512xbf16, #tpu.memory_space<vmem>>, vector<6x128xbf16>,
    %c0_249 = arith.constant 0 : index
    %c16_250 = arith.constant 16 : index
    %142 = vector.load %arg6[%c0_249, %c16_250] : memref<24x256xbf16, #tpu.memory_space<vmem>>, vector<6x128xbf16>
    %c114_251 = arith.constant 114 : index
    %c256_252 = arith.constant 256 : index
    %143 = vector.load %arg7[%c114_251, %c256_252] : memref<150x512xbf16, #tpu.memory_space<vmem>>, vector<6x128xbf16>
    tpu.vector_store %arg7[%c114_251, %c256_252], %142 {strides = array<i32>} : memref<150x512xbf16, #tpu.memory_space<vmem>>, vector<6x128xbf16>,
    %c12_253 = arith.constant 12 : index
    %c14_254 = arith.constant 14 : index
    %144 = vector.load %arg6[%c12_253, %c14_254] : memref<24x256xbf16, #tpu.memory_space<vmem>>, vector<6x128xbf16>
    %c120_255 = arith.constant 120 : index
    %c256_256 = arith.constant 256 : index
    %145 = vector.load %arg7[%c120_255, %c256_256] : memref<150x512xbf16, #tpu.memory_space<vmem>>, vector<6x128xbf16>
    tpu.vector_store %arg7[%c120_255, %c256_256], %144 {strides = array<i32>} : memref<150x512xbf16, #tpu.memory_space<vmem>>, vector<6x128xbf16>,
    %c18_257 = arith.constant 18 : index
    %c14_258 = arith.constant 14 : index
    %146 = vector.load %arg6[%c18_257, %c14_258] : memref<24x256xbf16, #tpu.memory_space<vmem>>, vector<6x128xbf16>
    %c126_259 = arith.constant 126 : index
    %c256_260 = arith.constant 256 : index
    %147 = vector.load %arg7[%c126_259, %c256_260] : memref<150x512xbf16, #tpu.memory_space<vmem>>, vector<6x128xbf16>
    tpu.vector_store %arg7[%c126_259, %c256_260], %146 {strides = array<i32>} : memref<150x512xbf16, #tpu.memory_space<vmem>>, vector<6x128xbf16>,
    %c12_261 = arith.constant 12 : index
    %c15_262 = arith.constant 15 : index
    %148 = vector.load %arg6[%c12_261, %c15_262] : memref<24x256xbf16, #tpu.memory_space<vmem>>, vector<6x128xbf16>
    %c132_263 = arith.constant 132 : index
    %c256_264 = arith.constant 256 : index
    %149 = vector.load %arg7[%c132_263, %c256_264] : memref<150x512xbf16, #tpu.memory_space<vmem>>, vector<6x128xbf16>
    tpu.vector_store %arg7[%c132_263, %c256_264], %148 {strides = array<i32>} : memref<150x512xbf16, #tpu.memory_space<vmem>>, vector<6x128xbf16>,
    %c18_265 = arith.constant 18 : index
    %c15_266 = arith.constant 15 : index
    %150 = vector.load %arg6[%c18_265, %c15_266] : memref<24x256xbf16, #tpu.memory_space<vmem>>, vector<6x128xbf16>
    %c138_267 = arith.constant 138 : index
    %c256_268 = arith.constant 256 : index
    %151 = vector.load %arg7[%c138_267, %c256_268] : memref<150x512xbf16, #tpu.memory_space<vmem>>, vector<6x128xbf16>
    tpu.vector_store %arg7[%c138_267, %c256_268], %150 {strides = array<i32>} : memref<150x512xbf16, #tpu.memory_space<vmem>>, vector<6x128xbf16>,
    %c12_269 = arith.constant 12 : index
    %c16_270 = arith.constant 16 : index
    %152 = vector.load %arg6[%c12_269, %c16_270] : memref<24x256xbf16, #tpu.memory_space<vmem>>, vector<6x128xbf16>
    %c144_271 = arith.constant 144 : index
    %c256_272 = arith.constant 256 : index
    %153 = vector.load %arg7[%c144_271, %c256_272] : memref<150x512xbf16, #tpu.memory_space<vmem>>, vector<6x128xbf16>
    tpu.vector_store %arg7[%c144_271, %c256_272], %152 {strides = array<i32>} : memref<150x512xbf16, #tpu.memory_space<vmem>>, vector<6x128xbf16>,
    %c18_273 = arith.constant 18 : index
    %c0_274 = arith.constant 0 : index
    %154 = vector.load %arg6[%c18_273, %c0_274] : memref<24x256xbf16, #tpu.memory_space<vmem>>, vector<6x128xbf16>
    %c0_275 = arith.constant 0 : index
    %c384 = arith.constant 384 : index
    %155 = vector.load %arg7[%c0_275, %c384] : memref<150x512xbf16, #tpu.memory_space<vmem>>, vector<6x128xbf16>
    tpu.vector_store %arg7[%c0_275, %c384], %154 {strides = array<i32>} : memref<150x512xbf16, #tpu.memory_space<vmem>>, vector<6x128xbf16>,
    %c12_276 = arith.constant 12 : index
    %c1_277 = arith.constant 1 : index
    %156 = vector.load %arg6[%c12_276, %c1_277] : memref<24x256xbf16, #tpu.memory_space<vmem>>, vector<6x128xbf16>
    %c6_278 = arith.constant 6 : index
    %c384_279 = arith.constant 384 : index
    %157 = vector.load %arg7[%c6_278, %c384_279] : memref<150x512xbf16, #tpu.memory_space<vmem>>, vector<6x128xbf16>
    tpu.vector_store %arg7[%c6_278, %c384_279], %156 {strides = array<i32>} : memref<150x512xbf16, #tpu.memory_space<vmem>>, vector<6x128xbf16>,
    %c18_280 = arith.constant 18 : index
    %c1_281 = arith.constant 1 : index
    %158 = vector.load %arg6[%c18_280, %c1_281] : memref<24x256xbf16, #tpu.memory_space<vmem>>, vector<6x128xbf16>
    %c12_282 = arith.constant 12 : index
    %c384_283 = arith.constant 384 : index
    %159 = vector.load %arg7[%c12_282, %c384_283] : memref<150x512xbf16, #tpu.memory_space<vmem>>, vector<6x128xbf16>
    tpu.vector_store %arg7[%c12_282, %c384_283], %158 {strides = array<i32>} : memref<150x512xbf16, #tpu.memory_space<vmem>>, vector<6x128xbf16>,
    %c12_284 = arith.constant 12 : index
    %c2_285 = arith.constant 2 : index
    %160 = vector.load %arg6[%c12_284, %c2_285] : memref<24x256xbf16, #tpu.memory_space<vmem>>, vector<6x128xbf16>
    %c18_286 = arith.constant 18 : index
    %c384_287 = arith.constant 384 : index
    %161 = vector.load %arg7[%c18_286, %c384_287] : memref<150x512xbf16, #tpu.memory_space<vmem>>, vector<6x128xbf16>
    tpu.vector_store %arg7[%c18_286, %c384_287], %160 {strides = array<i32>} : memref<150x512xbf16, #tpu.memory_space<vmem>>, vector<6x128xbf16>,
    %c18_288 = arith.constant 18 : index
    %c2_289 = arith.constant 2 : index
    %162 = vector.load %arg6[%c18_288, %c2_289] : memref<24x256xbf16, #tpu.memory_space<vmem>>, vector<6x128xbf16>
    %c24_290 = arith.constant 24 : index
    %c384_291 = arith.constant 384 : index
    %163 = vector.load %arg7[%c24_290, %c384_291] : memref<150x512xbf16, #tpu.memory_space<vmem>>, vector<6x128xbf16>
    tpu.vector_store %arg7[%c24_290, %c384_291], %162 {strides = array<i32>} : memref<150x512xbf16, #tpu.memory_space<vmem>>, vector<6x128xbf16>,
    %c6_292 = arith.constant 6 : index
    %c7_293 = arith.constant 7 : index
    %164 = vector.load %arg6[%c6_292, %c7_293] : memref<24x256xbf16, #tpu.memory_space<vmem>>, vector<6x128xbf16>
    %c30_294 = arith.constant 30 : index
    %c384_295 = arith.constant 384 : index
    %165 = vector.load %arg7[%c30_294, %c384_295] : memref<150x512xbf16, #tpu.memory_space<vmem>>, vector<6x128xbf16>
    tpu.vector_store %arg7[%c30_294, %c384_295], %164 {strides = array<i32>} : memref<150x512xbf16, #tpu.memory_space<vmem>>, vector<6x128xbf16>,
    %c0_296 = arith.constant 0 : index
    %c8_297 = arith.constant 8 : index
    %166 = vector.load %arg6[%c0_296, %c8_297] : memref<24x256xbf16, #tpu.memory_space<vmem>>, vector<6x128xbf16>
    %c36_298 = arith.constant 36 : index
    %c384_299 = arith.constant 384 : index
    %167 = vector.load %arg7[%c36_298, %c384_299] : memref<150x512xbf16, #tpu.memory_space<vmem>>, vector<6x128xbf16>
    tpu.vector_store %arg7[%c36_298, %c384_299], %166 {strides = array<i32>} : memref<150x512xbf16, #tpu.memory_space<vmem>>, vector<6x128xbf16>,
    %c6_300 = arith.constant 6 : index
    %c8_301 = arith.constant 8 : index
    %168 = vector.load %arg6[%c6_300, %c8_301] : memref<24x256xbf16, #tpu.memory_space<vmem>>, vector<6x128xbf16>
    %c42_302 = arith.constant 42 : index
    %c384_303 = arith.constant 384 : index
    %169 = vector.load %arg7[%c42_302, %c384_303] : memref<150x512xbf16, #tpu.memory_space<vmem>>, vector<6x128xbf16>
    tpu.vector_store %arg7[%c42_302, %c384_303], %168 {strides = array<i32>} : memref<150x512xbf16, #tpu.memory_space<vmem>>, vector<6x128xbf16>,
    %c0_304 = arith.constant 0 : index
    %c9_305 = arith.constant 9 : index
    %170 = vector.load %arg6[%c0_304, %c9_305] : memref<24x256xbf16, #tpu.memory_space<vmem>>, vector<6x128xbf16>
    %c48_306 = arith.constant 48 : index
    %c384_307 = arith.constant 384 : index
    %171 = vector.load %arg7[%c48_306, %c384_307] : memref<150x512xbf16, #tpu.memory_space<vmem>>, vector<6x128xbf16>
    tpu.vector_store %arg7[%c48_306, %c384_307], %170 {strides = array<i32>} : memref<150x512xbf16, #tpu.memory_space<vmem>>, vector<6x128xbf16>,
    %c6_308 = arith.constant 6 : index
    %c9_309 = arith.constant 9 : index
    %172 = vector.load %arg6[%c6_308, %c9_309] : memref<24x256xbf16, #tpu.memory_space<vmem>>, vector<6x128xbf16>
    %c54_310 = arith.constant 54 : index
    %c384_311 = arith.constant 384 : index
    %173 = vector.load %arg7[%c54_310, %c384_311] : memref<150x512xbf16, #tpu.memory_space<vmem>>, vector<6x128xbf16>
    tpu.vector_store %arg7[%c54_310, %c384_311], %172 {strides = array<i32>} : memref<150x512xbf16, #tpu.memory_space<vmem>>, vector<6x128xbf16>,
    %c18_312 = arith.constant 18 : index
    %c7_313 = arith.constant 7 : index
    %174 = vector.load %arg6[%c18_312, %c7_313] : memref<24x256xbf16, #tpu.memory_space<vmem>>, vector<6x128xbf16>
    %c60_314 = arith.constant 60 : index
    %c384_315 = arith.constant 384 : index
    %175 = vector.load %arg7[%c60_314, %c384_315] : memref<150x512xbf16, #tpu.memory_space<vmem>>, vector<6x128xbf16>
    tpu.vector_store %arg7[%c60_314, %c384_315], %174 {strides = array<i32>} : memref<150x512xbf16, #tpu.memory_space<vmem>>, vector<6x128xbf16>,
    %c12_316 = arith.constant 12 : index
    %c8_317 = arith.constant 8 : index
    %176 = vector.load %arg6[%c12_316, %c8_317] : memref<24x256xbf16, #tpu.memory_space<vmem>>, vector<6x128xbf16>
    %c66_318 = arith.constant 66 : index
    %c384_319 = arith.constant 384 : index
    %177 = vector.load %arg7[%c66_318, %c384_319] : memref<150x512xbf16, #tpu.memory_space<vmem>>, vector<6x128xbf16>
    tpu.vector_store %arg7[%c66_318, %c384_319], %176 {strides = array<i32>} : memref<150x512xbf16, #tpu.memory_space<vmem>>, vector<6x128xbf16>,
    %c18_320 = arith.constant 18 : index
    %c8_321 = arith.constant 8 : index
    %178 = vector.load %arg6[%c18_320, %c8_321] : memref<24x256xbf16, #tpu.memory_space<vmem>>, vector<6x128xbf16>
    %c72_322 = arith.constant 72 : index
    %c384_323 = arith.constant 384 : index
    %179 = vector.load %arg7[%c72_322, %c384_323] : memref<150x512xbf16, #tpu.memory_space<vmem>>, vector<6x128xbf16>
    tpu.vector_store %arg7[%c72_322, %c384_323], %178 {strides = array<i32>} : memref<150x512xbf16, #tpu.memory_space<vmem>>, vector<6x128xbf16>,
    %c12_324 = arith.constant 12 : index
    %c9_325 = arith.constant 9 : index
    %180 = vector.load %arg6[%c12_324, %c9_325] : memref<24x256xbf16, #tpu.memory_space<vmem>>, vector<6x128xbf16>
    %c78_326 = arith.constant 78 : index
    %c384_327 = arith.constant 384 : index
    %181 = vector.load %arg7[%c78_326, %c384_327] : memref<150x512xbf16, #tpu.memory_space<vmem>>, vector<6x128xbf16>
    tpu.vector_store %arg7[%c78_326, %c384_327], %180 {strides = array<i32>} : memref<150x512xbf16, #tpu.memory_space<vmem>>, vector<6x128xbf16>,
    %c18_328 = arith.constant 18 : index
    %c9_329 = arith.constant 9 : index
    %182 = vector.load %arg6[%c18_328, %c9_329] : memref<24x256xbf16, #tpu.memory_space<vmem>>, vector<6x128xbf16>
    %c84_330 = arith.constant 84 : index
    %c384_331 = arith.constant 384 : index
    %183 = vector.load %arg7[%c84_330, %c384_331] : memref<150x512xbf16, #tpu.memory_space<vmem>>, vector<6x128xbf16>
    tpu.vector_store %arg7[%c84_330, %c384_331], %182 {strides = array<i32>} : memref<150x512xbf16, #tpu.memory_space<vmem>>, vector<6x128xbf16>,
    %c6_332 = arith.constant 6 : index
    %c14_333 = arith.constant 14 : index
    %184 = vector.load %arg6[%c6_332, %c14_333] : memref<24x256xbf16, #tpu.memory_space<vmem>>, vector<6x128xbf16>
    %c90_334 = arith.constant 90 : index
    %c384_335 = arith.constant 384 : index
    %185 = vector.load %arg7[%c90_334, %c384_335] : memref<150x512xbf16, #tpu.memory_space<vmem>>, vector<6x128xbf16>
    tpu.vector_store %arg7[%c90_334, %c384_335], %184 {strides = array<i32>} : memref<150x512xbf16, #tpu.memory_space<vmem>>, vector<6x128xbf16>,
    %c0_336 = arith.constant 0 : index
    %c15_337 = arith.constant 15 : index
    %186 = vector.load %arg6[%c0_336, %c15_337] : memref<24x256xbf16, #tpu.memory_space<vmem>>, vector<6x128xbf16>
    %c96_338 = arith.constant 96 : index
    %c384_339 = arith.constant 384 : index
    %187 = vector.load %arg7[%c96_338, %c384_339] : memref<150x512xbf16, #tpu.memory_space<vmem>>, vector<6x128xbf16>
    tpu.vector_store %arg7[%c96_338, %c384_339], %186 {strides = array<i32>} : memref<150x512xbf16, #tpu.memory_space<vmem>>, vector<6x128xbf16>,
    %c6_340 = arith.constant 6 : index
    %c15_341 = arith.constant 15 : index
    %188 = vector.load %arg6[%c6_340, %c15_341] : memref<24x256xbf16, #tpu.memory_space<vmem>>, vector<6x128xbf16>
    %c102_342 = arith.constant 102 : index
    %c384_343 = arith.constant 384 : index
    %189 = vector.load %arg7[%c102_342, %c384_343] : memref<150x512xbf16, #tpu.memory_space<vmem>>, vector<6x128xbf16>
    tpu.vector_store %arg7[%c102_342, %c384_343], %188 {strides = array<i32>} : memref<150x512xbf16, #tpu.memory_space<vmem>>, vector<6x128xbf16>,
    %c0_344 = arith.constant 0 : index
    %c16_345 = arith.constant 16 : index
    %190 = vector.load %arg6[%c0_344, %c16_345] : memref<24x256xbf16, #tpu.memory_space<vmem>>, vector<6x128xbf16>
    %c108_346 = arith.constant 108 : index
    %c384_347 = arith.constant 384 : index
    %191 = vector.load %arg7[%c108_346, %c384_347] : memref<150x512xbf16, #tpu.memory_space<vmem>>, vector<6x128xbf16>
    tpu.vector_store %arg7[%c108_346, %c384_347], %190 {strides = array<i32>} : memref<150x512xbf16, #tpu.memory_space<vmem>>, vector<6x128xbf16>,
    %c6_348 = arith.constant 6 : index
    %c16_349 = arith.constant 16 : index
    %192 = vector.load %arg6[%c6_348, %c16_349] : memref<24x256xbf16, #tpu.memory_space<vmem>>, vector<6x128xbf16>
    %c114_350 = arith.constant 114 : index
    %c384_351 = arith.constant 384 : index
    %193 = vector.load %arg7[%c114_350, %c384_351] : memref<150x512xbf16, #tpu.memory_space<vmem>>, vector<6x128xbf16>
    tpu.vector_store %arg7[%c114_350, %c384_351], %192 {strides = array<i32>} : memref<150x512xbf16, #tpu.memory_space<vmem>>, vector<6x128xbf16>,
    %c18_352 = arith.constant 18 : index
    %c14_353 = arith.constant 14 : index
    %194 = vector.load %arg6[%c18_352, %c14_353] : memref<24x256xbf16, #tpu.memory_space<vmem>>, vector<6x128xbf16>
    %c120_354 = arith.constant 120 : index
    %c384_355 = arith.constant 384 : index
    %195 = vector.load %arg7[%c120_354, %c384_355] : memref<150x512xbf16, #tpu.memory_space<vmem>>, vector<6x128xbf16>
    tpu.vector_store %arg7[%c120_354, %c384_355], %194 {strides = array<i32>} : memref<150x512xbf16, #tpu.memory_space<vmem>>, vector<6x128xbf16>,
    %c12_356 = arith.constant 12 : index
    %c15_357 = arith.constant 15 : index
    %196 = vector.load %arg6[%c12_356, %c15_357] : memref<24x256xbf16, #tpu.memory_space<vmem>>, vector<6x128xbf16>
    %c126_358 = arith.constant 126 : index
    %c384_359 = arith.constant 384 : index
    %197 = vector.load %arg7[%c126_358, %c384_359] : memref<150x512xbf16, #tpu.memory_space<vmem>>, vector<6x128xbf16>
    tpu.vector_store %arg7[%c126_358, %c384_359], %196 {strides = array<i32>} : memref<150x512xbf16, #tpu.memory_space<vmem>>, vector<6x128xbf16>,
    %c18_360 = arith.constant 18 : index
    %c15_361 = arith.constant 15 : index
    %198 = vector.load %arg6[%c18_360, %c15_361] : memref<24x256xbf16, #tpu.memory_space<vmem>>, vector<6x128xbf16>
    %c132_362 = arith.constant 132 : index
    %c384_363 = arith.constant 384 : index
    %199 = vector.load %arg7[%c132_362, %c384_363] : memref<150x512xbf16, #tpu.memory_space<vmem>>, vector<6x128xbf16>
    tpu.vector_store %arg7[%c132_362, %c384_363], %198 {strides = array<i32>} : memref<150x512xbf16, #tpu.memory_space<vmem>>, vector<6x128xbf16>,
    %c12_364 = arith.constant 12 : index
    %c16_365 = arith.constant 16 : index
    %200 = vector.load %arg6[%c12_364, %c16_365] : memref<24x256xbf16, #tpu.memory_space<vmem>>, vector<6x128xbf16>
    %c138_366 = arith.constant 138 : index
    %c384_367 = arith.constant 384 : index
    %201 = vector.load %arg7[%c138_366, %c384_367] : memref<150x512xbf16, #tpu.memory_space<vmem>>, vector<6x128xbf16>
    tpu.vector_store %arg7[%c138_366, %c384_367], %200 {strides = array<i32>} : memref<150x512xbf16, #tpu.memory_space<vmem>>, vector<6x128xbf16>,
    %c18_368 = arith.constant 18 : index
    %c16_369 = arith.constant 16 : index
    %202 = vector.load %arg6[%c18_368, %c16_369] : memref<24x256xbf16, #tpu.memory_space<vmem>>, vector<6x128xbf16>
    %c144_370 = arith.constant 144 : index
    %c384_371 = arith.constant 384 : index
    %203 = vector.load %arg7[%c144_370, %c384_371] : memref<150x512xbf16, #tpu.memory_space<vmem>>, vector<6x128xbf16>
    tpu.vector_store %arg7[%c144_370, %c384_371], %202 {strides = array<i32>} : memref<150x512xbf16, #tpu.memory_space<vmem>>, vector<6x128xbf16>,
    %c0_372 = arith.constant 0 : index
    %c0_373 = arith.constant 0 : index
    %204 = vector.load %arg3[%c0_372, %c0_373] : memref<16x150xbf16, #tpu.memory_space<vmem>>, vector<16x150xbf16>
    %c0_374 = arith.constant 0 : index
    %c0_375 = arith.constant 0 : index
    %205 = vector.load %arg7[%c0_374, %c0_375] : memref<150x512xbf16, #tpu.memory_space<vmem>>, vector<150x512xbf16>
    %cst = arith.constant dense<0.000000e+00> : vector<16x512xf32>
    %206 = tpu.matmul %204, %205, %cst {dimension_numbers = #tpu.dot_dimension_numbers<[1], [0], [0], [1], [0, 0, 1, 1], [], []>} : vector<16x150xbf16>, vector<150x512xbf16>, vector<16x512xf32> -> vector<16x512xf32>
    %207 = vector.extract_strided_slice %206 {offsets = [0, 0], sizes = [16, 128], strides = [1, 1]} : vector<16x512xf32> to vector<16x128xf32>
    %208 = vector.extract_strided_slice %206 {offsets = [0, 128], sizes = [16, 128], strides = [1, 1]} : vector<16x512xf32> to vector<16x128xf32>
    %209 = arith.maximumf %207, %208 : vector<16x128xf32>
    %210 = vector.extract_strided_slice %206 {offsets = [0, 256], sizes = [16, 128], strides = [1, 1]} : vector<16x512xf32> to vector<16x128xf32>
    %211 = arith.maximumf %209, %210 : vector<16x128xf32>
    %212 = vector.extract_strided_slice %206 {offsets = [0, 384], sizes = [16, 128], strides = [1, 1]} : vector<16x512xf32> to vector<16x128xf32>
    %213 = arith.maximumf %211, %212 : vector<16x128xf32>
    %c0_376 = arith.constant 0 : index
    %c0_377 = arith.constant 0 : index
    %214 = vector.load %arg4[%c0_376, %c0_377] : memref<16x1xf32, #tpu.memory_space<vmem>>, vector<16x1xf32>
    %215 = vector.broadcast %214 : vector<16x1xf32> to vector<16x128xf32>
    %216 = arith.addf %213, %215 : vector<16x128xf32>
    %cst_378 = arith.constant 0.000000e+00 : f32
    %217 = vector.broadcast %cst_378 : f32 to vector<16x128xf32>
    %218 = arith.maximumf %216, %217 : vector<16x128xf32>
    %c0_379 = arith.constant 0 : index
    %c0_380 = arith.constant 0 : index
    %219 = vector.load %arg5[%c0_379, %c0_380] : memref<16x128xf32, #tpu.memory_space<vmem>>, vector<16x128xf32>
    tpu.vector_store %arg5[%c0_379, %c0_380], %218 {strides = array<i32>} : memref<16x128xf32, #tpu.memory_space<vmem>>, vector<16x128xf32>,
    return
  }
  func.func @transform_0(%arg0: i32) -> (i32, i32) {
    %c0_i32 = arith.constant 0 : i32
    %c0_i32_0 = arith.constant 0 : i32
    return %c0_i32, %arg0 : i32, i32
  }
  func.func @transform_1(%arg0: i32) -> (i32, i32) {
    %c1_i32 = arith.constant 1 : i32
    %0 = arith.muli %arg0, %c1_i32 : i32
    %c1_i32_0 = arith.constant 1 : i32
    %1 = arith.addi %0, %c1_i32_0 : i32
    %c0_i32 = arith.constant 0 : i32
    %c0_i32_1 = arith.constant 0 : i32
    return %c0_i32, %1 : i32, i32
  }
  func.func @transform_2(%arg0: i32) -> (i32, i32) {
    %c0_i32 = arith.constant 0 : i32
    %c0_i32_0 = arith.constant 0 : i32
    %c0_i32_1 = arith.constant 0 : i32
    return %c0_i32, %c0_i32_0 : i32, i32
  }
  func.func @transform_3(%arg0: i32) -> (i32, i32) {
    %c0_i32 = arith.constant 0 : i32
    %c0_i32_0 = arith.constant 0 : i32
    %c0_i32_1 = arith.constant 0 : i32
    return %c0_i32, %c0_i32_0 : i32, i32
  }
  func.func @transform_4(%arg0: i32) -> (i32, i32) {
    %c0_i32 = arith.constant 0 : i32
    %c0_i32_0 = arith.constant 0 : i32
    return %c0_i32, %arg0 : i32, i32
  }
}

module attributes {stable_mosaic.version = 11 : i64} {
  func.func @_mlp_kernel(%arg0: i32, %arg1: memref<8x400xf32, #tpu.memory_space<vmem>>, %arg2: memref<400x128xf32, #tpu.memory_space<vmem>>, %arg3: memref<1x128xf32, #tpu.memory_space<vmem>>, %arg4: memref<128x128xf32, #tpu.memory_space<vmem>>, %arg5: memref<1x128xf32, #tpu.memory_space<vmem>>, %arg6: memref<128x128xf32, #tpu.memory_space<vmem>>, %arg7: memref<1x128xf32, #tpu.memory_space<vmem>>, %arg8: memref<8x128xf32, #tpu.memory_space<vmem>>) attributes {dimension_semantics = [#tpu.dimension_semantics<parallel>], iteration_bounds = array<i64: 2>, scalar_prefetch = 0 : i64, scratch_operands = 0 : i64, tpu.core_type = #tpu.core_type<tc>, window_params = [{transform_indices = @transform_0, window_bounds = array<i64: 8, 400>}, {pipeline_mode = #tpu.pipeline_mode<synchronous>, transform_indices = @transform_1, window_bounds = array<i64: 400, 128>}, {pipeline_mode = #tpu.pipeline_mode<synchronous>, transform_indices = @transform_2, window_bounds = array<i64: 1, 128>}, {pipeline_mode = #tpu.pipeline_mode<synchronous>, transform_indices = @transform_3, window_bounds = array<i64: 128, 128>}, {pipeline_mode = #tpu.pipeline_mode<synchronous>, transform_indices = @transform_4, window_bounds = array<i64: 1, 128>}, {pipeline_mode = #tpu.pipeline_mode<synchronous>, transform_indices = @transform_5, window_bounds = array<i64: 128, 128>}, {pipeline_mode = #tpu.pipeline_mode<synchronous>, transform_indices = @transform_6, window_bounds = array<i64: 1, 128>}, {transform_indices = @transform_7, window_bounds = array<i64: 8, 128>}]} {
    %c0 = arith.constant 0 : index
    %c0_0 = arith.constant 0 : index
    %0 = vector.load %arg1[%c0, %c0_0] : memref<8x400xf32, #tpu.memory_space<vmem>>, vector<8x400xf32>
    %c0_1 = arith.constant 0 : index
    %c0_2 = arith.constant 0 : index
    %1 = vector.load %arg2[%c0_1, %c0_2] : memref<400x128xf32, #tpu.memory_space<vmem>>, vector<400x128xf32>
    %cst = arith.constant dense<0.000000e+00> : vector<8x128xf32>
    %2 = tpu.matmul %0, %1, %cst {dimension_numbers = #tpu.dot_dimension_numbers<[1], [0], [0], [1], [0, 0, 1, 1], [], []>} : vector<8x400xf32>, vector<400x128xf32>, vector<8x128xf32> -> vector<8x128xf32>
    %c0_3 = arith.constant 0 : index
    %c0_4 = arith.constant 0 : index
    %3 = vector.load %arg3[%c0_3, %c0_4] : memref<1x128xf32, #tpu.memory_space<vmem>>, vector<1x128xf32>
    %4 = vector.broadcast %3 : vector<1x128xf32> to vector<8x128xf32>
    %5 = arith.addf %2, %4 : vector<8x128xf32>
    %cst_5 = arith.constant 0.000000e+00 : f32
    %6 = vector.broadcast %cst_5 : f32 to vector<8x128xf32>
    %7 = arith.maximumf %5, %6 : vector<8x128xf32>
    %c0_6 = arith.constant 0 : index
    %c0_7 = arith.constant 0 : index
    %8 = vector.load %arg4[%c0_6, %c0_7] : memref<128x128xf32, #tpu.memory_space<vmem>>, vector<128x128xf32>
    %cst_8 = arith.constant dense<0.000000e+00> : vector<8x128xf32>
    %9 = tpu.matmul %7, %8, %cst_8 {dimension_numbers = #tpu.dot_dimension_numbers<[1], [0], [0], [1], [0, 0, 1, 1], [], []>} : vector<8x128xf32>, vector<128x128xf32>, vector<8x128xf32> -> vector<8x128xf32>
    %c0_9 = arith.constant 0 : index
    %c0_10 = arith.constant 0 : index
    %10 = vector.load %arg5[%c0_9, %c0_10] : memref<1x128xf32, #tpu.memory_space<vmem>>, vector<1x128xf32>
    %11 = vector.broadcast %10 : vector<1x128xf32> to vector<8x128xf32>
    %12 = arith.addf %9, %11 : vector<8x128xf32>
    %cst_11 = arith.constant 0.000000e+00 : f32
    %13 = vector.broadcast %cst_11 : f32 to vector<8x128xf32>
    %14 = arith.maximumf %12, %13 : vector<8x128xf32>
    %c0_12 = arith.constant 0 : index
    %c0_13 = arith.constant 0 : index
    %15 = vector.load %arg6[%c0_12, %c0_13] : memref<128x128xf32, #tpu.memory_space<vmem>>, vector<128x128xf32>
    %cst_14 = arith.constant dense<0.000000e+00> : vector<8x128xf32>
    %16 = tpu.matmul %14, %15, %cst_14 {dimension_numbers = #tpu.dot_dimension_numbers<[1], [0], [0], [1], [0, 0, 1, 1], [], []>} : vector<8x128xf32>, vector<128x128xf32>, vector<8x128xf32> -> vector<8x128xf32>
    %c0_15 = arith.constant 0 : index
    %c0_16 = arith.constant 0 : index
    %17 = vector.load %arg7[%c0_15, %c0_16] : memref<1x128xf32, #tpu.memory_space<vmem>>, vector<1x128xf32>
    %18 = vector.broadcast %17 : vector<1x128xf32> to vector<8x128xf32>
    %19 = arith.addf %16, %18 : vector<8x128xf32>
    %c0_17 = arith.constant 0 : index
    %c0_18 = arith.constant 0 : index
    %20 = vector.load %arg8[%c0_17, %c0_18] : memref<8x128xf32, #tpu.memory_space<vmem>>, vector<8x128xf32>
    tpu.vector_store %arg8[%c0_17, %c0_18], %19 {strides = array<i32>} : memref<8x128xf32, #tpu.memory_space<vmem>>, vector<8x128xf32>,
    return
  }
  func.func @transform_0(%arg0: i32) -> (i32, i32) {
    %c0_i32 = arith.constant 0 : i32
    %c0_i32_0 = arith.constant 0 : i32
    return %arg0, %c0_i32 : i32, i32
  }
  func.func @transform_1(%arg0: i32) -> (i32, i32) {
    %c0_i32 = arith.constant 0 : i32
    %c0_i32_0 = arith.constant 0 : i32
    %c0_i32_1 = arith.constant 0 : i32
    return %c0_i32, %c0_i32_0 : i32, i32
  }
  func.func @transform_2(%arg0: i32) -> (i32, i32) {
    %c0_i32 = arith.constant 0 : i32
    %c0_i32_0 = arith.constant 0 : i32
    %c0_i32_1 = arith.constant 0 : i32
    return %c0_i32, %c0_i32_0 : i32, i32
  }
  func.func @transform_3(%arg0: i32) -> (i32, i32) {
    %c0_i32 = arith.constant 0 : i32
    %c0_i32_0 = arith.constant 0 : i32
    %c0_i32_1 = arith.constant 0 : i32
    return %c0_i32, %c0_i32_0 : i32, i32
  }
  func.func @transform_4(%arg0: i32) -> (i32, i32) {
    %c0_i32 = arith.constant 0 : i32
    %c0_i32_0 = arith.constant 0 : i32
    %c0_i32_1 = arith.constant 0 : i32
    return %c0_i32, %c0_i32_0 : i32, i32
  }
  func.func @transform_5(%arg0: i32) -> (i32, i32) {
    %c0_i32 = arith.constant 0 : i32
    %c0_i32_0 = arith.constant 0 : i32
    %c0_i32_1 = arith.constant 0 : i32
    return %c0_i32, %c0_i32_0 : i32, i32
  }
  func.func @transform_6(%arg0: i32) -> (i32, i32) {
    %c0_i32 = arith.constant 0 : i32
    %c0_i32_0 = arith.constant 0 : i32
    %c0_i32_1 = arith.constant 0 : i32
    return %c0_i32, %c0_i32_0 : i32, i32
  }
  func.func @transform_7(%arg0: i32) -> (i32, i32) {
    %c0_i32 = arith.constant 0 : i32
    %c0_i32_0 = arith.constant 0 : i32
    return %arg0, %c0_i32 : i32, i32
  }
}

</mosaic_0001>

<llo_original>
// kernel: net_forward.5
$region0: #{net_forward.5}
  #allocation0 [shape = 'u32[]', space=smem, size = 0x4, offset = 0x4, fixed_abs, tag = 'smem constant byte address 0x4 - core index']
  #allocation1 [shape = 'u32[144,128]{1,0:T(1,128)}', space=vmem, size = 0x12000, scoped, tag = 'internal scratch']
  %s0 = inlined_call_operand.vmem [shape: f32[16,400], index: 0, kind: input, shape index: {}]
  %s1 = inlined_call_operand.vmem [shape: f32[400,128], index: 1, kind: input, shape index: {}]
  %s2 = inlined_call_operand.vmem [shape: f32[1,128], index: 2, kind: input, shape index: {}]
  %s3 = inlined_call_operand.vmem [shape: f32[128,128], index: 3, kind: input, shape index: {}]
  %s4 = inlined_call_operand.vmem [shape: f32[1,128], index: 4, kind: input, shape index: {}]
  %s5 = inlined_call_operand.vmem [shape: f32[128,128], index: 5, kind: input, shape index: {}]
  %s6 = inlined_call_operand.vmem [shape: f32[1,128], index: 6, kind: input, shape index: {}]
  %s7 = inlined_call_operand.vmem [shape: f32[16,128], index: 7, kind: output, shape index: {}]
  %s8 = sld [smem:[#allocation0]]
  $region61: #{net_forward.5} parent=0
    _
  %s10 = ssub.s32 1, %s8
  %s11 = scalar_select 0, %s10, %s8
  loop: start=0, step=1, limit=4
  $region2: #{net_forward.5} parent=0 // loop_pre_header
    _
  $region3: #{net_forward.5} parent=0 // loop_header
    %s13 = sphi 0, %s17
    %p14 = scmp.ge.s32.totalorder %s13, 4
    %s23 = sphi 0, %s25
    %s26 = sphi 0, %s23
    %s27 = sphi 0, %s26
    %s43 = sphi 0, %s27
    %s47 = sphi 0, %s47
    %s49 = sphi 0, %s47
    %s50 = sphi 0, %s49
    %s64 = sphi 0, %s50
    %s68 = sphi 0, %s68
    %s70 = sphi 0, %s68
    %s71 = sphi 0, %s70
    %s85 = sphi 0, %s71
    %s89 = sphi 0, %s89
    %s91 = sphi 0, %s89
    %s92 = sphi 0, %s91
    %s106 = sphi 0, %s92
    %s110 = sphi 0, %s110
    %s112 = sphi 0, %s110
    %s113 = sphi 0, %s112
    %s127 = sphi 0, %s113
    %s131 = sphi 0, %s131
    %s133 = sphi 0, %s131
    %s134 = sphi 0, %s133
    %s148 = sphi 0, %s134
    %s152 = sphi 0, %s152
    %s154 = sphi 0, %s152
    %s155 = sphi 0, %s154
    %s169 = sphi 0, %s155
    %s175 = sphi 0, %s177
    %s178 = sphi 0, %s175
    %s179 = sphi 0, %s178
    %s195 = sphi 0, %s179
  $region4: #{net_forward.5} parent=0 // loop_header_branch
    %16 = sbr.rel (%p14) target = $region8
  $region5: #{net_forward.5} parent=0 // loop_body
    %s18 = ssub.s32 %s13, 1
    %s19 = ssub.s32 %s13, 2
    %s20 = sadd.s32 %s13, 1
    %s21 = ssub.s32 %s13, %s20
    %p22 = scmp.eq.s32.totalorder %s21, 0
    %s24 = sadd.s32 %s23, 1
    %s25 = scalar_select %p22, %s23, %s24
    %p28 = pneg %p22
    %p29 = scmp.eq.s32.totalorder %s13, 1
    %p30 = por %p28, %p29
    %p31 = scmp.ne.s32.totalorder %s23, %s26
    %p32 = scmp.eq.s32.totalorder %s13, 0
    %p33 = por %p31, %p32
    %p34 = scmp.ne.s32.totalorder %s23, %s26
    %p35 = scmp.eq.s32.totalorder %s18, 1
    %p36 = por %p34, %p35
    %p37 = scmp.ne.s32.totalorder %s26, %s27
    %p38 = scmp.eq.s32.totalorder %s18, 0
    %p39 = por %p37, %p38
    %p40 = scmp.ne.s32.totalorder %s26, %s27
    %p41 = scmp.eq.s32.totalorder %s19, 1
    %p42 = por %p40, %p41
    %p44 = scmp.ne.s32.totalorder %s27, %s43
    %p45 = scmp.eq.s32.totalorder %s19, 0
    %p46 = por %p44, %p45
    %s48 = sadd.s32 %s47, 1
    %p51 = scmp.eq.s32.totalorder %s13, 1
    %p52 = scmp.ne.s32.totalorder %s47, %s49
    %p53 = scmp.eq.s32.totalorder %s13, 0
    %p54 = por %p52, %p53
    %p55 = scmp.ne.s32.totalorder %s47, %s49
    %p56 = scmp.eq.s32.totalorder %s18, 1
    %p57 = por %p55, %p56
    %p58 = scmp.ne.s32.totalorder %s49, %s50
    %p59 = scmp.eq.s32.totalorder %s18, 0
    %p60 = por %p58, %p59
    %p61 = scmp.ne.s32.totalorder %s49, %s50
    %p62 = scmp.eq.s32.totalorder %s19, 1
    %p63 = por %p61, %p62
    %p65 = scmp.ne.s32.totalorder %s50, %s64
    %p66 = scmp.eq.s32.totalorder %s19, 0
    %p67 = por %p65, %p66
    %s69 = sadd.s32 %s68, 1
    %p72 = scmp.eq.s32.totalorder %s13, 1
    %p73 = scmp.ne.s32.totalorder %s68, %s70
    %p74 = scmp.eq.s32.totalorder %s13, 0
    %p75 = por %p73, %p74
    %p76 = scmp.ne.s32.totalorder %s68, %s70
    %p77 = scmp.eq.s32.totalorder %s18, 1
    %p78 = por %p76, %p77
    %p79 = scmp.ne.s32.totalorder %s70, %s71
    %p80 = scmp.eq.s32.totalorder %s18, 0
    %p81 = por %p79, %p80
    %p82 = scmp.ne.s32.totalorder %s70, %s71
    %p83 = scmp.eq.s32.totalorder %s19, 1
    %p84 = por %p82, %p83
    %p86 = scmp.ne.s32.totalorder %s71, %s85
    %p87 = scmp.eq.s32.totalorder %s19, 0
    %p88 = por %p86, %p87
    %s90 = sadd.s32 %s89, 1
    %p93 = scmp.eq.s32.totalorder %s13, 1
    %p94 = scmp.ne.s32.totalorder %s89, %s91
    %p95 = scmp.eq.s32.totalorder %s13, 0
    %p96 = por %p94, %p95
    %p97 = scmp.ne.s32.totalorder %s89, %s91
    %p98 = scmp.eq.s32.totalorder %s18, 1
    %p99 = por %p97, %p98
    %p100 = scmp.ne.s32.totalorder %s91, %s92
    %p101 = scmp.eq.s32.totalorder %s18, 0
    %p102 = por %p100, %p101
    %p103 = scmp.ne.s32.totalorder %s91, %s92
    %p104 = scmp.eq.s32.totalorder %s19, 1
    %p105 = por %p103, %p104
    %p107 = scmp.ne.s32.totalorder %s92, %s106
    %p108 = scmp.eq.s32.totalorder %s19, 0
    %p109 = por %p107, %p108
    %s111 = sadd.s32 %s110, 1
    %p114 = scmp.eq.s32.totalorder %s13, 1
    %p115 = scmp.ne.s32.totalorder %s110, %s112
    %p116 = scmp.eq.s32.totalorder %s13, 0
    %p117 = por %p115, %p116
    %p118 = scmp.ne.s32.totalorder %s110, %s112
    %p119 = scmp.eq.s32.totalorder %s18, 1
    %p120 = por %p118, %p119
    %p121 = scmp.ne.s32.totalorder %s112, %s113
    %p122 = scmp.eq.s32.totalorder %s18, 0
    %p123 = por %p121, %p122
    %p124 = scmp.ne.s32.totalorder %s112, %s113
    %p125 = scmp.eq.s32.totalorder %s19, 1
    %p126 = por %p124, %p125
    %p128 = scmp.ne.s32.totalorder %s113, %s127
    %p129 = scmp.eq.s32.totalorder %s19, 0
    %p130 = por %p128, %p129
    %s132 = sadd.s32 %s131, 1
    %p135 = scmp.eq.s32.totalorder %s13, 1
    %p136 = scmp.ne.s32.totalorder %s131, %s133
    %p137 = scmp.eq.s32.totalorder %s13, 0
    %p138 = por %p136, %p137
    %p139 = scmp.ne.s32.totalorder %s131, %s133
    %p140 = scmp.eq.s32.totalorder %s18, 1
    %p141 = por %p139, %p140
    %p142 = scmp.ne.s32.totalorder %s133, %s134
    %p143 = scmp.eq.s32.totalorder %s18, 0
    %p144 = por %p142, %p143
    %p145 = scmp.ne.s32.totalorder %s133, %s134
    %p146 = scmp.eq.s32.totalorder %s19, 1
    %p147 = por %p145, %p146
    %p149 = scmp.ne.s32.totalorder %s134, %s148
    %p150 = scmp.eq.s32.totalorder %s19, 0
    %p151 = por %p149, %p150
    %s153 = sadd.s32 %s152, 1
    %p156 = scmp.eq.s32.totalorder %s13, 1
    %p157 = scmp.ne.s32.totalorder %s152, %s154
    %p158 = scmp.eq.s32.totalorder %s13, 0
    %p159 = por %p157, %p158
    %p160 = scmp.ne.s32.totalorder %s152, %s154
    %p161 = scmp.eq.s32.totalorder %s18, 1
    %p162 = por %p160, %p161
    %p163 = scmp.ne.s32.totalorder %s154, %s155
    %p164 = scmp.eq.s32.totalorder %s18, 0
    %p165 = por %p163, %p164
    %p166 = scmp.ne.s32.totalorder %s154, %s155
    %p167 = scmp.eq.s32.totalorder %s19, 1
    %p168 = por %p166, %p167
    %p170 = scmp.ne.s32.totalorder %s155, %s169
    %p171 = scmp.eq.s32.totalorder %s19, 0
    %p172 = por %p170, %p171
    %s173 = ssub.s32 %s13, %s20
    %p174 = scmp.eq.s32.totalorder %s173, 0
    %s176 = sadd.s32 %s175, 1
    %s177 = scalar_select %p174, %s175, %s176
    %p180 = pneg %p174
    %p181 = scmp.eq.s32.totalorder %s13, 1
    %p182 = por %p180, %p181
    %p183 = scmp.ne.s32.totalorder %s175, %s178
    %p184 = scmp.eq.s32.totalorder %s13, 0
    %p185 = por %p183, %p184
    %p186 = scmp.ne.s32.totalorder %s175, %s178
    %p187 = scmp.eq.s32.totalorder %s18, 1
    %p188 = por %p186, %p187
    %p189 = scmp.ne.s32.totalorder %s178, %s179
    %p190 = scmp.eq.s32.totalorder %s18, 0
    %p191 = por %p189, %p190
    %p192 = scmp.ne.s32.totalorder %s178, %s179
    %p193 = scmp.eq.s32.totalorder %s19, 1
    %p194 = por %p192, %p193
    %p196 = scmp.ne.s32.totalorder %s179, %s195
    %p197 = scmp.eq.s32.totalorder %s19, 0
    %p198 = por %p196, %p197
    %p199 = scmp.le.s32.totalorder 1, %s13
    %p200 = scmp.lt.s32.totalorder %s13, 3
    %p201 = pnand %p199, %p200
    %p202 = pneg %p201
    // Predicated region
    $region9: #{net_forward.5} parent=5 // pred_check
      _
    $region10: #{net_forward.5} parent=5 // pred_check_branch
      %204 = sbr.rel (%p201) target = $region12
    $region11: #{net_forward.5} parent=5 // pred_region
      %s205 = ssub.s32 %s13, 1
      // Predicated region
      $region13: #{net_forward.5} parent=11 // pred_check
        %p206 = pneg %p60
      $region14: #{net_forward.5} parent=11 // pred_check_branch
        %208 = sbr.rel (%p206) target = $region16
      $region15: #{net_forward.5} parent=11 // pred_region
        _
      $region16: #{net_forward.5} parent=11 // pred_fallthru
        _
      // Predicated region
      $region17: #{net_forward.5} parent=11 // pred_check
        %p209 = pneg %p81
      $region18: #{net_forward.5} parent=11 // pred_check_branch
        %211 = sbr.rel (%p209) target = $region20
      $region19: #{net_forward.5} parent=11 // pred_region
        _
      $region20: #{net_forward.5} parent=11 // pred_fallthru
        _
      // Predicated region
      $region21: #{net_forward.5} parent=11 // pred_check
        %p212 = pneg %p102
      $region22: #{net_forward.5} parent=11 // pred_check_branch
        %214 = sbr.rel (%p212) target = $region24
      $region23: #{net_forward.5} parent=11 // pred_region
        _
      $region24: #{net_forward.5} parent=11 // pred_fallthru
        _
      // Predicated region
      $region25: #{net_forward.5} parent=11 // pred_check
        %p215 = pneg %p123
      $region26: #{net_forward.5} parent=11 // pred_check_branch
        %217 = sbr.rel (%p215) target = $region28
      $region27: #{net_forward.5} parent=11 // pred_region
        _
      $region28: #{net_forward.5} parent=11 // pred_fallthru
        _
      // Predicated region
      $region29: #{net_forward.5} parent=11 // pred_check
        %p218 = pneg %p144
      $region30: #{net_forward.5} parent=11 // pred_check_branch
        %220 = sbr.rel (%p218) target = $region32
      $region31: #{net_forward.5} parent=11 // pred_region
        _
      $region32: #{net_forward.5} parent=11 // pred_fallthru
        _
      // Predicated region
      $region33: #{net_forward.5} parent=11 // pred_check
        %p221 = pneg %p165
      $region34: #{net_forward.5} parent=11 // pred_check_branch
        %223 = sbr.rel (%p221) target = $region36
      $region35: #{net_forward.5} parent=11 // pred_region
        _
      $region36: #{net_forward.5} parent=11 // pred_fallthru
        _
    $region12: #{net_forward.5} parent=5 // pred_fallthru
      _
    %p224 = scmp.lt.s32.totalorder %s13, 2
    // Predicated region
    $region37: #{net_forward.5} parent=5 // pred_check
      %p225 = pneg %p224
    $region38: #{net_forward.5} parent=5 // pred_check_branch
      %227 = sbr.rel (%p225) target = $region40
    $region39: #{net_forward.5} parent=5 // pred_region
      // Predicated region
      $region41: #{net_forward.5} parent=39 // pred_check
        %p228 = pneg %p33
      $region42: #{net_forward.5} parent=39 // pred_check_branch
        %230 = sbr.rel (%p228) target = $region44
      $region43: #{net_forward.5} parent=39 // pred_region
        %p231 = scmp.lt.s32.totalorder %s13, 1
        %s232 = scalar_select %p231, %s13, 1
        %s233 = smul.addr %s232, 4
        %s234 = smul.addr %s233, 8
        %s235 = scalar_lea.vmem %s0, %s234
      $region44: #{net_forward.5} parent=39 // pred_fallthru
        _
    $region40: #{net_forward.5} parent=5 // pred_fallthru
      _
    %p236 = scmp.le.s32.totalorder 1, %s13
    %p237 = scmp.lt.s32.totalorder %s13, 3
    %p238 = pnand %p236, %p237
    %p239 = pneg %p238
    // Predicated region
    $region45: #{net_forward.5} parent=5 // pred_check
      _
    $region46: #{net_forward.5} parent=5 // pred_check_branch
      %241 = sbr.rel (%p238) target = $region48
    $region47: #{net_forward.5} parent=5 // pred_region
      %s242 = ssub.s32 %s13, 1
      %p243 = scmp.lt.s32.totalorder %s18, 1
      %s244 = scalar_select %p243, %s18, 1
      %s245 = smul.addr %s244, 4
      %s246 = smul.addr %s245, 8
      %s247 = scalar_lea.vmem %s0, %s246
      %p248 = pneg %p39
      %p249 = pneg %p36
      %p250 = pneg %p60
      %p251 = pneg %p57
      %p252 = pneg %p81
      %p253 = pneg %p78
      %p254 = pneg %p102
      %p255 = pneg %p99
      %p256 = pneg %p123
      %p257 = pneg %p120
      %p258 = pneg %p144
      %p259 = pneg %p141
      %p260 = pneg %p165
      %p261 = pneg %p162
      %p262 = pneg %p191
      %p263 = pneg %p188
      %p264 = scmp.lt.s32.totalorder %s18, 1
      %s265 = scalar_select %p264, %s18, 1
      %s266 = smul.addr %s265, 8
      %s267 = scalar_lea.vmem %s7, %s266
      %p268 = scmp.lt.s32.totalorder %s18, 1
      %s269 = scalar_select %p268, %s18, 1
      %s270 = smul.addr %s269, 4
      %s271 = smul.addr %s270, 8
      %s272 = scalar_lea.vmem %s0, %s271
      %p273 = scmp.lt.s32.totalorder %s18, 1
      %s274 = scalar_select %p273, %s18, 1
      %s275 = smul.addr %s274, 8
      %s276 = scalar_lea.vmem %s7, %s275
      %v277 = vld [vmem:[%s272] sm:$0xff]
      %v278 = vld [vmem:[%s272 + $0x8] sm:$0xff]
      %v279 = vld [vmem:[%s272 + $0x10] sm:$0xff]
      %v280 = vld [vmem:[%s272 + $0x18] sm:$0xff]
      %v281 = vld [vmem:[%s1] sm:$0xff]
      %v282 = vld [vmem:[%s1 + $0x8] sm:$0xff]
      %v283 = vld [vmem:[%s1 + $0x10] sm:$0xff]
      %v284 = vld [vmem:[%s1 + $0x18] sm:$0xff]
      %v285 = vld [vmem:[%s1 + $0x20] sm:$0xff]
      %v286 = vld [vmem:[%s1 + $0x28] sm:$0xff]
      %v287 = vld [vmem:[%s1 + $0x30] sm:$0xff]
      %v288 = vld [vmem:[%s1 + $0x38] sm:$0xff]
      %v289 = vld [vmem:[%s1 + $0x40] sm:$0xff]
      %v290 = vld [vmem:[%s1 + $0x48] sm:$0xff]
      %v291 = vld [vmem:[%s1 + $0x50] sm:$0xff]
      %v292 = vld [vmem:[%s1 + $0x58] sm:$0xff]
      %v293 = vld [vmem:[%s1 + $0x60] sm:$0xff]
      %v294 = vld [vmem:[%s1 + $0x68] sm:$0xff]
      %v295 = vld [vmem:[%s1 + $0x70] sm:$0xff]
      %v296 = vld [vmem:[%s1 + $0x78] sm:$0xff]
      %v297 = vld [vmem:[%s1 + $0x80] sm:$0xff]
      %v298 = vld [vmem:[%s1 + $0x88] sm:$0xff]
      %v299 = vld [vmem:[%s1 + $0x90] sm:$0xff]
      %v300 = vld [vmem:[%s1 + $0x98] sm:$0xff]
      %v301 = vld [vmem:[%s1 + $0xa0] sm:$0xff]
      %v302 = vld [vmem:[%s1 + $0xa8] sm:$0xff]
      %v303 = vld [vmem:[%s1 + $0xb0] sm:$0xff]
      %v304 = vld [vmem:[%s1 + $0xb8] sm:$0xff]
      %v305 = vld [vmem:[%s1 + $0xc0] sm:$0xff]
      %v306 = vld [vmem:[%s1 + $0xc8] sm:$0xff]
      %v307 = vld [vmem:[%s1 + $0xd0] sm:$0xff]
      %v308 = vld [vmem:[%s1 + $0xd8] sm:$0xff]
      %v309 = vld [vmem:[%s1 + $0xe0] sm:$0xff]
      %v310 = vld [vmem:[%s1 + $0xe8] sm:$0xff]
      %v311 = vld [vmem:[%s1 + $0xf0] sm:$0xff]
      %v312 = vld [vmem:[%s1 + $0xf8] sm:$0xff]
      %v313 = vld [vmem:[%s1 + $0x100] sm:$0xff]
      %v314 = vld [vmem:[%s1 + $0x108] sm:$0xff]
      %v315 = vld [vmem:[%s1 + $0x110] sm:$0xff]
      %v316 = vld [vmem:[%s1 + $0x118] sm:$0xff]
      %v317 = vld [vmem:[%s1 + $0x120] sm:$0xff]
      %v318 = vld [vmem:[%s1 + $0x128] sm:$0xff]
      %v319 = vld [vmem:[%s1 + $0x130] sm:$0xff]
      %v320 = vld [vmem:[%s1 + $0x138] sm:$0xff]
      %v321 = vld [vmem:[%s1 + $0x140] sm:$0xff]
      %v322 = vld [vmem:[%s1 + $0x148] sm:$0xff]
      %v323 = vld [vmem:[%s1 + $0x150] sm:$0xff]
      %v324 = vld [vmem:[%s1 + $0x158] sm:$0xff]
      %v325 = vld [vmem:[%s1 + $0x160] sm:$0xff]
      %v326 = vld [vmem:[%s1 + $0x168] sm:$0xff]
      %v327 = vld [vmem:[%s1 + $0x170] sm:$0xff]
      %v328 = vld [vmem:[%s1 + $0x178] sm:$0xff]
      %v329 = vld [vmem:[%s1 + $0x180] sm:$0xff]
      %v330 = vld [vmem:[%s1 + $0x188] sm:$0xff]
      %v331 = vld [vmem:[%s2] sm:$0x1]
      %v333 = vlaneseq
      %v334 = vshrl.u32 %v333, 7
      %v335 = vsub.s32 0, %v334
      %v336 = vrot.slane %v331, %v335
      %vm338 = vcmask 130048
      %v340 = vsel %vm338, %v280, 0
      %342 = vmatprep.subr.mxu0 0.0
      %343 = vmatpush1.msra.mxu0 %v296
      %344 = vmatprep.subr.mxu0 0.0
      %345 = vmatpush1.msra.mxu0 %v295
      %346 = vmatprep.subr.mxu0 0.0
      %347 = vmatpush1.msra.mxu0 %v294
      %348 = vmatprep.subr.mxu0 0.0
      %349 = vmatpush1.msra.mxu0 %v293
      %350 = vmatprep.subr.mxu0 0.0
      %351 = vmatpush1.msra.mxu0 %v292
      %352 = vmatprep.subr.mxu0 0.0
      %353 = vmatpush1.msra.mxu0 %v291
      %354 = vmatprep.subr.mxu0 0.0
      %355 = vmatpush1.msra.mxu0 %v290
      %356 = vmatprep.subr.mxu0 0.0
      %357 = vmatpush1.msra.mxu0 %v289
      %358 = vmatprep.subr.mxu0 0.0
      %359 = vmatpush1.msra.mxu0 %v288
      %360 = vmatprep.subr.mxu0 0.0
      %361 = vmatpush1.msra.mxu0 %v287
      %362 = vmatprep.subr.mxu0 0.0
      %363 = vmatpush1.msra.mxu0 %v286
      %364 = vmatprep.subr.mxu0 0.0
      %365 = vmatpush1.msra.mxu0 %v285
      %366 = vmatprep.subr.mxu0 0.0
      %367 = vmatpush1.msra.mxu0 %v284
      %368 = vmatprep.subr.mxu0 0.0
      %369 = vmatpush1.msra.mxu0 %v283
      %370 = vmatprep.subr.mxu0 0.0
      %371 = vmatpush1.msra.mxu0 %v282
      %372 = vmatprep.subr.mxu0 0.0
      %373 = vmatpush1.msra.mxu0 %v281
      %374 = vmatprep.subr.mxu0 0.0
      %375 = vmatpush2.msra.mxu0 %v312
      %376 = vmatprep.subr.mxu0 0.0
      %377 = vmatpush2.msra.mxu0 %v311
      %378 = vmatprep.subr.mxu0 0.0
      %379 = vmatpush2.msra.mxu0 %v310
      %380 = vmatprep.subr.mxu0 0.0
      %381 = vmatpush2.msra.mxu0 %v309
      %382 = vmatprep.subr.mxu0 0.0
      %383 = vmatpush2.msra.mxu0 %v308
      %384 = vmatprep.subr.mxu0 0.0
      %385 = vmatpush2.msra.mxu0 %v307
      %386 = vmatprep.subr.mxu0 0.0
      %387 = vmatpush2.msra.mxu0 %v306
      %388 = vmatprep.subr.mxu0 0.0
      %389 = vmatpush2.msra.mxu0 %v305
      %390 = vmatprep.subr.mxu0 0.0
      %391 = vmatpush2.msra.mxu0 %v304
      %392 = vmatprep.subr.mxu0 0.0
      %393 = vmatpush2.msra.mxu0 %v303
      %394 = vmatprep.subr.mxu0 0.0
      %395 = vmatpush2.msra.mxu0 %v302
      %396 = vmatprep.subr.mxu0 0.0
      %397 = vmatpush2.msra.mxu0 %v301
      %398 = vmatprep.subr.mxu0 0.0
      %399 = vmatpush2.msra.mxu0 %v300
      %400 = vmatprep.subr.mxu0 0.0
      %401 = vmatpush2.msra.mxu0 %v299
      %402 = vmatprep.subr.mxu0 0.0
      %403 = vmatpush2.msra.mxu0 %v298
      %404 = vmatprep.subr.mxu0 0.0
      %405 = vmatpush2.msra.mxu0 %v297
      %406 = vmatprep.mubr.f32.mxu0 %v278
      %407 = vmatmul.mubr.f32.gmra.mxu0 %v277
      %v408 = vpop.f32.mrf.mxu0
      %v409 = vadd.f32 %v336, %v408
      %v410 = vpop.f32.mrf.mxu0
      %411 = vdwg.mxu0
      %412 = vmatprep.subr.mxu0 0.0
      %413 = vmatpush1.msra.mxu0 %v328
      %414 = vmatprep.subr.mxu0 0.0
      %415 = vmatpush1.msra.mxu0 %v327
      %416 = vmatprep.subr.mxu0 0.0
      %417 = vmatpush1.msra.mxu0 %v326
      %418 = vmatprep.subr.mxu0 0.0
      %419 = vmatpush1.msra.mxu0 %v325
      %420 = vmatprep.subr.mxu0 0.0
      %421 = vmatpush1.msra.mxu0 %v324
      %422 = vmatprep.subr.mxu0 0.0
      %423 = vmatpush1.msra.mxu0 %v323
      %424 = vmatprep.subr.mxu0 0.0
      %425 = vmatpush1.msra.mxu0 %v322
      %426 = vmatprep.subr.mxu0 0.0
      %427 = vmatpush1.msra.mxu0 %v321
      %428 = vmatprep.subr.mxu0 0.0
      %429 = vmatpush1.msra.mxu0 %v320
      %430 = vmatprep.subr.mxu0 0.0
      %431 = vmatpush1.msra.mxu0 %v319
      %432 = vmatprep.subr.mxu0 0.0
      %433 = vmatpush1.msra.mxu0 %v318
      %434 = vmatprep.subr.mxu0 0.0
      %435 = vmatpush1.msra.mxu0 %v317
      %436 = vmatprep.subr.mxu0 0.0
      %437 = vmatpush1.msra.mxu0 %v316
      %438 = vmatprep.subr.mxu0 0.0
      %439 = vmatpush1.msra.mxu0 %v315
      %440 = vmatprep.subr.mxu0 0.0
      %441 = vmatpush1.msra.mxu0 %v314
      %442 = vmatprep.subr.mxu0 0.0
      %443 = vmatpush1.msra.mxu0 %v313
      %444 = vmatprep.subr.mxu0 0.0
      %445 = vmatpush2.msra.mxu0 0.0
      %446 = vmatprep.subr.mxu0 0.0
      %447 = vmatpush2.msra.mxu0 0.0
      %448 = vmatprep.subr.mxu0 0.0
      %449 = vmatpush2.msra.mxu0 0.0
      %450 = vmatprep.subr.mxu0 0.0
      %451 = vmatpush2.msra.mxu0 0.0
      %452 = vmatprep.subr.mxu0 0.0
      %453 = vmatpush2.msra.mxu0 0.0
      %454 = vmatprep.subr.mxu0 0.0
      %455 = vmatpush2.msra.mxu0 0.0
      %456 = vmatprep.subr.mxu0 0.0
      %457 = vmatpush2.msra.mxu0 0.0
      %458 = vmatprep.subr.mxu0 0.0
      %459 = vmatpush2.msra.mxu0 0.0
      %460 = vmatprep.subr.mxu0 0.0
      %461 = vmatpush2.msra.mxu0 0.0
      %462 = vmatprep.subr.mxu0 0.0
      %463 = vmatpush2.msra.mxu0 0.0
      %464 = vmatprep.subr.mxu0 0.0
      %465 = vmatpush2.msra.mxu0 0.0
      %466 = vmatprep.subr.mxu0 0.0
      %467 = vmatpush2.msra.mxu0 0.0
      %468 = vmatprep.subr.mxu0 0.0
      %469 = vmatpush2.msra.mxu0 0.0
      %470 = vmatprep.subr.mxu0 0.0
      %471 = vmatpush2.msra.mxu0 0.0
      %472 = vmatprep.subr.mxu0 0.0
      %473 = vmatpush2.msra.mxu0 %v330
      %474 = vmatprep.subr.mxu0 0.0
      %475 = vmatpush2.msra.mxu0 %v329
      %476 = vmatprep.mubr.f32.mxu0 %v340
      %477 = vmatmul.mubr.f32.gmra.mxu0 %v279
      %v478 = vpop.f32.mrf.mxu0
      %v479 = vadd.f32 %v409, %v478
      %v480 = vpop.f32.mrf.mxu0
      %481 = vdwg.mxu0
      %v482 = vmax.f32 %v479, 0.0
      %v483 = vld [vmem:[%s3] sm:$0xff]
      %v484 = vld [vmem:[%s3 + $0x8] sm:$0xff]
      %v485 = vld [vmem:[%s3 + $0x10] sm:$0xff]
      %v486 = vld [vmem:[%s3 + $0x18] sm:$0xff]
      %v487 = vld [vmem:[%s3 + $0x20] sm:$0xff]
      %v488 = vld [vmem:[%s3 + $0x28] sm:$0xff]
      %v489 = vld [vmem:[%s3 + $0x30] sm:$0xff]
      %v490 = vld [vmem:[%s3 + $0x38] sm:$0xff]
      %v491 = vld [vmem:[%s3 + $0x40] sm:$0xff]
      %v492 = vld [vmem:[%s3 + $0x48] sm:$0xff]
      %v493 = vld [vmem:[%s3 + $0x50] sm:$0xff]
      %v494 = vld [vmem:[%s3 + $0x58] sm:$0xff]
      %v495 = vld [vmem:[%s3 + $0x60] sm:$0xff]
      %v496 = vld [vmem:[%s3 + $0x68] sm:$0xff]
      %v497 = vld [vmem:[%s3 + $0x70] sm:$0xff]
      %v498 = vld [vmem:[%s3 + $0x78] sm:$0xff]
      %v499 = vld [vmem:[%s4] sm:$0x1]
      %v501 = vlaneseq
      %v502 = vshrl.u32 %v501, 7
      %v503 = vsub.s32 0, %v502
      %v504 = vrot.slane %v499, %v503
      %506 = vmatprep.subr.mxu0 0.0
      %507 = vmatpush1.msra.mxu0 %v498
      %508 = vmatprep.subr.mxu0 0.0
      %509 = vmatpush1.msra.mxu0 %v497
      %510 = vmatprep.subr.mxu0 0.0
      %511 = vmatpush1.msra.mxu0 %v496
      %512 = vmatprep.subr.mxu0 0.0
      %513 = vmatpush1.msra.mxu0 %v495
      %514 = vmatprep.subr.mxu0 0.0
      %515 = vmatpush1.msra.mxu0 %v494
      %516 = vmatprep.subr.mxu0 0.0
      %517 = vmatpush1.msra.mxu0 %v493
      %518 = vmatprep.subr.mxu0 0.0
      %519 = vmatpush1.msra.mxu0 %v492
      %520 = vmatprep.subr.mxu0 0.0
      %521 = vmatpush1.msra.mxu0 %v491
      %522 = vmatprep.subr.mxu0 0.0
      %523 = vmatpush1.msra.mxu0 %v490
      %524 = vmatprep.subr.mxu0 0.0
      %525 = vmatpush1.msra.mxu0 %v489
      %526 = vmatprep.subr.mxu0 0.0
      %527 = vmatpush1.msra.mxu0 %v488
      %528 = vmatprep.subr.mxu0 0.0
      %529 = vmatpush1.msra.mxu0 %v487
      %530 = vmatprep.subr.mxu0 0.0
      %531 = vmatpush1.msra.mxu0 %v486
      %532 = vmatprep.subr.mxu0 0.0
      %533 = vmatpush1.msra.mxu0 %v485
      %534 = vmatprep.subr.mxu0 0.0
      %535 = vmatpush1.msra.mxu0 %v484
      %536 = vmatprep.subr.mxu0 0.0
      %537 = vmatpush1.msra.mxu0 %v483
      %538 = vmatprep.subr.mxu0 0.0
      %539 = vmatpush2.msra.mxu0 0.0
      %540 = vmatprep.subr.mxu0 0.0
      %541 = vmatpush2.msra.mxu0 0.0
      %542 = vmatprep.subr.mxu0 0.0
      %543 = vmatpush2.msra.mxu0 0.0
      %544 = vmatprep.subr.mxu0 0.0
      %545 = vmatpush2.msra.mxu0 0.0
      %546 = vmatprep.subr.mxu0 0.0
      %547 = vmatpush2.msra.mxu0 0.0
      %548 = vmatprep.subr.mxu0 0.0
      %549 = vmatpush2.msra.mxu0 0.0
      %550 = vmatprep.subr.mxu0 0.0
      %551 = vmatpush2.msra.mxu0 0.0
      %552 = vmatprep.subr.mxu0 0.0
      %553 = vmatpush2.msra.mxu0 0.0
      %554 = vmatprep.subr.mxu0 0.0
      %555 = vmatpush2.msra.mxu0 0.0
      %556 = vmatprep.subr.mxu0 0.0
      %557 = vmatpush2.msra.mxu0 0.0
      %558 = vmatprep.subr.mxu0 0.0
      %559 = vmatpush2.msra.mxu0 0.0
      %560 = vmatprep.subr.mxu0 0.0
      %561 = vmatpush2.msra.mxu0 0.0
      %562 = vmatprep.subr.mxu0 0.0
      %563 = vmatpush2.msra.mxu0 0.0
      %564 = vmatprep.subr.mxu0 0.0
      %565 = vmatpush2.msra.mxu0 0.0
      %566 = vmatprep.subr.mxu0 0.0
      %567 = vmatpush2.msra.mxu0 0.0
      %568 = vmatprep.subr.mxu0 0.0
      %569 = vmatpush2.msra.mxu0 0.0
      %570 = vmatprep.mubr.f32.mxu0 0.0
      %571 = vmatmul.mubr.f32.gmra.mxu0 %v482
      %v572 = vpop.f32.mrf.mxu0
      %v573 = vadd.f32 %v504, %v572
      %v574 = vpop.f32.mrf.mxu0
      %575 = vdwg.mxu0
      %v576 = vmax.f32 %v573, 0.0
      %v577 = vld [vmem:[%s5] sm:$0xff]
      %v578 = vld [vmem:[%s5 + $0x8] sm:$0xff]
      %v579 = vld [vmem:[%s5 + $0x10] sm:$0xff]
      %v580 = vld [vmem:[%s5 + $0x18] sm:$0xff]
      %v581 = vld [vmem:[%s5 + $0x20] sm:$0xff]
      %v582 = vld [vmem:[%s5 + $0x28] sm:$0xff]
      %v583 = vld [vmem:[%s5 + $0x30] sm:$0xff]
      %v584 = vld [vmem:[%s5 + $0x38] sm:$0xff]
      %v585 = vld [vmem:[%s5 + $0x40] sm:$0xff]
      %v586 = vld [vmem:[%s5 + $0x48] sm:$0xff]
      %v587 = vld [vmem:[%s5 + $0x50] sm:$0xff]
      %v588 = vld [vmem:[%s5 + $0x58] sm:$0xff]
      %v589 = vld [vmem:[%s5 + $0x60] sm:$0xff]
      %v590 = vld [vmem:[%s5 + $0x68] sm:$0xff]
      %v591 = vld [vmem:[%s5 + $0x70] sm:$0xff]
      %v592 = vld [vmem:[%s5 + $0x78] sm:$0xff]
      %v593 = vld [vmem:[%s6] sm:$0x1]
      %v595 = vlaneseq
      %v596 = vshrl.u32 %v595, 7
      %v597 = vsub.s32 0, %v596
      %v598 = vrot.slane %v593, %v597
      %600 = vmatprep.subr.mxu0 0.0
      %601 = vmatpush1.msra.mxu0 %v592
      %602 = vmatprep.subr.mxu0 0.0
      %603 = vmatpush1.msra.mxu0 %v591
      %604 = vmatprep.subr.mxu0 0.0
      %605 = vmatpush1.msra.mxu0 %v590
      %606 = vmatprep.subr.mxu0 0.0
      %607 = vmatpush1.msra.mxu0 %v589
      %608 = vmatprep.subr.mxu0 0.0
      %609 = vmatpush1.msra.mxu0 %v588
      %610 = vmatprep.subr.mxu0 0.0
      %611 = vmatpush1.msra.mxu0 %v587
      %612 = vmatprep.subr.mxu0 0.0
      %613 = vmatpush1.msra.mxu0 %v586
      %614 = vmatprep.subr.mxu0 0.0
      %615 = vmatpush1.msra.mxu0 %v585
      %616 = vmatprep.subr.mxu0 0.0
      %617 = vmatpush1.msra.mxu0 %v584
      %618 = vmatprep.subr.mxu0 0.0
      %619 = vmatpush1.msra.mxu0 %v583
      %620 = vmatprep.subr.mxu0 0.0
      %621 = vmatpush1.msra.mxu0 %v582
      %622 = vmatprep.subr.mxu0 0.0
      %623 = vmatpush1.msra.mxu0 %v581
      %624 = vmatprep.subr.mxu0 0.0
      %625 = vmatpush1.msra.mxu0 %v580
      %626 = vmatprep.subr.mxu0 0.0
      %627 = vmatpush1.msra.mxu0 %v579
      %628 = vmatprep.subr.mxu0 0.0
      %629 = vmatpush1.msra.mxu0 %v578
      %630 = vmatprep.subr.mxu0 0.0
      %631 = vmatpush1.msra.mxu0 %v577
      %632 = vmatprep.subr.mxu0 0.0
      %633 = vmatpush2.msra.mxu0 0.0
      %634 = vmatprep.subr.mxu0 0.0
      %635 = vmatpush2.msra.mxu0 0.0
      %636 = vmatprep.subr.mxu0 0.0
      %637 = vmatpush2.msra.mxu0 0.0
      %638 = vmatprep.subr.mxu0 0.0
      %639 = vmatpush2.msra.mxu0 0.0
      %640 = vmatprep.subr.mxu0 0.0
      %641 = vmatpush2.msra.mxu0 0.0
      %642 = vmatprep.subr.mxu0 0.0
      %643 = vmatpush2.msra.mxu0 0.0
      %644 = vmatprep.subr.mxu0 0.0
      %645 = vmatpush2.msra.mxu0 0.0
      %646 = vmatprep.subr.mxu0 0.0
      %647 = vmatpush2.msra.mxu0 0.0
      %648 = vmatprep.subr.mxu0 0.0
      %649 = vmatpush2.msra.mxu0 0.0
      %650 = vmatprep.subr.mxu0 0.0
      %651 = vmatpush2.msra.mxu0 0.0
      %652 = vmatprep.subr.mxu0 0.0
      %653 = vmatpush2.msra.mxu0 0.0
      %654 = vmatprep.subr.mxu0 0.0
      %655 = vmatpush2.msra.mxu0 0.0
      %656 = vmatprep.subr.mxu0 0.0
      %657 = vmatpush2.msra.mxu0 0.0
      %658 = vmatprep.subr.mxu0 0.0
      %659 = vmatpush2.msra.mxu0 0.0
      %660 = vmatprep.subr.mxu0 0.0
      %661 = vmatpush2.msra.mxu0 0.0
      %662 = vmatprep.subr.mxu0 0.0
      %663 = vmatpush2.msra.mxu0 0.0
      %664 = vmatprep.mubr.f32.mxu0 0.0
      %665 = vmatmul.mubr.f32.gmra.mxu0 %v576
      %v666 = vpop.f32.mrf.mxu0
      %v667 = vadd.f32 %v598, %v666
      %v668 = vpop.f32.mrf.mxu0
      %669 = vdwg.mxu0
      %670 = vst [vmem:[%s276] sm:$0xff] %v667
      %p671 = scmp.lt.s32.totalorder %s18, 1
      %s672 = scalar_select %p671, %s18, 1
      %s673 = smul.addr %s672, 8
      %s674 = scalar_lea.vmem %s7, %s673
      // Predicated region
      $region49: #{net_forward.5} parent=47 // pred_check
        %p675 = pneg %p188
      $region50: #{net_forward.5} parent=47 // pred_check_branch
        %677 = sbr.rel (%p675) target = $region52
      $region51: #{net_forward.5} parent=47 // pred_region
        _
      $region52: #{net_forward.5} parent=47 // pred_fallthru
        _
    $region48: #{net_forward.5} parent=5 // pred_fallthru
      _
    %p678 = scmp.le.s32.totalorder 2, %s13
    // Predicated region
    $region53: #{net_forward.5} parent=5 // pred_check
      %p679 = pneg %p678
    $region54: #{net_forward.5} parent=5 // pred_check_branch
      %681 = sbr.rel (%p679) target = $region56
    $region55: #{net_forward.5} parent=5 // pred_region
      %s682 = ssub.s32 %s13, 2
      // Predicated region
      $region57: #{net_forward.5} parent=55 // pred_check
        %p683 = pneg %p194
      $region58: #{net_forward.5} parent=55 // pred_check_branch
        %685 = sbr.rel (%p683) target = $region60
      $region59: #{net_forward.5} parent=55 // pred_region
        %p686 = scmp.lt.s32.totalorder %s19, 1
        %s687 = scalar_select %p686, %s19, 1
        %s688 = smul.addr %s687, 8
        %s689 = scalar_lea.vmem %s7, %s688
      $region60: #{net_forward.5} parent=55 // pred_fallthru
        _
    $region56: #{net_forward.5} parent=5 // pred_fallthru
      _
  $region6: #{net_forward.5} parent=0 // loop_footer
    %s17 = sadd.s32 1, %s13
  $region7: #{net_forward.5} parent=0 // loop_footer_branch
    %12 = sbr.rel target = $region3
  $region8: #{net_forward.5} parent=0 // loop_exit
    _

// kernel: net_forward.3
$region0: #{net_forward.3}
  #allocation0 [shape = 'u32[]', space=smem, size = 0x4, offset = 0x4, fixed_abs, tag = 'smem constant byte address 0x4 - core index']
  #allocation1 [shape = 'u32[144,128]{1,0:T(1,128)}', space=vmem, size = 0x12000, scoped, tag = 'internal scratch']
  #allocation2 [shape = 'bf16[16,384]{1,0:T(8,128)(2,1)}', space=vmem, size = 0x3000, scoped, tag = 'scratch operand']
  #allocation3 [shape = 'bf16[100,1024]{1,0:T(8,128)(2,1)}', space=vmem, size = 0x34000, scoped, tag = 'scratch operand']
  %s0 = inlined_call_operand.vmem [shape: bf16[16,768], index: 0, kind: input, shape index: {}, may-alias: {0,1}]
  %s1 = inlined_call_operand.vmem [shape: bf16[16,768], index: 1, kind: input, shape index: {}, may-alias: {0,1}]
  %s2 = inlined_call_operand.vmem [shape: bf16[6,100], index: 2, kind: input, shape index: {}]
  %s3 = inlined_call_operand.vmem [shape: f32[6,1], index: 3, kind: input, shape index: {}]
  %s4 = inlined_call_operand.vmem [shape: bf16[6,512], index: 4, kind: output, shape index: {}]
  %s5 = sld [smem:[#allocation0]]
  $region128: #{net_forward.3} parent=0
    _
  %s7 = ssub.s32 1, %s5
  %s8 = scalar_select 0, %s7, %s5
  $region1: #{net_forward.3} parent=0
    #allocation4 [shape = 'u8[16384]{0}', space=vmem, size = 0x4000, scoped, tag = 'input window, operand 0']
    #allocation5 [shape = 'u8[8192]{0}', space=vmem, size = 0x2000, scoped, tag = 'input window, operand 1']
    loop: start=0, step=1, limit=4
    $region2: #{net_forward.3} parent=1 // loop_pre_header
      _
    $region3: #{net_forward.3} parent=1 // loop_header
      %s10 = sphi 0, %s14
      %p11 = scmp.ge.s32.totalorder %s10, 4
      %s20 = sphi 0, %s22
      %s23 = sphi 0, %s20
      %s24 = sphi 0, %s23
      %s40 = sphi 0, %s24
      %s50 = sphi 0, %s52
      %s53 = sphi 0, %s50
      %s54 = sphi 0, %s53
      %s70 = sphi 0, %s54
      %s74 = sphi 0, %s74
      %s76 = sphi 0, %s74
      %s77 = sphi 0, %s76
      %s91 = sphi 0, %s77
      %s95 = sphi 0, %s95
      %s97 = sphi 0, %s95
      %s98 = sphi 0, %s97
      %s112 = sphi 0, %s98
      %s118 = sphi 0, %s120
      %s121 = sphi 0, %s118
      %s122 = sphi 0, %s121
      %s138 = sphi 0, %s122
    $region4: #{net_forward.3} parent=1 // loop_header_branch
      %13 = sbr.rel (%p11) target = $region8
    $region5: #{net_forward.3} parent=1 // loop_body
      %s15 = ssub.s32 %s10, 1
      %s16 = ssub.s32 %s10, 2
      %s17 = sadd.s32 %s10, 1
      %s18 = ssub.s32 %s10, %s17
      %p19 = scmp.eq.s32.totalorder %s18, 0
      %s21 = sadd.s32 %s20, 1
      %s22 = scalar_select %p19, %s20, %s21
      %p25 = pneg %p19
      %p26 = scmp.eq.s32.totalorder %s10, 1
      %p27 = por %p25, %p26
      %p28 = scmp.ne.s32.totalorder %s20, %s23
      %p29 = scmp.eq.s32.totalorder %s10, 0
      %p30 = por %p28, %p29
      %p31 = scmp.ne.s32.totalorder %s20, %s23
      %p32 = scmp.eq.s32.totalorder %s15, 1
      %p33 = por %p31, %p32
      %p34 = scmp.ne.s32.totalorder %s23, %s24
      %p35 = scmp.eq.s32.totalorder %s15, 0
      %p36 = por %p34, %p35
      %p37 = scmp.ne.s32.totalorder %s23, %s24
      %p38 = scmp.eq.s32.totalorder %s16, 1
      %p39 = por %p37, %p38
      %p41 = scmp.ne.s32.totalorder %s24, %s40
      %p42 = scmp.eq.s32.totalorder %s16, 0
      %p43 = por %p41, %p42
      %s44 = smul.u32 %s10, 2
      %s45 = sadd.s32 %s44, 2
      %s46 = smul.u32 %s17, 2
      %s47 = sadd.s32 %s46, 2
      %s48 = ssub.s32 %s45, %s47
      %p49 = scmp.eq.s32.totalorder %s48, 0
      %s51 = sadd.s32 %s50, 1
      %s52 = scalar_select %p49, %s50, %s51
      %p55 = pneg %p49
      %p56 = scmp.eq.s32.totalorder %s10, 1
      %p57 = por %p55, %p56
      %p58 = scmp.ne.s32.totalorder %s50, %s53
      %p59 = scmp.eq.s32.totalorder %s10, 0
      %p60 = por %p58, %p59
      %p61 = scmp.ne.s32.totalorder %s50, %s53
      %p62 = scmp.eq.s32.totalorder %s15, 1
      %p63 = por %p61, %p62
      %p64 = scmp.ne.s32.totalorder %s53, %s54
      %p65 = scmp.eq.s32.totalorder %s15, 0
      %p66 = por %p64, %p65
      %p67 = scmp.ne.s32.totalorder %s53, %s54
      %p68 = scmp.eq.s32.totalorder %s16, 1
      %p69 = por %p67, %p68
      %p71 = scmp.ne.s32.totalorder %s54, %s70
      %p72 = scmp.eq.s32.totalorder %s16, 0
      %p73 = por %p71, %p72
      %s75 = sadd.s32 %s74, 1
      %p78 = scmp.eq.s32.totalorder %s10, 1
      %p79 = scmp.ne.s32.totalorder %s74, %s76
      %p80 = scmp.eq.s32.totalorder %s10, 0
      %p81 = por %p79, %p80
      %p82 = scmp.ne.s32.totalorder %s74, %s76
      %p83 = scmp.eq.s32.totalorder %s15, 1
      %p84 = por %p82, %p83
      %p85 = scmp.ne.s32.totalorder %s76, %s77
      %p86 = scmp.eq.s32.totalorder %s15, 0
      %p87 = por %p85, %p86
      %p88 = scmp.ne.s32.totalorder %s76, %s77
      %p89 = scmp.eq.s32.totalorder %s16, 1
      %p90 = por %p88, %p89
      %p92 = scmp.ne.s32.totalorder %s77, %s91
      %p93 = scmp.eq.s32.totalorder %s16, 0
      %p94 = por %p92, %p93
      %s96 = sadd.s32 %s95, 1
      %p99 = scmp.eq.s32.totalorder %s10, 1
      %p100 = scmp.ne.s32.totalorder %s95, %s97
      %p101 = scmp.eq.s32.totalorder %s10, 0
      %p102 = por %p100, %p101
      %p103 = scmp.ne.s32.totalorder %s95, %s97
      %p104 = scmp.eq.s32.totalorder %s15, 1
      %p105 = por %p103, %p104
      %p106 = scmp.ne.s32.totalorder %s97, %s98
      %p107 = scmp.eq.s32.totalorder %s15, 0
      %p108 = por %p106, %p107
      %p109 = scmp.ne.s32.totalorder %s97, %s98
      %p110 = scmp.eq.s32.totalorder %s16, 1
      %p111 = por %p109, %p110
      %p113 = scmp.ne.s32.totalorder %s98, %s112
      %p114 = scmp.eq.s32.totalorder %s16, 0
      %p115 = por %p113, %p114
      %s116 = ssub.s32 %s10, %s17
      %p117 = scmp.eq.s32.totalorder %s116, 0
      %s119 = sadd.s32 %s118, 1
      %s120 = scalar_select %p117, %s118, %s119
      %p123 = pneg %p117
      %p124 = scmp.eq.s32.totalorder %s10, 1
      %p125 = por %p123, %p124
      %p126 = scmp.ne.s32.totalorder %s118, %s121
      %p127 = scmp.eq.s32.totalorder %s10, 0
      %p128 = por %p126, %p127
      %p129 = scmp.ne.s32.totalorder %s118, %s121
      %p130 = scmp.eq.s32.totalorder %s15, 1
      %p131 = por %p129, %p130
      %p132 = scmp.ne.s32.totalorder %s121, %s122
      %p133 = scmp.eq.s32.totalorder %s15, 0
      %p134 = por %p132, %p133
      %p135 = scmp.ne.s32.totalorder %s121, %s122
      %p136 = scmp.eq.s32.totalorder %s16, 1
      %p137 = por %p135, %p136
      %p139 = scmp.ne.s32.totalorder %s122, %s138
      %p140 = scmp.eq.s32.totalorder %s16, 0
      %p141 = por %p139, %p140
      %p142 = scmp.le.s32.totalorder 1, %s10
      %p143 = scmp.lt.s32.totalorder %s10, 3
      %p144 = pnand %p142, %p143
      %p145 = pneg %p144
      // Predicated region
      $region9: #{net_forward.3} parent=5 // pred_check
        _
      $region10: #{net_forward.3} parent=5 // pred_check_branch
        %147 = sbr.rel (%p144) target = $region12
      $region11: #{net_forward.3} parent=5 // pred_region
        %s148 = ssub.s32 %s10, 1
        // Predicated region
        $region13: #{net_forward.3} parent=11 // pred_check
          %p149 = pneg %p87
        $region14: #{net_forward.3} parent=11 // pred_check_branch
          %151 = sbr.rel (%p149) target = $region16
        $region15: #{net_forward.3} parent=11 // pred_region
          _
        $region16: #{net_forward.3} parent=11 // pred_fallthru
          _
        // Predicated region
        $region17: #{net_forward.3} parent=11 // pred_check
          %p152 = pneg %p108
        $region18: #{net_forward.3} parent=11 // pred_check_branch
          %154 = sbr.rel (%p152) target = $region20
        $region19: #{net_forward.3} parent=11 // pred_region
          _
        $region20: #{net_forward.3} parent=11 // pred_fallthru
          _
      $region12: #{net_forward.3} parent=5 // pred_fallthru
        _
      %p155 = scmp.lt.s32.totalorder %s10, 2
      // Predicated region
      $region21: #{net_forward.3} parent=5 // pred_check
        %p156 = pneg %p155
      $region22: #{net_forward.3} parent=5 // pred_check_branch
        %158 = sbr.rel (%p156) target = $region24
      $region23: #{net_forward.3} parent=5 // pred_region
        // Predicated region
        $region25: #{net_forward.3} parent=23 // pred_check
          %p159 = pneg %p30
        $region26: #{net_forward.3} parent=23 // pred_check_branch
          %161 = sbr.rel (%p159) target = $region28
        $region27: #{net_forward.3} parent=23 // pred_region
          %s162 = sand.u32 %s20, 1
          %s163 = sand.u32 %s20, 1
          %s164 = smul.addr %s163, 16
          %s165 = scalar_lea.vmem [#allocation4], %s164
          %s166 = smul.u32 2, %s10
          %s167 = smul.addr %s166, 4
          %s168 = scalar_lea.vmem %s0, %s167
          // Predicated region
          $region29: #{net_forward.3} parent=27 // pred_check
            _
          $region30: #{net_forward.3} parent=27 // pred_check_branch
            %170 = sbr.rel (0) target = $region32
          $region31: #{net_forward.3} parent=27 // pred_region
            // Predicated region
            $region33: #{net_forward.3} parent=31 // pred_check
              _
            $region34: #{net_forward.3} parent=31 // pred_check_branch
              %172 = sbr.rel (0) target = $region36
            $region35: #{net_forward.3} parent=31 // pred_region
              // Predicated region
              $region48: #{net_forward.3} parent=35 // pred_check
                _
              $region49: #{net_forward.3} parent=35 // pred_check_branch
                %190 = sbr.rel (0) target = $region51
              $region50: #{net_forward.3} parent=35 // pred_region
                loop: start=0, step=1, limit=1
                $region52: #{net_forward.3} parent=50 // loop_pre_header
                  _
                $region53: #{net_forward.3} parent=50 // loop_header
                  %s192 = sphi 0, %s196
                  %p193 = scmp.ge.s32.totalorder %s192, 1
                  %s197 = sphi %s168, %s168
                  %s198 = sphi %s165, %s165
                $region54: #{net_forward.3} parent=50 // loop_header_branch
                  %195 = sbr.rel (%p193) target = $region58
                $region55: #{net_forward.3} parent=50 // loop_body
                  %v199 = vld [vmem:[%s197] sm:$0xff]
                  %200 = vst [vmem:[%s198] sm:$0xff] %v199
                  %v201 = vld [vmem:[%s197 + $0x18] sm:$0xff]
                  %202 = vst [vmem:[%s198 + $0x8] sm:$0xff] %v201
                $region56: #{net_forward.3} parent=50 // loop_footer
                  %s196 = sadd.s32 1, %s192
                $region57: #{net_forward.3} parent=50 // loop_footer_branch
                  %191 = sbr.rel target = $region53
                $region58: #{net_forward.3} parent=50 // loop_exit
                  _
              $region51: #{net_forward.3} parent=35 // pred_fallthru
                _
              // Predicated region
              $region59: #{net_forward.3} parent=35 // pred_check
                _
              $region60: #{net_forward.3} parent=35 // pred_check_branch
                %204 = sbr.rel target = $region62
              $region61: #{net_forward.3} parent=35 // pred_region
                _
              $region62: #{net_forward.3} parent=35 // pred_fallthru
                _
            $region36: #{net_forward.3} parent=31 // pred_fallthru
              _
            // Predicated region
            $region37: #{net_forward.3} parent=31 // pred_check
              _
            $region38: #{net_forward.3} parent=31 // pred_check_branch
              %174 = sbr.rel target = $region40
            $region39: #{net_forward.3} parent=31 // pred_region
              %s176 = ssub.s32 256, 1
              loop: start=0, step=1, limit=1
              $region41: #{net_forward.3} parent=39 // loop_pre_header
                _
              $region42: #{net_forward.3} parent=39 // loop_header
                %s178 = sphi 0, %s182
                %p179 = scmp.ge.s32.totalorder %s178, 1
                %s183 = sphi %s168, %s168
                %s184 = sphi %s165, %s165
              $region43: #{net_forward.3} parent=39 // loop_header_branch
                %181 = sbr.rel (%p179) target = $region47
              $region44: #{net_forward.3} parent=39 // loop_body
                %v185 = vld [vmem:[%s183] sm:%s176]
                %186 = vst [vmem:[%s184] sm:%s176] %v185
                %v187 = vld [vmem:[%s183 + $0x18] sm:%s176]
                %188 = vst [vmem:[%s184 + $0x8] sm:%s176] %v187
              $region45: #{net_forward.3} parent=39 // loop_footer
                %s182 = sadd.s32 1, %s178
              $region46: #{net_forward.3} parent=39 // loop_footer_branch
                %177 = sbr.rel target = $region42
              $region47: #{net_forward.3} parent=39 // loop_exit
                _
            $region40: #{net_forward.3} parent=31 // pred_fallthru
              _
          $region32: #{net_forward.3} parent=27 // pred_fallthru
            _
          %205 = vnop
        $region28: #{net_forward.3} parent=23 // pred_fallthru
          _
        // Predicated region
        $region63: #{net_forward.3} parent=23 // pred_check
          %p206 = pneg %p60
        $region64: #{net_forward.3} parent=23 // pred_check_branch
          %208 = sbr.rel (%p206) target = $region66
        $region65: #{net_forward.3} parent=23 // pred_region
          %s209 = sand.u32 %s50, 1
          %s210 = sand.u32 %s50, 1
          %s211 = smul.addr %s210, 8
          %s212 = scalar_lea.vmem [#allocation5], %s211
          %s213 = smul.u32 %s10, 2
          %s214 = sadd.s32 %s213, 2
          %s215 = smul.addr %s214, 4
          %s216 = scalar_lea.vmem %s1, %s215
          // Predicated region
          $region67: #{net_forward.3} parent=65 // pred_check
            _
          $region68: #{net_forward.3} parent=65 // pred_check_branch
            %218 = sbr.rel (0) target = $region70
          $region69: #{net_forward.3} parent=65 // pred_region
            // Predicated region
            $region71: #{net_forward.3} parent=69 // pred_check
              _
            $region72: #{net_forward.3} parent=69 // pred_check_branch
              %220 = sbr.rel target = $region74
            $region73: #{net_forward.3} parent=69 // pred_region
              // Predicated region
              $region86: #{net_forward.3} parent=73 // pred_check
                _
              $region87: #{net_forward.3} parent=73 // pred_check_branch
                %238 = sbr.rel (0) target = $region89
              $region88: #{net_forward.3} parent=73 // pred_region
                loop: start=0, step=1, limit=1
                $region90: #{net_forward.3} parent=88 // loop_pre_header
                  _
                $region91: #{net_forward.3} parent=88 // loop_header
                  %s240 = sphi 0, %s244
                  %p241 = scmp.ge.s32.totalorder %s240, 1
                  %s245 = sphi %s216, %s216
                  %s246 = sphi %s212, %s212
                $region92: #{net_forward.3} parent=88 // loop_header_branch
                  %243 = sbr.rel (%p241) target = $region96
                $region93: #{net_forward.3} parent=88 // loop_body
                  _
                $region94: #{net_forward.3} parent=88 // loop_footer
                  %s244 = sadd.s32 1, %s240
                $region95: #{net_forward.3} parent=88 // loop_footer_branch
                  %239 = sbr.rel target = $region91
                $region96: #{net_forward.3} parent=88 // loop_exit
                  _
                %s248 = ssub.s32 16, 1
                loop: start=0, step=1, limit=1
                $region97: #{net_forward.3} parent=88 // loop_pre_header
                  _
                $region98: #{net_forward.3} parent=88 // loop_header
                  %s250 = sphi 0, %s254
                  %p251 = scmp.ge.s32.totalorder %s250, 1
                  %s255 = sphi %s216, %s216
                  %s256 = sphi %s212, %s212
                $region99: #{net_forward.3} parent=88 // loop_header_branch
                  %253 = sbr.rel (%p251) target = $region103
                $region100: #{net_forward.3} parent=88 // loop_body
                  %v257 = vld [vmem:[%s255] sm:%s248]
                  %258 = vst [vmem:[%s256] sm:%s248] %v257
                  %v259 = vld [vmem:[%s255 + $0x18] sm:%s248]
                  %260 = vst [vmem:[%s256 + $0x4] sm:%s248] %v259
                $region101: #{net_forward.3} parent=88 // loop_footer
                  %s254 = sadd.s32 1, %s250
                $region102: #{net_forward.3} parent=88 // loop_footer_branch
                  %249 = sbr.rel target = $region98
                $region103: #{net_forward.3} parent=88 // loop_exit
                  _
              $region89: #{net_forward.3} parent=73 // pred_fallthru
                _
            $region74: #{net_forward.3} parent=69 // pred_fallthru
              _
            // Predicated region
            $region75: #{net_forward.3} parent=69 // pred_check
              _
            $region76: #{net_forward.3} parent=69 // pred_check_branch
              %222 = sbr.rel (0) target = $region78
            $region77: #{net_forward.3} parent=69 // pred_region
              %s224 = ssub.s32 16, 1
              loop: start=0, step=1, limit=1
              $region79: #{net_forward.3} parent=77 // loop_pre_header
                _
              $region80: #{net_forward.3} parent=77 // loop_header
                %s226 = sphi 0, %s230
                %p227 = scmp.ge.s32.totalorder %s226, 1
                %s231 = sphi %s216, %s216
                %s232 = sphi %s212, %s212
              $region81: #{net_forward.3} parent=77 // loop_header_branch
                %229 = sbr.rel (%p227) target = $region85
              $region82: #{net_forward.3} parent=77 // loop_body
                %v233 = vld [vmem:[%s231] sm:%s224]
                %234 = vst [vmem:[%s232] sm:%s224] %v233
                %v235 = vld [vmem:[%s231 + $0x18] sm:%s224]
                %236 = vst [vmem:[%s232 + $0x4] sm:%s224] %v235
              $region83: #{net_forward.3} parent=77 // loop_footer
                %s230 = sadd.s32 1, %s226
              $region84: #{net_forward.3} parent=77 // loop_footer_branch
                %225 = sbr.rel target = $region80
              $region85: #{net_forward.3} parent=77 // loop_exit
                _
            $region78: #{net_forward.3} parent=69 // pred_fallthru
              _
          $region70: #{net_forward.3} parent=65 // pred_fallthru
            _
          %261 = vnop
        $region66: #{net_forward.3} parent=23 // pred_fallthru
          _
      $region24: #{net_forward.3} parent=5 // pred_fallthru
        _
      %p262 = scmp.le.s32.totalorder 1, %s10
      %p263 = scmp.lt.s32.totalorder %s10, 3
      %p264 = pnand %p262, %p263
      %p265 = pneg %p264
      // Predicated region
      $region104: #{net_forward.3} parent=5 // pred_check
        _
      $region105: #{net_forward.3} parent=5 // pred_check_branch
        %267 = sbr.rel (%p264) target = $region107
      $region106: #{net_forward.3} parent=5 // pred_region
        %s268 = ssub.s32 %s10, 1
        %s269 = sand.u32 %s23, 1
        %s270 = sand.u32 %s23, 1
        %s271 = smul.addr %s270, 16
        %s272 = scalar_lea.vmem [#allocation4], %s271
        // Predicated region
        $region108: #{net_forward.3} parent=106 // pred_check
          %p273 = pneg %p36
        $region109: #{net_forward.3} parent=106 // pred_check_branch
          %275 = sbr.rel (%p273) target = $region111
        $region110: #{net_forward.3} parent=106 // pred_region
          _
        $region111: #{net_forward.3} parent=106 // pred_fallthru
          _
        %s276 = sand.u32 %s53, 1
        %s277 = sand.u32 %s53, 1
        %s278 = smul.addr %s277, 8
        %s279 = scalar_lea.vmem [#allocation5], %s278
        // Predicated region
        $region112: #{net_forward.3} parent=106 // pred_check
          %p280 = pneg %p66
        $region113: #{net_forward.3} parent=106 // pred_check_branch
          %282 = sbr.rel (%p280) target = $region115
        $region114: #{net_forward.3} parent=106 // pred_region
          _
        $region115: #{net_forward.3} parent=106 // pred_fallthru
          _
        %s283 = sand.u32 %s23, 1
        %s284 = sand.u32 %s23, 1
        %s285 = smul.addr %s284, 16
        %s286 = scalar_lea.vmem [#allocation4], %s285
        %p287 = pneg %p36
        %p288 = pneg %p33
        %s289 = sand.u32 %s53, 1
        %s290 = sand.u32 %s53, 1
        %s291 = smul.addr %s290, 8
        %s292 = scalar_lea.vmem [#allocation5], %s291
        %p293 = pneg %p66
        %p294 = pneg %p63
        %p295 = pneg %p87
        %p296 = pneg %p84
        %p297 = pneg %p108
        %p298 = pneg %p105
        %p299 = pneg %p134
        %p300 = pneg %p131
        %s301 = smul.u32 2, %s15
        %p302 = scmp.lt.s32.totalorder %s301, 3
        %s303 = scalar_select %p302, %s301, 3
        %s304 = smul.addr %s303, 4
        %s305 = scalar_lea.vmem %s4, %s304
        %s306 = smul.u32 2, %s15
        %s307 = smul.u32 %s15, 2
        %s308 = sadd.s32 %s307, 2
        %s309 = smul.u32 2, %s15
        %p310 = scmp.lt.s32.totalorder %s309, 3
        %s311 = scalar_select %p310, %s309, 3
        %s312 = smul.addr %s311, 4
        %s313 = scalar_lea.vmem %s4, %s312
        %s314 = smul.u32 2, %s15
        %v316 = vld [vmem:[%s272] sm:$0xff]
        %v317 = vld [vmem:[%s272 + $0x8] sm:$0xff]
        %318 = vst [vmem:[#allocation2] sm:$0xff] %v316
        %319 = vst [vmem:[#allocation2 + $0xc] sm:$0xff] %v317
        %v320 = vld [vmem:[%s279] sm:$0xf]
        %v321 = vld [vmem:[%s279 + $0x4] sm:$0xf]
        %322 = vst [vmem:[#allocation2 + $0x8] sm:$0xf] %v320
        %323 = vst [vmem:[#allocation2 + $0x14] sm:$0xf] %v321
        %v324 = vld [vmem:[#allocation2] sm:$0x33]
        %325 = vst [vmem:[#allocation3] sm:$0x33] %v324
        %v326 = vld [vmem:[#allocation2] sm:$0xcc]
        %327 = vst [vmem:[#allocation3] sm:$0xcc] %v326
        %v328 = vld [vmem:[#allocation2] sm:$0x33]
        %v329 = vld [vmem:[#allocation2 + $0x8] sm:$0x3]
        %332 = vrot.lane.b32.xlu0 %v328, 127
        %v333 = vpop.permute.xlu0 %332
        %334 = vrot.lane.b32.xlu0 %v329, 127
        %v335 = vpop.permute.xlu0 %334
        %v336 = vrot.slane %v333, 4
        %v337 = vrot.slane %v335, 4
        %vm338 = vcmask 1043456
        %v339 = vsel %vm338, %v336, %v337
        %vm340 = vcmask 1039360
        %v341 = vsel %vm340, %v333, %v339
        %343 = vst [vmem:[#allocation3 + $0x20] sm:$0x33] %v341
        %v344 = vld [vmem:[#allocation2] sm:$0xcc]
        %v345 = vld [vmem:[#allocation2 + $0x8] sm:$0xc]
        %348 = vrot.lane.b32.xlu0 %v344, 127
        %v349 = vpop.permute.xlu0 %348
        %350 = vrot.lane.b32.xlu0 %v345, 127
        %v351 = vpop.permute.xlu0 %350
        %v352 = vrot.slane %v349, 4
        %v353 = vrot.slane %v351, 4
        %v354 = vsel %vm338, %v352, %v353
        %v355 = vsel %vm340, %v349, %v354
        %357 = vst [vmem:[#allocation3 + $0x20] sm:$0xcc] %v355
        %v358 = vld [vmem:[#allocation2] sm:$0x33]
        %v359 = vld [vmem:[#allocation2 + $0x8] sm:$0x3]
        %362 = vrot.lane.b32.xlu0 %v358, 126
        %v363 = vpop.permute.xlu0 %362
        %364 = vrot.lane.b32.xlu0 %v359, 126
        %v365 = vpop.permute.xlu0 %364
        %v366 = vrot.slane %v363, 4
        %v367 = vrot.slane %v365, 4
        %v368 = vsel %vm338, %v366, %v367
        %vm369 = vcmask 1031168
        %v370 = vsel %vm369, %v363, %v368
        %372 = vst [vmem:[#allocation3 + $0x40] sm:$0x33] %v370
        %v373 = vld [vmem:[#allocation2 + $0xc] sm:$0x33]
        %v375 = vrot.slane %v373, 6
        %377 = vst [vmem:[#allocation3 + $0x40] sm:$0xcc] %v375
        %v378 = vld [vmem:[#allocation2 + $0xc] sm:$0xcc]
        %v380 = vrot.slane %v378, 6
        %v381 = vrot.slane %v380, 4
        %383 = vst [vmem:[#allocation3 + $0x60] sm:$0x33] %v381
        %v384 = vld [vmem:[#allocation2 + $0xc] sm:$0x33]
        %v385 = vld [vmem:[#allocation2 + $0x14] sm:$0x3]
        %v388 = vrot.slane %v384, 6
        %v389 = vrot.slane %v385, 6
        %390 = vrot.lane.b32.xlu0 %v388, 127
        %v391 = vpop.permute.xlu0 %390
        %392 = vrot.lane.b32.xlu0 %v389, 127
        %v393 = vpop.permute.xlu0 %392
        %v394 = vrot.slane %v391, 4
        %v395 = vrot.slane %v393, 4
        %v396 = vsel %vm338, %v394, %v395
        %v397 = vsel %vm340, %v391, %v396
        %399 = vst [vmem:[#allocation3 + $0x60] sm:$0xcc] %v397
        %v400 = vld [vmem:[#allocation2 + $0xc] sm:$0xcc]
        %v401 = vld [vmem:[#allocation2 + $0x14] sm:$0xc]
        %v404 = vrot.slane %v400, 6
        %v405 = vrot.slane %v404, 4
        %v406 = vrot.slane %v401, 6
        %v407 = vrot.slane %v406, 4
        %408 = vrot.lane.b32.xlu0 %v405, 127
        %v409 = vpop.permute.xlu0 %408
        %410 = vrot.lane.b32.xlu0 %v407, 127
        %v411 = vpop.permute.xlu0 %410
        %v412 = vrot.slane %v409, 4
        %v413 = vrot.slane %v411, 4
        %v414 = vsel %vm338, %v412, %v413
        %v415 = vsel %vm340, %v409, %v414
        %417 = vst [vmem:[#allocation3 + $0x80] sm:$0x33] %v415
        %v418 = vld [vmem:[#allocation2 + $0xc] sm:$0x33]
        %v419 = vld [vmem:[#allocation2 + $0x14] sm:$0x3]
        %v422 = vrot.slane %v418, 6
        %v423 = vrot.slane %v419, 6
        %424 = vrot.lane.b32.xlu0 %v422, 126
        %v425 = vpop.permute.xlu0 %424
        %426 = vrot.lane.b32.xlu0 %v423, 126
        %v427 = vpop.permute.xlu0 %426
        %v428 = vrot.slane %v425, 4
        %v429 = vrot.slane %v427, 4
        %v430 = vsel %vm338, %v428, %v429
        %v431 = vsel %vm369, %v425, %v430
        %433 = vst [vmem:[#allocation3 + $0x80] sm:$0xcc] %v431
        %v434 = vld [vmem:[#allocation2] sm:$0x33]
        %v435 = vld [vmem:[#allocation2 + $0x8] sm:$0x3]
        %438 = vrot.lane.b32.xlu0 %v434, 112
        %v439 = vpop.permute.xlu0 %438
        %440 = vrot.lane.b32.xlu0 %v435, 112
        %v441 = vpop.permute.xlu0 %440
        %v442 = vrot.slane %v439, 4
        %v443 = vrot.slane %v441, 4
        %v444 = vsel %vm338, %v442, %v443
        %vm445 = vcmask 916480
        %v446 = vsel %vm445, %v439, %v444
        %448 = vst [vmem:[#allocation3 + $0xa0] sm:$0x33] %v446
        %v449 = vld [vmem:[#allocation2] sm:$0xcc]
        %v450 = vld [vmem:[#allocation2 + $0x8] sm:$0xc]
        %453 = vrot.lane.b32.xlu0 %v449, 112
        %v454 = vpop.permute.xlu0 %453
        %455 = vrot.lane.b32.xlu0 %v450, 112
        %v456 = vpop.permute.xlu0 %455
        %v457 = vrot.slane %v454, 4
        %v458 = vrot.slane %v456, 4
        %v459 = vsel %vm338, %v457, %v458
        %v460 = vsel %vm445, %v454, %v459
        %462 = vst [vmem:[#allocation3 + $0xa0] sm:$0xcc] %v460
        %v463 = vld [vmem:[#allocation2] sm:$0x33]
        %v464 = vld [vmem:[#allocation2 + $0x8] sm:$0x3]
        %467 = vrot.lane.b32.xlu0 %v463, 111
        %v468 = vpop.permute.xlu0 %467
        %469 = vrot.lane.b32.xlu0 %v464, 111
        %v470 = vpop.permute.xlu0 %469
        %v471 = vrot.slane %v468, 4
        %v472 = vrot.slane %v470, 4
        %v473 = vsel %vm338, %v471, %v472
        %vm474 = vcmask 908288
        %v475 = vsel %vm474, %v468, %v473
        %477 = vst [vmem:[#allocation3 + $0xc0] sm:$0x33] %v475
        %v478 = vld [vmem:[#allocation2] sm:$0xcc]
        %v479 = vld [vmem:[#allocation2 + $0x8] sm:$0xc]
        %482 = vrot.lane.b32.xlu0 %v478, 111
        %v483 = vpop.permute.xlu0 %482
        %484 = vrot.lane.b32.xlu0 %v479, 111
        %v485 = vpop.permute.xlu0 %484
        %v486 = vrot.slane %v483, 4
        %v487 = vrot.slane %v485, 4
        %v488 = vsel %vm338, %v486, %v487
        %v489 = vsel %vm474, %v483, %v488
        %491 = vst [vmem:[#allocation3 + $0xc0] sm:$0xcc] %v489
        %v492 = vld [vmem:[#allocation2] sm:$0x33]
        %v493 = vld [vmem:[#allocation2 + $0x8] sm:$0x3]
        %496 = vrot.lane.b32.xlu0 %v492, 110
        %v497 = vpop.permute.xlu0 %496
        %498 = vrot.lane.b32.xlu0 %v493, 110
        %v499 = vpop.permute.xlu0 %498
        %v500 = vrot.slane %v497, 4
        %v501 = vrot.slane %v499, 4
        %v502 = vsel %vm338, %v500, %v501
        %vm503 = vcmask 900096
        %v504 = vsel %vm503, %v497, %v502
        %506 = vst [vmem:[#allocation3 + $0xe0] sm:$0x33] %v504
        %v507 = vld [vmem:[#allocation2 + $0xc] sm:$0x33]
        %v508 = vld [vmem:[#allocation2 + $0x14] sm:$0x3]
        %v511 = vrot.slane %v507, 6
        %v512 = vrot.slane %v508, 6
        %513 = vrot.lane.b32.xlu0 %v511, 112
        %v514 = vpop.permute.xlu0 %513
        %515 = vrot.lane.b32.xlu0 %v512, 112
        %v516 = vpop.permute.xlu0 %515
        %v517 = vrot.slane %v514, 4
        %v518 = vrot.slane %v516, 4
        %v519 = vsel %vm338, %v517, %v518
        %v520 = vsel %vm445, %v514, %v519
        %522 = vst [vmem:[#allocation3 + $0xe0] sm:$0xcc] %v520
        %v523 = vld [vmem:[#allocation2 + $0xc] sm:$0xcc]
        %v524 = vld [vmem:[#allocation2 + $0x14] sm:$0xc]
        %v527 = vrot.slane %v523, 6
        %v528 = vrot.slane %v527, 4
        %v529 = vrot.slane %v524, 6
        %v530 = vrot.slane %v529, 4
        %531 = vrot.lane.b32.xlu0 %v528, 112
        %v532 = vpop.permute.xlu0 %531
        %533 = vrot.lane.b32.xlu0 %v530, 112
        %v534 = vpop.permute.xlu0 %533
        %v535 = vrot.slane %v532, 4
        %v536 = vrot.slane %v534, 4
        %v537 = vsel %vm338, %v535, %v536
        %v538 = vsel %vm445, %v532, %v537
        %540 = vst [vmem:[#allocation3 + $0x100] sm:$0x33] %v538
        %v541 = vld [vmem:[#allocation2 + $0xc] sm:$0x33]
        %v542 = vld [vmem:[#allocation2 + $0x14] sm:$0x3]
        %v545 = vrot.slane %v541, 6
        %v546 = vrot.slane %v542, 6
        %547 = vrot.lane.b32.xlu0 %v545, 111
        %v548 = vpop.permute.xlu0 %547
        %549 = vrot.lane.b32.xlu0 %v546, 111
        %v550 = vpop.permute.xlu0 %549
        %v551 = vrot.slane %v548, 4
        %v552 = vrot.slane %v550, 4
        %v553 = vsel %vm338, %v551, %v552
        %v554 = vsel %vm474, %v548, %v553
        %556 = vst [vmem:[#allocation3 + $0x100] sm:$0xcc] %v554
        %v557 = vld [vmem:[#allocation2 + $0xc] sm:$0xcc]
        %v558 = vld [vmem:[#allocation2 + $0x14] sm:$0xc]
        %v561 = vrot.slane %v557, 6
        %v562 = vrot.slane %v561, 4
        %v563 = vrot.slane %v558, 6
        %v564 = vrot.slane %v563, 4
        %565 = vrot.lane.b32.xlu0 %v562, 111
        %v566 = vpop.permute.xlu0 %565
        %567 = vrot.lane.b32.xlu0 %v564, 111
        %v568 = vpop.permute.xlu0 %567
        %v569 = vrot.slane %v566, 4
        %v570 = vrot.slane %v568, 4
        %v571 = vsel %vm338, %v569, %v570
        %v572 = vsel %vm474, %v566, %v571
        %574 = vst [vmem:[#allocation3 + $0x120] sm:$0x33] %v572
        %v575 = vld [vmem:[#allocation2 + $0xc] sm:$0x33]
        %v576 = vld [vmem:[#allocation2 + $0x14] sm:$0x3]
        %v579 = vrot.slane %v575, 6
        %v580 = vrot.slane %v576, 6
        %581 = vrot.lane.b32.xlu0 %v579, 110
        %v582 = vpop.permute.xlu0 %581
        %583 = vrot.lane.b32.xlu0 %v580, 110
        %v584 = vpop.permute.xlu0 %583
        %v585 = vrot.slane %v582, 4
        %v586 = vrot.slane %v584, 4
        %v587 = vsel %vm338, %v585, %v586
        %v588 = vsel %vm503, %v582, %v587
        %590 = vst [vmem:[#allocation3 + $0x120] sm:$0xcc] %v588
        %v591 = vld [vmem:[#allocation2] sm:$0x33]
        %v592 = vld [vmem:[#allocation2 + $0x8] sm:$0x3]
        %595 = vrot.lane.b32.xlu0 %v591, 96
        %v596 = vpop.permute.xlu0 %595
        %597 = vrot.lane.b32.xlu0 %v592, 96
        %v598 = vpop.permute.xlu0 %597
        %v599 = vrot.slane %v596, 4
        %v600 = vrot.slane %v598, 4
        %v601 = vsel %vm338, %v599, %v600
        %vm602 = vcmask 785408
        %v603 = vsel %vm602, %v596, %v601
        %605 = vst [vmem:[#allocation3 + $0x140] sm:$0x33] %v603
        %v606 = vld [vmem:[#allocation2] sm:$0xcc]
        %v607 = vld [vmem:[#allocation2 + $0x8] sm:$0xc]
        %610 = vrot.lane.b32.xlu0 %v606, 96
        %v611 = vpop.permute.xlu0 %610
        %612 = vrot.lane.b32.xlu0 %v607, 96
        %v613 = vpop.permute.xlu0 %612
        %v614 = vrot.slane %v611, 4
        %v615 = vrot.slane %v613, 4
        %v616 = vsel %vm338, %v614, %v615
        %v617 = vsel %vm602, %v611, %v616
        %619 = vst [vmem:[#allocation3 + $0x140] sm:$0xcc] %v617
        %v620 = vld [vmem:[#allocation2] sm:$0x33]
        %v621 = vld [vmem:[#allocation2 + $0x8] sm:$0x3]
        %624 = vrot.lane.b32.xlu0 %v620, 95
        %v625 = vpop.permute.xlu0 %624
        %626 = vrot.lane.b32.xlu0 %v621, 95
        %v627 = vpop.permute.xlu0 %626
        %v628 = vrot.slane %v625, 4
        %v629 = vrot.slane %v627, 4
        %v630 = vsel %vm338, %v628, %v629
        %vm631 = vcmask 777216
        %v632 = vsel %vm631, %v625, %v630
        %634 = vst [vmem:[#allocation3 + $0x160] sm:$0x33] %v632
        %v635 = vld [vmem:[#allocation2] sm:$0xcc]
        %v636 = vld [vmem:[#allocation2 + $0x8] sm:$0xc]
        %639 = vrot.lane.b32.xlu0 %v635, 95
        %v640 = vpop.permute.xlu0 %639
        %641 = vrot.lane.b32.xlu0 %v636, 95
        %v642 = vpop.permute.xlu0 %641
        %v643 = vrot.slane %v640, 4
        %v644 = vrot.slane %v642, 4
        %v645 = vsel %vm338, %v643, %v644
        %v646 = vsel %vm631, %v640, %v645
        %648 = vst [vmem:[#allocation3 + $0x160] sm:$0xcc] %v646
        %v649 = vld [vmem:[#allocation2] sm:$0x33]
        %v650 = vld [vmem:[#allocation2 + $0x8] sm:$0x3]
        %653 = vrot.lane.b32.xlu0 %v649, 94
        %v654 = vpop.permute.xlu0 %653
        %655 = vrot.lane.b32.xlu0 %v650, 94
        %v656 = vpop.permute.xlu0 %655
        %v657 = vrot.slane %v654, 4
        %v658 = vrot.slane %v656, 4
        %v659 = vsel %vm338, %v657, %v658
        %vm660 = vcmask 769024
        %v661 = vsel %vm660, %v654, %v659
        %663 = vst [vmem:[#allocation3 + $0x180] sm:$0x33] %v661
        %v664 = vld [vmem:[#allocation2] sm:$0xcc]
        %v666 = vrot.slane %v664, 6
        %v667 = vrot.slane %v666, 4
        %669 = vst [vmem:[#allocation3 + $0x8] sm:$0x33] %v667
        %v670 = vld [vmem:[#allocation2] sm:$0x33]
        %v671 = vld [vmem:[#allocation2 + $0x8] sm:$0x3]
        %v674 = vrot.slane %v670, 6
        %v675 = vrot.slane %v671, 6
        %676 = vrot.lane.b32.xlu0 %v674, 127
        %v677 = vpop.permute.xlu0 %676
        %678 = vrot.lane.b32.xlu0 %v675, 127
        %v679 = vpop.permute.xlu0 %678
        %v680 = vrot.slane %v677, 4
        %v681 = vrot.slane %v679, 4
        %v682 = vsel %vm338, %v680, %v681
        %v683 = vsel %vm340, %v677, %v682
        %685 = vst [vmem:[#allocation3 + $0x8] sm:$0xcc] %v683
        %v686 = vld [vmem:[#allocation2] sm:$0xcc]
        %v687 = vld [vmem:[#allocation2 + $0x8] sm:$0xc]
        %v690 = vrot.slane %v686, 6
        %v691 = vrot.slane %v690, 4
        %v692 = vrot.slane %v687, 6
        %v693 = vrot.slane %v692, 4
        %694 = vrot.lane.b32.xlu0 %v691, 127
        %v695 = vpop.permute.xlu0 %694
        %696 = vrot.lane.b32.xlu0 %v693, 127
        %v697 = vpop.permute.xlu0 %696
        %v698 = vrot.slane %v695, 4
        %v699 = vrot.slane %v697, 4
        %v700 = vsel %vm338, %v698, %v699
        %v701 = vsel %vm340, %v695, %v700
        %703 = vst [vmem:[#allocation3 + $0x28] sm:$0x33] %v701
        %v704 = vld [vmem:[#allocation2] sm:$0x33]
        %v705 = vld [vmem:[#allocation2 + $0x8] sm:$0x3]
        %v708 = vrot.slane %v704, 6
        %v709 = vrot.slane %v705, 6
        %710 = vrot.lane.b32.xlu0 %v708, 126
        %v711 = vpop.permute.xlu0 %710
        %712 = vrot.lane.b32.xlu0 %v709, 126
        %v713 = vpop.permute.xlu0 %712
        %v714 = vrot.slane %v711, 4
        %v715 = vrot.slane %v713, 4
        %v716 = vsel %vm338, %v714, %v715
        %v717 = vsel %vm369, %v711, %v716
        %719 = vst [vmem:[#allocation3 + $0x28] sm:$0xcc] %v717
        %v720 = vld [vmem:[#allocation2] sm:$0xcc]
        %v721 = vld [vmem:[#allocation2 + $0x8] sm:$0xc]
        %v724 = vrot.slane %v720, 6
        %v725 = vrot.slane %v724, 4
        %v726 = vrot.slane %v721, 6
        %v727 = vrot.slane %v726, 4
        %728 = vrot.lane.b32.xlu0 %v725, 126
        %v729 = vpop.permute.xlu0 %728
        %730 = vrot.lane.b32.xlu0 %v727, 126
        %v731 = vpop.permute.xlu0 %730
        %v732 = vrot.slane %v729, 4
        %v733 = vrot.slane %v731, 4
        %v734 = vsel %vm338, %v732, %v733
        %v735 = vsel %vm369, %v729, %v734
        %737 = vst [vmem:[#allocation3 + $0x48] sm:$0x33] %v735
        %v738 = vld [vmem:[#allocation2 + $0xc] sm:$0xcc]
        %739 = vst [vmem:[#allocation3 + $0x48] sm:$0xcc] %v738
        %v740 = vld [vmem:[#allocation2 + $0xc] sm:$0x33]
        %v741 = vld [vmem:[#allocation2 + $0x14] sm:$0x3]
        %744 = vrot.lane.b32.xlu0 %v740, 127
        %v745 = vpop.permute.xlu0 %744
        %746 = vrot.lane.b32.xlu0 %v741, 127
        %v747 = vpop.permute.xlu0 %746
        %v748 = vrot.slane %v745, 4
        %v749 = vrot.slane %v747, 4
        %v750 = vsel %vm338, %v748, %v749
        %v751 = vsel %vm340, %v745, %v750
        %753 = vst [vmem:[#allocation3 + $0x68] sm:$0x33] %v751
        %v754 = vld [vmem:[#allocation2 + $0xc] sm:$0xcc]
        %v755 = vld [vmem:[#allocation2 + $0x14] sm:$0xc]
        %758 = vrot.lane.b32.xlu0 %v754, 127
        %v759 = vpop.permute.xlu0 %758
        %760 = vrot.lane.b32.xlu0 %v755, 127
        %v761 = vpop.permute.xlu0 %760
        %v762 = vrot.slane %v759, 4
        %v763 = vrot.slane %v761, 4
        %v764 = vsel %vm338, %v762, %v763
        %v765 = vsel %vm340, %v759, %v764
        %767 = vst [vmem:[#allocation3 + $0x68] sm:$0xcc] %v765
        %v768 = vld [vmem:[#allocation2 + $0xc] sm:$0x33]
        %v769 = vld [vmem:[#allocation2 + $0x14] sm:$0x3]
        %772 = vrot.lane.b32.xlu0 %v768, 126
        %v773 = vpop.permute.xlu0 %772
        %774 = vrot.lane.b32.xlu0 %v769, 126
        %v775 = vpop.permute.xlu0 %774
        %v776 = vrot.slane %v773, 4
        %v777 = vrot.slane %v775, 4
        %v778 = vsel %vm338, %v776, %v777
        %v779 = vsel %vm369, %v773, %v778
        %781 = vst [vmem:[#allocation3 + $0x88] sm:$0x33] %v779
        %v782 = vld [vmem:[#allocation2 + $0xc] sm:$0xcc]
        %v783 = vld [vmem:[#allocation2 + $0x14] sm:$0xc]
        %786 = vrot.lane.b32.xlu0 %v782, 126
        %v787 = vpop.permute.xlu0 %786
        %788 = vrot.lane.b32.xlu0 %v783, 126
        %v789 = vpop.permute.xlu0 %788
        %v790 = vrot.slane %v787, 4
        %v791 = vrot.slane %v789, 4
        %v792 = vsel %vm338, %v790, %v791
        %v793 = vsel %vm369, %v787, %v792
        %795 = vst [vmem:[#allocation3 + $0x88] sm:$0xcc] %v793
        %v796 = vld [vmem:[#allocation2] sm:$0xcc]
        %v797 = vld [vmem:[#allocation2 + $0x8] sm:$0xc]
        %v800 = vrot.slane %v796, 6
        %v801 = vrot.slane %v800, 4
        %v802 = vrot.slane %v797, 6
        %v803 = vrot.slane %v802, 4
        %804 = vrot.lane.b32.xlu0 %v801, 112
        %v805 = vpop.permute.xlu0 %804
        %806 = vrot.lane.b32.xlu0 %v803, 112
        %v807 = vpop.permute.xlu0 %806
        %v808 = vrot.slane %v805, 4
        %v809 = vrot.slane %v807, 4
        %v810 = vsel %vm338, %v808, %v809
        %v811 = vsel %vm445, %v805, %v810
        %813 = vst [vmem:[#allocation3 + $0xa8] sm:$0x33] %v811
        %v814 = vld [vmem:[#allocation2] sm:$0x33]
        %v815 = vld [vmem:[#allocation2 + $0x8] sm:$0x3]
        %v818 = vrot.slane %v814, 6
        %v819 = vrot.slane %v815, 6
        %820 = vrot.lane.b32.xlu0 %v818, 111
        %v821 = vpop.permute.xlu0 %820
        %822 = vrot.lane.b32.xlu0 %v819, 111
        %v823 = vpop.permute.xlu0 %822
        %v824 = vrot.slane %v821, 4
        %v825 = vrot.slane %v823, 4
        %v826 = vsel %vm338, %v824, %v825
        %v827 = vsel %vm474, %v821, %v826
        %829 = vst [vmem:[#allocation3 + $0xa8] sm:$0xcc] %v827
        %v830 = vld [vmem:[#allocation2] sm:$0xcc]
        %v831 = vld [vmem:[#allocation2 + $0x8] sm:$0xc]
        %v834 = vrot.slane %v830, 6
        %v835 = vrot.slane %v834, 4
        %v836 = vrot.slane %v831, 6
        %v837 = vrot.slane %v836, 4
        %838 = vrot.lane.b32.xlu0 %v835, 111
        %v839 = vpop.permute.xlu0 %838
        %840 = vrot.lane.b32.xlu0 %v837, 111
        %v841 = vpop.permute.xlu0 %840
        %v842 = vrot.slane %v839, 4
        %v843 = vrot.slane %v841, 4
        %v844 = vsel %vm338, %v842, %v843
        %v845 = vsel %vm474, %v839, %v844
        %847 = vst [vmem:[#allocation3 + $0xc8] sm:$0x33] %v845
        %v848 = vld [vmem:[#allocation2] sm:$0x33]
        %v849 = vld [vmem:[#allocation2 + $0x8] sm:$0x3]
        %v852 = vrot.slane %v848, 6
        %v853 = vrot.slane %v849, 6
        %854 = vrot.lane.b32.xlu0 %v852, 110
        %v855 = vpop.permute.xlu0 %854
        %856 = vrot.lane.b32.xlu0 %v853, 110
        %v857 = vpop.permute.xlu0 %856
        %v858 = vrot.slane %v855, 4
        %v859 = vrot.slane %v857, 4
        %v860 = vsel %vm338, %v858, %v859
        %v861 = vsel %vm503, %v855, %v860
        %863 = vst [vmem:[#allocation3 + $0xc8] sm:$0xcc] %v861
        %v864 = vld [vmem:[#allocation2] sm:$0xcc]
        %v865 = vld [vmem:[#allocation2 + $0x8] sm:$0xc]
        %v868 = vrot.slane %v864, 6
        %v869 = vrot.slane %v868, 4
        %v870 = vrot.slane %v865, 6
        %v871 = vrot.slane %v870, 4
        %872 = vrot.lane.b32.xlu0 %v869, 110
        %v873 = vpop.permute.xlu0 %872
        %874 = vrot.lane.b32.xlu0 %v871, 110
        %v875 = vpop.permute.xlu0 %874
        %v876 = vrot.slane %v873, 4
        %v877 = vrot.slane %v875, 4
        %v878 = vsel %vm338, %v876, %v877
        %v879 = vsel %vm503, %v873, %v878
        %881 = vst [vmem:[#allocation3 + $0xe8] sm:$0x33] %v879
        %v882 = vld [vmem:[#allocation2 + $0xc] sm:$0xcc]
        %v883 = vld [vmem:[#allocation2 + $0x14] sm:$0xc]
        %886 = vrot.lane.b32.xlu0 %v882, 112
        %v887 = vpop.permute.xlu0 %886
        %888 = vrot.lane.b32.xlu0 %v883, 112
        %v889 = vpop.permute.xlu0 %888
        %v890 = vrot.slane %v887, 4
        %v891 = vrot.slane %v889, 4
        %v892 = vsel %vm338, %v890, %v891
        %v893 = vsel %vm445, %v887, %v892
        %895 = vst [vmem:[#allocation3 + $0xe8] sm:$0xcc] %v893
        %v896 = vld [vmem:[#allocation2 + $0xc] sm:$0x33]
        %v897 = vld [vmem:[#allocation2 + $0x14] sm:$0x3]
        %900 = vrot.lane.b32.xlu0 %v896, 111
        %v901 = vpop.permute.xlu0 %900
        %902 = vrot.lane.b32.xlu0 %v897, 111
        %v903 = vpop.permute.xlu0 %902
        %v904 = vrot.slane %v901, 4
        %v905 = vrot.slane %v903, 4
        %v906 = vsel %vm338, %v904, %v905
        %v907 = vsel %vm474, %v901, %v906
        %909 = vst [vmem:[#allocation3 + $0x108] sm:$0x33] %v907
        %v910 = vld [vmem:[#allocation2 + $0xc] sm:$0xcc]
        %v911 = vld [vmem:[#allocation2 + $0x14] sm:$0xc]
        %914 = vrot.lane.b32.xlu0 %v910, 111
        %v915 = vpop.permute.xlu0 %914
        %916 = vrot.lane.b32.xlu0 %v911, 111
        %v917 = vpop.permute.xlu0 %916
        %v918 = vrot.slane %v915, 4
        %v919 = vrot.slane %v917, 4
        %v920 = vsel %vm338, %v918, %v919
        %v921 = vsel %vm474, %v915, %v920
        %923 = vst [vmem:[#allocation3 + $0x108] sm:$0xcc] %v921
        %v924 = vld [vmem:[#allocation2 + $0xc] sm:$0x33]
        %v925 = vld [vmem:[#allocation2 + $0x14] sm:$0x3]
        %928 = vrot.lane.b32.xlu0 %v924, 110
        %v929 = vpop.permute.xlu0 %928
        %930 = vrot.lane.b32.xlu0 %v925, 110
        %v931 = vpop.permute.xlu0 %930
        %v932 = vrot.slane %v929, 4
        %v933 = vrot.slane %v931, 4
        %v934 = vsel %vm338, %v932, %v933
        %v935 = vsel %vm503, %v929, %v934
        %937 = vst [vmem:[#allocation3 + $0x128] sm:$0x33] %v935
        %v938 = vld [vmem:[#allocation2 + $0xc] sm:$0xcc]
        %v939 = vld [vmem:[#allocation2 + $0x14] sm:$0xc]
        %942 = vrot.lane.b32.xlu0 %v938, 110
        %v943 = vpop.permute.xlu0 %942
        %944 = vrot.lane.b32.xlu0 %v939, 110
        %v945 = vpop.permute.xlu0 %944
        %v946 = vrot.slane %v943, 4
        %v947 = vrot.slane %v945, 4
        %v948 = vsel %vm338, %v946, %v947
        %v949 = vsel %vm503, %v943, %v948
        %951 = vst [vmem:[#allocation3 + $0x128] sm:$0xcc] %v949
        %v952 = vld [vmem:[#allocation2] sm:$0xcc]
        %v953 = vld [vmem:[#allocation2 + $0x8] sm:$0xc]
        %v956 = vrot.slane %v952, 6
        %v957 = vrot.slane %v956, 4
        %v958 = vrot.slane %v953, 6
        %v959 = vrot.slane %v958, 4
        %960 = vrot.lane.b32.xlu0 %v957, 96
        %v961 = vpop.permute.xlu0 %960
        %962 = vrot.lane.b32.xlu0 %v959, 96
        %v963 = vpop.permute.xlu0 %962
        %v964 = vrot.slane %v961, 4
        %v965 = vrot.slane %v963, 4
        %v966 = vsel %vm338, %v964, %v965
        %v967 = vsel %vm602, %v961, %v966
        %969 = vst [vmem:[#allocation3 + $0x148] sm:$0x33] %v967
        %v970 = vld [vmem:[#allocation2] sm:$0x33]
        %v971 = vld [vmem:[#allocation2 + $0x8] sm:$0x3]
        %v974 = vrot.slane %v970, 6
        %v975 = vrot.slane %v971, 6
        %976 = vrot.lane.b32.xlu0 %v974, 95
        %v977 = vpop.permute.xlu0 %976
        %978 = vrot.lane.b32.xlu0 %v975, 95
        %v979 = vpop.permute.xlu0 %978
        %v980 = vrot.slane %v977, 4
        %v981 = vrot.slane %v979, 4
        %v982 = vsel %vm338, %v980, %v981
        %v983 = vsel %vm631, %v977, %v982
        %985 = vst [vmem:[#allocation3 + $0x148] sm:$0xcc] %v983
        %v986 = vld [vmem:[#allocation2] sm:$0xcc]
        %v987 = vld [vmem:[#allocation2 + $0x8] sm:$0xc]
        %v990 = vrot.slane %v986, 6
        %v991 = vrot.slane %v990, 4
        %v992 = vrot.slane %v987, 6
        %v993 = vrot.slane %v992, 4
        %994 = vrot.lane.b32.xlu0 %v991, 95
        %v995 = vpop.permute.xlu0 %994
        %996 = vrot.lane.b32.xlu0 %v993, 95
        %v997 = vpop.permute.xlu0 %996
        %v998 = vrot.slane %v995, 4
        %v999 = vrot.slane %v997, 4
        %v1000 = vsel %vm338, %v998, %v999
        %v1001 = vsel %vm631, %v995, %v1000
        %1003 = vst [vmem:[#allocation3 + $0x168] sm:$0x33] %v1001
        %v1004 = vld [vmem:[#allocation2] sm:$0x33]
        %v1005 = vld [vmem:[#allocation2 + $0x8] sm:$0x3]
        %v1008 = vrot.slane %v1004, 6
        %v1009 = vrot.slane %v1005, 6
        %1010 = vrot.lane.b32.xlu0 %v1008, 94
        %v1011 = vpop.permute.xlu0 %1010
        %1012 = vrot.lane.b32.xlu0 %v1009, 94
        %v1013 = vpop.permute.xlu0 %1012
        %v1014 = vrot.slane %v1011, 4
        %v1015 = vrot.slane %v1013, 4
        %v1016 = vsel %vm338, %v1014, %v1015
        %v1017 = vsel %vm660, %v1011, %v1016
        %1019 = vst [vmem:[#allocation3 + $0x168] sm:$0xcc] %v1017
        %v1020 = vld [vmem:[#allocation2] sm:$0xcc]
        %v1021 = vld [vmem:[#allocation2 + $0x8] sm:$0xc]
        %v1024 = vrot.slane %v1020, 6
        %v1025 = vrot.slane %v1024, 4
        %v1026 = vrot.slane %v1021, 6
        %v1027 = vrot.slane %v1026, 4
        %1028 = vrot.lane.b32.xlu0 %v1025, 94
        %v1029 = vpop.permute.xlu0 %1028
        %1030 = vrot.lane.b32.xlu0 %v1027, 94
        %v1031 = vpop.permute.xlu0 %1030
        %v1032 = vrot.slane %v1029, 4
        %v1033 = vrot.slane %v1031, 4
        %v1034 = vsel %vm338, %v1032, %v1033
        %v1035 = vsel %vm660, %v1029, %v1034
        %1037 = vst [vmem:[#allocation3 + $0x188] sm:$0x33] %v1035
        %v1038 = vld [vmem:[#allocation2 + $0xc] sm:$0x33]
        %1039 = vst [vmem:[#allocation3 + $0x10] sm:$0x33] %v1038
        %v1040 = vld [vmem:[#allocation2 + $0xc] sm:$0xcc]
        %1041 = vst [vmem:[#allocation3 + $0x10] sm:$0xcc] %v1040
        %v1042 = vld [vmem:[#allocation2 + $0xc] sm:$0x33]
        %v1043 = vld [vmem:[#allocation2 + $0x14] sm:$0x3]
        %1046 = vrot.lane.b32.xlu0 %v1042, 127
        %v1047 = vpop.permute.xlu0 %1046
        %1048 = vrot.lane.b32.xlu0 %v1043, 127
        %v1049 = vpop.permute.xlu0 %1048
        %v1050 = vrot.slane %v1047, 4
        %v1051 = vrot.slane %v1049, 4
        %v1052 = vsel %vm338, %v1050, %v1051
        %v1053 = vsel %vm340, %v1047, %v1052
        %1055 = vst [vmem:[#allocation3 + $0x30] sm:$0x33] %v1053
        %v1056 = vld [vmem:[#allocation2 + $0xc] sm:$0xcc]
        %v1057 = vld [vmem:[#allocation2 + $0x14] sm:$0xc]
        %1060 = vrot.lane.b32.xlu0 %v1056, 127
        %v1061 = vpop.permute.xlu0 %1060
        %1062 = vrot.lane.b32.xlu0 %v1057, 127
        %v1063 = vpop.permute.xlu0 %1062
        %v1064 = vrot.slane %v1061, 4
        %v1065 = vrot.slane %v1063, 4
        %v1066 = vsel %vm338, %v1064, %v1065
        %v1067 = vsel %vm340, %v1061, %v1066
        %1069 = vst [vmem:[#allocation3 + $0x30] sm:$0xcc] %v1067
        %v1070 = vld [vmem:[#allocation2 + $0xc] sm:$0x33]
        %v1071 = vld [vmem:[#allocation2 + $0x14] sm:$0x3]
        %1074 = vrot.lane.b32.xlu0 %v1070, 126
        %v1075 = vpop.permute.xlu0 %1074
        %1076 = vrot.lane.b32.xlu0 %v1071, 126
        %v1077 = vpop.permute.xlu0 %1076
        %v1078 = vrot.slane %v1075, 4
        %v1079 = vrot.slane %v1077, 4
        %v1080 = vsel %vm338, %v1078, %v1079
        %v1081 = vsel %vm369, %v1075, %v1080
        %1083 = vst [vmem:[#allocation3 + $0x50] sm:$0x33] %v1081
        %v1084 = vld [vmem:[#allocation2] sm:$0x33]
        %v1085 = vld [vmem:[#allocation2 + $0x8] sm:$0x3]
        %v1088 = vrot.slane %v1084, 6
        %v1089 = vrot.slane %v1085, 6
        %1090 = vrot.lane.b32.xlu0 %v1088, 112
        %v1091 = vpop.permute.xlu0 %1090
        %1092 = vrot.lane.b32.xlu0 %v1089, 112
        %v1093 = vpop.permute.xlu0 %1092
        %v1094 = vrot.slane %v1091, 4
        %v1095 = vrot.slane %v1093, 4
        %v1096 = vsel %vm338, %v1094, %v1095
        %v1097 = vsel %vm445, %v1091, %v1096
        %1099 = vst [vmem:[#allocation3 + $0x50] sm:$0xcc] %v1097
        %v1100 = vld [vmem:[#allocation2] sm:$0xcc]
        %v1101 = vld [vmem:[#allocation2 + $0x8] sm:$0xc]
        %v1104 = vrot.slane %v1100, 6
        %v1105 = vrot.slane %v1104, 4
        %v1106 = vrot.slane %v1101, 6
        %v1107 = vrot.slane %v1106, 4
        %1108 = vrot.lane.b32.xlu0 %v1105, 112
        %v1109 = vpop.permute.xlu0 %1108
        %1110 = vrot.lane.b32.xlu0 %v1107, 112
        %v1111 = vpop.permute.xlu0 %1110
        %v1112 = vrot.slane %v1109, 4
        %v1113 = vrot.slane %v1111, 4
        %v1114 = vsel %vm338, %v1112, %v1113
        %v1115 = vsel %vm445, %v1109, %v1114
        %1117 = vst [vmem:[#allocation3 + $0x70] sm:$0x33] %v1115
        %v1118 = vld [vmem:[#allocation2] sm:$0x33]
        %v1119 = vld [vmem:[#allocation2 + $0x8] sm:$0x3]
        %v1122 = vrot.slane %v1118, 6
        %v1123 = vrot.slane %v1119, 6
        %1124 = vrot.lane.b32.xlu0 %v1122, 111
        %v1125 = vpop.permute.xlu0 %1124
        %1126 = vrot.lane.b32.xlu0 %v1123, 111
        %v1127 = vpop.permute.xlu0 %1126
        %v1128 = vrot.slane %v1125, 4
        %v1129 = vrot.slane %v1127, 4
        %v1130 = vsel %vm338, %v1128, %v1129
        %v1131 = vsel %vm474, %v1125, %v1130
        %1133 = vst [vmem:[#allocation3 + $0x70] sm:$0xcc] %v1131
        %v1134 = vld [vmem:[#allocation2] sm:$0xcc]
        %v1135 = vld [vmem:[#allocation2 + $0x8] sm:$0xc]
        %v1138 = vrot.slane %v1134, 6
        %v1139 = vrot.slane %v1138, 4
        %v1140 = vrot.slane %v1135, 6
        %v1141 = vrot.slane %v1140, 4
        %1142 = vrot.lane.b32.xlu0 %v1139, 111
        %v1143 = vpop.permute.xlu0 %1142
        %1144 = vrot.lane.b32.xlu0 %v1141, 111
        %v1145 = vpop.permute.xlu0 %1144
        %v1146 = vrot.slane %v1143, 4
        %v1147 = vrot.slane %v1145, 4
        %v1148 = vsel %vm338, %v1146, %v1147
        %v1149 = vsel %vm474, %v1143, %v1148
        %1151 = vst [vmem:[#allocation3 + $0x90] sm:$0x33] %v1149
        %v1152 = vld [vmem:[#allocation2] sm:$0x33]
        %v1153 = vld [vmem:[#allocation2 + $0x8] sm:$0x3]
        %v1156 = vrot.slane %v1152, 6
        %v1157 = vrot.slane %v1153, 6
        %1158 = vrot.lane.b32.xlu0 %v1156, 110
        %v1159 = vpop.permute.xlu0 %1158
        %1160 = vrot.lane.b32.xlu0 %v1157, 110
        %v1161 = vpop.permute.xlu0 %1160
        %v1162 = vrot.slane %v1159, 4
        %v1163 = vrot.slane %v1161, 4
        %v1164 = vsel %vm338, %v1162, %v1163
        %v1165 = vsel %vm503, %v1159, %v1164
        %1167 = vst [vmem:[#allocation3 + $0x90] sm:$0xcc] %v1165
        %v1168 = vld [vmem:[#allocation2 + $0xc] sm:$0x33]
        %v1169 = vld [vmem:[#allocation2 + $0x14] sm:$0x3]
        %1172 = vrot.lane.b32.xlu0 %v1168, 112
        %v1173 = vpop.permute.xlu0 %1172
        %1174 = vrot.lane.b32.xlu0 %v1169, 112
        %v1175 = vpop.permute.xlu0 %1174
        %v1176 = vrot.slane %v1173, 4
        %v1177 = vrot.slane %v1175, 4
        %v1178 = vsel %vm338, %v1176, %v1177
        %v1179 = vsel %vm445, %v1173, %v1178
        %1181 = vst [vmem:[#allocation3 + $0xb0] sm:$0x33] %v1179
        %v1182 = vld [vmem:[#allocation2 + $0xc] sm:$0xcc]
        %v1183 = vld [vmem:[#allocation2 + $0x14] sm:$0xc]
        %1186 = vrot.lane.b32.xlu0 %v1182, 112
        %v1187 = vpop.permute.xlu0 %1186
        %1188 = vrot.lane.b32.xlu0 %v1183, 112
        %v1189 = vpop.permute.xlu0 %1188
        %v1190 = vrot.slane %v1187, 4
        %v1191 = vrot.slane %v1189, 4
        %v1192 = vsel %vm338, %v1190, %v1191
        %v1193 = vsel %vm445, %v1187, %v1192
        %1195 = vst [vmem:[#allocation3 + $0xb0] sm:$0xcc] %v1193
        %v1196 = vld [vmem:[#allocation2 + $0xc] sm:$0x33]
        %v1197 = vld [vmem:[#allocation2 + $0x14] sm:$0x3]
        %1200 = vrot.lane.b32.xlu0 %v1196, 111
        %v1201 = vpop.permute.xlu0 %1200
        %1202 = vrot.lane.b32.xlu0 %v1197, 111
        %v1203 = vpop.permute.xlu0 %1202
        %v1204 = vrot.slane %v1201, 4
        %v1205 = vrot.slane %v1203, 4
        %v1206 = vsel %vm338, %v1204, %v1205
        %v1207 = vsel %vm474, %v1201, %v1206
        %1209 = vst [vmem:[#allocation3 + $0xd0] sm:$0x33] %v1207
        %v1210 = vld [vmem:[#allocation2 + $0xc] sm:$0xcc]
        %v1211 = vld [vmem:[#allocation2 + $0x14] sm:$0xc]
        %1214 = vrot.lane.b32.xlu0 %v1210, 111
        %v1215 = vpop.permute.xlu0 %1214
        %1216 = vrot.lane.b32.xlu0 %v1211, 111
        %v1217 = vpop.permute.xlu0 %1216
        %v1218 = vrot.slane %v1215, 4
        %v1219 = vrot.slane %v1217, 4
        %v1220 = vsel %vm338, %v1218, %v1219
        %v1221 = vsel %vm474, %v1215, %v1220
        %1223 = vst [vmem:[#allocation3 + $0xd0] sm:$0xcc] %v1221
        %v1224 = vld [vmem:[#allocation2 + $0xc] sm:$0x33]
        %v1225 = vld [vmem:[#allocation2 + $0x14] sm:$0x3]
        %1228 = vrot.lane.b32.xlu0 %v1224, 110
        %v1229 = vpop.permute.xlu0 %1228
        %1230 = vrot.lane.b32.xlu0 %v1225, 110
        %v1231 = vpop.permute.xlu0 %1230
        %v1232 = vrot.slane %v1229, 4
        %v1233 = vrot.slane %v1231, 4
        %v1234 = vsel %vm338, %v1232, %v1233
        %v1235 = vsel %vm503, %v1229, %v1234
        %1237 = vst [vmem:[#allocation3 + $0xf0] sm:$0x33] %v1235
        %v1238 = vld [vmem:[#allocation2] sm:$0x33]
        %v1239 = vld [vmem:[#allocation2 + $0x8] sm:$0x3]
        %v1242 = vrot.slane %v1238, 6
        %v1243 = vrot.slane %v1239, 6
        %1244 = vrot.lane.b32.xlu0 %v1242, 96
        %v1245 = vpop.permute.xlu0 %1244
        %1246 = vrot.lane.b32.xlu0 %v1243, 96
        %v1247 = vpop.permute.xlu0 %1246
        %v1248 = vrot.slane %v1245, 4
        %v1249 = vrot.slane %v1247, 4
        %v1250 = vsel %vm338, %v1248, %v1249
        %v1251 = vsel %vm602, %v1245, %v1250
        %1253 = vst [vmem:[#allocation3 + $0xf0] sm:$0xcc] %v1251
        %v1254 = vld [vmem:[#allocation2] sm:$0xcc]
        %v1255 = vld [vmem:[#allocation2 + $0x8] sm:$0xc]
        %v1258 = vrot.slane %v1254, 6
        %v1259 = vrot.slane %v1258, 4
        %v1260 = vrot.slane %v1255, 6
        %v1261 = vrot.slane %v1260, 4
        %1262 = vrot.lane.b32.xlu0 %v1259, 96
        %v1263 = vpop.permute.xlu0 %1262
        %1264 = vrot.lane.b32.xlu0 %v1261, 96
        %v1265 = vpop.permute.xlu0 %1264
        %v1266 = vrot.slane %v1263, 4
        %v1267 = vrot.slane %v1265, 4
        %v1268 = vsel %vm338, %v1266, %v1267
        %v1269 = vsel %vm602, %v1263, %v1268
        %1271 = vst [vmem:[#allocation3 + $0x110] sm:$0x33] %v1269
        %v1272 = vld [vmem:[#allocation2] sm:$0x33]
        %v1273 = vld [vmem:[#allocation2 + $0x8] sm:$0x3]
        %v1276 = vrot.slane %v1272, 6
        %v1277 = vrot.slane %v1273, 6
        %1278 = vrot.lane.b32.xlu0 %v1276, 95
        %v1279 = vpop.permute.xlu0 %1278
        %1280 = vrot.lane.b32.xlu0 %v1277, 95
        %v1281 = vpop.permute.xlu0 %1280
        %v1282 = vrot.slane %v1279, 4
        %v1283 = vrot.slane %v1281, 4
        %v1284 = vsel %vm338, %v1282, %v1283
        %v1285 = vsel %vm631, %v1279, %v1284
        %1287 = vst [vmem:[#allocation3 + $0x110] sm:$0xcc] %v1285
        %v1288 = vld [vmem:[#allocation2] sm:$0xcc]
        %v1289 = vld [vmem:[#allocation2 + $0x8] sm:$0xc]
        %v1292 = vrot.slane %v1288, 6
        %v1293 = vrot.slane %v1292, 4
        %v1294 = vrot.slane %v1289, 6
        %v1295 = vrot.slane %v1294, 4
        %1296 = vrot.lane.b32.xlu0 %v1293, 95
        %v1297 = vpop.permute.xlu0 %1296
        %1298 = vrot.lane.b32.xlu0 %v1295, 95
        %v1299 = vpop.permute.xlu0 %1298
        %v1300 = vrot.slane %v1297, 4
        %v1301 = vrot.slane %v1299, 4
        %v1302 = vsel %vm338, %v1300, %v1301
        %v1303 = vsel %vm631, %v1297, %v1302
        %1305 = vst [vmem:[#allocation3 + $0x130] sm:$0x33] %v1303
        %v1306 = vld [vmem:[#allocation2] sm:$0x33]
        %v1307 = vld [vmem:[#allocation2 + $0x8] sm:$0x3]
        %v1310 = vrot.slane %v1306, 6
        %v1311 = vrot.slane %v1307, 6
        %1312 = vrot.lane.b32.xlu0 %v1310, 94
        %v1313 = vpop.permute.xlu0 %1312
        %1314 = vrot.lane.b32.xlu0 %v1311, 94
        %v1315 = vpop.permute.xlu0 %1314
        %v1316 = vrot.slane %v1313, 4
        %v1317 = vrot.slane %v1315, 4
        %v1318 = vsel %vm338, %v1316, %v1317
        %v1319 = vsel %vm660, %v1313, %v1318
        %1321 = vst [vmem:[#allocation3 + $0x130] sm:$0xcc] %v1319
        %v1322 = vld [vmem:[#allocation2 + $0xc] sm:$0x33]
        %v1323 = vld [vmem:[#allocation2 + $0x14] sm:$0x3]
        %1326 = vrot.lane.b32.xlu0 %v1322, 96
        %v1327 = vpop.permute.xlu0 %1326
        %1328 = vrot.lane.b32.xlu0 %v1323, 96
        %v1329 = vpop.permute.xlu0 %1328
        %v1330 = vrot.slane %v1327, 4
        %v1331 = vrot.slane %v1329, 4
        %v1332 = vsel %vm338, %v1330, %v1331
        %v1333 = vsel %vm602, %v1327, %v1332
        %1335 = vst [vmem:[#allocation3 + $0x150] sm:$0x33] %v1333
        %v1336 = vld [vmem:[#allocation2 + $0xc] sm:$0xcc]
        %v1337 = vld [vmem:[#allocation2 + $0x14] sm:$0xc]
        %1340 = vrot.lane.b32.xlu0 %v1336, 96
        %v1341 = vpop.permute.xlu0 %1340
        %1342 = vrot.lane.b32.xlu0 %v1337, 96
        %v1343 = vpop.permute.xlu0 %1342
        %v1344 = vrot.slane %v1341, 4
        %v1345 = vrot.slane %v1343, 4
        %v1346 = vsel %vm338, %v1344, %v1345
        %v1347 = vsel %vm602, %v1341, %v1346
        %1349 = vst [vmem:[#allocation3 + $0x150] sm:$0xcc] %v1347
        %v1350 = vld [vmem:[#allocation2 + $0xc] sm:$0x33]
        %v1351 = vld [vmem:[#allocation2 + $0x14] sm:$0x3]
        %1354 = vrot.lane.b32.xlu0 %v1350, 95
        %v1355 = vpop.permute.xlu0 %1354
        %1356 = vrot.lane.b32.xlu0 %v1351, 95
        %v1357 = vpop.permute.xlu0 %1356
        %v1358 = vrot.slane %v1355, 4
        %v1359 = vrot.slane %v1357, 4
        %v1360 = vsel %vm338, %v1358, %v1359
        %v1361 = vsel %vm631, %v1355, %v1360
        %1363 = vst [vmem:[#allocation3 + $0x170] sm:$0x33] %v1361
        %v1364 = vld [vmem:[#allocation2 + $0xc] sm:$0xcc]
        %v1365 = vld [vmem:[#allocation2 + $0x14] sm:$0xc]
        %1368 = vrot.lane.b32.xlu0 %v1364, 95
        %v1369 = vpop.permute.xlu0 %1368
        %1370 = vrot.lane.b32.xlu0 %v1365, 95
        %v1371 = vpop.permute.xlu0 %1370
        %v1372 = vrot.slane %v1369, 4
        %v1373 = vrot.slane %v1371, 4
        %v1374 = vsel %vm338, %v1372, %v1373
        %v1375 = vsel %vm631, %v1369, %v1374
        %1377 = vst [vmem:[#allocation3 + $0x170] sm:$0xcc] %v1375
        %v1378 = vld [vmem:[#allocation2 + $0xc] sm:$0x33]
        %v1379 = vld [vmem:[#allocation2 + $0x14] sm:$0x3]
        %1382 = vrot.lane.b32.xlu0 %v1378, 94
        %v1383 = vpop.permute.xlu0 %1382
        %1384 = vrot.lane.b32.xlu0 %v1379, 94
        %v1385 = vpop.permute.xlu0 %1384
        %v1386 = vrot.slane %v1383, 4
        %v1387 = vrot.slane %v1385, 4
        %v1388 = vsel %vm338, %v1386, %v1387
        %v1389 = vsel %vm660, %v1383, %v1388
        %1391 = vst [vmem:[#allocation3 + $0x190] sm:$0x33] %v1389
        %v1392 = vld [vmem:[#allocation2 + $0xc] sm:$0xcc]
        %v1394 = vrot.slane %v1392, 6
        %v1395 = vrot.slane %v1394, 4
        %1397 = vst [vmem:[#allocation3 + $0x18] sm:$0x33] %v1395
        %v1398 = vld [vmem:[#allocation2 + $0xc] sm:$0x33]
        %v1399 = vld [vmem:[#allocation2 + $0x14] sm:$0x3]
        %v1402 = vrot.slane %v1398, 6
        %v1403 = vrot.slane %v1399, 6
        %1404 = vrot.lane.b32.xlu0 %v1402, 127
        %v1405 = vpop.permute.xlu0 %1404
        %1406 = vrot.lane.b32.xlu0 %v1403, 127
        %v1407 = vpop.permute.xlu0 %1406
        %v1408 = vrot.slane %v1405, 4
        %v1409 = vrot.slane %v1407, 4
        %v1410 = vsel %vm338, %v1408, %v1409
        %v1411 = vsel %vm340, %v1405, %v1410
        %1413 = vst [vmem:[#allocation3 + $0x18] sm:$0xcc] %v1411
        %v1414 = vld [vmem:[#allocation2 + $0xc] sm:$0xcc]
        %v1415 = vld [vmem:[#allocation2 + $0x14] sm:$0xc]
        %v1418 = vrot.slane %v1414, 6
        %v1419 = vrot.slane %v1418, 4
        %v1420 = vrot.slane %v1415, 6
        %v1421 = vrot.slane %v1420, 4
        %1422 = vrot.lane.b32.xlu0 %v1419, 127
        %v1423 = vpop.permute.xlu0 %1422
        %1424 = vrot.lane.b32.xlu0 %v1421, 127
        %v1425 = vpop.permute.xlu0 %1424
        %v1426 = vrot.slane %v1423, 4
        %v1427 = vrot.slane %v1425, 4
        %v1428 = vsel %vm338, %v1426, %v1427
        %v1429 = vsel %vm340, %v1423, %v1428
        %1431 = vst [vmem:[#allocation3 + $0x38] sm:$0x33] %v1429
        %v1432 = vld [vmem:[#allocation2 + $0xc] sm:$0x33]
        %v1433 = vld [vmem:[#allocation2 + $0x14] sm:$0x3]
        %v1436 = vrot.slane %v1432, 6
        %v1437 = vrot.slane %v1433, 6
        %1438 = vrot.lane.b32.xlu0 %v1436, 126
        %v1439 = vpop.permute.xlu0 %1438
        %1440 = vrot.lane.b32.xlu0 %v1437, 126
        %v1441 = vpop.permute.xlu0 %1440
        %v1442 = vrot.slane %v1439, 4
        %v1443 = vrot.slane %v1441, 4
        %v1444 = vsel %vm338, %v1442, %v1443
        %v1445 = vsel %vm369, %v1439, %v1444
        %1447 = vst [vmem:[#allocation3 + $0x38] sm:$0xcc] %v1445
        %v1448 = vld [vmem:[#allocation2 + $0xc] sm:$0xcc]
        %v1449 = vld [vmem:[#allocation2 + $0x14] sm:$0xc]
        %v1452 = vrot.slane %v1448, 6
        %v1453 = vrot.slane %v1452, 4
        %v1454 = vrot.slane %v1449, 6
        %v1455 = vrot.slane %v1454, 4
        %1456 = vrot.lane.b32.xlu0 %v1453, 126
        %v1457 = vpop.permute.xlu0 %1456
        %1458 = vrot.lane.b32.xlu0 %v1455, 126
        %v1459 = vpop.permute.xlu0 %1458
        %v1460 = vrot.slane %v1457, 4
        %v1461 = vrot.slane %v1459, 4
        %v1462 = vsel %vm338, %v1460, %v1461
        %v1463 = vsel %vm369, %v1457, %v1462
        %1465 = vst [vmem:[#allocation3 + $0x58] sm:$0x33] %v1463
        %v1466 = vld [vmem:[#allocation2] sm:$0xcc]
        %v1467 = vld [vmem:[#allocation2 + $0x8] sm:$0xc]
        %1470 = vrot.lane.b32.xlu0 %v1466, 112
        %v1471 = vpop.permute.xlu0 %1470
        %1472 = vrot.lane.b32.xlu0 %v1467, 112
        %v1473 = vpop.permute.xlu0 %1472
        %v1474 = vrot.slane %v1471, 4
        %v1475 = vrot.slane %v1473, 4
        %v1476 = vsel %vm338, %v1474, %v1475
        %v1477 = vsel %vm445, %v1471, %v1476
        %1479 = vst [vmem:[#allocation3 + $0x58] sm:$0xcc] %v1477
        %v1480 = vld [vmem:[#allocation2] sm:$0x33]
        %v1481 = vld [vmem:[#allocation2 + $0x8] sm:$0x3]
        %1484 = vrot.lane.b32.xlu0 %v1480, 111
        %v1485 = vpop.permute.xlu0 %1484
        %1486 = vrot.lane.b32.xlu0 %v1481, 111
        %v1487 = vpop.permute.xlu0 %1486
        %v1488 = vrot.slane %v1485, 4
        %v1489 = vrot.slane %v1487, 4
        %v1490 = vsel %vm338, %v1488, %v1489
        %v1491 = vsel %vm474, %v1485, %v1490
        %1493 = vst [vmem:[#allocation3 + $0x78] sm:$0x33] %v1491
        %v1494 = vld [vmem:[#allocation2] sm:$0xcc]
        %v1495 = vld [vmem:[#allocation2 + $0x8] sm:$0xc]
        %1498 = vrot.lane.b32.xlu0 %v1494, 111
        %v1499 = vpop.permute.xlu0 %1498
        %1500 = vrot.lane.b32.xlu0 %v1495, 111
        %v1501 = vpop.permute.xlu0 %1500
        %v1502 = vrot.slane %v1499, 4
        %v1503 = vrot.slane %v1501, 4
        %v1504 = vsel %vm338, %v1502, %v1503
        %v1505 = vsel %vm474, %v1499, %v1504
        %1507 = vst [vmem:[#allocation3 + $0x78] sm:$0xcc] %v1505
        %v1508 = vld [vmem:[#allocation2] sm:$0x33]
        %v1509 = vld [vmem:[#allocation2 + $0x8] sm:$0x3]
        %1512 = vrot.lane.b32.xlu0 %v1508, 110
        %v1513 = vpop.permute.xlu0 %1512
        %1514 = vrot.lane.b32.xlu0 %v1509, 110
        %v1515 = vpop.permute.xlu0 %1514
        %v1516 = vrot.slane %v1513, 4
        %v1517 = vrot.slane %v1515, 4
        %v1518 = vsel %vm338, %v1516, %v1517
        %v1519 = vsel %vm503, %v1513, %v1518
        %1521 = vst [vmem:[#allocation3 + $0x98] sm:$0x33] %v1519
        %v1522 = vld [vmem:[#allocation2] sm:$0xcc]
        %v1523 = vld [vmem:[#allocation2 + $0x8] sm:$0xc]
        %1526 = vrot.lane.b32.xlu0 %v1522, 110
        %v1527 = vpop.permute.xlu0 %1526
        %1528 = vrot.lane.b32.xlu0 %v1523, 110
        %v1529 = vpop.permute.xlu0 %1528
        %v1530 = vrot.slane %v1527, 4
        %v1531 = vrot.slane %v1529, 4
        %v1532 = vsel %vm338, %v1530, %v1531
        %v1533 = vsel %vm503, %v1527, %v1532
        %1535 = vst [vmem:[#allocation3 + $0x98] sm:$0xcc] %v1533
        %v1536 = vld [vmem:[#allocation2 + $0xc] sm:$0xcc]
        %v1537 = vld [vmem:[#allocation2 + $0x14] sm:$0xc]
        %v1540 = vrot.slane %v1536, 6
        %v1541 = vrot.slane %v1540, 4
        %v1542 = vrot.slane %v1537, 6
        %v1543 = vrot.slane %v1542, 4
        %1544 = vrot.lane.b32.xlu0 %v1541, 112
        %v1545 = vpop.permute.xlu0 %1544
        %1546 = vrot.lane.b32.xlu0 %v1543, 112
        %v1547 = vpop.permute.xlu0 %1546
        %v1548 = vrot.slane %v1545, 4
        %v1549 = vrot.slane %v1547, 4
        %v1550 = vsel %vm338, %v1548, %v1549
        %v1551 = vsel %vm445, %v1545, %v1550
        %1553 = vst [vmem:[#allocation3 + $0xb8] sm:$0x33] %v1551
        %v1554 = vld [vmem:[#allocation2 + $0xc] sm:$0x33]
        %v1555 = vld [vmem:[#allocation2 + $0x14] sm:$0x3]
        %v1558 = vrot.slane %v1554, 6
        %v1559 = vrot.slane %v1555, 6
        %1560 = vrot.lane.b32.xlu0 %v1558, 111
        %v1561 = vpop.permute.xlu0 %1560
        %1562 = vrot.lane.b32.xlu0 %v1559, 111
        %v1563 = vpop.permute.xlu0 %1562
        %v1564 = vrot.slane %v1561, 4
        %v1565 = vrot.slane %v1563, 4
        %v1566 = vsel %vm338, %v1564, %v1565
        %v1567 = vsel %vm474, %v1561, %v1566
        %1569 = vst [vmem:[#allocation3 + $0xb8] sm:$0xcc] %v1567
        %v1570 = vld [vmem:[#allocation2 + $0xc] sm:$0xcc]
        %v1571 = vld [vmem:[#allocation2 + $0x14] sm:$0xc]
        %v1574 = vrot.slane %v1570, 6
        %v1575 = vrot.slane %v1574, 4
        %v1576 = vrot.slane %v1571, 6
        %v1577 = vrot.slane %v1576, 4
        %1578 = vrot.lane.b32.xlu0 %v1575, 111
        %v1579 = vpop.permute.xlu0 %1578
        %1580 = vrot.lane.b32.xlu0 %v1577, 111
        %v1581 = vpop.permute.xlu0 %1580
        %v1582 = vrot.slane %v1579, 4
        %v1583 = vrot.slane %v1581, 4
        %v1584 = vsel %vm338, %v1582, %v1583
        %v1585 = vsel %vm474, %v1579, %v1584
        %1587 = vst [vmem:[#allocation3 + $0xd8] sm:$0x33] %v1585
        %v1588 = vld [vmem:[#allocation2 + $0xc] sm:$0x33]
        %v1589 = vld [vmem:[#allocation2 + $0x14] sm:$0x3]
        %v1592 = vrot.slane %v1588, 6
        %v1593 = vrot.slane %v1589, 6
        %1594 = vrot.lane.b32.xlu0 %v1592, 110
        %v1595 = vpop.permute.xlu0 %1594
        %1596 = vrot.lane.b32.xlu0 %v1593, 110
        %v1597 = vpop.permute.xlu0 %1596
        %v1598 = vrot.slane %v1595, 4
        %v1599 = vrot.slane %v1597, 4
        %v1600 = vsel %vm338, %v1598, %v1599
        %v1601 = vsel %vm503, %v1595, %v1600
        %1603 = vst [vmem:[#allocation3 + $0xd8] sm:$0xcc] %v1601
        %v1604 = vld [vmem:[#allocation2 + $0xc] sm:$0xcc]
        %v1605 = vld [vmem:[#allocation2 + $0x14] sm:$0xc]
        %v1608 = vrot.slane %v1604, 6
        %v1609 = vrot.slane %v1608, 4
        %v1610 = vrot.slane %v1605, 6
        %v1611 = vrot.slane %v1610, 4
        %1612 = vrot.lane.b32.xlu0 %v1609, 110
        %v1613 = vpop.permute.xlu0 %1612
        %1614 = vrot.lane.b32.xlu0 %v1611, 110
        %v1615 = vpop.permute.xlu0 %1614
        %v1616 = vrot.slane %v1613, 4
        %v1617 = vrot.slane %v1615, 4
        %v1618 = vsel %vm338, %v1616, %v1617
        %v1619 = vsel %vm503, %v1613, %v1618
        %1621 = vst [vmem:[#allocation3 + $0xf8] sm:$0x33] %v1619
        %v1622 = vld [vmem:[#allocation2] sm:$0xcc]
        %v1623 = vld [vmem:[#allocation2 + $0x8] sm:$0xc]
        %1626 = vrot.lane.b32.xlu0 %v1622, 96
        %v1627 = vpop.permute.xlu0 %1626
        %1628 = vrot.lane.b32.xlu0 %v1623, 96
        %v1629 = vpop.permute.xlu0 %1628
        %v1630 = vrot.slane %v1627, 4
        %v1631 = vrot.slane %v1629, 4
        %v1632 = vsel %vm338, %v1630, %v1631
        %v1633 = vsel %vm602, %v1627, %v1632
        %1635 = vst [vmem:[#allocation3 + $0xf8] sm:$0xcc] %v1633
        %v1636 = vld [vmem:[#allocation2] sm:$0x33]
        %v1637 = vld [vmem:[#allocation2 + $0x8] sm:$0x3]
        %1640 = vrot.lane.b32.xlu0 %v1636, 95
        %v1641 = vpop.permute.xlu0 %1640
        %1642 = vrot.lane.b32.xlu0 %v1637, 95
        %v1643 = vpop.permute.xlu0 %1642
        %v1644 = vrot.slane %v1641, 4
        %v1645 = vrot.slane %v1643, 4
        %v1646 = vsel %vm338, %v1644, %v1645
        %v1647 = vsel %vm631, %v1641, %v1646
        %1649 = vst [vmem:[#allocation3 + $0x118] sm:$0x33] %v1647
        %v1650 = vld [vmem:[#allocation2] sm:$0xcc]
        %v1651 = vld [vmem:[#allocation2 + $0x8] sm:$0xc]
        %1654 = vrot.lane.b32.xlu0 %v1650, 95
        %v1655 = vpop.permute.xlu0 %1654
        %1656 = vrot.lane.b32.xlu0 %v1651, 95
        %v1657 = vpop.permute.xlu0 %1656
        %v1658 = vrot.slane %v1655, 4
        %v1659 = vrot.slane %v1657, 4
        %v1660 = vsel %vm338, %v1658, %v1659
        %v1661 = vsel %vm631, %v1655, %v1660
        %1663 = vst [vmem:[#allocation3 + $0x118] sm:$0xcc] %v1661
        %v1664 = vld [vmem:[#allocation2] sm:$0x33]
        %v1665 = vld [vmem:[#allocation2 + $0x8] sm:$0x3]
        %1668 = vrot.lane.b32.xlu0 %v1664, 94
        %v1669 = vpop.permute.xlu0 %1668
        %1670 = vrot.lane.b32.xlu0 %v1665, 94
        %v1671 = vpop.permute.xlu0 %1670
        %v1672 = vrot.slane %v1669, 4
        %v1673 = vrot.slane %v1671, 4
        %v1674 = vsel %vm338, %v1672, %v1673
        %v1675 = vsel %vm660, %v1669, %v1674
        %1677 = vst [vmem:[#allocation3 + $0x138] sm:$0x33] %v1675
        %v1678 = vld [vmem:[#allocation2] sm:$0xcc]
        %v1679 = vld [vmem:[#allocation2 + $0x8] sm:$0xc]
        %1682 = vrot.lane.b32.xlu0 %v1678, 94
        %v1683 = vpop.permute.xlu0 %1682
        %1684 = vrot.lane.b32.xlu0 %v1679, 94
        %v1685 = vpop.permute.xlu0 %1684
        %v1686 = vrot.slane %v1683, 4
        %v1687 = vrot.slane %v1685, 4
        %v1688 = vsel %vm338, %v1686, %v1687
        %v1689 = vsel %vm660, %v1683, %v1688
        %1691 = vst [vmem:[#allocation3 + $0x138] sm:$0xcc] %v1689
        %v1692 = vld [vmem:[#allocation2 + $0xc] sm:$0xcc]
        %v1693 = vld [vmem:[#allocation2 + $0x14] sm:$0xc]
        %v1696 = vrot.slane %v1692, 6
        %v1697 = vrot.slane %v1696, 4
        %v1698 = vrot.slane %v1693, 6
        %v1699 = vrot.slane %v1698, 4
        %1700 = vrot.lane.b32.xlu0 %v1697, 96
        %v1701 = vpop.permute.xlu0 %1700
        %1702 = vrot.lane.b32.xlu0 %v1699, 96
        %v1703 = vpop.permute.xlu0 %1702
        %v1704 = vrot.slane %v1701, 4
        %v1705 = vrot.slane %v1703, 4
        %v1706 = vsel %vm338, %v1704, %v1705
        %v1707 = vsel %vm602, %v1701, %v1706
        %1709 = vst [vmem:[#allocation3 + $0x158] sm:$0x33] %v1707
        %v1710 = vld [vmem:[#allocation2 + $0xc] sm:$0x33]
        %v1711 = vld [vmem:[#allocation2 + $0x14] sm:$0x3]
        %v1714 = vrot.slane %v1710, 6
        %v1715 = vrot.slane %v1711, 6
        %1716 = vrot.lane.b32.xlu0 %v1714, 95
        %v1717 = vpop.permute.xlu0 %1716
        %1718 = vrot.lane.b32.xlu0 %v1715, 95
        %v1719 = vpop.permute.xlu0 %1718
        %v1720 = vrot.slane %v1717, 4
        %v1721 = vrot.slane %v1719, 4
        %v1722 = vsel %vm338, %v1720, %v1721
        %v1723 = vsel %vm631, %v1717, %v1722
        %1725 = vst [vmem:[#allocation3 + $0x158] sm:$0xcc] %v1723
        %v1726 = vld [vmem:[#allocation2 + $0xc] sm:$0xcc]
        %v1727 = vld [vmem:[#allocation2 + $0x14] sm:$0xc]
        %v1730 = vrot.slane %v1726, 6
        %v1731 = vrot.slane %v1730, 4
        %v1732 = vrot.slane %v1727, 6
        %v1733 = vrot.slane %v1732, 4
        %1734 = vrot.lane.b32.xlu0 %v1731, 95
        %v1735 = vpop.permute.xlu0 %1734
        %1736 = vrot.lane.b32.xlu0 %v1733, 95
        %v1737 = vpop.permute.xlu0 %1736
        %v1738 = vrot.slane %v1735, 4
        %v1739 = vrot.slane %v1737, 4
        %v1740 = vsel %vm338, %v1738, %v1739
        %v1741 = vsel %vm631, %v1735, %v1740
        %1743 = vst [vmem:[#allocation3 + $0x178] sm:$0x33] %v1741
        %v1744 = vld [vmem:[#allocation2 + $0xc] sm:$0x33]
        %v1745 = vld [vmem:[#allocation2 + $0x14] sm:$0x3]
        %v1748 = vrot.slane %v1744, 6
        %v1749 = vrot.slane %v1745, 6
        %1750 = vrot.lane.b32.xlu0 %v1748, 94
        %v1751 = vpop.permute.xlu0 %1750
        %1752 = vrot.lane.b32.xlu0 %v1749, 94
        %v1753 = vpop.permute.xlu0 %1752
        %v1754 = vrot.slane %v1751, 4
        %v1755 = vrot.slane %v1753, 4
        %v1756 = vsel %vm338, %v1754, %v1755
        %v1757 = vsel %vm660, %v1751, %v1756
        %1759 = vst [vmem:[#allocation3 + $0x178] sm:$0xcc] %v1757
        %v1760 = vld [vmem:[#allocation2 + $0xc] sm:$0xcc]
        %v1761 = vld [vmem:[#allocation2 + $0x14] sm:$0xc]
        %v1764 = vrot.slane %v1760, 6
        %v1765 = vrot.slane %v1764, 4
        %v1766 = vrot.slane %v1761, 6
        %v1767 = vrot.slane %v1766, 4
        %1768 = vrot.lane.b32.xlu0 %v1765, 94
        %v1769 = vpop.permute.xlu0 %1768
        %1770 = vrot.lane.b32.xlu0 %v1767, 94
        %v1771 = vpop.permute.xlu0 %1770
        %v1772 = vrot.slane %v1769, 4
        %v1773 = vrot.slane %v1771, 4
        %v1774 = vsel %vm338, %v1772, %v1773
        %v1775 = vsel %vm660, %v1769, %v1774
        %1777 = vst [vmem:[#allocation3 + $0x198] sm:$0x33] %v1775
        %v1778 = vld [vmem:[%s2] sm:$0x7]
        %v1779 = vld [vmem:[#allocation3] sm:$0xff]
        %v1780 = vld [vmem:[#allocation3 + $0x8] sm:$0xff]
        %v1781 = vld [vmem:[#allocation3 + $0x10] sm:$0xff]
        %v1782 = vld [vmem:[#allocation3 + $0x18] sm:$0xff]
        %v1783 = vld [vmem:[#allocation3 + $0x20] sm:$0xff]
        %v1784 = vld [vmem:[#allocation3 + $0x28] sm:$0xff]
        %v1785 = vld [vmem:[#allocation3 + $0x30] sm:$0xff]
        %v1786 = vld [vmem:[#allocation3 + $0x38] sm:$0xff]
        %v1787 = vld [vmem:[#allocation3 + $0x40] sm:$0xff]
        %v1788 = vld [vmem:[#allocation3 + $0x48] sm:$0xff]
        %v1789 = vld [vmem:[#allocation3 + $0x50] sm:$0xff]
        %v1790 = vld [vmem:[#allocation3 + $0x58] sm:$0xff]
        %v1791 = vld [vmem:[#allocation3 + $0x60] sm:$0xff]
        %v1792 = vld [vmem:[#allocation3 + $0x68] sm:$0xff]
        %v1793 = vld [vmem:[#allocation3 + $0x70] sm:$0xff]
        %v1794 = vld [vmem:[#allocation3 + $0x78] sm:$0xff]
        %v1795 = vld [vmem:[#allocation3 + $0x80] sm:$0xff]
        %v1796 = vld [vmem:[#allocation3 + $0x88] sm:$0xff]
        %v1797 = vld [vmem:[#allocation3 + $0x90] sm:$0xff]
        %v1798 = vld [vmem:[#allocation3 + $0x98] sm:$0xff]
        %v1799 = vld [vmem:[#allocation3 + $0xa0] sm:$0xff]
        %v1800 = vld [vmem:[#allocation3 + $0xa8] sm:$0xff]
        %v1801 = vld [vmem:[#allocation3 + $0xb0] sm:$0xff]
        %v1802 = vld [vmem:[#allocation3 + $0xb8] sm:$0xff]
        %v1803 = vld [vmem:[#allocation3 + $0xc0] sm:$0xff]
        %v1804 = vld [vmem:[#allocation3 + $0xc8] sm:$0xff]
        %v1805 = vld [vmem:[#allocation3 + $0xd0] sm:$0xff]
        %v1806 = vld [vmem:[#allocation3 + $0xd8] sm:$0xff]
        %v1807 = vld [vmem:[#allocation3 + $0xe0] sm:$0xff]
        %v1808 = vld [vmem:[#allocation3 + $0xe8] sm:$0xff]
        %v1809 = vld [vmem:[#allocation3 + $0xf0] sm:$0xff]
        %v1810 = vld [vmem:[#allocation3 + $0xf8] sm:$0xff]
        %v1811 = vld [vmem:[#allocation3 + $0x100] sm:$0xff]
        %v1812 = vld [vmem:[#allocation3 + $0x108] sm:$0xff]
        %v1813 = vld [vmem:[#allocation3 + $0x110] sm:$0xff]
        %v1814 = vld [vmem:[#allocation3 + $0x118] sm:$0xff]
        %v1815 = vld [vmem:[#allocation3 + $0x120] sm:$0xff]
        %v1816 = vld [vmem:[#allocation3 + $0x128] sm:$0xff]
        %v1817 = vld [vmem:[#allocation3 + $0x130] sm:$0xff]
        %v1818 = vld [vmem:[#allocation3 + $0x138] sm:$0xff]
        %v1819 = vld [vmem:[#allocation3 + $0x140] sm:$0xff]
        %v1820 = vld [vmem:[#allocation3 + $0x148] sm:$0xff]
        %v1821 = vld [vmem:[#allocation3 + $0x150] sm:$0xff]
        %v1822 = vld [vmem:[#allocation3 + $0x158] sm:$0xff]
        %v1823 = vld [vmem:[#allocation3 + $0x160] sm:$0xff]
        %v1824 = vld [vmem:[#allocation3 + $0x168] sm:$0xff]
        %v1825 = vld [vmem:[#allocation3 + $0x170] sm:$0xff]
        %v1826 = vld [vmem:[#allocation3 + $0x178] sm:$0xff]
        %v1827 = vld [vmem:[#allocation3 + $0x180] sm:$0x33]
        %v1828 = vld [vmem:[#allocation3 + $0x188] sm:$0x33]
        %v1829 = vld [vmem:[#allocation3 + $0x190] sm:$0x33]
        %v1830 = vld [vmem:[#allocation3 + $0x198] sm:$0x33]
        %v1883 = vunpack.c.l.b16 %v1779
        %v1884 = vunpack.c.h.b16 %v1779
        %v1885 = vunpack.c.l.b16 %v1780
        %v1886 = vunpack.c.h.b16 %v1780
        %v1887 = vunpack.c.l.b16 %v1781
        %v1888 = vunpack.c.h.b16 %v1781
        %v1889 = vunpack.c.l.b16 %v1782
        %v1890 = vunpack.c.h.b16 %v1782
        %v1891 = vunpack.c.l.b16 %v1783
        %v1892 = vunpack.c.h.b16 %v1783
        %v1893 = vunpack.c.l.b16 %v1784
        %v1894 = vunpack.c.h.b16 %v1784
        %v1895 = vunpack.c.l.b16 %v1785
        %v1896 = vunpack.c.h.b16 %v1785
        %v1897 = vunpack.c.l.b16 %v1786
        %v1898 = vunpack.c.h.b16 %v1786
        %v1899 = vunpack.c.l.b16 %v1787
        %v1900 = vunpack.c.h.b16 %v1787
        %v1901 = vunpack.c.l.b16 %v1788
        %v1902 = vunpack.c.h.b16 %v1788
        %v1903 = vunpack.c.l.b16 %v1789
        %v1904 = vunpack.c.h.b16 %v1789
        %v1905 = vunpack.c.l.b16 %v1790
        %v1906 = vunpack.c.h.b16 %v1790
        %v1907 = vunpack.c.l.b16 %v1791
        %v1908 = vunpack.c.h.b16 %v1791
        %v1909 = vunpack.c.l.b16 %v1792
        %v1910 = vunpack.c.h.b16 %v1792
        %v1911 = vunpack.c.l.b16 %v1793
        %v1912 = vunpack.c.h.b16 %v1793
        %v1913 = vunpack.c.l.b16 %v1794
        %v1914 = vunpack.c.h.b16 %v1794
        %v1915 = vunpack.c.l.b16 %v1795
        %v1916 = vunpack.c.h.b16 %v1795
        %v1917 = vunpack.c.l.b16 %v1796
        %v1918 = vunpack.c.h.b16 %v1796
        %v1919 = vunpack.c.l.b16 %v1797
        %v1920 = vunpack.c.h.b16 %v1797
        %v1921 = vunpack.c.l.b16 %v1798
        %v1922 = vunpack.c.h.b16 %v1798
        %v1923 = vunpack.c.l.b16 %v1799
        %v1924 = vunpack.c.h.b16 %v1799
        %v1925 = vunpack.c.l.b16 %v1800
        %v1926 = vunpack.c.h.b16 %v1800
        %v1927 = vunpack.c.l.b16 %v1801
        %v1928 = vunpack.c.h.b16 %v1801
        %v1929 = vunpack.c.l.b16 %v1802
        %v1930 = vunpack.c.h.b16 %v1802
        %v1931 = vunpack.c.l.b16 %v1803
        %v1932 = vunpack.c.h.b16 %v1803
        %v1933 = vunpack.c.l.b16 %v1804
        %v1934 = vunpack.c.h.b16 %v1804
        %v1935 = vunpack.c.l.b16 %v1805
        %v1936 = vunpack.c.h.b16 %v1805
        %v1937 = vunpack.c.l.b16 %v1806
        %v1938 = vunpack.c.h.b16 %v1806
        %v1939 = vunpack.c.l.b16 %v1807
        %v1940 = vunpack.c.h.b16 %v1807
        %v1941 = vunpack.c.l.b16 %v1808
        %v1942 = vunpack.c.h.b16 %v1808
        %v1943 = vunpack.c.l.b16 %v1809
        %v1944 = vunpack.c.h.b16 %v1809
        %v1945 = vunpack.c.l.b16 %v1810
        %v1946 = vunpack.c.h.b16 %v1810
        %v1947 = vunpack.c.l.b16 %v1811
        %v1948 = vunpack.c.h.b16 %v1811
        %v1949 = vunpack.c.l.b16 %v1812
        %v1950 = vunpack.c.h.b16 %v1812
        %v1951 = vunpack.c.l.b16 %v1813
        %v1952 = vunpack.c.h.b16 %v1813
        %v1953 = vunpack.c.l.b16 %v1814
        %v1954 = vunpack.c.h.b16 %v1814
        %v1955 = vunpack.c.l.b16 %v1815
        %v1956 = vunpack.c.h.b16 %v1815
        %v1957 = vunpack.c.l.b16 %v1816
        %v1958 = vunpack.c.h.b16 %v1816
        %v1959 = vunpack.c.l.b16 %v1817
        %v1960 = vunpack.c.h.b16 %v1817
        %v1961 = vunpack.c.l.b16 %v1818
        %v1962 = vunpack.c.h.b16 %v1818
        %v1963 = vunpack.c.l.b16 %v1819
        %v1964 = vunpack.c.h.b16 %v1819
        %v1965 = vunpack.c.l.b16 %v1820
        %v1966 = vunpack.c.h.b16 %v1820
        %v1967 = vunpack.c.l.b16 %v1821
        %v1968 = vunpack.c.h.b16 %v1821
        %v1969 = vunpack.c.l.b16 %v1822
        %v1970 = vunpack.c.h.b16 %v1822
        %v1971 = vunpack.c.l.b16 %v1823
        %v1972 = vunpack.c.h.b16 %v1823
        %v1973 = vunpack.c.l.b16 %v1824
        %v1974 = vunpack.c.h.b16 %v1824
        %v1975 = vunpack.c.l.b16 %v1825
        %v1976 = vunpack.c.h.b16 %v1825
        %v1977 = vunpack.c.l.b16 %v1826
        %v1978 = vunpack.c.h.b16 %v1826
        %v1979 = vunpack.c.l.b16 %v1827
        %v1980 = vunpack.c.h.b16 %v1827
        %v1981 = vunpack.c.l.b16 %v1828
        %v1982 = vunpack.c.h.b16 %v1828
        %v1983 = vunpack.c.l.b16 %v1829
        %v1984 = vunpack.c.h.b16 %v1829
        %v1985 = vunpack.c.l.b16 %v1830
        %v1986 = vunpack.c.h.b16 %v1830
        %v1987 = vpack.c.b16 %v1891, %v1883
        %v1988 = vpack.c.b16 %v1892, %v1884
        %v1989 = vpack.c.b16 %v1893, %v1885
        %v1990 = vpack.c.b16 %v1894, %v1886
        %v1991 = vpack.c.b16 %v1895, %v1887
        %v1992 = vpack.c.b16 %v1896, %v1888
        %v1993 = vpack.c.b16 %v1897, %v1889
        %v1994 = vpack.c.b16 %v1898, %v1890
        %v1995 = vpack.c.b16 %v1907, %v1899
        %v1996 = vpack.c.b16 %v1908, %v1900
        %v1997 = vpack.c.b16 %v1909, %v1901
        %v1998 = vpack.c.b16 %v1910, %v1902
        %v1999 = vpack.c.b16 %v1911, %v1903
        %v2000 = vpack.c.b16 %v1912, %v1904
        %v2001 = vpack.c.b16 %v1913, %v1905
        %v2002 = vpack.c.b16 %v1914, %v1906
        %v2003 = vpack.c.b16 %v1923, %v1915
        %v2004 = vpack.c.b16 %v1924, %v1916
        %v2005 = vpack.c.b16 %v1925, %v1917
        %v2006 = vpack.c.b16 %v1926, %v1918
        %v2007 = vpack.c.b16 %v1927, %v1919
        %v2008 = vpack.c.b16 %v1928, %v1920
        %v2009 = vpack.c.b16 %v1929, %v1921
        %v2010 = vpack.c.b16 %v1930, %v1922
        %v2011 = vpack.c.b16 %v1939, %v1931
        %v2012 = vpack.c.b16 %v1940, %v1932
        %v2013 = vpack.c.b16 %v1941, %v1933
        %v2014 = vpack.c.b16 %v1942, %v1934
        %v2015 = vpack.c.b16 %v1943, %v1935
        %v2016 = vpack.c.b16 %v1944, %v1936
        %v2017 = vpack.c.b16 %v1945, %v1937
        %v2018 = vpack.c.b16 %v1946, %v1938
        %v2019 = vpack.c.b16 %v1955, %v1947
        %v2020 = vpack.c.b16 %v1956, %v1948
        %v2021 = vpack.c.b16 %v1957, %v1949
        %v2022 = vpack.c.b16 %v1958, %v1950
        %v2023 = vpack.c.b16 %v1959, %v1951
        %v2024 = vpack.c.b16 %v1960, %v1952
        %v2025 = vpack.c.b16 %v1961, %v1953
        %v2026 = vpack.c.b16 %v1962, %v1954
        %v2027 = vpack.c.b16 %v1971, %v1963
        %v2028 = vpack.c.b16 %v1972, %v1964
        %v2029 = vpack.c.b16 %v1973, %v1965
        %v2030 = vpack.c.b16 %v1974, %v1966
        %v2031 = vpack.c.b16 %v1975, %v1967
        %v2032 = vpack.c.b16 %v1976, %v1968
        %v2033 = vpack.c.b16 %v1977, %v1969
        %v2034 = vpack.c.b16 %v1978, %v1970
        %v2035 = vpack.c.b16 %v1979, %v1979
        %v2036 = vpack.c.b16 %v1980, %v1980
        %v2037 = vpack.c.b16 %v1981, %v1981
        %v2038 = vpack.c.b16 %v1982, %v1982
        %v2039 = vpack.c.b16 %v1983, %v1983
        %v2040 = vpack.c.b16 %v1984, %v1984
        %v2041 = vpack.c.b16 %v1985, %v1985
        %v2042 = vpack.c.b16 %v1986, %v1986
        %vm2091 = vcmask 818176
        %v2093 = vsel %vm2091, %v1778, 0
        %vm2095 = vcmask 1041408
        %v2097 = vsel %vm2095, %v2035, 0
        %v2100 = vsel %vm2095, %v2036, 0
        %v2103 = vsel %vm2095, %v2037, 0
        %v2106 = vsel %vm2095, %v2038, 0
        %v2109 = vsel %vm2095, %v2039, 0
        %v2112 = vsel %vm2095, %v2040, 0
        %v2115 = vsel %vm2095, %v2041, 0
        %v2118 = vsel %vm2095, %v2042, 0
        %2120 = vmatprep.subr.bf16.mxu0 0
        %2121 = vmatpush1.bf16.msra.mxu0 0
        %2122 = vmatprep.subr.bf16.mxu0 %v2100
        %2123 = vmatpush1.bf16.msra.mxu0 %v2097
        %2124 = vmatprep.subr.bf16.mxu0 %v2028
        %2125 = vmatpush1.bf16.msra.mxu0 %v2027
        %2126 = vmatprep.subr.bf16.mxu0 %v2020
        %2127 = vmatpush1.bf16.msra.mxu0 %v2019
        %2128 = vmatprep.subr.bf16.mxu0 %v2012
        %2129 = vmatpush1.bf16.msra.mxu0 %v2011
        %2130 = vmatprep.subr.bf16.mxu0 %v2004
        %2131 = vmatpush1.bf16.msra.mxu0 %v2003
        %2132 = vmatprep.subr.bf16.mxu0 %v1996
        %2133 = vmatpush1.bf16.msra.mxu0 %v1995
        %2134 = vmatprep.subr.bf16.mxu0 %v1988
        %2135 = vmatpush1.bf16.msra.mxu0 %v1987
        %2136 = vmatprep.subr.bf16.mxu0 0
        %2137 = vmatpush2.bf16.msra.mxu0 0
        %2138 = vmatprep.subr.bf16.mxu0 0
        %2139 = vmatpush2.bf16.msra.mxu0 0
        %2140 = vmatprep.subr.bf16.mxu0 0
        %2141 = vmatpush2.bf16.msra.mxu0 0
        %2142 = vmatprep.subr.bf16.mxu0 0
        %2143 = vmatpush2.bf16.msra.mxu0 0
        %2144 = vmatprep.subr.bf16.mxu0 0
        %2145 = vmatpush2.bf16.msra.mxu0 0
        %2146 = vmatprep.subr.bf16.mxu0 0
        %2147 = vmatpush2.bf16.msra.mxu0 0
        %2148 = vmatprep.subr.bf16.mxu0 0
        %2149 = vmatpush2.bf16.msra.mxu0 0
        %2150 = vmatprep.subr.bf16.mxu0 0
        %2151 = vmatpush2.bf16.msra.mxu0 0
        %2152 = vmatprep.mubr.bf16.mxu0 0
        %2153 = vmatmul.mubr.bf16.gmra.mxu0 %v2093
        %v2154 = vpop.f32.mrf.mxu0
        %v2155 = vadd.f32 0.0, %v2154
        %v2156 = vpop.f32.mrf.mxu0
        %v2157 = vadd.f32 0.0, %v2156
        %v2158 = vpop.f32.mrf.mxu0
        %v2159 = vpop.f32.mrf.mxu0
        %2160 = vdwg.mxu0
        %2161 = vmatprep.subr.bf16.mxu0 0
        %2162 = vmatpush1.bf16.msra.mxu0 0
        %2163 = vmatprep.subr.bf16.mxu0 %v2106
        %2164 = vmatpush1.bf16.msra.mxu0 %v2103
        %2165 = vmatprep.subr.bf16.mxu0 %v2030
        %2166 = vmatpush1.bf16.msra.mxu0 %v2029
        %2167 = vmatprep.subr.bf16.mxu0 %v2022
        %2168 = vmatpush1.bf16.msra.mxu0 %v2021
        %2169 = vmatprep.subr.bf16.mxu0 %v2014
        %2170 = vmatpush1.bf16.msra.mxu0 %v2013
        %2171 = vmatprep.subr.bf16.mxu0 %v2006
        %2172 = vmatpush1.bf16.msra.mxu0 %v2005
        %2173 = vmatprep.subr.bf16.mxu0 %v1998
        %2174 = vmatpush1.bf16.msra.mxu0 %v1997
        %2175 = vmatprep.subr.bf16.mxu0 %v1990
        %2176 = vmatpush1.bf16.msra.mxu0 %v1989
        %2177 = vmatprep.subr.bf16.mxu0 0
        %2178 = vmatpush2.bf16.msra.mxu0 0
        %2179 = vmatprep.subr.bf16.mxu0 0
        %2180 = vmatpush2.bf16.msra.mxu0 0
        %2181 = vmatprep.subr.bf16.mxu0 0
        %2182 = vmatpush2.bf16.msra.mxu0 0
        %2183 = vmatprep.subr.bf16.mxu0 0
        %2184 = vmatpush2.bf16.msra.mxu0 0
        %2185 = vmatprep.subr.bf16.mxu0 0
        %2186 = vmatpush2.bf16.msra.mxu0 0
        %2187 = vmatprep.subr.bf16.mxu0 0
        %2188 = vmatpush2.bf16.msra.mxu0 0
        %2189 = vmatprep.subr.bf16.mxu0 0
        %2190 = vmatpush2.bf16.msra.mxu0 0
        %2191 = vmatprep.subr.bf16.mxu0 0
        %2192 = vmatpush2.bf16.msra.mxu0 0
        %2193 = vmatprep.mubr.bf16.mxu0 0
        %2194 = vmatmul.mubr.bf16.gmra.mxu0 %v2093
        %v2195 = vpop.f32.mrf.mxu0
        %v2196 = vadd.f32 0.0, %v2195
        %v2197 = vpop.f32.mrf.mxu0
        %v2198 = vadd.f32 0.0, %v2197
        %v2199 = vpop.f32.mrf.mxu0
        %v2200 = vpop.f32.mrf.mxu0
        %2201 = vdwg.mxu0
        %2202 = vmatprep.subr.bf16.mxu0 0
        %2203 = vmatpush1.bf16.msra.mxu0 0
        %2204 = vmatprep.subr.bf16.mxu0 %v2112
        %2205 = vmatpush1.bf16.msra.mxu0 %v2109
        %2206 = vmatprep.subr.bf16.mxu0 %v2032
        %2207 = vmatpush1.bf16.msra.mxu0 %v2031
        %2208 = vmatprep.subr.bf16.mxu0 %v2024
        %2209 = vmatpush1.bf16.msra.mxu0 %v2023
        %2210 = vmatprep.subr.bf16.mxu0 %v2016
        %2211 = vmatpush1.bf16.msra.mxu0 %v2015
        %2212 = vmatprep.subr.bf16.mxu0 %v2008
        %2213 = vmatpush1.bf16.msra.mxu0 %v2007
        %2214 = vmatprep.subr.bf16.mxu0 %v2000
        %2215 = vmatpush1.bf16.msra.mxu0 %v1999
        %2216 = vmatprep.subr.bf16.mxu0 %v1992
        %2217 = vmatpush1.bf16.msra.mxu0 %v1991
        %2218 = vmatprep.subr.bf16.mxu0 0
        %2219 = vmatpush2.bf16.msra.mxu0 0
        %2220 = vmatprep.subr.bf16.mxu0 0
        %2221 = vmatpush2.bf16.msra.mxu0 0
        %2222 = vmatprep.subr.bf16.mxu0 0
        %2223 = vmatpush2.bf16.msra.mxu0 0
        %2224 = vmatprep.subr.bf16.mxu0 0
        %2225 = vmatpush2.bf16.msra.mxu0 0
        %2226 = vmatprep.subr.bf16.mxu0 0
        %2227 = vmatpush2.bf16.msra.mxu0 0
        %2228 = vmatprep.subr.bf16.mxu0 0
        %2229 = vmatpush2.bf16.msra.mxu0 0
        %2230 = vmatprep.subr.bf16.mxu0 0
        %2231 = vmatpush2.bf16.msra.mxu0 0
        %2232 = vmatprep.subr.bf16.mxu0 0
        %2233 = vmatpush2.bf16.msra.mxu0 0
        %2234 = vmatprep.mubr.bf16.mxu0 0
        %2235 = vmatmul.mubr.bf16.gmra.mxu0 %v2093
        %v2236 = vpop.f32.mrf.mxu0
        %v2237 = vadd.f32 0.0, %v2236
        %v2238 = vpop.f32.mrf.mxu0
        %v2239 = vadd.f32 0.0, %v2238
        %v2240 = vpop.f32.mrf.mxu0
        %v2241 = vpop.f32.mrf.mxu0
        %2242 = vdwg.mxu0
        %2243 = vmatprep.subr.bf16.mxu0 0
        %2244 = vmatpush1.bf16.msra.mxu0 0
        %2245 = vmatprep.subr.bf16.mxu0 %v2118
        %2246 = vmatpush1.bf16.msra.mxu0 %v2115
        %2247 = vmatprep.subr.bf16.mxu0 %v2034
        %2248 = vmatpush1.bf16.msra.mxu0 %v2033
        %2249 = vmatprep.subr.bf16.mxu0 %v2026
        %2250 = vmatpush1.bf16.msra.mxu0 %v2025
        %2251 = vmatprep.subr.bf16.mxu0 %v2018
        %2252 = vmatpush1.bf16.msra.mxu0 %v2017
        %2253 = vmatprep.subr.bf16.mxu0 %v2010
        %2254 = vmatpush1.bf16.msra.mxu0 %v2009
        %2255 = vmatprep.subr.bf16.mxu0 %v2002
        %2256 = vmatpush1.bf16.msra.mxu0 %v2001
        %2257 = vmatprep.subr.bf16.mxu0 %v1994
        %2258 = vmatpush1.bf16.msra.mxu0 %v1993
        %2259 = vmatprep.subr.bf16.mxu0 0
        %2260 = vmatpush2.bf16.msra.mxu0 0
        %2261 = vmatprep.subr.bf16.mxu0 0
        %2262 = vmatpush2.bf16.msra.mxu0 0
        %2263 = vmatprep.subr.bf16.mxu0 0
        %2264 = vmatpush2.bf16.msra.mxu0 0
        %2265 = vmatprep.subr.bf16.mxu0 0
        %2266 = vmatpush2.bf16.msra.mxu0 0
        %2267 = vmatprep.subr.bf16.mxu0 0
        %2268 = vmatpush2.bf16.msra.mxu0 0
        %2269 = vmatprep.subr.bf16.mxu0 0
        %2270 = vmatpush2.bf16.msra.mxu0 0
        %2271 = vmatprep.subr.bf16.mxu0 0
        %2272 = vmatpush2.bf16.msra.mxu0 0
        %2273 = vmatprep.subr.bf16.mxu0 0
        %2274 = vmatpush2.bf16.msra.mxu0 0
        %2275 = vmatprep.mubr.bf16.mxu0 0
        %2276 = vmatmul.mubr.bf16.gmra.mxu0 %v2093
        %v2277 = vpop.f32.mrf.mxu0
        %v2278 = vadd.f32 0.0, %v2277
        %v2279 = vpop.f32.mrf.mxu0
        %v2280 = vadd.f32 0.0, %v2279
        %v2281 = vpop.f32.mrf.mxu0
        %v2282 = vpop.f32.mrf.mxu0
        %2283 = vdwg.mxu0
        %v2284 = vmax.f32 %v2155, %v2196
        %v2285 = vmax.f32 %v2157, %v2198
        %v2286 = vmax.f32 %v2284, %v2237
        %v2287 = vmax.f32 %v2285, %v2239
        %v2288 = vmax.f32 %v2286, %v2278
        %v2289 = vmax.f32 %v2287, %v2280
        %v2290 = vld [vmem:[%s3] sm:$0x3f]
        %2292 = vset.pattern.permute.xlu0 0
        %2293 = vperm.xlu0 %2292, %v2290
        %v2294 = vpop.permute.xlu0 %2293
        %v2296 = vadd.f32 %v2288, %v2294
        %v2297 = vadd.f32 %v2289, %v2294
        %v2298 = vmax.f32 %v2296, 0.0
        %v2299 = vmax.f32 %v2297, 0.0
        %v2300 = vpack.c.bf16 %v2298, %v2298
        %v2301 = vpack.c.bf16 %v2299, %v2299
        %v2304 = vunpack.c.l.b16 %v2300
        %v2305 = vunpack.c.l.b16 %v2301
        %v2306 = vpack.c.b16 %v2305, %v2304
        %2308 = vst [vmem:[%s313] sm:$0x77] %v2306
        %s2309 = smul.u32 2, %s15
        %p2310 = scmp.lt.s32.totalorder %s2309, 3
        %s2311 = scalar_select %p2310, %s2309, 3
        %s2312 = smul.addr %s2311, 4
        %s2313 = scalar_lea.vmem %s4, %s2312
        // Predicated region
        $region116: #{net_forward.3} parent=106 // pred_check
          %p2314 = pneg %p131
        $region117: #{net_forward.3} parent=106 // pred_check_branch
          %2316 = sbr.rel (%p2314) target = $region119
        $region118: #{net_forward.3} parent=106 // pred_region
          %s2317 = smul.u32 2, %s15
        $region119: #{net_forward.3} parent=106 // pred_fallthru
          _
      $region107: #{net_forward.3} parent=5 // pred_fallthru
        _
      %p2318 = scmp.le.s32.totalorder 2, %s10
      // Predicated region
      $region120: #{net_forward.3} parent=5 // pred_check
        %p2319 = pneg %p2318
      $region121: #{net_forward.3} parent=5 // pred_check_branch
        %2321 = sbr.rel (%p2319) target = $region123
      $region122: #{net_forward.3} parent=5 // pred_region
        %s2322 = ssub.s32 %s10, 2
        // Predicated region
        $region124: #{net_forward.3} parent=122 // pred_check
          %p2323 = pneg %p137
        $region125: #{net_forward.3} parent=122 // pred_check_branch
          %2325 = sbr.rel (%p2323) target = $region127
        $region126: #{net_forward.3} parent=122 // pred_region
          %s2326 = smul.u32 2, %s16
          %p2327 = scmp.lt.s32.totalorder %s2326, 3
          %s2328 = scalar_select %p2327, %s2326, 3
          %s2329 = smul.addr %s2328, 4
          %s2330 = scalar_lea.vmem %s4, %s2329
        $region127: #{net_forward.3} parent=122 // pred_fallthru
          _
      $region123: #{net_forward.3} parent=5 // pred_fallthru
        _
    $region6: #{net_forward.3} parent=1 // loop_footer
      %s14 = sadd.s32 1, %s10
    $region7: #{net_forward.3} parent=1 // loop_footer_branch
      %9 = sbr.rel target = $region3
    $region8: #{net_forward.3} parent=1 // loop_exit
      _

// kernel: net_forward.4
$region0: #{net_forward.4}
  #allocation0 [shape = 'u32[]', space=smem, size = 0x4, offset = 0x4, fixed_abs, tag = 'smem constant byte address 0x4 - core index']
  #allocation1 [shape = 'u32[144,128]{1,0:T(1,128)}', space=vmem, size = 0x12000, scoped, tag = 'internal scratch']
  #allocation2 [shape = 'bf16[24,256]{1,0:T(8,128)(2,1)}', space=vmem, size = 0x3000, scoped, tag = 'scratch operand']
  #allocation3 [shape = 'bf16[150,512]{1,0:T(8,128)(2,1)}', space=vmem, size = 0x26000, scoped, tag = 'scratch operand']
  %s0 = inlined_call_operand.vmem [shape: bf16[24,384], index: 0, kind: input, shape index: {}, may-alias: {0,1}]
  %s1 = inlined_call_operand.vmem [shape: bf16[24,384], index: 1, kind: input, shape index: {}, may-alias: {0,1}]
  %s2 = inlined_call_operand.vmem [shape: bf16[16,150], index: 2, kind: input, shape index: {}]
  %s3 = inlined_call_operand.vmem [shape: f32[16,1], index: 3, kind: input, shape index: {}]
  %s4 = inlined_call_operand.vmem [shape: f32[16,256], index: 4, kind: output, shape index: {}]
  %s5 = sld [smem:[#allocation0]]
  $region165: #{net_forward.4} parent=0
    _
  %s7 = ssub.s32 1, %s5
  %s8 = scalar_select 0, %s7, %s5
  $region1: #{net_forward.4} parent=0
    #allocation4 [shape = 'u8[12288]{0}', space=vmem, size = 0x3000, scoped, tag = 'input window, operand 0']
    #allocation5 [shape = 'u8[12288]{0}', space=vmem, size = 0x3000, scoped, tag = 'input window, operand 1']
    #allocation6 [shape = 'u8[16384]{0}', space=vmem, size = 0x4000, scoped, tag = 'output window, operand 0']
    loop: start=0, step=1, limit=4
    $region2: #{net_forward.4} parent=1 // loop_pre_header
      _
    $region3: #{net_forward.4} parent=1 // loop_header
      %s10 = sphi 0, %s14
      %p11 = scmp.ge.s32.totalorder %s10, 4
      %s20 = sphi 0, %s22
      %s23 = sphi 0, %s20
      %s24 = sphi 0, %s23
      %s40 = sphi 0, %s24
      %s48 = sphi 0, %s50
      %s51 = sphi 0, %s48
      %s52 = sphi 0, %s51
      %s68 = sphi 0, %s52
      %s72 = sphi 0, %s72
      %s74 = sphi 0, %s72
      %s75 = sphi 0, %s74
      %s89 = sphi 0, %s75
      %s93 = sphi 0, %s93
      %s95 = sphi 0, %s93
      %s96 = sphi 0, %s95
      %s110 = sphi 0, %s96
      %s116 = sphi 0, %s118
      %s119 = sphi 0, %s116
      %s120 = sphi 0, %s119
      %s136 = sphi 0, %s120
    $region4: #{net_forward.4} parent=1 // loop_header_branch
      %13 = sbr.rel (%p11) target = $region8
    $region5: #{net_forward.4} parent=1 // loop_body
      %s15 = ssub.s32 %s10, 1
      %s16 = ssub.s32 %s10, 2
      %s17 = sadd.s32 %s10, 1
      %s18 = ssub.s32 %s10, %s17
      %p19 = scmp.eq.s32.totalorder %s18, 0
      %s21 = sadd.s32 %s20, 1
      %s22 = scalar_select %p19, %s20, %s21
      %p25 = pneg %p19
      %p26 = scmp.eq.s32.totalorder %s10, 1
      %p27 = por %p25, %p26
      %p28 = scmp.ne.s32.totalorder %s20, %s23
      %p29 = scmp.eq.s32.totalorder %s10, 0
      %p30 = por %p28, %p29
      %p31 = scmp.ne.s32.totalorder %s20, %s23
      %p32 = scmp.eq.s32.totalorder %s15, 1
      %p33 = por %p31, %p32
      %p34 = scmp.ne.s32.totalorder %s23, %s24
      %p35 = scmp.eq.s32.totalorder %s15, 0
      %p36 = por %p34, %p35
      %p37 = scmp.ne.s32.totalorder %s23, %s24
      %p38 = scmp.eq.s32.totalorder %s16, 1
      %p39 = por %p37, %p38
      %p41 = scmp.ne.s32.totalorder %s24, %s40
      %p42 = scmp.eq.s32.totalorder %s16, 0
      %p43 = por %p41, %p42
      %s44 = sadd.s32 %s10, 1
      %s45 = sadd.s32 %s17, 1
      %s46 = ssub.s32 %s44, %s45
      %p47 = scmp.eq.s32.totalorder %s46, 0
      %s49 = sadd.s32 %s48, 1
      %s50 = scalar_select %p47, %s48, %s49
      %p53 = pneg %p47
      %p54 = scmp.eq.s32.totalorder %s10, 1
      %p55 = por %p53, %p54
      %p56 = scmp.ne.s32.totalorder %s48, %s51
      %p57 = scmp.eq.s32.totalorder %s10, 0
      %p58 = por %p56, %p57
      %p59 = scmp.ne.s32.totalorder %s48, %s51
      %p60 = scmp.eq.s32.totalorder %s15, 1
      %p61 = por %p59, %p60
      %p62 = scmp.ne.s32.totalorder %s51, %s52
      %p63 = scmp.eq.s32.totalorder %s15, 0
      %p64 = por %p62, %p63
      %p65 = scmp.ne.s32.totalorder %s51, %s52
      %p66 = scmp.eq.s32.totalorder %s16, 1
      %p67 = por %p65, %p66
      %p69 = scmp.ne.s32.totalorder %s52, %s68
      %p70 = scmp.eq.s32.totalorder %s16, 0
      %p71 = por %p69, %p70
      %s73 = sadd.s32 %s72, 1
      %p76 = scmp.eq.s32.totalorder %s10, 1
      %p77 = scmp.ne.s32.totalorder %s72, %s74
      %p78 = scmp.eq.s32.totalorder %s10, 0
      %p79 = por %p77, %p78
      %p80 = scmp.ne.s32.totalorder %s72, %s74
      %p81 = scmp.eq.s32.totalorder %s15, 1
      %p82 = por %p80, %p81
      %p83 = scmp.ne.s32.totalorder %s74, %s75
      %p84 = scmp.eq.s32.totalorder %s15, 0
      %p85 = por %p83, %p84
      %p86 = scmp.ne.s32.totalorder %s74, %s75
      %p87 = scmp.eq.s32.totalorder %s16, 1
      %p88 = por %p86, %p87
      %p90 = scmp.ne.s32.totalorder %s75, %s89
      %p91 = scmp.eq.s32.totalorder %s16, 0
      %p92 = por %p90, %p91
      %s94 = sadd.s32 %s93, 1
      %p97 = scmp.eq.s32.totalorder %s10, 1
      %p98 = scmp.ne.s32.totalorder %s93, %s95
      %p99 = scmp.eq.s32.totalorder %s10, 0
      %p100 = por %p98, %p99
      %p101 = scmp.ne.s32.totalorder %s93, %s95
      %p102 = scmp.eq.s32.totalorder %s15, 1
      %p103 = por %p101, %p102
      %p104 = scmp.ne.s32.totalorder %s95, %s96
      %p105 = scmp.eq.s32.totalorder %s15, 0
      %p106 = por %p104, %p105
      %p107 = scmp.ne.s32.totalorder %s95, %s96
      %p108 = scmp.eq.s32.totalorder %s16, 1
      %p109 = por %p107, %p108
      %p111 = scmp.ne.s32.totalorder %s96, %s110
      %p112 = scmp.eq.s32.totalorder %s16, 0
      %p113 = por %p111, %p112
      %s114 = ssub.s32 %s10, %s17
      %p115 = scmp.eq.s32.totalorder %s114, 0
      %s117 = sadd.s32 %s116, 1
      %s118 = scalar_select %p115, %s116, %s117
      %p121 = pneg %p115
      %p122 = scmp.eq.s32.totalorder %s10, 1
      %p123 = por %p121, %p122
      %p124 = scmp.ne.s32.totalorder %s116, %s119
      %p125 = scmp.eq.s32.totalorder %s10, 0
      %p126 = por %p124, %p125
      %p127 = scmp.ne.s32.totalorder %s116, %s119
      %p128 = scmp.eq.s32.totalorder %s15, 1
      %p129 = por %p127, %p128
      %p130 = scmp.ne.s32.totalorder %s119, %s120
      %p131 = scmp.eq.s32.totalorder %s15, 0
      %p132 = por %p130, %p131
      %p133 = scmp.ne.s32.totalorder %s119, %s120
      %p134 = scmp.eq.s32.totalorder %s16, 1
      %p135 = por %p133, %p134
      %p137 = scmp.ne.s32.totalorder %s120, %s136
      %p138 = scmp.eq.s32.totalorder %s16, 0
      %p139 = por %p137, %p138
      %p140 = scmp.le.s32.totalorder 1, %s10
      %p141 = scmp.lt.s32.totalorder %s10, 3
      %p142 = pnand %p140, %p141
      %p143 = pneg %p142
      // Predicated region
      $region9: #{net_forward.4} parent=5 // pred_check
        _
      $region10: #{net_forward.4} parent=5 // pred_check_branch
        %145 = sbr.rel (%p142) target = $region12
      $region11: #{net_forward.4} parent=5 // pred_region
        %s146 = ssub.s32 %s10, 1
        // Predicated region
        $region13: #{net_forward.4} parent=11 // pred_check
          %p147 = pneg %p85
        $region14: #{net_forward.4} parent=11 // pred_check_branch
          %149 = sbr.rel (%p147) target = $region16
        $region15: #{net_forward.4} parent=11 // pred_region
          _
        $region16: #{net_forward.4} parent=11 // pred_fallthru
          _
        // Predicated region
        $region17: #{net_forward.4} parent=11 // pred_check
          %p150 = pneg %p106
        $region18: #{net_forward.4} parent=11 // pred_check_branch
          %152 = sbr.rel (%p150) target = $region20
        $region19: #{net_forward.4} parent=11 // pred_region
          _
        $region20: #{net_forward.4} parent=11 // pred_fallthru
          _
      $region12: #{net_forward.4} parent=5 // pred_fallthru
        _
      %p153 = scmp.lt.s32.totalorder %s10, 2
      // Predicated region
      $region21: #{net_forward.4} parent=5 // pred_check
        %p154 = pneg %p153
      $region22: #{net_forward.4} parent=5 // pred_check_branch
        %156 = sbr.rel (%p154) target = $region24
      $region23: #{net_forward.4} parent=5 // pred_region
        // Predicated region
        $region25: #{net_forward.4} parent=23 // pred_check
          %p157 = pneg %p30
        $region26: #{net_forward.4} parent=23 // pred_check_branch
          %159 = sbr.rel (%p157) target = $region28
        $region27: #{net_forward.4} parent=23 // pred_region
          %s160 = sand.u32 %s20, 1
          %s161 = sand.u32 %s20, 1
          %s162 = smul.addr %s161, 12
          %s163 = scalar_lea.vmem [#allocation4], %s162
          %s164 = smul.addr %s10, 4
          %s165 = scalar_lea.vmem %s0, %s164
          // Predicated region
          $region29: #{net_forward.4} parent=27 // pred_check
            _
          $region30: #{net_forward.4} parent=27 // pred_check_branch
            %167 = sbr.rel (0) target = $region32
          $region31: #{net_forward.4} parent=27 // pred_region
            // Predicated region
            $region33: #{net_forward.4} parent=31 // pred_check
              _
            $region34: #{net_forward.4} parent=31 // pred_check_branch
              %169 = sbr.rel target = $region36
            $region35: #{net_forward.4} parent=31 // pred_region
              // Predicated region
              $region48: #{net_forward.4} parent=35 // pred_check
                _
              $region49: #{net_forward.4} parent=35 // pred_check_branch
                %189 = sbr.rel (0) target = $region51
              $region50: #{net_forward.4} parent=35 // pred_region
                loop: start=0, step=1, limit=1
                $region52: #{net_forward.4} parent=50 // loop_pre_header
                  _
                $region53: #{net_forward.4} parent=50 // loop_header
                  %s191 = sphi 0, %s195
                  %p192 = scmp.ge.s32.totalorder %s191, 1
                  %s196 = sphi %s165, %s165
                  %s197 = sphi %s163, %s163
                $region54: #{net_forward.4} parent=50 // loop_header_branch
                  %194 = sbr.rel (%p192) target = $region58
                $region55: #{net_forward.4} parent=50 // loop_body
                  _
                $region56: #{net_forward.4} parent=50 // loop_footer
                  %s195 = sadd.s32 1, %s191
                $region57: #{net_forward.4} parent=50 // loop_footer_branch
                  %190 = sbr.rel target = $region53
                $region58: #{net_forward.4} parent=50 // loop_exit
                  _
                %s199 = ssub.s32 16, 1
                loop: start=0, step=1, limit=1
                $region59: #{net_forward.4} parent=50 // loop_pre_header
                  _
                $region60: #{net_forward.4} parent=50 // loop_header
                  %s201 = sphi 0, %s205
                  %p202 = scmp.ge.s32.totalorder %s201, 1
                  %s206 = sphi %s165, %s165
                  %s207 = sphi %s163, %s163
                $region61: #{net_forward.4} parent=50 // loop_header_branch
                  %204 = sbr.rel (%p202) target = $region65
                $region62: #{net_forward.4} parent=50 // loop_body
                  %v208 = vld [vmem:[%s206] sm:%s199]
                  %209 = vst [vmem:[%s207] sm:%s199] %v208
                  %v210 = vld [vmem:[%s206 + $0xc] sm:%s199]
                  %211 = vst [vmem:[%s207 + $0x4] sm:%s199] %v210
                  %v212 = vld [vmem:[%s206 + $0x18] sm:%s199]
                  %213 = vst [vmem:[%s207 + $0x8] sm:%s199] %v212
                $region63: #{net_forward.4} parent=50 // loop_footer
                  %s205 = sadd.s32 1, %s201
                $region64: #{net_forward.4} parent=50 // loop_footer_branch
                  %200 = sbr.rel target = $region60
                $region65: #{net_forward.4} parent=50 // loop_exit
                  _
              $region51: #{net_forward.4} parent=35 // pred_fallthru
                _
            $region36: #{net_forward.4} parent=31 // pred_fallthru
              _
            // Predicated region
            $region37: #{net_forward.4} parent=31 // pred_check
              _
            $region38: #{net_forward.4} parent=31 // pred_check_branch
              %171 = sbr.rel (0) target = $region40
            $region39: #{net_forward.4} parent=31 // pred_region
              %s173 = ssub.s32 16, 1
              loop: start=0, step=1, limit=1
              $region41: #{net_forward.4} parent=39 // loop_pre_header
                _
              $region42: #{net_forward.4} parent=39 // loop_header
                %s175 = sphi 0, %s179
                %p176 = scmp.ge.s32.totalorder %s175, 1
                %s180 = sphi %s165, %s165
                %s181 = sphi %s163, %s163
              $region43: #{net_forward.4} parent=39 // loop_header_branch
                %178 = sbr.rel (%p176) target = $region47
              $region44: #{net_forward.4} parent=39 // loop_body
                %v182 = vld [vmem:[%s180] sm:%s173]
                %183 = vst [vmem:[%s181] sm:%s173] %v182
                %v184 = vld [vmem:[%s180 + $0xc] sm:%s173]
                %185 = vst [vmem:[%s181 + $0x4] sm:%s173] %v184
                %v186 = vld [vmem:[%s180 + $0x18] sm:%s173]
                %187 = vst [vmem:[%s181 + $0x8] sm:%s173] %v186
              $region45: #{net_forward.4} parent=39 // loop_footer
                %s179 = sadd.s32 1, %s175
              $region46: #{net_forward.4} parent=39 // loop_footer_branch
                %174 = sbr.rel target = $region42
              $region47: #{net_forward.4} parent=39 // loop_exit
                _
            $region40: #{net_forward.4} parent=31 // pred_fallthru
              _
          $region32: #{net_forward.4} parent=27 // pred_fallthru
            _
          %214 = vnop
        $region28: #{net_forward.4} parent=23 // pred_fallthru
          _
        // Predicated region
        $region66: #{net_forward.4} parent=23 // pred_check
          %p215 = pneg %p58
        $region67: #{net_forward.4} parent=23 // pred_check_branch
          %217 = sbr.rel (%p215) target = $region69
        $region68: #{net_forward.4} parent=23 // pred_region
          %s218 = sand.u32 %s48, 1
          %s219 = sand.u32 %s48, 1
          %s220 = smul.addr %s219, 12
          %s221 = scalar_lea.vmem [#allocation5], %s220
          %s222 = sadd.s32 %s10, 1
          %s223 = smul.addr %s222, 4
          %s224 = scalar_lea.vmem %s1, %s223
          // Predicated region
          $region70: #{net_forward.4} parent=68 // pred_check
            _
          $region71: #{net_forward.4} parent=68 // pred_check_branch
            %226 = sbr.rel (0) target = $region73
          $region72: #{net_forward.4} parent=68 // pred_region
            // Predicated region
            $region74: #{net_forward.4} parent=72 // pred_check
              _
            $region75: #{net_forward.4} parent=72 // pred_check_branch
              %228 = sbr.rel target = $region77
            $region76: #{net_forward.4} parent=72 // pred_region
              // Predicated region
              $region89: #{net_forward.4} parent=76 // pred_check
                _
              $region90: #{net_forward.4} parent=76 // pred_check_branch
                %248 = sbr.rel (0) target = $region92
              $region91: #{net_forward.4} parent=76 // pred_region
                loop: start=0, step=1, limit=1
                $region93: #{net_forward.4} parent=91 // loop_pre_header
                  _
                $region94: #{net_forward.4} parent=91 // loop_header
                  %s250 = sphi 0, %s254
                  %p251 = scmp.ge.s32.totalorder %s250, 1
                  %s255 = sphi %s224, %s224
                  %s256 = sphi %s221, %s221
                $region95: #{net_forward.4} parent=91 // loop_header_branch
                  %253 = sbr.rel (%p251) target = $region99
                $region96: #{net_forward.4} parent=91 // loop_body
                  _
                $region97: #{net_forward.4} parent=91 // loop_footer
                  %s254 = sadd.s32 1, %s250
                $region98: #{net_forward.4} parent=91 // loop_footer_branch
                  %249 = sbr.rel target = $region94
                $region99: #{net_forward.4} parent=91 // loop_exit
                  _
                %s258 = ssub.s32 16, 1
                loop: start=0, step=1, limit=1
                $region100: #{net_forward.4} parent=91 // loop_pre_header
                  _
                $region101: #{net_forward.4} parent=91 // loop_header
                  %s260 = sphi 0, %s264
                  %p261 = scmp.ge.s32.totalorder %s260, 1
                  %s265 = sphi %s224, %s224
                  %s266 = sphi %s221, %s221
                $region102: #{net_forward.4} parent=91 // loop_header_branch
                  %263 = sbr.rel (%p261) target = $region106
                $region103: #{net_forward.4} parent=91 // loop_body
                  %v267 = vld [vmem:[%s265] sm:%s258]
                  %268 = vst [vmem:[%s266] sm:%s258] %v267
                  %v269 = vld [vmem:[%s265 + $0xc] sm:%s258]
                  %270 = vst [vmem:[%s266 + $0x4] sm:%s258] %v269
                  %v271 = vld [vmem:[%s265 + $0x18] sm:%s258]
                  %272 = vst [vmem:[%s266 + $0x8] sm:%s258] %v271
                $region104: #{net_forward.4} parent=91 // loop_footer
                  %s264 = sadd.s32 1, %s260
                $region105: #{net_forward.4} parent=91 // loop_footer_branch
                  %259 = sbr.rel target = $region101
                $region106: #{net_forward.4} parent=91 // loop_exit
                  _
              $region92: #{net_forward.4} parent=76 // pred_fallthru
                _
            $region77: #{net_forward.4} parent=72 // pred_fallthru
              _
            // Predicated region
            $region78: #{net_forward.4} parent=72 // pred_check
              _
            $region79: #{net_forward.4} parent=72 // pred_check_branch
              %230 = sbr.rel (0) target = $region81
            $region80: #{net_forward.4} parent=72 // pred_region
              %s232 = ssub.s32 16, 1
              loop: start=0, step=1, limit=1
              $region82: #{net_forward.4} parent=80 // loop_pre_header
                _
              $region83: #{net_forward.4} parent=80 // loop_header
                %s234 = sphi 0, %s238
                %p235 = scmp.ge.s32.totalorder %s234, 1
                %s239 = sphi %s224, %s224
                %s240 = sphi %s221, %s221
              $region84: #{net_forward.4} parent=80 // loop_header_branch
                %237 = sbr.rel (%p235) target = $region88
              $region85: #{net_forward.4} parent=80 // loop_body
                %v241 = vld [vmem:[%s239] sm:%s232]
                %242 = vst [vmem:[%s240] sm:%s232] %v241
                %v243 = vld [vmem:[%s239 + $0xc] sm:%s232]
                %244 = vst [vmem:[%s240 + $0x4] sm:%s232] %v243
                %v245 = vld [vmem:[%s239 + $0x18] sm:%s232]
                %246 = vst [vmem:[%s240 + $0x8] sm:%s232] %v245
              $region86: #{net_forward.4} parent=80 // loop_footer
                %s238 = sadd.s32 1, %s234
              $region87: #{net_forward.4} parent=80 // loop_footer_branch
                %233 = sbr.rel target = $region83
              $region88: #{net_forward.4} parent=80 // loop_exit
                _
            $region81: #{net_forward.4} parent=72 // pred_fallthru
              _
          $region73: #{net_forward.4} parent=68 // pred_fallthru
            _
          %273 = vnop
        $region69: #{net_forward.4} parent=23 // pred_fallthru
          _
      $region24: #{net_forward.4} parent=5 // pred_fallthru
        _
      %p274 = scmp.le.s32.totalorder 1, %s10
      %p275 = scmp.lt.s32.totalorder %s10, 3
      %p276 = pnand %p274, %p275
      %p277 = pneg %p276
      // Predicated region
      $region107: #{net_forward.4} parent=5 // pred_check
        _
      $region108: #{net_forward.4} parent=5 // pred_check_branch
        %279 = sbr.rel (%p276) target = $region110
      $region109: #{net_forward.4} parent=5 // pred_region
        %s280 = ssub.s32 %s10, 1
        %s281 = sand.u32 %s23, 1
        %s282 = sand.u32 %s23, 1
        %s283 = smul.addr %s282, 12
        %s284 = scalar_lea.vmem [#allocation4], %s283
        // Predicated region
        $region111: #{net_forward.4} parent=109 // pred_check
          %p285 = pneg %p36
        $region112: #{net_forward.4} parent=109 // pred_check_branch
          %287 = sbr.rel (%p285) target = $region114
        $region113: #{net_forward.4} parent=109 // pred_region
          _
        $region114: #{net_forward.4} parent=109 // pred_fallthru
          _
        %s288 = sand.u32 %s51, 1
        %s289 = sand.u32 %s51, 1
        %s290 = smul.addr %s289, 12
        %s291 = scalar_lea.vmem [#allocation5], %s290
        // Predicated region
        $region115: #{net_forward.4} parent=109 // pred_check
          %p292 = pneg %p64
        $region116: #{net_forward.4} parent=109 // pred_check_branch
          %294 = sbr.rel (%p292) target = $region118
        $region117: #{net_forward.4} parent=109 // pred_region
          _
        $region118: #{net_forward.4} parent=109 // pred_fallthru
          _
        %s295 = sand.u32 %s23, 1
        %s296 = sand.u32 %s23, 1
        %s297 = smul.addr %s296, 12
        %s298 = scalar_lea.vmem [#allocation4], %s297
        %p299 = pneg %p36
        %p300 = pneg %p33
        %s301 = sand.u32 %s51, 1
        %s302 = sand.u32 %s51, 1
        %s303 = smul.addr %s302, 12
        %s304 = scalar_lea.vmem [#allocation5], %s303
        %p305 = pneg %p64
        %p306 = pneg %p61
        %p307 = pneg %p85
        %p308 = pneg %p82
        %p309 = pneg %p106
        %p310 = pneg %p103
        %p311 = pneg %p132
        %p312 = pneg %p129
        %s313 = sand.u32 %s119, 1
        %s314 = sand.u32 %s119, 1
        %s315 = smul.addr %s314, 16
        %s316 = scalar_lea.vmem [#allocation6], %s315
        %s317 = sadd.s32 %s15, 1
        %v319 = vld [vmem:[%s284] sm:$0xf]
        %v320 = vld [vmem:[%s284 + $0x4] sm:$0xf]
        %v321 = vld [vmem:[%s284 + $0x8] sm:$0xf]
        %322 = vst [vmem:[#allocation2] sm:$0xf] %v319
        %323 = vst [vmem:[#allocation2 + $0x8] sm:$0xf] %v320
        %324 = vst [vmem:[#allocation2 + $0x10] sm:$0xf] %v321
        %v325 = vld [vmem:[%s291] sm:$0xf]
        %v326 = vld [vmem:[%s291 + $0x4] sm:$0xf]
        %v327 = vld [vmem:[%s291 + $0x8] sm:$0xf]
        %328 = vst [vmem:[#allocation2 + $0x4] sm:$0xf] %v325
        %329 = vst [vmem:[#allocation2 + $0xc] sm:$0xf] %v326
        %330 = vst [vmem:[#allocation2 + $0x14] sm:$0xf] %v327
        %v331 = vld [vmem:[#allocation2] sm:$0x7]
        %332 = vst [vmem:[#allocation3] sm:$0x7] %v331
        %v333 = vld [vmem:[#allocation2] sm:$0x8]
        %v334 = vld [vmem:[#allocation2 + $0x8] sm:$0x3]
        %335 = vst [vmem:[#allocation3] sm:$0x8] %v333
        %336 = vst [vmem:[#allocation3 + $0x10] sm:$0x3] %v334
        %v337 = vld [vmem:[#allocation2] sm:$0x77]
        %v339 = vrot.slane %v337, 6
        %v340 = vrot.slane %v339, 4
        %341 = vrot.lane.b32.xlu0 %v339, 127
        %v342 = vpop.permute.xlu0 %341
        %343 = vrot.lane.b32.xlu0 %v340, 127
        %v344 = vpop.permute.xlu0 %343
        %v345 = vrot.slane %v342, 4
        %v346 = vrot.slane %v344, 4
        %vm347 = vcmask 1039360
        %v348 = vsel %vm347, %v342, %v345
        %v349 = vsel %vm347, %v344, %v346
        %352 = vst [vmem:[#allocation3 + $0x10] sm:$0xc] %v348
        %353 = vst [vmem:[#allocation3 + $0x20] sm:$0x1] %v349
        %v354 = vld [vmem:[#allocation2] sm:$0x88]
        %v355 = vld [vmem:[#allocation2 + $0x8] sm:$0x33]
        %vm358 = vcmask 1041408
        %vm359 = vcmask 1045508
        %vm360 = vmor %vm358, %vm359
        %v361 = vrot.slane %v354, 6
        %v362 = vrot.slane %v361, 4
        %v363 = vrot.slane %v355, 6
        %v364 = vsel %vm360, %v362, %v363
        %365 = vrot.lane.b32.xlu0 %v364, 127
        %v366 = vpop.permute.xlu0 %365
        %v367 = vrot.slane %v366, 4
        %v368 = vsel %vm347, %v366, %v367
        %370 = vst [vmem:[#allocation3 + $0x20] sm:$0xe] %v368
        %v371 = vld [vmem:[#allocation2] sm:$0x77]
        %373 = vrot.lane.b32.xlu0 %v371, 126
        %v374 = vpop.permute.xlu0 %373
        %v375 = vrot.slane %v374, 4
        %vm376 = vcmask 1031168
        %v377 = vsel %vm376, %v374, %v375
        %379 = vst [vmem:[#allocation3 + $0x30] sm:$0x7] %v377
        %v380 = vld [vmem:[#allocation2 + $0x8] sm:$0xc]
        %v381 = vld [vmem:[#allocation2 + $0x10] sm:$0x1]
        %vm384 = vcmask 1040384
        %vm385 = vcmask 1044484
        %vm386 = vmor %vm384, %vm385
        %v387 = vrot.slane %v380, 7
        %v388 = vrot.slane %v387, 4
        %v389 = vrot.slane %v381, 7
        %v390 = vsel %vm386, %v388, %v389
        %393 = vst [vmem:[#allocation3 + $0x30] sm:$0x8] %v387
        %394 = vst [vmem:[#allocation3 + $0x40] sm:$0x3] %v390
        %v395 = vld [vmem:[#allocation2 + $0x10] sm:$0xe]
        %v397 = vrot.slane %v395, 7
        %v398 = vrot.slane %v397, 4
        %401 = vst [vmem:[#allocation3 + $0x40] sm:$0xc] %v397
        %402 = vst [vmem:[#allocation3 + $0x50] sm:$0x1] %v398
        %v403 = vld [vmem:[#allocation2 + $0x8] sm:$0xcc]
        %v404 = vld [vmem:[#allocation2 + $0x10] sm:$0x11]
        %vm407 = vcmask 1042432
        %vm408 = vcmask 1046532
        %vm409 = vmor %vm407, %vm408
        %v410 = vrot.slane %v403, 5
        %v411 = vrot.slane %v410, 4
        %v412 = vrot.slane %v404, 5
        %v413 = vsel %vm409, %v411, %v412
        %414 = vrot.lane.b32.xlu0 %v413, 127
        %v415 = vpop.permute.xlu0 %414
        %v416 = vrot.slane %v415, 4
        %v417 = vsel %vm347, %v415, %v416
        %419 = vst [vmem:[#allocation3 + $0x50] sm:$0xe] %v417
        %v420 = vld [vmem:[#allocation2 + $0x10] sm:$0xee]
        %v422 = vrot.slane %v420, 5
        %v423 = vrot.slane %v422, 4
        %424 = vrot.lane.b32.xlu0 %v423, 127
        %v425 = vpop.permute.xlu0 %424
        %v426 = vrot.slane %v425, 4
        %v427 = vsel %vm347, %v425, %v426
        %429 = vst [vmem:[#allocation3 + $0x60] sm:$0x7] %v427
        %v430 = vld [vmem:[#allocation2 + $0x8] sm:$0xcc]
        %v431 = vld [vmem:[#allocation2 + $0x10] sm:$0x11]
        %v434 = vrot.slane %v430, 7
        %v435 = vrot.slane %v434, 4
        %v436 = vrot.slane %v431, 7
        %v437 = vsel %vm386, %v435, %v436
        %438 = vrot.lane.b32.xlu0 %v434, 126
        %v439 = vpop.permute.xlu0 %438
        %440 = vrot.lane.b32.xlu0 %v437, 126
        %v441 = vpop.permute.xlu0 %440
        %v442 = vrot.slane %v439, 4
        %v443 = vrot.slane %v441, 4
        %v444 = vsel %vm376, %v439, %v442
        %v445 = vsel %vm376, %v441, %v443
        %448 = vst [vmem:[#allocation3 + $0x60] sm:$0x8] %v444
        %449 = vst [vmem:[#allocation3 + $0x70] sm:$0x3] %v445
        %v450 = vld [vmem:[#allocation2] sm:$0x77]
        %v452 = vrot.slane %v450, 6
        %v453 = vrot.slane %v452, 4
        %454 = vrot.lane.b32.xlu0 %v452, 121
        %v455 = vpop.permute.xlu0 %454
        %456 = vrot.lane.b32.xlu0 %v453, 121
        %v457 = vpop.permute.xlu0 %456
        %v458 = vrot.slane %v455, 4
        %v459 = vrot.slane %v457, 4
        %vm460 = vcmask 990208
        %v461 = vsel %vm460, %v455, %v458
        %v462 = vsel %vm460, %v457, %v459
        %465 = vst [vmem:[#allocation3 + $0x70] sm:$0xc] %v461
        %466 = vst [vmem:[#allocation3 + $0x80] sm:$0x1] %v462
        %v467 = vld [vmem:[#allocation2] sm:$0x88]
        %v468 = vld [vmem:[#allocation2 + $0x8] sm:$0x33]
        %v471 = vrot.slane %v467, 6
        %v472 = vrot.slane %v471, 4
        %v473 = vrot.slane %v468, 6
        %v474 = vsel %vm360, %v472, %v473
        %475 = vrot.lane.b32.xlu0 %v474, 121
        %v476 = vpop.permute.xlu0 %475
        %v477 = vrot.slane %v476, 4
        %v478 = vsel %vm460, %v476, %v477
        %480 = vst [vmem:[#allocation3 + $0x80] sm:$0xe] %v478
        %v481 = vld [vmem:[#allocation2] sm:$0x77]
        %483 = vrot.lane.b32.xlu0 %v481, 120
        %v484 = vpop.permute.xlu0 %483
        %v485 = vrot.slane %v484, 4
        %vm486 = vcmask 982016
        %v487 = vsel %vm486, %v484, %v485
        %489 = vst [vmem:[#allocation3 + $0x90] sm:$0x7] %v487
        %v490 = vld [vmem:[#allocation2] sm:$0x88]
        %v491 = vld [vmem:[#allocation2 + $0x8] sm:$0x33]
        %494 = vrot.lane.b32.xlu0 %v490, 120
        %v495 = vpop.permute.xlu0 %494
        %496 = vrot.lane.b32.xlu0 %v491, 120
        %v497 = vpop.permute.xlu0 %496
        %v498 = vrot.slane %v495, 4
        %v499 = vrot.slane %v497, 4
        %v500 = vsel %vm486, %v495, %v498
        %v501 = vsel %vm486, %v497, %v499
        %504 = vst [vmem:[#allocation3 + $0x90] sm:$0x8] %v500
        %505 = vst [vmem:[#allocation3 + $0xa0] sm:$0x3] %v501
        %v506 = vld [vmem:[#allocation2] sm:$0x77]
        %v508 = vrot.slane %v506, 6
        %v509 = vrot.slane %v508, 4
        %510 = vrot.lane.b32.xlu0 %v508, 119
        %v511 = vpop.permute.xlu0 %510
        %512 = vrot.lane.b32.xlu0 %v509, 119
        %v513 = vpop.permute.xlu0 %512
        %v514 = vrot.slane %v511, 4
        %v515 = vrot.slane %v513, 4
        %vm516 = vcmask 973824
        %v517 = vsel %vm516, %v511, %v514
        %v518 = vsel %vm516, %v513, %v515
        %521 = vst [vmem:[#allocation3 + $0xa0] sm:$0xc] %v517
        %522 = vst [vmem:[#allocation3 + $0xb0] sm:$0x1] %v518
        %v523 = vld [vmem:[#allocation2 + $0x8] sm:$0xcc]
        %v524 = vld [vmem:[#allocation2 + $0x10] sm:$0x11]
        %v527 = vrot.slane %v523, 5
        %v528 = vrot.slane %v527, 4
        %v529 = vrot.slane %v524, 5
        %v530 = vsel %vm409, %v528, %v529
        %531 = vrot.lane.b32.xlu0 %v530, 121
        %v532 = vpop.permute.xlu0 %531
        %v533 = vrot.slane %v532, 4
        %v534 = vsel %vm460, %v532, %v533
        %536 = vst [vmem:[#allocation3 + $0xb0] sm:$0xe] %v534
        %v537 = vld [vmem:[#allocation2 + $0x10] sm:$0xee]
        %v539 = vrot.slane %v537, 5
        %v540 = vrot.slane %v539, 4
        %541 = vrot.lane.b32.xlu0 %v540, 121
        %v542 = vpop.permute.xlu0 %541
        %v543 = vrot.slane %v542, 4
        %v544 = vsel %vm460, %v542, %v543
        %546 = vst [vmem:[#allocation3 + $0xc0] sm:$0x7] %v544
        %v547 = vld [vmem:[#allocation2 + $0x8] sm:$0xcc]
        %v548 = vld [vmem:[#allocation2 + $0x10] sm:$0x11]
        %v551 = vrot.slane %v547, 7
        %v552 = vrot.slane %v551, 4
        %v553 = vrot.slane %v548, 7
        %v554 = vsel %vm386, %v552, %v553
        %555 = vrot.lane.b32.xlu0 %v551, 120
        %v556 = vpop.permute.xlu0 %555
        %557 = vrot.lane.b32.xlu0 %v554, 120
        %v558 = vpop.permute.xlu0 %557
        %v559 = vrot.slane %v556, 4
        %v560 = vrot.slane %v558, 4
        %v561 = vsel %vm486, %v556, %v559
        %v562 = vsel %vm486, %v558, %v560
        %565 = vst [vmem:[#allocation3 + $0xc0] sm:$0x8] %v561
        %566 = vst [vmem:[#allocation3 + $0xd0] sm:$0x3] %v562
        %v567 = vld [vmem:[#allocation2 + $0x10] sm:$0xee]
        %v569 = vrot.slane %v567, 7
        %v570 = vrot.slane %v569, 4
        %571 = vrot.lane.b32.xlu0 %v569, 120
        %v572 = vpop.permute.xlu0 %571
        %573 = vrot.lane.b32.xlu0 %v570, 120
        %v574 = vpop.permute.xlu0 %573
        %v575 = vrot.slane %v572, 4
        %v576 = vrot.slane %v574, 4
        %v577 = vsel %vm486, %v572, %v575
        %v578 = vsel %vm486, %v574, %v576
        %581 = vst [vmem:[#allocation3 + $0xd0] sm:$0xc] %v577
        %582 = vst [vmem:[#allocation3 + $0xe0] sm:$0x1] %v578
        %v583 = vld [vmem:[#allocation2 + $0x8] sm:$0xcc]
        %v584 = vld [vmem:[#allocation2 + $0x10] sm:$0x11]
        %v587 = vrot.slane %v583, 5
        %v588 = vrot.slane %v587, 4
        %v589 = vrot.slane %v584, 5
        %v590 = vsel %vm409, %v588, %v589
        %591 = vrot.lane.b32.xlu0 %v590, 119
        %v592 = vpop.permute.xlu0 %591
        %v593 = vrot.slane %v592, 4
        %v594 = vsel %vm516, %v592, %v593
        %596 = vst [vmem:[#allocation3 + $0xe0] sm:$0xe] %v594
        %v597 = vld [vmem:[#allocation2] sm:$0x77]
        %599 = vrot.lane.b32.xlu0 %v597, 114
        %v600 = vpop.permute.xlu0 %599
        %v601 = vrot.slane %v600, 4
        %vm602 = vcmask 932864
        %v603 = vsel %vm602, %v600, %v601
        %605 = vst [vmem:[#allocation3 + $0xf0] sm:$0x7] %v603
        %v606 = vld [vmem:[#allocation2] sm:$0x88]
        %v607 = vld [vmem:[#allocation2 + $0x8] sm:$0x33]
        %610 = vrot.lane.b32.xlu0 %v606, 114
        %v611 = vpop.permute.xlu0 %610
        %612 = vrot.lane.b32.xlu0 %v607, 114
        %v613 = vpop.permute.xlu0 %612
        %v614 = vrot.slane %v611, 4
        %v615 = vrot.slane %v613, 4
        %v616 = vsel %vm602, %v611, %v614
        %v617 = vsel %vm602, %v613, %v615
        %620 = vst [vmem:[#allocation3 + $0xf0] sm:$0x8] %v616
        %621 = vst [vmem:[#allocation3 + $0x100] sm:$0x3] %v617
        %v622 = vld [vmem:[#allocation2] sm:$0x77]
        %v624 = vrot.slane %v622, 6
        %v625 = vrot.slane %v624, 4
        %626 = vrot.lane.b32.xlu0 %v624, 113
        %v627 = vpop.permute.xlu0 %626
        %628 = vrot.lane.b32.xlu0 %v625, 113
        %v629 = vpop.permute.xlu0 %628
        %v630 = vrot.slane %v627, 4
        %v631 = vrot.slane %v629, 4
        %vm632 = vcmask 924672
        %v633 = vsel %vm632, %v627, %v630
        %v634 = vsel %vm632, %v629, %v631
        %637 = vst [vmem:[#allocation3 + $0x100] sm:$0xc] %v633
        %638 = vst [vmem:[#allocation3 + $0x110] sm:$0x1] %v634
        %v639 = vld [vmem:[#allocation2] sm:$0x88]
        %v640 = vld [vmem:[#allocation2 + $0x8] sm:$0x33]
        %v643 = vrot.slane %v639, 6
        %v644 = vrot.slane %v643, 4
        %v645 = vrot.slane %v640, 6
        %v646 = vsel %vm360, %v644, %v645
        %647 = vrot.lane.b32.xlu0 %v646, 113
        %v648 = vpop.permute.xlu0 %647
        %v649 = vrot.slane %v648, 4
        %v650 = vsel %vm632, %v648, %v649
        %652 = vst [vmem:[#allocation3 + $0x110] sm:$0xe] %v650
        %v653 = vld [vmem:[#allocation2] sm:$0x77]
        %655 = vrot.lane.b32.xlu0 %v653, 112
        %v656 = vpop.permute.xlu0 %655
        %v657 = vrot.slane %v656, 4
        %vm658 = vcmask 916480
        %v659 = vsel %vm658, %v656, %v657
        %661 = vst [vmem:[#allocation3 + $0x120] sm:$0x7] %v659
        %v662 = vld [vmem:[#allocation2] sm:$0x8]
        %v663 = vld [vmem:[#allocation2 + $0x8] sm:$0x3]
        %v666 = vrot.slane %v662, 7
        %v667 = vrot.slane %v666, 4
        %v668 = vrot.slane %v663, 7
        %v669 = vsel %vm386, %v667, %v668
        %671 = vst [vmem:[#allocation3 + $0x4] sm:$0x7] %v669
        %v672 = vld [vmem:[#allocation2] sm:$0x77]
        %v674 = vrot.slane %v672, 5
        %v675 = vrot.slane %v674, 4
        %676 = vrot.lane.b32.xlu0 %v674, 127
        %v677 = vpop.permute.xlu0 %676
        %678 = vrot.lane.b32.xlu0 %v675, 127
        %v679 = vpop.permute.xlu0 %678
        %v680 = vrot.slane %v677, 4
        %v681 = vrot.slane %v679, 4
        %v682 = vsel %vm347, %v677, %v680
        %v683 = vsel %vm347, %v679, %v681
        %686 = vst [vmem:[#allocation3 + $0x4] sm:$0x8] %v682
        %687 = vst [vmem:[#allocation3 + $0x14] sm:$0x3] %v683
        %v688 = vld [vmem:[#allocation2] sm:$0x88]
        %v689 = vld [vmem:[#allocation2 + $0x8] sm:$0x33]
        %v692 = vrot.slane %v688, 5
        %v693 = vrot.slane %v692, 4
        %v694 = vrot.slane %v689, 5
        %v695 = vsel %vm409, %v693, %v694
        %v696 = vrot.slane %v694, 4
        %697 = vrot.lane.b32.xlu0 %v695, 127
        %v698 = vpop.permute.xlu0 %697
        %699 = vrot.lane.b32.xlu0 %v696, 127
        %v700 = vpop.permute.xlu0 %699
        %v701 = vrot.slane %v698, 4
        %v702 = vrot.slane %v700, 4
        %v703 = vsel %vm347, %v698, %v701
        %v704 = vsel %vm347, %v700, %v702
        %707 = vst [vmem:[#allocation3 + $0x14] sm:$0xc] %v703
        %708 = vst [vmem:[#allocation3 + $0x24] sm:$0x1] %v704
        %v709 = vld [vmem:[#allocation2] sm:$0x77]
        %v711 = vrot.slane %v709, 7
        %712 = vrot.lane.b32.xlu0 %v711, 126
        %v713 = vpop.permute.xlu0 %712
        %v714 = vrot.slane %v713, 4
        %v715 = vsel %vm376, %v713, %v714
        %717 = vst [vmem:[#allocation3 + $0x24] sm:$0xe] %v715
        %v718 = vld [vmem:[#allocation2] sm:$0x88]
        %v719 = vld [vmem:[#allocation2 + $0x8] sm:$0x33]
        %v722 = vrot.slane %v718, 7
        %v723 = vrot.slane %v722, 4
        %v724 = vrot.slane %v719, 7
        %v725 = vsel %vm386, %v723, %v724
        %726 = vrot.lane.b32.xlu0 %v725, 126
        %v727 = vpop.permute.xlu0 %726
        %v728 = vrot.slane %v727, 4
        %v729 = vsel %vm376, %v727, %v728
        %731 = vst [vmem:[#allocation3 + $0x34] sm:$0x7] %v729
        %v732 = vld [vmem:[#allocation2 + $0x10] sm:$0xe]
        %v734 = vrot.slane %v732, 6
        %v735 = vrot.slane %v734, 4
        %738 = vst [vmem:[#allocation3 + $0x34] sm:$0x8] %v734
        %739 = vst [vmem:[#allocation3 + $0x44] sm:$0x3] %v735
        %v740 = vld [vmem:[#allocation2 + $0x8] sm:$0xcc]
        %v741 = vld [vmem:[#allocation2 + $0x10] sm:$0x11]
        %744 = vrot.lane.b32.xlu0 %v740, 127
        %v745 = vpop.permute.xlu0 %744
        %746 = vrot.lane.b32.xlu0 %v741, 127
        %v747 = vpop.permute.xlu0 %746
        %v748 = vrot.slane %v745, 4
        %v749 = vrot.slane %v747, 4
        %v750 = vsel %vm347, %v745, %v748
        %v751 = vsel %vm347, %v747, %v749
        %754 = vst [vmem:[#allocation3 + $0x44] sm:$0xc] %v750
        %755 = vst [vmem:[#allocation3 + $0x54] sm:$0x1] %v751
        %v756 = vld [vmem:[#allocation2 + $0x10] sm:$0xee]
        %758 = vrot.lane.b32.xlu0 %v756, 127
        %v759 = vpop.permute.xlu0 %758
        %v760 = vrot.slane %v759, 4
        %v761 = vsel %vm347, %v759, %v760
        %763 = vst [vmem:[#allocation3 + $0x54] sm:$0xe] %v761
        %v764 = vld [vmem:[#allocation2 + $0x8] sm:$0xcc]
        %v765 = vld [vmem:[#allocation2 + $0x10] sm:$0x11]
        %v768 = vrot.slane %v764, 6
        %v769 = vrot.slane %v768, 4
        %v770 = vrot.slane %v765, 6
        %v771 = vsel %vm360, %v769, %v770
        %772 = vrot.lane.b32.xlu0 %v771, 126
        %v773 = vpop.permute.xlu0 %772
        %v774 = vrot.slane %v773, 4
        %v775 = vsel %vm376, %v773, %v774
        %777 = vst [vmem:[#allocation3 + $0x64] sm:$0x7] %v775
        %v778 = vld [vmem:[#allocation2 + $0x10] sm:$0xee]
        %v780 = vrot.slane %v778, 6
        %v781 = vrot.slane %v780, 4
        %782 = vrot.lane.b32.xlu0 %v780, 126
        %v783 = vpop.permute.xlu0 %782
        %784 = vrot.lane.b32.xlu0 %v781, 126
        %v785 = vpop.permute.xlu0 %784
        %v786 = vrot.slane %v783, 4
        %v787 = vrot.slane %v785, 4
        %v788 = vsel %vm376, %v783, %v786
        %v789 = vsel %vm376, %v785, %v787
        %792 = vst [vmem:[#allocation3 + $0x64] sm:$0x8] %v788
        %793 = vst [vmem:[#allocation3 + $0x74] sm:$0x3] %v789
        %v794 = vld [vmem:[#allocation2] sm:$0x88]
        %v795 = vld [vmem:[#allocation2 + $0x8] sm:$0x33]
        %v798 = vrot.slane %v794, 5
        %v799 = vrot.slane %v798, 4
        %v800 = vrot.slane %v795, 5
        %v801 = vsel %vm409, %v799, %v800
        %v802 = vrot.slane %v800, 4
        %803 = vrot.lane.b32.xlu0 %v801, 121
        %v804 = vpop.permute.xlu0 %803
        %805 = vrot.lane.b32.xlu0 %v802, 121
        %v806 = vpop.permute.xlu0 %805
        %v807 = vrot.slane %v804, 4
        %v808 = vrot.slane %v806, 4
        %v809 = vsel %vm460, %v804, %v807
        %v810 = vsel %vm460, %v806, %v808
        %813 = vst [vmem:[#allocation3 + $0x74] sm:$0xc] %v809
        %814 = vst [vmem:[#allocation3 + $0x84] sm:$0x1] %v810
        %v815 = vld [vmem:[#allocation2] sm:$0x77]
        %v817 = vrot.slane %v815, 7
        %818 = vrot.lane.b32.xlu0 %v817, 120
        %v819 = vpop.permute.xlu0 %818
        %v820 = vrot.slane %v819, 4
        %v821 = vsel %vm486, %v819, %v820
        %823 = vst [vmem:[#allocation3 + $0x84] sm:$0xe] %v821
        %v824 = vld [vmem:[#allocation2] sm:$0x88]
        %v825 = vld [vmem:[#allocation2 + $0x8] sm:$0x33]
        %v828 = vrot.slane %v824, 7
        %v829 = vrot.slane %v828, 4
        %v830 = vrot.slane %v825, 7
        %v831 = vsel %vm386, %v829, %v830
        %832 = vrot.lane.b32.xlu0 %v831, 120
        %v833 = vpop.permute.xlu0 %832
        %v834 = vrot.slane %v833, 4
        %v835 = vsel %vm486, %v833, %v834
        %837 = vst [vmem:[#allocation3 + $0x94] sm:$0x7] %v835
        %v838 = vld [vmem:[#allocation2] sm:$0x77]
        %v840 = vrot.slane %v838, 5
        %v841 = vrot.slane %v840, 4
        %842 = vrot.lane.b32.xlu0 %v840, 119
        %v843 = vpop.permute.xlu0 %842
        %844 = vrot.lane.b32.xlu0 %v841, 119
        %v845 = vpop.permute.xlu0 %844
        %v846 = vrot.slane %v843, 4
        %v847 = vrot.slane %v845, 4
        %v848 = vsel %vm516, %v843, %v846
        %v849 = vsel %vm516, %v845, %v847
        %852 = vst [vmem:[#allocation3 + $0x94] sm:$0x8] %v848
        %853 = vst [vmem:[#allocation3 + $0xa4] sm:$0x3] %v849
        %v854 = vld [vmem:[#allocation2] sm:$0x88]
        %v855 = vld [vmem:[#allocation2 + $0x8] sm:$0x33]
        %v858 = vrot.slane %v854, 5
        %v859 = vrot.slane %v858, 4
        %v860 = vrot.slane %v855, 5
        %v861 = vsel %vm409, %v859, %v860
        %v862 = vrot.slane %v860, 4
        %863 = vrot.lane.b32.xlu0 %v861, 119
        %v864 = vpop.permute.xlu0 %863
        %865 = vrot.lane.b32.xlu0 %v862, 119
        %v866 = vpop.permute.xlu0 %865
        %v867 = vrot.slane %v864, 4
        %v868 = vrot.slane %v866, 4
        %v869 = vsel %vm516, %v864, %v867
        %v870 = vsel %vm516, %v866, %v868
        %873 = vst [vmem:[#allocation3 + $0xa4] sm:$0xc] %v869
        %874 = vst [vmem:[#allocation3 + $0xb4] sm:$0x1] %v870
        %v875 = vld [vmem:[#allocation2 + $0x10] sm:$0xee]
        %877 = vrot.lane.b32.xlu0 %v875, 121
        %v878 = vpop.permute.xlu0 %877
        %v879 = vrot.slane %v878, 4
        %v880 = vsel %vm460, %v878, %v879
        %882 = vst [vmem:[#allocation3 + $0xb4] sm:$0xe] %v880
        %v883 = vld [vmem:[#allocation2 + $0x8] sm:$0xcc]
        %v884 = vld [vmem:[#allocation2 + $0x10] sm:$0x11]
        %v887 = vrot.slane %v883, 6
        %v888 = vrot.slane %v887, 4
        %v889 = vrot.slane %v884, 6
        %v890 = vsel %vm360, %v888, %v889
        %891 = vrot.lane.b32.xlu0 %v890, 120
        %v892 = vpop.permute.xlu0 %891
        %v893 = vrot.slane %v892, 4
        %v894 = vsel %vm486, %v892, %v893
        %896 = vst [vmem:[#allocation3 + $0xc4] sm:$0x7] %v894
        %v897 = vld [vmem:[#allocation2 + $0x10] sm:$0xee]
        %v899 = vrot.slane %v897, 6
        %v900 = vrot.slane %v899, 4
        %901 = vrot.lane.b32.xlu0 %v899, 120
        %v902 = vpop.permute.xlu0 %901
        %903 = vrot.lane.b32.xlu0 %v900, 120
        %v904 = vpop.permute.xlu0 %903
        %v905 = vrot.slane %v902, 4
        %v906 = vrot.slane %v904, 4
        %v907 = vsel %vm486, %v902, %v905
        %v908 = vsel %vm486, %v904, %v906
        %911 = vst [vmem:[#allocation3 + $0xc4] sm:$0x8] %v907
        %912 = vst [vmem:[#allocation3 + $0xd4] sm:$0x3] %v908
        %v913 = vld [vmem:[#allocation2 + $0x8] sm:$0xcc]
        %v914 = vld [vmem:[#allocation2 + $0x10] sm:$0x11]
        %917 = vrot.lane.b32.xlu0 %v913, 119
        %v918 = vpop.permute.xlu0 %917
        %919 = vrot.lane.b32.xlu0 %v914, 119
        %v920 = vpop.permute.xlu0 %919
        %v921 = vrot.slane %v918, 4
        %v922 = vrot.slane %v920, 4
        %v923 = vsel %vm516, %v918, %v921
        %v924 = vsel %vm516, %v920, %v922
        %927 = vst [vmem:[#allocation3 + $0xd4] sm:$0xc] %v923
        %928 = vst [vmem:[#allocation3 + $0xe4] sm:$0x1] %v924
        %v929 = vld [vmem:[#allocation2 + $0x10] sm:$0xee]
        %931 = vrot.lane.b32.xlu0 %v929, 119
        %v932 = vpop.permute.xlu0 %931
        %v933 = vrot.slane %v932, 4
        %v934 = vsel %vm516, %v932, %v933
        %936 = vst [vmem:[#allocation3 + $0xe4] sm:$0xe] %v934
        %v937 = vld [vmem:[#allocation2] sm:$0x88]
        %v938 = vld [vmem:[#allocation2 + $0x8] sm:$0x33]
        %v941 = vrot.slane %v937, 7
        %v942 = vrot.slane %v941, 4
        %v943 = vrot.slane %v938, 7
        %v944 = vsel %vm386, %v942, %v943
        %945 = vrot.lane.b32.xlu0 %v944, 114
        %v946 = vpop.permute.xlu0 %945
        %v947 = vrot.slane %v946, 4
        %v948 = vsel %vm602, %v946, %v947
        %950 = vst [vmem:[#allocation3 + $0xf4] sm:$0x7] %v948
        %v951 = vld [vmem:[#allocation2] sm:$0x77]
        %v953 = vrot.slane %v951, 5
        %v954 = vrot.slane %v953, 4
        %955 = vrot.lane.b32.xlu0 %v953, 113
        %v956 = vpop.permute.xlu0 %955
        %957 = vrot.lane.b32.xlu0 %v954, 113
        %v958 = vpop.permute.xlu0 %957
        %v959 = vrot.slane %v956, 4
        %v960 = vrot.slane %v958, 4
        %v961 = vsel %vm632, %v956, %v959
        %v962 = vsel %vm632, %v958, %v960
        %965 = vst [vmem:[#allocation3 + $0xf4] sm:$0x8] %v961
        %966 = vst [vmem:[#allocation3 + $0x104] sm:$0x3] %v962
        %v967 = vld [vmem:[#allocation2] sm:$0x88]
        %v968 = vld [vmem:[#allocation2 + $0x8] sm:$0x33]
        %v971 = vrot.slane %v967, 5
        %v972 = vrot.slane %v971, 4
        %v973 = vrot.slane %v968, 5
        %v974 = vsel %vm409, %v972, %v973
        %v975 = vrot.slane %v973, 4
        %976 = vrot.lane.b32.xlu0 %v974, 113
        %v977 = vpop.permute.xlu0 %976
        %978 = vrot.lane.b32.xlu0 %v975, 113
        %v979 = vpop.permute.xlu0 %978
        %v980 = vrot.slane %v977, 4
        %v981 = vrot.slane %v979, 4
        %v982 = vsel %vm632, %v977, %v980
        %v983 = vsel %vm632, %v979, %v981
        %986 = vst [vmem:[#allocation3 + $0x104] sm:$0xc] %v982
        %987 = vst [vmem:[#allocation3 + $0x114] sm:$0x1] %v983
        %v988 = vld [vmem:[#allocation2] sm:$0x77]
        %v990 = vrot.slane %v988, 7
        %991 = vrot.lane.b32.xlu0 %v990, 112
        %v992 = vpop.permute.xlu0 %991
        %v993 = vrot.slane %v992, 4
        %v994 = vsel %vm658, %v992, %v993
        %996 = vst [vmem:[#allocation3 + $0x114] sm:$0xe] %v994
        %v997 = vld [vmem:[#allocation2] sm:$0x88]
        %v998 = vld [vmem:[#allocation2 + $0x8] sm:$0x33]
        %v1001 = vrot.slane %v997, 7
        %v1002 = vrot.slane %v1001, 4
        %v1003 = vrot.slane %v998, 7
        %v1004 = vsel %vm386, %v1002, %v1003
        %1005 = vrot.lane.b32.xlu0 %v1004, 112
        %v1006 = vpop.permute.xlu0 %1005
        %v1007 = vrot.slane %v1006, 4
        %v1008 = vsel %vm658, %v1006, %v1007
        %1010 = vst [vmem:[#allocation3 + $0x124] sm:$0x7] %v1008
        %v1011 = vld [vmem:[#allocation2 + $0x8] sm:$0xc]
        %v1012 = vld [vmem:[#allocation2 + $0x10] sm:$0x1]
        %v1015 = vrot.slane %v1011, 6
        %v1016 = vrot.slane %v1015, 4
        %v1017 = vrot.slane %v1012, 6
        %v1018 = vsel %vm360, %v1016, %v1017
        %1020 = vst [vmem:[#allocation3 + $0x8] sm:$0x7] %v1018
        %v1021 = vld [vmem:[#allocation2 + $0x10] sm:$0xe]
        %v1023 = vrot.slane %v1021, 6
        %v1024 = vrot.slane %v1023, 4
        %1027 = vst [vmem:[#allocation3 + $0x8] sm:$0x8] %v1023
        %1028 = vst [vmem:[#allocation3 + $0x18] sm:$0x3] %v1024
        %v1029 = vld [vmem:[#allocation2 + $0x8] sm:$0xcc]
        %v1030 = vld [vmem:[#allocation2 + $0x10] sm:$0x11]
        %1033 = vrot.lane.b32.xlu0 %v1029, 127
        %v1034 = vpop.permute.xlu0 %1033
        %1035 = vrot.lane.b32.xlu0 %v1030, 127
        %v1036 = vpop.permute.xlu0 %1035
        %v1037 = vrot.slane %v1034, 4
        %v1038 = vrot.slane %v1036, 4
        %v1039 = vsel %vm347, %v1034, %v1037
        %v1040 = vsel %vm347, %v1036, %v1038
        %1043 = vst [vmem:[#allocation3 + $0x18] sm:$0xc] %v1039
        %1044 = vst [vmem:[#allocation3 + $0x28] sm:$0x1] %v1040
        %v1045 = vld [vmem:[#allocation2 + $0x10] sm:$0xee]
        %1047 = vrot.lane.b32.xlu0 %v1045, 127
        %v1048 = vpop.permute.xlu0 %1047
        %v1049 = vrot.slane %v1048, 4
        %v1050 = vsel %vm347, %v1048, %v1049
        %1052 = vst [vmem:[#allocation3 + $0x28] sm:$0xe] %v1050
        %v1053 = vld [vmem:[#allocation2 + $0x8] sm:$0xcc]
        %v1054 = vld [vmem:[#allocation2 + $0x10] sm:$0x11]
        %v1057 = vrot.slane %v1053, 6
        %v1058 = vrot.slane %v1057, 4
        %v1059 = vrot.slane %v1054, 6
        %v1060 = vsel %vm360, %v1058, %v1059
        %1061 = vrot.lane.b32.xlu0 %v1060, 126
        %v1062 = vpop.permute.xlu0 %1061
        %v1063 = vrot.slane %v1062, 4
        %v1064 = vsel %vm376, %v1062, %v1063
        %1066 = vst [vmem:[#allocation3 + $0x38] sm:$0x7] %v1064
        %v1067 = vld [vmem:[#allocation2] sm:$0x77]
        %v1069 = vrot.slane %v1067, 5
        %v1070 = vrot.slane %v1069, 4
        %1071 = vrot.lane.b32.xlu0 %v1069, 121
        %v1072 = vpop.permute.xlu0 %1071
        %1073 = vrot.lane.b32.xlu0 %v1070, 121
        %v1074 = vpop.permute.xlu0 %1073
        %v1075 = vrot.slane %v1072, 4
        %v1076 = vrot.slane %v1074, 4
        %v1077 = vsel %vm460, %v1072, %v1075
        %v1078 = vsel %vm460, %v1074, %v1076
        %1081 = vst [vmem:[#allocation3 + $0x38] sm:$0x8] %v1077
        %1082 = vst [vmem:[#allocation3 + $0x48] sm:$0x3] %v1078
        %v1083 = vld [vmem:[#allocation2] sm:$0x88]
        %v1084 = vld [vmem:[#allocation2 + $0x8] sm:$0x33]
        %v1087 = vrot.slane %v1083, 5
        %v1088 = vrot.slane %v1087, 4
        %v1089 = vrot.slane %v1084, 5
        %v1090 = vsel %vm409, %v1088, %v1089
        %v1091 = vrot.slane %v1089, 4
        %1092 = vrot.lane.b32.xlu0 %v1090, 121
        %v1093 = vpop.permute.xlu0 %1092
        %1094 = vrot.lane.b32.xlu0 %v1091, 121
        %v1095 = vpop.permute.xlu0 %1094
        %v1096 = vrot.slane %v1093, 4
        %v1097 = vrot.slane %v1095, 4
        %v1098 = vsel %vm460, %v1093, %v1096
        %v1099 = vsel %vm460, %v1095, %v1097
        %1102 = vst [vmem:[#allocation3 + $0x48] sm:$0xc] %v1098
        %1103 = vst [vmem:[#allocation3 + $0x58] sm:$0x1] %v1099
        %v1104 = vld [vmem:[#allocation2] sm:$0x77]
        %v1106 = vrot.slane %v1104, 7
        %1107 = vrot.lane.b32.xlu0 %v1106, 120
        %v1108 = vpop.permute.xlu0 %1107
        %v1109 = vrot.slane %v1108, 4
        %v1110 = vsel %vm486, %v1108, %v1109
        %1112 = vst [vmem:[#allocation3 + $0x58] sm:$0xe] %v1110
        %v1113 = vld [vmem:[#allocation2] sm:$0x88]
        %v1114 = vld [vmem:[#allocation2 + $0x8] sm:$0x33]
        %v1117 = vrot.slane %v1113, 7
        %v1118 = vrot.slane %v1117, 4
        %v1119 = vrot.slane %v1114, 7
        %v1120 = vsel %vm386, %v1118, %v1119
        %1121 = vrot.lane.b32.xlu0 %v1120, 120
        %v1122 = vpop.permute.xlu0 %1121
        %v1123 = vrot.slane %v1122, 4
        %v1124 = vsel %vm486, %v1122, %v1123
        %1126 = vst [vmem:[#allocation3 + $0x68] sm:$0x7] %v1124
        %v1127 = vld [vmem:[#allocation2] sm:$0x77]
        %v1129 = vrot.slane %v1127, 5
        %v1130 = vrot.slane %v1129, 4
        %1131 = vrot.lane.b32.xlu0 %v1129, 119
        %v1132 = vpop.permute.xlu0 %1131
        %1133 = vrot.lane.b32.xlu0 %v1130, 119
        %v1134 = vpop.permute.xlu0 %1133
        %v1135 = vrot.slane %v1132, 4
        %v1136 = vrot.slane %v1134, 4
        %v1137 = vsel %vm516, %v1132, %v1135
        %v1138 = vsel %vm516, %v1134, %v1136
        %1141 = vst [vmem:[#allocation3 + $0x68] sm:$0x8] %v1137
        %1142 = vst [vmem:[#allocation3 + $0x78] sm:$0x3] %v1138
        %v1143 = vld [vmem:[#allocation2 + $0x8] sm:$0xcc]
        %v1144 = vld [vmem:[#allocation2 + $0x10] sm:$0x11]
        %1147 = vrot.lane.b32.xlu0 %v1143, 121
        %v1148 = vpop.permute.xlu0 %1147
        %1149 = vrot.lane.b32.xlu0 %v1144, 121
        %v1150 = vpop.permute.xlu0 %1149
        %v1151 = vrot.slane %v1148, 4
        %v1152 = vrot.slane %v1150, 4
        %v1153 = vsel %vm460, %v1148, %v1151
        %v1154 = vsel %vm460, %v1150, %v1152
        %1157 = vst [vmem:[#allocation3 + $0x78] sm:$0xc] %v1153
        %1158 = vst [vmem:[#allocation3 + $0x88] sm:$0x1] %v1154
        %v1159 = vld [vmem:[#allocation2 + $0x10] sm:$0xee]
        %1161 = vrot.lane.b32.xlu0 %v1159, 121
        %v1162 = vpop.permute.xlu0 %1161
        %v1163 = vrot.slane %v1162, 4
        %v1164 = vsel %vm460, %v1162, %v1163
        %1166 = vst [vmem:[#allocation3 + $0x88] sm:$0xe] %v1164
        %v1167 = vld [vmem:[#allocation2 + $0x8] sm:$0xcc]
        %v1168 = vld [vmem:[#allocation2 + $0x10] sm:$0x11]
        %v1171 = vrot.slane %v1167, 6
        %v1172 = vrot.slane %v1171, 4
        %v1173 = vrot.slane %v1168, 6
        %v1174 = vsel %vm360, %v1172, %v1173
        %1175 = vrot.lane.b32.xlu0 %v1174, 120
        %v1176 = vpop.permute.xlu0 %1175
        %v1177 = vrot.slane %v1176, 4
        %v1178 = vsel %vm486, %v1176, %v1177
        %1180 = vst [vmem:[#allocation3 + $0x98] sm:$0x7] %v1178
        %v1181 = vld [vmem:[#allocation2 + $0x10] sm:$0xee]
        %v1183 = vrot.slane %v1181, 6
        %v1184 = vrot.slane %v1183, 4
        %1185 = vrot.lane.b32.xlu0 %v1183, 120
        %v1186 = vpop.permute.xlu0 %1185
        %1187 = vrot.lane.b32.xlu0 %v1184, 120
        %v1188 = vpop.permute.xlu0 %1187
        %v1189 = vrot.slane %v1186, 4
        %v1190 = vrot.slane %v1188, 4
        %v1191 = vsel %vm486, %v1186, %v1189
        %v1192 = vsel %vm486, %v1188, %v1190
        %1195 = vst [vmem:[#allocation3 + $0x98] sm:$0x8] %v1191
        %1196 = vst [vmem:[#allocation3 + $0xa8] sm:$0x3] %v1192
        %v1197 = vld [vmem:[#allocation2 + $0x8] sm:$0xcc]
        %v1198 = vld [vmem:[#allocation2 + $0x10] sm:$0x11]
        %1201 = vrot.lane.b32.xlu0 %v1197, 119
        %v1202 = vpop.permute.xlu0 %1201
        %1203 = vrot.lane.b32.xlu0 %v1198, 119
        %v1204 = vpop.permute.xlu0 %1203
        %v1205 = vrot.slane %v1202, 4
        %v1206 = vrot.slane %v1204, 4
        %v1207 = vsel %vm516, %v1202, %v1205
        %v1208 = vsel %vm516, %v1204, %v1206
        %1211 = vst [vmem:[#allocation3 + $0xa8] sm:$0xc] %v1207
        %1212 = vst [vmem:[#allocation3 + $0xb8] sm:$0x1] %v1208
        %v1213 = vld [vmem:[#allocation2] sm:$0x77]
        %v1215 = vrot.slane %v1213, 7
        %1216 = vrot.lane.b32.xlu0 %v1215, 114
        %v1217 = vpop.permute.xlu0 %1216
        %v1218 = vrot.slane %v1217, 4
        %v1219 = vsel %vm602, %v1217, %v1218
        %1221 = vst [vmem:[#allocation3 + $0xb8] sm:$0xe] %v1219
        %v1222 = vld [vmem:[#allocation2] sm:$0x88]
        %v1223 = vld [vmem:[#allocation2 + $0x8] sm:$0x33]
        %v1226 = vrot.slane %v1222, 7
        %v1227 = vrot.slane %v1226, 4
        %v1228 = vrot.slane %v1223, 7
        %v1229 = vsel %vm386, %v1227, %v1228
        %1230 = vrot.lane.b32.xlu0 %v1229, 114
        %v1231 = vpop.permute.xlu0 %1230
        %v1232 = vrot.slane %v1231, 4
        %v1233 = vsel %vm602, %v1231, %v1232
        %1235 = vst [vmem:[#allocation3 + $0xc8] sm:$0x7] %v1233
        %v1236 = vld [vmem:[#allocation2] sm:$0x77]
        %v1238 = vrot.slane %v1236, 5
        %v1239 = vrot.slane %v1238, 4
        %1240 = vrot.lane.b32.xlu0 %v1238, 113
        %v1241 = vpop.permute.xlu0 %1240
        %1242 = vrot.lane.b32.xlu0 %v1239, 113
        %v1243 = vpop.permute.xlu0 %1242
        %v1244 = vrot.slane %v1241, 4
        %v1245 = vrot.slane %v1243, 4
        %v1246 = vsel %vm632, %v1241, %v1244
        %v1247 = vsel %vm632, %v1243, %v1245
        %1250 = vst [vmem:[#allocation3 + $0xc8] sm:$0x8] %v1246
        %1251 = vst [vmem:[#allocation3 + $0xd8] sm:$0x3] %v1247
        %v1252 = vld [vmem:[#allocation2] sm:$0x88]
        %v1253 = vld [vmem:[#allocation2 + $0x8] sm:$0x33]
        %v1256 = vrot.slane %v1252, 5
        %v1257 = vrot.slane %v1256, 4
        %v1258 = vrot.slane %v1253, 5
        %v1259 = vsel %vm409, %v1257, %v1258
        %v1260 = vrot.slane %v1258, 4
        %1261 = vrot.lane.b32.xlu0 %v1259, 113
        %v1262 = vpop.permute.xlu0 %1261
        %1263 = vrot.lane.b32.xlu0 %v1260, 113
        %v1264 = vpop.permute.xlu0 %1263
        %v1265 = vrot.slane %v1262, 4
        %v1266 = vrot.slane %v1264, 4
        %v1267 = vsel %vm632, %v1262, %v1265
        %v1268 = vsel %vm632, %v1264, %v1266
        %1271 = vst [vmem:[#allocation3 + $0xd8] sm:$0xc] %v1267
        %1272 = vst [vmem:[#allocation3 + $0xe8] sm:$0x1] %v1268
        %v1273 = vld [vmem:[#allocation2] sm:$0x77]
        %v1275 = vrot.slane %v1273, 7
        %1276 = vrot.lane.b32.xlu0 %v1275, 112
        %v1277 = vpop.permute.xlu0 %1276
        %v1278 = vrot.slane %v1277, 4
        %v1279 = vsel %vm658, %v1277, %v1278
        %1281 = vst [vmem:[#allocation3 + $0xe8] sm:$0xe] %v1279
        %v1282 = vld [vmem:[#allocation2 + $0x8] sm:$0xcc]
        %v1283 = vld [vmem:[#allocation2 + $0x10] sm:$0x11]
        %v1286 = vrot.slane %v1282, 6
        %v1287 = vrot.slane %v1286, 4
        %v1288 = vrot.slane %v1283, 6
        %v1289 = vsel %vm360, %v1287, %v1288
        %1290 = vrot.lane.b32.xlu0 %v1289, 114
        %v1291 = vpop.permute.xlu0 %1290
        %v1292 = vrot.slane %v1291, 4
        %v1293 = vsel %vm602, %v1291, %v1292
        %1295 = vst [vmem:[#allocation3 + $0xf8] sm:$0x7] %v1293
        %v1296 = vld [vmem:[#allocation2 + $0x10] sm:$0xee]
        %v1298 = vrot.slane %v1296, 6
        %v1299 = vrot.slane %v1298, 4
        %1300 = vrot.lane.b32.xlu0 %v1298, 114
        %v1301 = vpop.permute.xlu0 %1300
        %1302 = vrot.lane.b32.xlu0 %v1299, 114
        %v1303 = vpop.permute.xlu0 %1302
        %v1304 = vrot.slane %v1301, 4
        %v1305 = vrot.slane %v1303, 4
        %v1306 = vsel %vm602, %v1301, %v1304
        %v1307 = vsel %vm602, %v1303, %v1305
        %1310 = vst [vmem:[#allocation3 + $0xf8] sm:$0x8] %v1306
        %1311 = vst [vmem:[#allocation3 + $0x108] sm:$0x3] %v1307
        %v1312 = vld [vmem:[#allocation2 + $0x8] sm:$0xcc]
        %v1313 = vld [vmem:[#allocation2 + $0x10] sm:$0x11]
        %1316 = vrot.lane.b32.xlu0 %v1312, 113
        %v1317 = vpop.permute.xlu0 %1316
        %1318 = vrot.lane.b32.xlu0 %v1313, 113
        %v1319 = vpop.permute.xlu0 %1318
        %v1320 = vrot.slane %v1317, 4
        %v1321 = vrot.slane %v1319, 4
        %v1322 = vsel %vm632, %v1317, %v1320
        %v1323 = vsel %vm632, %v1319, %v1321
        %1326 = vst [vmem:[#allocation3 + $0x108] sm:$0xc] %v1322
        %1327 = vst [vmem:[#allocation3 + $0x118] sm:$0x1] %v1323
        %v1328 = vld [vmem:[#allocation2 + $0x10] sm:$0xee]
        %1330 = vrot.lane.b32.xlu0 %v1328, 113
        %v1331 = vpop.permute.xlu0 %1330
        %v1332 = vrot.slane %v1331, 4
        %v1333 = vsel %vm632, %v1331, %v1332
        %1335 = vst [vmem:[#allocation3 + $0x118] sm:$0xe] %v1333
        %v1336 = vld [vmem:[#allocation2 + $0x8] sm:$0xcc]
        %v1337 = vld [vmem:[#allocation2 + $0x10] sm:$0x11]
        %v1340 = vrot.slane %v1336, 6
        %v1341 = vrot.slane %v1340, 4
        %v1342 = vrot.slane %v1337, 6
        %v1343 = vsel %vm360, %v1341, %v1342
        %1344 = vrot.lane.b32.xlu0 %v1343, 112
        %v1345 = vpop.permute.xlu0 %1344
        %v1346 = vrot.slane %v1345, 4
        %v1347 = vsel %vm658, %v1345, %v1346
        %1349 = vst [vmem:[#allocation3 + $0x128] sm:$0x7] %v1347
        %v1350 = vld [vmem:[#allocation2 + $0x10] sm:$0xe]
        %v1352 = vrot.slane %v1350, 5
        %v1353 = vrot.slane %v1352, 4
        %1355 = vst [vmem:[#allocation3 + $0xc] sm:$0x7] %v1353
        %v1356 = vld [vmem:[#allocation2 + $0x8] sm:$0xcc]
        %v1357 = vld [vmem:[#allocation2 + $0x10] sm:$0x11]
        %v1360 = vrot.slane %v1356, 7
        %v1361 = vrot.slane %v1360, 4
        %v1362 = vrot.slane %v1357, 7
        %v1363 = vsel %vm386, %v1361, %v1362
        %1364 = vrot.lane.b32.xlu0 %v1360, 127
        %v1365 = vpop.permute.xlu0 %1364
        %1366 = vrot.lane.b32.xlu0 %v1363, 127
        %v1367 = vpop.permute.xlu0 %1366
        %v1368 = vrot.slane %v1365, 4
        %v1369 = vrot.slane %v1367, 4
        %v1370 = vsel %vm347, %v1365, %v1368
        %v1371 = vsel %vm347, %v1367, %v1369
        %1374 = vst [vmem:[#allocation3 + $0xc] sm:$0x8] %v1370
        %1375 = vst [vmem:[#allocation3 + $0x1c] sm:$0x3] %v1371
        %v1376 = vld [vmem:[#allocation2 + $0x10] sm:$0xee]
        %v1378 = vrot.slane %v1376, 7
        %v1379 = vrot.slane %v1378, 4
        %1380 = vrot.lane.b32.xlu0 %v1378, 127
        %v1381 = vpop.permute.xlu0 %1380
        %1382 = vrot.lane.b32.xlu0 %v1379, 127
        %v1383 = vpop.permute.xlu0 %1382
        %v1384 = vrot.slane %v1381, 4
        %v1385 = vrot.slane %v1383, 4
        %v1386 = vsel %vm347, %v1381, %v1384
        %v1387 = vsel %vm347, %v1383, %v1385
        %1390 = vst [vmem:[#allocation3 + $0x1c] sm:$0xc] %v1386
        %1391 = vst [vmem:[#allocation3 + $0x2c] sm:$0x1] %v1387
        %v1392 = vld [vmem:[#allocation2 + $0x8] sm:$0xcc]
        %v1393 = vld [vmem:[#allocation2 + $0x10] sm:$0x11]
        %v1396 = vrot.slane %v1392, 5
        %v1397 = vrot.slane %v1396, 4
        %v1398 = vrot.slane %v1393, 5
        %v1399 = vsel %vm409, %v1397, %v1398
        %1400 = vrot.lane.b32.xlu0 %v1399, 126
        %v1401 = vpop.permute.xlu0 %1400
        %v1402 = vrot.slane %v1401, 4
        %v1403 = vsel %vm376, %v1401, %v1402
        %1405 = vst [vmem:[#allocation3 + $0x2c] sm:$0xe] %v1403
        %v1406 = vld [vmem:[#allocation2 + $0x10] sm:$0xee]
        %v1408 = vrot.slane %v1406, 5
        %v1409 = vrot.slane %v1408, 4
        %1410 = vrot.lane.b32.xlu0 %v1409, 126
        %v1411 = vpop.permute.xlu0 %1410
        %v1412 = vrot.slane %v1411, 4
        %v1413 = vsel %vm376, %v1411, %v1412
        %1415 = vst [vmem:[#allocation3 + $0x3c] sm:$0x7] %v1413
        %v1416 = vld [vmem:[#allocation2] sm:$0x88]
        %v1417 = vld [vmem:[#allocation2 + $0x8] sm:$0x33]
        %1420 = vrot.lane.b32.xlu0 %v1416, 121
        %v1421 = vpop.permute.xlu0 %1420
        %1422 = vrot.lane.b32.xlu0 %v1417, 121
        %v1423 = vpop.permute.xlu0 %1422
        %v1424 = vrot.slane %v1421, 4
        %v1425 = vrot.slane %v1423, 4
        %v1426 = vsel %vm460, %v1421, %v1424
        %v1427 = vsel %vm460, %v1423, %v1425
        %1430 = vst [vmem:[#allocation3 + $0x3c] sm:$0x8] %v1426
        %1431 = vst [vmem:[#allocation3 + $0x4c] sm:$0x3] %v1427
        %v1432 = vld [vmem:[#allocation2] sm:$0x77]
        %v1434 = vrot.slane %v1432, 6
        %v1435 = vrot.slane %v1434, 4
        %1436 = vrot.lane.b32.xlu0 %v1434, 120
        %v1437 = vpop.permute.xlu0 %1436
        %1438 = vrot.lane.b32.xlu0 %v1435, 120
        %v1439 = vpop.permute.xlu0 %1438
        %v1440 = vrot.slane %v1437, 4
        %v1441 = vrot.slane %v1439, 4
        %v1442 = vsel %vm486, %v1437, %v1440
        %v1443 = vsel %vm486, %v1439, %v1441
        %1446 = vst [vmem:[#allocation3 + $0x4c] sm:$0xc] %v1442
        %1447 = vst [vmem:[#allocation3 + $0x5c] sm:$0x1] %v1443
        %v1448 = vld [vmem:[#allocation2] sm:$0x88]
        %v1449 = vld [vmem:[#allocation2 + $0x8] sm:$0x33]
        %v1452 = vrot.slane %v1448, 6
        %v1453 = vrot.slane %v1452, 4
        %v1454 = vrot.slane %v1449, 6
        %v1455 = vsel %vm360, %v1453, %v1454
        %1456 = vrot.lane.b32.xlu0 %v1455, 120
        %v1457 = vpop.permute.xlu0 %1456
        %v1458 = vrot.slane %v1457, 4
        %v1459 = vsel %vm486, %v1457, %v1458
        %1461 = vst [vmem:[#allocation3 + $0x5c] sm:$0xe] %v1459
        %v1462 = vld [vmem:[#allocation2] sm:$0x77]
        %1464 = vrot.lane.b32.xlu0 %v1462, 119
        %v1465 = vpop.permute.xlu0 %1464
        %v1466 = vrot.slane %v1465, 4
        %v1467 = vsel %vm516, %v1465, %v1466
        %1469 = vst [vmem:[#allocation3 + $0x6c] sm:$0x7] %v1467
        %v1470 = vld [vmem:[#allocation2] sm:$0x88]
        %v1471 = vld [vmem:[#allocation2 + $0x8] sm:$0x33]
        %1474 = vrot.lane.b32.xlu0 %v1470, 119
        %v1475 = vpop.permute.xlu0 %1474
        %1476 = vrot.lane.b32.xlu0 %v1471, 119
        %v1477 = vpop.permute.xlu0 %1476
        %v1478 = vrot.slane %v1475, 4
        %v1479 = vrot.slane %v1477, 4
        %v1480 = vsel %vm516, %v1475, %v1478
        %v1481 = vsel %vm516, %v1477, %v1479
        %1484 = vst [vmem:[#allocation3 + $0x6c] sm:$0x8] %v1480
        %1485 = vst [vmem:[#allocation3 + $0x7c] sm:$0x3] %v1481
        %v1486 = vld [vmem:[#allocation2 + $0x10] sm:$0xee]
        %v1488 = vrot.slane %v1486, 7
        %v1489 = vrot.slane %v1488, 4
        %1490 = vrot.lane.b32.xlu0 %v1488, 121
        %v1491 = vpop.permute.xlu0 %1490
        %1492 = vrot.lane.b32.xlu0 %v1489, 121
        %v1493 = vpop.permute.xlu0 %1492
        %v1494 = vrot.slane %v1491, 4
        %v1495 = vrot.slane %v1493, 4
        %v1496 = vsel %vm460, %v1491, %v1494
        %v1497 = vsel %vm460, %v1493, %v1495
        %1500 = vst [vmem:[#allocation3 + $0x7c] sm:$0xc] %v1496
        %1501 = vst [vmem:[#allocation3 + $0x8c] sm:$0x1] %v1497
        %v1502 = vld [vmem:[#allocation2 + $0x8] sm:$0xcc]
        %v1503 = vld [vmem:[#allocation2 + $0x10] sm:$0x11]
        %v1506 = vrot.slane %v1502, 5
        %v1507 = vrot.slane %v1506, 4
        %v1508 = vrot.slane %v1503, 5
        %v1509 = vsel %vm409, %v1507, %v1508
        %1510 = vrot.lane.b32.xlu0 %v1509, 120
        %v1511 = vpop.permute.xlu0 %1510
        %v1512 = vrot.slane %v1511, 4
        %v1513 = vsel %vm486, %v1511, %v1512
        %1515 = vst [vmem:[#allocation3 + $0x8c] sm:$0xe] %v1513
        %v1516 = vld [vmem:[#allocation2 + $0x10] sm:$0xee]
        %v1518 = vrot.slane %v1516, 5
        %v1519 = vrot.slane %v1518, 4
        %1520 = vrot.lane.b32.xlu0 %v1519, 120
        %v1521 = vpop.permute.xlu0 %1520
        %v1522 = vrot.slane %v1521, 4
        %v1523 = vsel %vm486, %v1521, %v1522
        %1525 = vst [vmem:[#allocation3 + $0x9c] sm:$0x7] %v1523
        %v1526 = vld [vmem:[#allocation2 + $0x8] sm:$0xcc]
        %v1527 = vld [vmem:[#allocation2 + $0x10] sm:$0x11]
        %v1530 = vrot.slane %v1526, 7
        %v1531 = vrot.slane %v1530, 4
        %v1532 = vrot.slane %v1527, 7
        %v1533 = vsel %vm386, %v1531, %v1532
        %1534 = vrot.lane.b32.xlu0 %v1530, 119
        %v1535 = vpop.permute.xlu0 %1534
        %1536 = vrot.lane.b32.xlu0 %v1533, 119
        %v1537 = vpop.permute.xlu0 %1536
        %v1538 = vrot.slane %v1535, 4
        %v1539 = vrot.slane %v1537, 4
        %v1540 = vsel %vm516, %v1535, %v1538
        %v1541 = vsel %vm516, %v1537, %v1539
        %1544 = vst [vmem:[#allocation3 + $0x9c] sm:$0x8] %v1540
        %1545 = vst [vmem:[#allocation3 + $0xac] sm:$0x3] %v1541
        %v1546 = vld [vmem:[#allocation2 + $0x10] sm:$0xee]
        %v1548 = vrot.slane %v1546, 7
        %v1549 = vrot.slane %v1548, 4
        %1550 = vrot.lane.b32.xlu0 %v1548, 119
        %v1551 = vpop.permute.xlu0 %1550
        %1552 = vrot.lane.b32.xlu0 %v1549, 119
        %v1553 = vpop.permute.xlu0 %1552
        %v1554 = vrot.slane %v1551, 4
        %v1555 = vrot.slane %v1553, 4
        %v1556 = vsel %vm516, %v1551, %v1554
        %v1557 = vsel %vm516, %v1553, %v1555
        %1560 = vst [vmem:[#allocation3 + $0xac] sm:$0xc] %v1556
        %1561 = vst [vmem:[#allocation3 + $0xbc] sm:$0x1] %v1557
        %v1562 = vld [vmem:[#allocation2] sm:$0x88]
        %v1563 = vld [vmem:[#allocation2 + $0x8] sm:$0x33]
        %v1566 = vrot.slane %v1562, 6
        %v1567 = vrot.slane %v1566, 4
        %v1568 = vrot.slane %v1563, 6
        %v1569 = vsel %vm360, %v1567, %v1568
        %1570 = vrot.lane.b32.xlu0 %v1569, 114
        %v1571 = vpop.permute.xlu0 %1570
        %v1572 = vrot.slane %v1571, 4
        %v1573 = vsel %vm602, %v1571, %v1572
        %1575 = vst [vmem:[#allocation3 + $0xbc] sm:$0xe] %v1573
        %v1576 = vld [vmem:[#allocation2] sm:$0x77]
        %1578 = vrot.lane.b32.xlu0 %v1576, 113
        %v1579 = vpop.permute.xlu0 %1578
        %v1580 = vrot.slane %v1579, 4
        %v1581 = vsel %vm632, %v1579, %v1580
        %1583 = vst [vmem:[#allocation3 + $0xcc] sm:$0x7] %v1581
        %v1584 = vld [vmem:[#allocation2] sm:$0x88]
        %v1585 = vld [vmem:[#allocation2 + $0x8] sm:$0x33]
        %1588 = vrot.lane.b32.xlu0 %v1584, 113
        %v1589 = vpop.permute.xlu0 %1588
        %1590 = vrot.lane.b32.xlu0 %v1585, 113
        %v1591 = vpop.permute.xlu0 %1590
        %v1592 = vrot.slane %v1589, 4
        %v1593 = vrot.slane %v1591, 4
        %v1594 = vsel %vm632, %v1589, %v1592
        %v1595 = vsel %vm632, %v1591, %v1593
        %1598 = vst [vmem:[#allocation3 + $0xcc] sm:$0x8] %v1594
        %1599 = vst [vmem:[#allocation3 + $0xdc] sm:$0x3] %v1595
        %v1600 = vld [vmem:[#allocation2] sm:$0x77]
        %v1602 = vrot.slane %v1600, 6
        %v1603 = vrot.slane %v1602, 4
        %1604 = vrot.lane.b32.xlu0 %v1602, 112
        %v1605 = vpop.permute.xlu0 %1604
        %1606 = vrot.lane.b32.xlu0 %v1603, 112
        %v1607 = vpop.permute.xlu0 %1606
        %v1608 = vrot.slane %v1605, 4
        %v1609 = vrot.slane %v1607, 4
        %v1610 = vsel %vm658, %v1605, %v1608
        %v1611 = vsel %vm658, %v1607, %v1609
        %1614 = vst [vmem:[#allocation3 + $0xdc] sm:$0xc] %v1610
        %1615 = vst [vmem:[#allocation3 + $0xec] sm:$0x1] %v1611
        %v1616 = vld [vmem:[#allocation2] sm:$0x88]
        %v1617 = vld [vmem:[#allocation2 + $0x8] sm:$0x33]
        %v1620 = vrot.slane %v1616, 6
        %v1621 = vrot.slane %v1620, 4
        %v1622 = vrot.slane %v1617, 6
        %v1623 = vsel %vm360, %v1621, %v1622
        %1624 = vrot.lane.b32.xlu0 %v1623, 112
        %v1625 = vpop.permute.xlu0 %1624
        %v1626 = vrot.slane %v1625, 4
        %v1627 = vsel %vm658, %v1625, %v1626
        %1629 = vst [vmem:[#allocation3 + $0xec] sm:$0xe] %v1627
        %v1630 = vld [vmem:[#allocation2 + $0x10] sm:$0xee]
        %v1632 = vrot.slane %v1630, 5
        %v1633 = vrot.slane %v1632, 4
        %1634 = vrot.lane.b32.xlu0 %v1633, 114
        %v1635 = vpop.permute.xlu0 %1634
        %v1636 = vrot.slane %v1635, 4
        %v1637 = vsel %vm602, %v1635, %v1636
        %1639 = vst [vmem:[#allocation3 + $0xfc] sm:$0x7] %v1637
        %v1640 = vld [vmem:[#allocation2 + $0x8] sm:$0xcc]
        %v1641 = vld [vmem:[#allocation2 + $0x10] sm:$0x11]
        %v1644 = vrot.slane %v1640, 7
        %v1645 = vrot.slane %v1644, 4
        %v1646 = vrot.slane %v1641, 7
        %v1647 = vsel %vm386, %v1645, %v1646
        %1648 = vrot.lane.b32.xlu0 %v1644, 113
        %v1649 = vpop.permute.xlu0 %1648
        %1650 = vrot.lane.b32.xlu0 %v1647, 113
        %v1651 = vpop.permute.xlu0 %1650
        %v1652 = vrot.slane %v1649, 4
        %v1653 = vrot.slane %v1651, 4
        %v1654 = vsel %vm632, %v1649, %v1652
        %v1655 = vsel %vm632, %v1651, %v1653
        %1658 = vst [vmem:[#allocation3 + $0xfc] sm:$0x8] %v1654
        %1659 = vst [vmem:[#allocation3 + $0x10c] sm:$0x3] %v1655
        %v1660 = vld [vmem:[#allocation2 + $0x10] sm:$0xee]
        %v1662 = vrot.slane %v1660, 7
        %v1663 = vrot.slane %v1662, 4
        %1664 = vrot.lane.b32.xlu0 %v1662, 113
        %v1665 = vpop.permute.xlu0 %1664
        %1666 = vrot.lane.b32.xlu0 %v1663, 113
        %v1667 = vpop.permute.xlu0 %1666
        %v1668 = vrot.slane %v1665, 4
        %v1669 = vrot.slane %v1667, 4
        %v1670 = vsel %vm632, %v1665, %v1668
        %v1671 = vsel %vm632, %v1667, %v1669
        %1674 = vst [vmem:[#allocation3 + $0x10c] sm:$0xc] %v1670
        %1675 = vst [vmem:[#allocation3 + $0x11c] sm:$0x1] %v1671
        %v1676 = vld [vmem:[#allocation2 + $0x8] sm:$0xcc]
        %v1677 = vld [vmem:[#allocation2 + $0x10] sm:$0x11]
        %v1680 = vrot.slane %v1676, 5
        %v1681 = vrot.slane %v1680, 4
        %v1682 = vrot.slane %v1677, 5
        %v1683 = vsel %vm409, %v1681, %v1682
        %1684 = vrot.lane.b32.xlu0 %v1683, 112
        %v1685 = vpop.permute.xlu0 %1684
        %v1686 = vrot.slane %v1685, 4
        %v1687 = vsel %vm658, %v1685, %v1686
        %1689 = vst [vmem:[#allocation3 + $0x11c] sm:$0xe] %v1687
        %v1690 = vld [vmem:[#allocation2 + $0x10] sm:$0xee]
        %v1692 = vrot.slane %v1690, 5
        %v1693 = vrot.slane %v1692, 4
        %1694 = vrot.lane.b32.xlu0 %v1693, 112
        %v1695 = vpop.permute.xlu0 %1694
        %v1696 = vrot.slane %v1695, 4
        %v1697 = vsel %vm658, %v1695, %v1696
        %1699 = vst [vmem:[#allocation3 + $0x12c] sm:$0x7] %v1697
        %v1700 = vld [vmem:[%s2] sm:$0xff]
        %v1701 = vld [vmem:[%s2 + $0x8] sm:$0xff]
        %v1702 = vld [vmem:[#allocation3] sm:$0xff]
        %v1703 = vld [vmem:[#allocation3 + $0x8] sm:$0xff]
        %v1704 = vld [vmem:[#allocation3 + $0x10] sm:$0xff]
        %v1705 = vld [vmem:[#allocation3 + $0x18] sm:$0xff]
        %v1706 = vld [vmem:[#allocation3 + $0x20] sm:$0xff]
        %v1707 = vld [vmem:[#allocation3 + $0x28] sm:$0xff]
        %v1708 = vld [vmem:[#allocation3 + $0x30] sm:$0xff]
        %v1709 = vld [vmem:[#allocation3 + $0x38] sm:$0xff]
        %v1710 = vld [vmem:[#allocation3 + $0x40] sm:$0xff]
        %v1711 = vld [vmem:[#allocation3 + $0x48] sm:$0xff]
        %v1712 = vld [vmem:[#allocation3 + $0x50] sm:$0xff]
        %v1713 = vld [vmem:[#allocation3 + $0x58] sm:$0xff]
        %v1714 = vld [vmem:[#allocation3 + $0x60] sm:$0xff]
        %v1715 = vld [vmem:[#allocation3 + $0x68] sm:$0xff]
        %v1716 = vld [vmem:[#allocation3 + $0x70] sm:$0xff]
        %v1717 = vld [vmem:[#allocation3 + $0x78] sm:$0xff]
        %v1718 = vld [vmem:[#allocation3 + $0x80] sm:$0xff]
        %v1719 = vld [vmem:[#allocation3 + $0x88] sm:$0xff]
        %v1720 = vld [vmem:[#allocation3 + $0x90] sm:$0xff]
        %v1721 = vld [vmem:[#allocation3 + $0x98] sm:$0xff]
        %v1722 = vld [vmem:[#allocation3 + $0xa0] sm:$0xff]
        %v1723 = vld [vmem:[#allocation3 + $0xa8] sm:$0xff]
        %v1724 = vld [vmem:[#allocation3 + $0xb0] sm:$0xff]
        %v1725 = vld [vmem:[#allocation3 + $0xb8] sm:$0xff]
        %v1726 = vld [vmem:[#allocation3 + $0xc0] sm:$0xff]
        %v1727 = vld [vmem:[#allocation3 + $0xc8] sm:$0xff]
        %v1728 = vld [vmem:[#allocation3 + $0xd0] sm:$0xff]
        %v1729 = vld [vmem:[#allocation3 + $0xd8] sm:$0xff]
        %v1730 = vld [vmem:[#allocation3 + $0xe0] sm:$0xff]
        %v1731 = vld [vmem:[#allocation3 + $0xe8] sm:$0xff]
        %v1732 = vld [vmem:[#allocation3 + $0xf0] sm:$0xff]
        %v1733 = vld [vmem:[#allocation3 + $0xf8] sm:$0xff]
        %v1734 = vld [vmem:[#allocation3 + $0x100] sm:$0xff]
        %v1735 = vld [vmem:[#allocation3 + $0x108] sm:$0xff]
        %v1736 = vld [vmem:[#allocation3 + $0x110] sm:$0xff]
        %v1737 = vld [vmem:[#allocation3 + $0x118] sm:$0xff]
        %v1738 = vld [vmem:[#allocation3 + $0x120] sm:$0x77]
        %v1739 = vld [vmem:[#allocation3 + $0x128] sm:$0x77]
        %v1742 = vunpack.c.l.b16 %v1700
        %v1743 = vunpack.c.h.b16 %v1700
        %v1744 = vunpack.c.l.b16 %v1701
        %v1745 = vunpack.c.h.b16 %v1701
        %v1746 = vpack.c.b16 %v1744, %v1742
        %v1747 = vpack.c.b16 %v1745, %v1743
        %v1787 = vunpack.c.l.b16 %v1702
        %v1788 = vunpack.c.h.b16 %v1702
        %v1789 = vunpack.c.l.b16 %v1703
        %v1790 = vunpack.c.h.b16 %v1703
        %v1791 = vunpack.c.l.b16 %v1704
        %v1792 = vunpack.c.h.b16 %v1704
        %v1793 = vunpack.c.l.b16 %v1705
        %v1794 = vunpack.c.h.b16 %v1705
        %v1795 = vunpack.c.l.b16 %v1706
        %v1796 = vunpack.c.h.b16 %v1706
        %v1797 = vunpack.c.l.b16 %v1707
        %v1798 = vunpack.c.h.b16 %v1707
        %v1799 = vunpack.c.l.b16 %v1708
        %v1800 = vunpack.c.h.b16 %v1708
        %v1801 = vunpack.c.l.b16 %v1709
        %v1802 = vunpack.c.h.b16 %v1709
        %v1803 = vunpack.c.l.b16 %v1710
        %v1804 = vunpack.c.h.b16 %v1710
        %v1805 = vunpack.c.l.b16 %v1711
        %v1806 = vunpack.c.h.b16 %v1711
        %v1807 = vunpack.c.l.b16 %v1712
        %v1808 = vunpack.c.h.b16 %v1712
        %v1809 = vunpack.c.l.b16 %v1713
        %v1810 = vunpack.c.h.b16 %v1713
        %v1811 = vunpack.c.l.b16 %v1714
        %v1812 = vunpack.c.h.b16 %v1714
        %v1813 = vunpack.c.l.b16 %v1715
        %v1814 = vunpack.c.h.b16 %v1715
        %v1815 = vunpack.c.l.b16 %v1716
        %v1816 = vunpack.c.h.b16 %v1716
        %v1817 = vunpack.c.l.b16 %v1717
        %v1818 = vunpack.c.h.b16 %v1717
        %v1819 = vunpack.c.l.b16 %v1718
        %v1820 = vunpack.c.h.b16 %v1718
        %v1821 = vunpack.c.l.b16 %v1719
        %v1822 = vunpack.c.h.b16 %v1719
        %v1823 = vunpack.c.l.b16 %v1720
        %v1824 = vunpack.c.h.b16 %v1720
        %v1825 = vunpack.c.l.b16 %v1721
        %v1826 = vunpack.c.h.b16 %v1721
        %v1827 = vunpack.c.l.b16 %v1722
        %v1828 = vunpack.c.h.b16 %v1722
        %v1829 = vunpack.c.l.b16 %v1723
        %v1830 = vunpack.c.h.b16 %v1723
        %v1831 = vunpack.c.l.b16 %v1724
        %v1832 = vunpack.c.h.b16 %v1724
        %v1833 = vunpack.c.l.b16 %v1725
        %v1834 = vunpack.c.h.b16 %v1725
        %v1835 = vunpack.c.l.b16 %v1726
        %v1836 = vunpack.c.h.b16 %v1726
        %v1837 = vunpack.c.l.b16 %v1727
        %v1838 = vunpack.c.h.b16 %v1727
        %v1839 = vunpack.c.l.b16 %v1728
        %v1840 = vunpack.c.h.b16 %v1728
        %v1841 = vunpack.c.l.b16 %v1729
        %v1842 = vunpack.c.h.b16 %v1729
        %v1843 = vunpack.c.l.b16 %v1730
        %v1844 = vunpack.c.h.b16 %v1730
        %v1845 = vunpack.c.l.b16 %v1731
        %v1846 = vunpack.c.h.b16 %v1731
        %v1847 = vunpack.c.l.b16 %v1732
        %v1848 = vunpack.c.h.b16 %v1732
        %v1849 = vunpack.c.l.b16 %v1733
        %v1850 = vunpack.c.h.b16 %v1733
        %v1851 = vunpack.c.l.b16 %v1734
        %v1852 = vunpack.c.h.b16 %v1734
        %v1853 = vunpack.c.l.b16 %v1735
        %v1854 = vunpack.c.h.b16 %v1735
        %v1855 = vunpack.c.l.b16 %v1736
        %v1856 = vunpack.c.h.b16 %v1736
        %v1857 = vunpack.c.l.b16 %v1737
        %v1858 = vunpack.c.h.b16 %v1737
        %v1859 = vunpack.c.l.b16 %v1738
        %v1860 = vunpack.c.h.b16 %v1738
        %v1861 = vunpack.c.l.b16 %v1739
        %v1862 = vunpack.c.h.b16 %v1739
        %v1863 = vpack.c.b16 %v1791, %v1787
        %v1864 = vpack.c.b16 %v1792, %v1788
        %v1865 = vpack.c.b16 %v1793, %v1789
        %v1866 = vpack.c.b16 %v1794, %v1790
        %v1867 = vpack.c.b16 %v1799, %v1795
        %v1868 = vpack.c.b16 %v1800, %v1796
        %v1869 = vpack.c.b16 %v1801, %v1797
        %v1870 = vpack.c.b16 %v1802, %v1798
        %v1871 = vpack.c.b16 %v1807, %v1803
        %v1872 = vpack.c.b16 %v1808, %v1804
        %v1873 = vpack.c.b16 %v1809, %v1805
        %v1874 = vpack.c.b16 %v1810, %v1806
        %v1875 = vpack.c.b16 %v1815, %v1811
        %v1876 = vpack.c.b16 %v1816, %v1812
        %v1877 = vpack.c.b16 %v1817, %v1813
        %v1878 = vpack.c.b16 %v1818, %v1814
        %v1879 = vpack.c.b16 %v1823, %v1819
        %v1880 = vpack.c.b16 %v1824, %v1820
        %v1881 = vpack.c.b16 %v1825, %v1821
        %v1882 = vpack.c.b16 %v1826, %v1822
        %v1883 = vpack.c.b16 %v1831, %v1827
        %v1884 = vpack.c.b16 %v1832, %v1828
        %v1885 = vpack.c.b16 %v1833, %v1829
        %v1886 = vpack.c.b16 %v1834, %v1830
        %v1887 = vpack.c.b16 %v1839, %v1835
        %v1888 = vpack.c.b16 %v1840, %v1836
        %v1889 = vpack.c.b16 %v1841, %v1837
        %v1890 = vpack.c.b16 %v1842, %v1838
        %v1891 = vpack.c.b16 %v1847, %v1843
        %v1892 = vpack.c.b16 %v1848, %v1844
        %v1893 = vpack.c.b16 %v1849, %v1845
        %v1894 = vpack.c.b16 %v1850, %v1846
        %v1895 = vpack.c.b16 %v1855, %v1851
        %v1896 = vpack.c.b16 %v1856, %v1852
        %v1897 = vpack.c.b16 %v1857, %v1853
        %v1898 = vpack.c.b16 %v1858, %v1854
        %v1899 = vpack.c.b16 %v1859, %v1859
        %v1900 = vpack.c.b16 %v1860, %v1860
        %v1901 = vpack.c.b16 %v1861, %v1861
        %v1902 = vpack.c.b16 %v1862, %v1862
        %vm1939 = vcmask 179200
        %v1941 = vsel %vm1939, %v1747, 0
        %vm1943 = vcmask 1042432
        %v1945 = vsel %vm1943, %v1899, 0
        %v1948 = vsel %vm1943, %v1900, 0
        %v1951 = vsel %vm1943, %v1901, 0
        %v1954 = vsel %vm1943, %v1902, 0
        %1956 = vmatprep.subr.bf16.mxu0 %v1892
        %1957 = vmatpush1.bf16.msra.mxu0 %v1891
        %1958 = vmatprep.subr.bf16.mxu0 %v1888
        %1959 = vmatpush1.bf16.msra.mxu0 %v1887
        %1960 = vmatprep.subr.bf16.mxu0 %v1884
        %1961 = vmatpush1.bf16.msra.mxu0 %v1883
        %1962 = vmatprep.subr.bf16.mxu0 %v1880
        %1963 = vmatpush1.bf16.msra.mxu0 %v1879
        %1964 = vmatprep.subr.bf16.mxu0 %v1876
        %1965 = vmatpush1.bf16.msra.mxu0 %v1875
        %1966 = vmatprep.subr.bf16.mxu0 %v1872
        %1967 = vmatpush1.bf16.msra.mxu0 %v1871
        %1968 = vmatprep.subr.bf16.mxu0 %v1868
        %1969 = vmatpush1.bf16.msra.mxu0 %v1867
        %1970 = vmatprep.subr.bf16.mxu0 %v1864
        %1971 = vmatpush1.bf16.msra.mxu0 %v1863
        %1972 = vmatprep.subr.bf16.mxu0 0
        %1973 = vmatpush2.bf16.msra.mxu0 0
        %1974 = vmatprep.subr.bf16.mxu0 0
        %1975 = vmatpush2.bf16.msra.mxu0 0
        %1976 = vmatprep.subr.bf16.mxu0 0
        %1977 = vmatpush2.bf16.msra.mxu0 0
        %1978 = vmatprep.subr.bf16.mxu0 0
        %1979 = vmatpush2.bf16.msra.mxu0 0
        %1980 = vmatprep.subr.bf16.mxu0 0
        %1981 = vmatpush2.bf16.msra.mxu0 0
        %1982 = vmatprep.subr.bf16.mxu0 0
        %1983 = vmatpush2.bf16.msra.mxu0 0
        %1984 = vmatprep.subr.bf16.mxu0 %v1948
        %1985 = vmatpush2.bf16.msra.mxu0 %v1945
        %1986 = vmatprep.subr.bf16.mxu0 %v1896
        %1987 = vmatpush2.bf16.msra.mxu0 %v1895
        %1988 = vmatprep.mubr.bf16.mxu0 %v1941
        %1989 = vmatmul.mubr.bf16.gmra.mxu0 %v1746
        %v1990 = vpop.f32.mrf.mxu0
        %v1991 = vadd.f32 0.0, %v1990
        %v1992 = vpop.f32.mrf.mxu0
        %v1993 = vadd.f32 0.0, %v1992
        %v1994 = vpop.f32.mrf.mxu0
        %v1995 = vadd.f32 0.0, %v1994
        %v1996 = vpop.f32.mrf.mxu0
        %v1997 = vadd.f32 0.0, %v1996
        %1998 = vdwg.mxu0
        %1999 = vmatprep.subr.bf16.mxu0 %v1894
        %2000 = vmatpush1.bf16.msra.mxu0 %v1893
        %2001 = vmatprep.subr.bf16.mxu0 %v1890
        %2002 = vmatpush1.bf16.msra.mxu0 %v1889
        %2003 = vmatprep.subr.bf16.mxu0 %v1886
        %2004 = vmatpush1.bf16.msra.mxu0 %v1885
        %2005 = vmatprep.subr.bf16.mxu0 %v1882
        %2006 = vmatpush1.bf16.msra.mxu0 %v1881
        %2007 = vmatprep.subr.bf16.mxu0 %v1878
        %2008 = vmatpush1.bf16.msra.mxu0 %v1877
        %2009 = vmatprep.subr.bf16.mxu0 %v1874
        %2010 = vmatpush1.bf16.msra.mxu0 %v1873
        %2011 = vmatprep.subr.bf16.mxu0 %v1870
        %2012 = vmatpush1.bf16.msra.mxu0 %v1869
        %2013 = vmatprep.subr.bf16.mxu0 %v1866
        %2014 = vmatpush1.bf16.msra.mxu0 %v1865
        %2015 = vmatprep.subr.bf16.mxu0 0
        %2016 = vmatpush2.bf16.msra.mxu0 0
        %2017 = vmatprep.subr.bf16.mxu0 0
        %2018 = vmatpush2.bf16.msra.mxu0 0
        %2019 = vmatprep.subr.bf16.mxu0 0
        %2020 = vmatpush2.bf16.msra.mxu0 0
        %2021 = vmatprep.subr.bf16.mxu0 0
        %2022 = vmatpush2.bf16.msra.mxu0 0
        %2023 = vmatprep.subr.bf16.mxu0 0
        %2024 = vmatpush2.bf16.msra.mxu0 0
        %2025 = vmatprep.subr.bf16.mxu0 0
        %2026 = vmatpush2.bf16.msra.mxu0 0
        %2027 = vmatprep.subr.bf16.mxu0 %v1954
        %2028 = vmatpush2.bf16.msra.mxu0 %v1951
        %2029 = vmatprep.subr.bf16.mxu0 %v1898
        %2030 = vmatpush2.bf16.msra.mxu0 %v1897
        %2031 = vmatprep.mubr.bf16.mxu0 %v1941
        %2032 = vmatmul.mubr.bf16.gmra.mxu0 %v1746
        %v2033 = vpop.f32.mrf.mxu0
        %v2034 = vadd.f32 0.0, %v2033
        %v2035 = vpop.f32.mrf.mxu0
        %v2036 = vadd.f32 0.0, %v2035
        %v2037 = vpop.f32.mrf.mxu0
        %v2038 = vadd.f32 0.0, %v2037
        %v2039 = vpop.f32.mrf.mxu0
        %v2040 = vadd.f32 0.0, %v2039
        %2041 = vdwg.mxu0
        %v2042 = vmax.f32 %v1991, %v1993
        %v2043 = vmax.f32 %v1995, %v1997
        %v2044 = vmax.f32 %v2042, %v2034
        %v2045 = vmax.f32 %v2043, %v2038
        %v2046 = vmax.f32 %v2044, %v2036
        %v2047 = vmax.f32 %v2045, %v2040
        %v2048 = vld [vmem:[%s3] sm:$0xff]
        %v2049 = vld [vmem:[%s3 + $0x8] sm:$0xff]
        %2051 = vset.pattern.permute.xlu0 0
        %2052 = vperm.xlu0 %2051, %v2048
        %v2053 = vpop.permute.xlu0 %2052
        %2056 = vset.pattern.permute.xlu0 0
        %2057 = vperm.xlu0 %2056, %v2049
        %v2058 = vpop.permute.xlu0 %2057
        %v2060 = vadd.f32 %v2046, %v2053
        %v2061 = vadd.f32 %v2047, %v2058
        %v2062 = vmax.f32 %v2060, 0.0
        %v2063 = vmax.f32 %v2061, 0.0
        %2064 = vst [vmem:[%s316] sm:$0xff] %v2062
        %2065 = vst [vmem:[%s316 + $0x8] sm:$0xff] %v2063
        %s2066 = sand.u32 %s119, 1
        %s2067 = sand.u32 %s119, 1
        %s2068 = smul.addr %s2067, 16
        %s2069 = scalar_lea.vmem [#allocation6], %s2068
        // Predicated region
        $region119: #{net_forward.4} parent=109 // pred_check
          %p2070 = pneg %p129
        $region120: #{net_forward.4} parent=109 // pred_check_branch
          %2072 = sbr.rel (%p2070) target = $region122
        $region121: #{net_forward.4} parent=109 // pred_region
          %s2073 = smul.addr %s15, 8
          %s2074 = scalar_lea.vmem %s4, %s2073
          // Predicated region
          $region123: #{net_forward.4} parent=121 // pred_check
            _
          $region124: #{net_forward.4} parent=121 // pred_check_branch
            %2076 = sbr.rel (0) target = $region126
          $region125: #{net_forward.4} parent=121 // pred_region
            // Predicated region
            $region127: #{net_forward.4} parent=125 // pred_check
              _
            $region128: #{net_forward.4} parent=125 // pred_check_branch
              %2078 = sbr.rel (0) target = $region130
            $region129: #{net_forward.4} parent=125 // pred_region
              // Predicated region
              $region142: #{net_forward.4} parent=129 // pred_check
                _
              $region143: #{net_forward.4} parent=129 // pred_check_branch
                %2096 = sbr.rel (0) target = $region145
              $region144: #{net_forward.4} parent=129 // pred_region
                loop: start=0, step=1, limit=1
                $region146: #{net_forward.4} parent=144 // loop_pre_header
                  _
                $region147: #{net_forward.4} parent=144 // loop_header
                  %s2098 = sphi 0, %s2102
                  %p2099 = scmp.ge.s32.totalorder %s2098, 1
                  %s2103 = sphi %s2069, %s2069
                  %s2104 = sphi %s2074, %s2074
                $region148: #{net_forward.4} parent=144 // loop_header_branch
                  %2101 = sbr.rel (%p2099) target = $region152
                $region149: #{net_forward.4} parent=144 // loop_body
                  %v2105 = vld [vmem:[%s2103] sm:$0xff]
                  %2106 = vst [vmem:[%s2104] sm:$0xff] %v2105
                  %v2107 = vld [vmem:[%s2103 + $0x8] sm:$0xff]
                  %2108 = vst [vmem:[%s2104 + $0x10] sm:$0xff] %v2107
                $region150: #{net_forward.4} parent=144 // loop_footer
                  %s2102 = sadd.s32 1, %s2098
                $region151: #{net_forward.4} parent=144 // loop_footer_branch
                  %2097 = sbr.rel target = $region147
                $region152: #{net_forward.4} parent=144 // loop_exit
                  _
              $region145: #{net_forward.4} parent=129 // pred_fallthru
                _
              // Predicated region
              $region153: #{net_forward.4} parent=129 // pred_check
                _
              $region154: #{net_forward.4} parent=129 // pred_check_branch
                %2110 = sbr.rel target = $region156
              $region155: #{net_forward.4} parent=129 // pred_region
                _
              $region156: #{net_forward.4} parent=129 // pred_fallthru
                _
            $region130: #{net_forward.4} parent=125 // pred_fallthru
              _
            // Predicated region
            $region131: #{net_forward.4} parent=125 // pred_check
              _
            $region132: #{net_forward.4} parent=125 // pred_check_branch
              %2080 = sbr.rel target = $region134
            $region133: #{net_forward.4} parent=125 // pred_region
              %s2082 = ssub.s32 256, 1
              loop: start=0, step=1, limit=1
              $region135: #{net_forward.4} parent=133 // loop_pre_header
                _
              $region136: #{net_forward.4} parent=133 // loop_header
                %s2084 = sphi 0, %s2088
                %p2085 = scmp.ge.s32.totalorder %s2084, 1
                %s2089 = sphi %s2069, %s2069
                %s2090 = sphi %s2074, %s2074
              $region137: #{net_forward.4} parent=133 // loop_header_branch
                %2087 = sbr.rel (%p2085) target = $region141
              $region138: #{net_forward.4} parent=133 // loop_body
                %v2091 = vld [vmem:[%s2089] sm:%s2082]
                %2092 = vst [vmem:[%s2090] sm:%s2082] %v2091
                %v2093 = vld [vmem:[%s2089 + $0x8] sm:%s2082]
                %2094 = vst [vmem:[%s2090 + $0x10] sm:%s2082] %v2093
              $region139: #{net_forward.4} parent=133 // loop_footer
                %s2088 = sadd.s32 1, %s2084
              $region140: #{net_forward.4} parent=133 // loop_footer_branch
                %2083 = sbr.rel target = $region136
              $region141: #{net_forward.4} parent=133 // loop_exit
                _
            $region134: #{net_forward.4} parent=125 // pred_fallthru
              _
          $region126: #{net_forward.4} parent=121 // pred_fallthru
            _
          %2111 = vnop
        $region122: #{net_forward.4} parent=109 // pred_fallthru
          _
      $region110: #{net_forward.4} parent=5 // pred_fallthru
        _
      %p2112 = scmp.le.s32.totalorder 2, %s10
      // Predicated region
      $region157: #{net_forward.4} parent=5 // pred_check
        %p2113 = pneg %p2112
      $region158: #{net_forward.4} parent=5 // pred_check_branch
        %2115 = sbr.rel (%p2113) target = $region160
      $region159: #{net_forward.4} parent=5 // pred_region
        %s2116 = ssub.s32 %s10, 2
        // Predicated region
        $region161: #{net_forward.4} parent=159 // pred_check
          %p2117 = pneg %p135
        $region162: #{net_forward.4} parent=159 // pred_check_branch
          %2119 = sbr.rel (%p2117) target = $region164
        $region163: #{net_forward.4} parent=159 // pred_region
          %s2120 = sand.u32 %s120, 1
          %s2121 = sand.u32 %s120, 1
          %s2122 = smul.addr %s2121, 16
          %s2123 = scalar_lea.vmem [#allocation6], %s2122
        $region164: #{net_forward.4} parent=159 // pred_fallthru
          _
      $region160: #{net_forward.4} parent=5 // pred_fallthru
        _
    $region6: #{net_forward.4} parent=1 // loop_footer
      %s14 = sadd.s32 1, %s10
    $region7: #{net_forward.4} parent=1 // loop_footer_branch
      %9 = sbr.rel target = $region3
    $region8: #{net_forward.4} parent=1 // loop_exit
      _

</llo_original>
